<compile_context>
chip_gen: v7x
topology: tpu7x:2x2x1
jax: 0.10.0
libtpu: 0.0.40
codegen_flags: <defaults>
</compile_context>

<pallas_src>
import functools
import math

import jax
import jax.numpy as jnp
from jax.experimental import pallas as pl
from jax.experimental.pallas import tpu as pltpu

_VMEM_LIMIT = 32 * 1024 * 1024
_LAYER_CFG = ((64, 3, 1), (128, 4, 2), (256, 6, 2), (512, 3, 2))


def _pick_tn(cout):
    if cout % 256 == 0:
        return 256
    if cout % 128 == 0:
        return 128
    return cout


# --------------------------- fused conv kernel -------------------------------
#
# xs   : (n_phases, m_rows, cin)  bf16  -- flattened (phase-split) padded input,
#                                          resident in VMEM for the whole call
# w    : (n_taps, cin, cout)      bf16  -- BN scale already folded in
# shift: (1, cout)                f32   -- folded BN shift
# res  : (mker, cout)             bf16  -- optional fused residual
# out  : (mker, cout)             bf16
#
# grid = (cout // tn,); each step computes the full-M slab for one cout tile by
# accumulating one bf16 matmul per tap (static unroll) in f32.

@functools.lru_cache(maxsize=None)
def _conv_call(n_phases, m_rows, cin, cout, tn, taps, mker, has_res, relu):
    n_taps = len(taps)
    use_scratch = n_taps > 1

    def kernel(*refs):
        if use_scratch:
            refs, acc_ref = refs[:-1], refs[-1]
        xs_ref, w_ref, shift_ref = refs[0], refs[1], refs[2]
        res_ref = refs[3] if has_res else None
        o_ref = refs[-1]

        def tap_dot(t):
            ph, off = taps[t]
            return jnp.dot(xs_ref[ph, off:off + mker, :], w_ref[t],
                           preferred_element_type=jnp.float32)

        if use_scratch:
            acc_ref[...] = tap_dot(0)
            for t in range(1, n_taps):
                acc_ref[...] += tap_dot(t)
            acc = acc_ref[...]
        else:
            acc = tap_dot(0)

        y = acc + shift_ref[...]
        if has_res:
            y = y + res_ref[...].astype(jnp.float32)
        if relu:
            y = jnp.maximum(y, 0.0)
        o_ref[...] = y.astype(o_ref.dtype)

    in_specs = [
        pl.BlockSpec((n_phases, m_rows, cin), lambda j: (0, 0, 0)),  # resident
        pl.BlockSpec((n_taps, cin, tn), lambda j: (0, 0, j)),
        pl.BlockSpec((1, tn), lambda j: (0, j)),
    ]
    if has_res:
        in_specs.append(pl.BlockSpec((mker, tn), lambda j: (0, j)))

    scratch = [pltpu.VMEM((mker, tn), jnp.float32)] if use_scratch else []

    return pl.pallas_call(
        kernel,
        out_shape=jax.ShapeDtypeStruct((mker, cout), jnp.bfloat16),
        grid=(cout // tn,),
        in_specs=in_specs,
        out_specs=pl.BlockSpec((mker, tn), lambda j: (0, j)),
        scratch_shapes=scratch,
        compiler_params=pltpu.CompilerParams(
            dimension_semantics=("parallel",),
            vmem_limit_bytes=_VMEM_LIMIT),
    )


# --------------------------- conv wrapper -------------------------------------

def conv_bn_act(x, p, stride, pad, relu, residual=None):
    """Fused conv + folded-BN shift (+ residual) (+ ReLU).  x: (N,H,W,Cin) bf16."""
    kh, kw, cin, cout = p['w'].shape
    n, h, w, _ = x.shape
    ho = (h + 2 * pad - kh) // stride + 1
    wo = (w + 2 * pad - kw) // stride + 1

    if kh == 1 and kw == 1:
        xin = x if stride == 1 else x[:, ::stride, ::stride, :]
        hc, wc = ho, wo
        xs = xin.reshape(1, n * hc * wc, cin)
        taps = ((0, 0),)
        max_off = 0
    else:
        xp = jnp.pad(x, ((0, 0), (pad, pad), (pad, pad), (0, 0)))
        hp, wp = h + 2 * pad, w + 2 * pad
        if stride == 1:
            hc, wc = hp, wp
            xs = xp.reshape(1, n * hc * wc, cin)
            taps = tuple((0, dy * wc + dx)
                         for dy in range(kh) for dx in range(kw))
        else:
            # split into stride-phases so every tap is a contiguous row window
            pady, padx = (-hp) % stride, (-wp) % stride
            if pady or padx:
                xp = jnp.pad(xp, ((0, 0), (0, pady), (0, padx), (0, 0)))
            hp += pady
            wp += padx
            hc, wc = hp // stride, wp // stride
            xs = jnp.stack([xp[:, py::stride, px::stride, :]
                            for py in range(stride) for px in range(stride)],
                           axis=0)
            xs = xs.reshape(stride * stride, n * hc * wc, cin)
            taps = tuple(((dy % stride) * stride + (dx % stride),
                          (dy // stride) * wc + (dx // stride))
                         for dy in range(kh) for dx in range(kw))
        max_off = max(off for _, off in taps)
        if max_off:
            xs = jnp.pad(xs, ((0, 0), (0, max_off), (0, 0)))

    mker = n * hc * wc
    m_rows = mker + max_off
    tn = _pick_tn(cout)
    wm = p['w'].reshape(kh * kw, cin, cout)
    shift = p['shift'].reshape(1, cout)

    args = [xs, wm, shift]
    has_res = residual is not None
    if has_res:
        # residual fusion is only used on 1x1 / stride-1 convs (no garbage rows)
        args.append(residual.reshape(mker, cout))

    out = _conv_call(xs.shape[0], m_rows, cin, cout, tn, taps, mker,
                     has_res, relu)(*args)
    return out.reshape(n, hc, wc, cout)[:, :ho, :wo, :]


def stem_conv_bn_relu(x, p):
    """7x7/s2/p3 stem conv via (tiny) im2col with K padded 147 -> 256."""
    kh, kw, cin, cout = p['w'].shape
    n, h, w, _ = x.shape
    stride, pad = 2, 3
    ho = (h + 2 * pad - kh) // stride + 1
    wo = (w + 2 * pad - kw) // stride + 1
    xp = jnp.pad(x, ((0, 0), (pad, pad), (pad, pad), (0, 0)))
    cols = []
    for dy in range(kh):
        for dx in range(kw):
            cols.append(jax.lax.slice(
                xp, (0, dy, dx, 0),
                (n, dy + (ho - 1) * stride + 1, dx + (wo - 1) * stride + 1, cin),
                (1, stride, stride, 1)))
    k = kh * kw * cin
    patches = jnp.stack(cols, axis=3).reshape(n * ho * wo, k)
    kp = pl.cdiv(k, 128) * 128
    patches = jnp.pad(patches, ((0, 0), (0, kp - k)))
    wmat = jnp.pad(p['w'].reshape(k, cout), ((0, kp - k), (0, 0)))
    mker = n * ho * wo
    call = _conv_call(1, mker, kp, cout, _pick_tn(cout), ((0, 0),), mker,
                      False, True)
    out = call(patches[None], wmat[None], p['shift'].reshape(1, cout))
    return out.reshape(n, ho, wo, cout)


# --------------------------- max pool & global avg pool -----------------------

@functools.lru_cache(maxsize=None)
def _maxpool_call(n_phases, m_rows, c, mker, taps):
    def kernel(xs_ref, o_ref):
        ph0, off0 = taps[0]
        r = xs_ref[ph0, off0:off0 + mker, :]
        for ph, off in taps[1:]:
            r = jnp.maximum(r, xs_ref[ph, off:off + mker, :])
        o_ref[...] = r

    return pl.pallas_call(
        kernel,
        out_shape=jax.ShapeDtypeStruct((mker, c), jnp.bfloat16),
        grid=(1,),
        in_specs=[pl.BlockSpec((n_phases, m_rows, c), lambda i: (0, 0, 0))],
        out_specs=pl.BlockSpec((mker, c), lambda i: (0, 0)),
        compiler_params=pltpu.CompilerParams(vmem_limit_bytes=_VMEM_LIMIT),
    )


def maxpool3x3_s2(x):
    n, h, w, c = x.shape
    k, stride, pad = 3, 2, 1
    ho = (h + 2 * pad - k) // stride + 1
    wo = (w + 2 * pad - k) // stride + 1
    neg = -1e30
    xp = jnp.pad(x, ((0, 0), (pad, pad), (pad, pad), (0, 0)), constant_values=neg)
    hp, wp = h + 2 * pad, w + 2 * pad
    pady, padx = (-hp) % stride, (-wp) % stride
    if pady or padx:
        xp = jnp.pad(xp, ((0, 0), (0, pady), (0, padx), (0, 0)),
                     constant_values=neg)
    hp += pady
    wp += padx
    hc, wc = hp // stride, wp // stride
    xs = jnp.stack([xp[:, py::stride, px::stride, :]
                    for py in range(stride) for px in range(stride)], axis=0)
    mker = n * hc * wc
    xs = xs.reshape(stride * stride, mker, c)
    taps = tuple(((dy % stride) * stride + (dx % stride),
                  (dy // stride) * wc + (dx // stride))
                 for dy in range(k) for dx in range(k))
    max_off = max(off for _, off in taps)
    if max_off:
        xs = jnp.pad(xs, ((0, 0), (0, max_off), (0, 0)), constant_values=neg)
    out = _maxpool_call(stride * stride, mker + max_off, c, mker, taps)(xs)
    return out.reshape(n, hc, wc, c)[:, :ho, :wo, :]


@functools.lru_cache(maxsize=None)
def _avgpool_call(n, hw, c):
    def kernel(x_ref, o_ref):
        o_ref[...] = jnp.mean(x_ref[...].astype(jnp.float32), axis=1)

    return pl.pallas_call(
        kernel,
        out_shape=jax.ShapeDtypeStruct((n, c), jnp.float32),
        grid=(1,),
        in_specs=[pl.BlockSpec((n, hw, c), lambda i: (0, 0, 0))],
        out_specs=pl.BlockSpec((n, c), lambda i: (0, 0)),
        compiler_params=pltpu.CompilerParams(vmem_limit_bytes=_VMEM_LIMIT),
    )


def global_avgpool(x):
    # AdaptiveAvgPool2d((1,1)) + flatten(1)
    n, h, w, c = x.shape
    return _avgpool_call(n, h * w, c)(x.reshape(n, h * w, c))


# --------------------------- bottleneck & network -----------------------------

def bottleneck_forward(x, p, stride):
    identity = x
    if 'downsample' in p:
        identity = conv_bn_act(x, p['downsample'], stride=stride, pad=0, relu=False)
    out = conv_bn_act(x, p['conv1'], stride=1, pad=0, relu=True)
    out = conv_bn_act(out, p['conv2'], stride=stride, pad=1, relu=True)
    # conv3: BN shift + residual add + ReLU fused into the matmul epilogue
    out = conv_bn_act(out, p['conv3'], stride=1, pad=0, relu=True,
                      residual=identity)
    return out


@jax.jit
def _stem_and_pool(p_conv1, x_nchw):
    x = jnp.transpose(x_nchw, (0, 2, 3, 1)).astype(jnp.bfloat16)   # NCHW -> NHWC
    x = stem_conv_bn_relu(x, p_conv1)
    return maxpool3x3_s2(x)


_block_fwd = jax.jit(bottleneck_forward, static_argnums=(2,))


@jax.jit
def _avgpool_head(x):
    return global_avgpool(x)


def resnet_forward(params, x_nchw):
    x = _stem_and_pool(params['conv1'], x_nchw)
    for li, (_planes, _nblocks, lstride) in enumerate(_LAYER_CFG):
        for bi, bp in enumerate(params[f'layer{li + 1}']):
            x = _block_fwd(x, bp, lstride if bi == 0 else 1)
    return _avgpool_head(x)   # (N, 2048) f32 features


# --------------------------- parameters (deterministic, synthetic) ------------

def _conv_bn_params(key, kh, kw, cin, cout):
    kconv, kg, kb, km, kv = jax.random.split(key, 5)
    fan_in = kh * kw * cin
    w = jax.random.normal(kconv, (kh, kw, cin, cout), jnp.float32) * math.sqrt(2.0 / fan_in)
    gamma = 1.0 + 0.1 * jax.random.normal(kg, (cout,), jnp.float32)
    beta = 0.1 * jax.random.normal(kb, (cout,), jnp.float32)
    mean = 0.1 * jax.random.normal(km, (cout,), jnp.float32)
    var = 0.9 + 0.2 * jax.random.uniform(kv, (cout,), jnp.float32)
    scale = gamma / jnp.sqrt(var + 1e-5)
    shift = beta - mean * scale
    # BN scale folded into the conv weights; weights stored as bf16 MXU operands.
    return {'w': (w * scale).astype(jnp.bfloat16), 'shift': shift}


def _bottleneck_params(key, inplanes, planes, downsample):
    keys = jax.random.split(key, 4)
    p = {'conv1': _conv_bn_params(keys[0], 1, 1, inplanes, planes),
         'conv2': _conv_bn_params(keys[1], 3, 3, planes, planes),
         'conv3': _conv_bn_params(keys[2], 1, 1, planes, planes * 4)}
    if downsample:
        p['downsample'] = _conv_bn_params(keys[3], 1, 1, inplanes, planes * 4)
    return p


def make_resnet50_params(key):
    keys = jax.random.split(key, 5)
    params = {'conv1': _conv_bn_params(keys[0], 7, 7, 3, 64)}
    inplanes = 64
    for li, (planes, nblocks, _stride) in enumerate(_LAYER_CFG):
        bkeys = jax.random.split(keys[li + 1], nblocks)
        blocks = []
        for bi in range(nblocks):
            blocks.append(_bottleneck_params(bkeys[bi], inplanes, planes, bi == 0))
            inplanes = planes * 4
        params[f'layer{li + 1}'] = blocks
    return params


# --------------------------- main ---------------------------------------------

if __name__ == "__main__":
    key = jax.random.PRNGKey(0)
    pkey, xkey = jax.random.split(key)
    params = make_resnet50_params(pkey)
    # small-but-consistent input: batch=2, 3 channels, 64x64 spatial
    x = jax.random.normal(xkey, (2, 3, 64, 64), jnp.float32)

    feats = resnet_forward(params, x)
    feats = jax.block_until_ready(feats)

    assert feats.shape == (2, 2048), feats.shape
    assert bool(jnp.all(jnp.isfinite(feats)))
    print("KERNEL_OK")
</pallas_src>

<mosaic_0001>
module attributes {stable_mosaic.version = 11 : i64} {
  func.func @kernel(%arg0: i32, %arg1: memref<1x2048x256xbf16, #tpu.memory_space<vmem>>, %arg2: memref<1x256x64xbf16, #tpu.memory_space<vmem>>, %arg3: memref<1x64xf32, #tpu.memory_space<vmem>>, %arg4: memref<2048x64xbf16, #tpu.memory_space<vmem>>) attributes {dimension_semantics = [#tpu.dimension_semantics<parallel>], iteration_bounds = array<i64: 1>, scalar_prefetch = 0 : i64, scratch_operands = 0 : i64, tpu.core_type = #tpu.core_type<tc>, window_params = [{pipeline_mode = #tpu.pipeline_mode<synchronous>, transform_indices = @transform_0, window_bounds = array<i64: 1, 2048, 256>}, {transform_indices = @transform_1, window_bounds = array<i64: 1, 256, 64>}, {transform_indices = @transform_2, window_bounds = array<i64: 1, 64>}, {transform_indices = @transform_3, window_bounds = array<i64: 2048, 64>}]} {
    %c0 = arith.constant 0 : index
    %c0_0 = arith.constant 0 : index
    %c0_1 = arith.constant 0 : index
    %0 = vector.load %arg1[%c0, %c0_0, %c0_1] : memref<1x2048x256xbf16, #tpu.memory_space<vmem>>, vector<1x2048x256xbf16>
    %1 = vector.shape_cast %0 : vector<1x2048x256xbf16> to vector<2048x256xbf16>
    %c0_2 = arith.constant 0 : index
    %c0_3 = arith.constant 0 : index
    %c0_4 = arith.constant 0 : index
    %2 = vector.load %arg2[%c0_2, %c0_3, %c0_4] : memref<1x256x64xbf16, #tpu.memory_space<vmem>>, vector<1x256x64xbf16>
    %3 = vector.shape_cast %2 : vector<1x256x64xbf16> to vector<256x64xbf16>
    %cst = arith.constant dense<0.000000e+00> : vector<2048x64xf32>
    %4 = tpu.matmul %1, %3, %cst {dimension_numbers = #tpu.dot_dimension_numbers<[1], [0], [0], [1], [0, 0, 1, 1], [], []>} : vector<2048x256xbf16>, vector<256x64xbf16>, vector<2048x64xf32> -> vector<2048x64xf32>
    %c0_5 = arith.constant 0 : index
    %c0_6 = arith.constant 0 : index
    %5 = vector.load %arg3[%c0_5, %c0_6] : memref<1x64xf32, #tpu.memory_space<vmem>>, vector<1x64xf32>
    %6 = vector.broadcast %5 : vector<1x64xf32> to vector<2048x64xf32>
    %7 = arith.addf %4, %6 : vector<2048x64xf32>
    %cst_7 = arith.constant 0.000000e+00 : f32
    %8 = vector.broadcast %cst_7 : f32 to vector<2048x64xf32>
    %9 = arith.maximumf %7, %8 : vector<2048x64xf32>
    %10 = arith.truncf %9 : vector<2048x64xf32> to vector<2048x64xbf16>
    %c0_8 = arith.constant 0 : index
    %c0_9 = arith.constant 0 : index
    %11 = vector.load %arg4[%c0_8, %c0_9] : memref<2048x64xbf16, #tpu.memory_space<vmem>>, vector<2048x64xbf16>
    tpu.vector_store %arg4[%c0_8, %c0_9], %10 {strides = array<i32>} : memref<2048x64xbf16, #tpu.memory_space<vmem>>, vector<2048x64xbf16>,
    return
  }
  func.func @transform_0(%arg0: i32) -> (i32, i32, i32) {
    %c0_i32 = arith.constant 0 : i32
    %c0_i32_0 = arith.constant 0 : i32
    %c0_i32_1 = arith.constant 0 : i32
    %c0_i32_2 = arith.constant 0 : i32
    return %c0_i32, %c0_i32_0, %c0_i32_1 : i32, i32, i32
  }
  func.func @transform_1(%arg0: i32) -> (i32, i32, i32) {
    %c0_i32 = arith.constant 0 : i32
    %c0_i32_0 = arith.constant 0 : i32
    %c0_i32_1 = arith.constant 0 : i32
    return %c0_i32, %c0_i32_0, %arg0 : i32, i32, i32
  }
  func.func @transform_2(%arg0: i32) -> (i32, i32) {
    %c0_i32 = arith.constant 0 : i32
    %c0_i32_0 = arith.constant 0 : i32
    return %c0_i32, %arg0 : i32, i32
  }
  func.func @transform_3(%arg0: i32) -> (i32, i32) {
    %c0_i32 = arith.constant 0 : i32
    %c0_i32_0 = arith.constant 0 : i32
    return %c0_i32, %arg0 : i32, i32
  }
}

module attributes {stable_mosaic.version = 11 : i64} {
  func.func @kernel(%arg0: i32, %arg1: memref<4x596x64xbf16, #tpu.memory_space<vmem>>, %arg2: memref<578x64xbf16, #tpu.memory_space<vmem>>) attributes {dimension_semantics = [#tpu.dimension_semantics<arbitrary>], iteration_bounds = array<i64: 1>, scalar_prefetch = 0 : i64, scratch_operands = 0 : i64, tpu.core_type = #tpu.core_type<tc>, window_params = [{pipeline_mode = #tpu.pipeline_mode<synchronous>, transform_indices = @transform_0, window_bounds = array<i64: 4, 596, 64>}, {pipeline_mode = #tpu.pipeline_mode<synchronous>, transform_indices = @transform_1, window_bounds = array<i64: 578, 64>}]} {
    %c0 = arith.constant 0 : index
    %c0_0 = arith.constant 0 : index
    %c0_1 = arith.constant 0 : index
    %0 = vector.load %arg1[%c0, %c0_0, %c0_1] : memref<4x596x64xbf16, #tpu.memory_space<vmem>>, vector<1x578x64xbf16>
    %1 = vector.shape_cast %0 : vector<1x578x64xbf16> to vector<578x64xbf16>
    %c1 = arith.constant 1 : index
    %c0_2 = arith.constant 0 : index
    %c0_3 = arith.constant 0 : index
    %2 = vector.load %arg1[%c1, %c0_2, %c0_3] : memref<4x596x64xbf16, #tpu.memory_space<vmem>>, vector<1x578x64xbf16>
    %3 = vector.shape_cast %2 : vector<1x578x64xbf16> to vector<578x64xbf16>
    %4 = arith.maximumf %1, %3 : vector<578x64xbf16>
    %c0_4 = arith.constant 0 : index
    %c1_5 = arith.constant 1 : index
    %c0_6 = arith.constant 0 : index
    %5 = vector.load %arg1[%c0_4, %c1_5, %c0_6] : memref<4x596x64xbf16, #tpu.memory_space<vmem>>, vector<1x578x64xbf16>
    %6 = vector.shape_cast %5 : vector<1x578x64xbf16> to vector<578x64xbf16>
    %7 = arith.maximumf %4, %6 : vector<578x64xbf16>
    %c2 = arith.constant 2 : index
    %c0_7 = arith.constant 0 : index
    %c0_8 = arith.constant 0 : index
    %8 = vector.load %arg1[%c2, %c0_7, %c0_8] : memref<4x596x64xbf16, #tpu.memory_space<vmem>>, vector<1x578x64xbf16>
    %9 = vector.shape_cast %8 : vector<1x578x64xbf16> to vector<578x64xbf16>
    %10 = arith.maximumf %7, %9 : vector<578x64xbf16>
    %c3 = arith.constant 3 : index
    %c0_9 = arith.constant 0 : index
    %c0_10 = arith.constant 0 : index
    %11 = vector.load %arg1[%c3, %c0_9, %c0_10] : memref<4x596x64xbf16, #tpu.memory_space<vmem>>, vector<1x578x64xbf16>
    %12 = vector.shape_cast %11 : vector<1x578x64xbf16> to vector<578x64xbf16>
    %13 = arith.maximumf %10, %12 : vector<578x64xbf16>
    %c2_11 = arith.constant 2 : index
    %c1_12 = arith.constant 1 : index
    %c0_13 = arith.constant 0 : index
    %14 = vector.load %arg1[%c2_11, %c1_12, %c0_13] : memref<4x596x64xbf16, #tpu.memory_space<vmem>>, vector<1x578x64xbf16>
    %15 = vector.shape_cast %14 : vector<1x578x64xbf16> to vector<578x64xbf16>
    %16 = arith.maximumf %13, %15 : vector<578x64xbf16>
    %c0_14 = arith.constant 0 : index
    %c17 = arith.constant 17 : index
    %c0_15 = arith.constant 0 : index
    %17 = vector.load %arg1[%c0_14, %c17, %c0_15] : memref<4x596x64xbf16, #tpu.memory_space<vmem>>, vector<1x578x64xbf16>
    %18 = vector.shape_cast %17 : vector<1x578x64xbf16> to vector<578x64xbf16>
    %19 = arith.maximumf %16, %18 : vector<578x64xbf16>
    %c1_16 = arith.constant 1 : index
    %c17_17 = arith.constant 17 : index
    %c0_18 = arith.constant 0 : index
    %20 = vector.load %arg1[%c1_16, %c17_17, %c0_18] : memref<4x596x64xbf16, #tpu.memory_space<vmem>>, vector<1x578x64xbf16>
    %21 = vector.shape_cast %20 : vector<1x578x64xbf16> to vector<578x64xbf16>
    %22 = arith.maximumf %19, %21 : vector<578x64xbf16>
    %c0_19 = arith.constant 0 : index
    %c18 = arith.constant 18 : index
    %c0_20 = arith.constant 0 : index
    %23 = vector.load %arg1[%c0_19, %c18, %c0_20] : memref<4x596x64xbf16, #tpu.memory_space<vmem>>, vector<1x578x64xbf16>
    %24 = vector.shape_cast %23 : vector<1x578x64xbf16> to vector<578x64xbf16>
    %25 = arith.maximumf %22, %24 : vector<578x64xbf16>
    %c0_21 = arith.constant 0 : index
    %c0_22 = arith.constant 0 : index
    %26 = vector.load %arg2[%c0_21, %c0_22] : memref<578x64xbf16, #tpu.memory_space<vmem>>, vector<578x64xbf16>
    tpu.vector_store %arg2[%c0_21, %c0_22], %25 {strides = array<i32>} : memref<578x64xbf16, #tpu.memory_space<vmem>>, vector<578x64xbf16>,
    return
  }
  func.func @transform_0(%arg0: i32) -> (i32, i32, i32) {
    %c0_i32 = arith.constant 0 : i32
    %c0_i32_0 = arith.constant 0 : i32
    %c0_i32_1 = arith.constant 0 : i32
    %c0_i32_2 = arith.constant 0 : i32
    return %c0_i32, %c0_i32_0, %c0_i32_1 : i32, i32, i32
  }
  func.func @transform_1(%arg0: i32) -> (i32, i32) {
    %c0_i32 = arith.constant 0 : i32
    %c0_i32_0 = arith.constant 0 : i32
    %c0_i32_1 = arith.constant 0 : i32
    return %c0_i32, %c0_i32_0 : i32, i32
  }
}

</mosaic_0001>

<llo_original>
// kernel: _stem_and_pool.2
$region0: #{_stem_and_pool.2}
  #allocation0 [shape = 'u32[]', space=smem, size = 0x4, offset = 0x4, fixed_abs, tag = 'smem constant byte address 0x4 - core index']
  #allocation1 [shape = 'u32[144,128]{1,0:T(1,128)}', space=vmem, size = 0x12000, scoped, tag = 'internal scratch']
  %s0 = inlined_call_operand.vmem [shape: bf16[1,2048,256], index: 0, kind: input, shape index: {}]
  %s1 = inlined_call_operand.vmem [shape: bf16[1,256,64], index: 1, kind: input, shape index: {}]
  %s2 = inlined_call_operand.vmem [shape: f32[1,64], index: 2, kind: input, shape index: {}]
  %s3 = inlined_call_operand.vmem [shape: bf16[2048,64], index: 3, kind: output, shape index: {}]
  %s4 = sld [smem:[#allocation0]]
  $region22: #{_stem_and_pool.2} parent=0
    _
  %s6 = ssub.s32 1, %s4
  %s7 = scalar_select 0, %s6, %s4
  // Predicated region
  $region2: #{_stem_and_pool.2} parent=0 // pred_check
    _
  $region3: #{_stem_and_pool.2} parent=0 // pred_check_branch
    %9 = sbr.rel (0) target = $region5
  $region4: #{_stem_and_pool.2} parent=0 // pred_region
    _
  $region5: #{_stem_and_pool.2} parent=0 // pred_fallthru
    _
  // Predicated region
  $region6: #{_stem_and_pool.2} parent=0 // pred_check
    _
  $region7: #{_stem_and_pool.2} parent=0 // pred_check_branch
    %11 = sbr.rel (0) target = $region9
  $region8: #{_stem_and_pool.2} parent=0 // pred_region
    _
  $region9: #{_stem_and_pool.2} parent=0 // pred_fallthru
    _
  // Predicated region
  $region10: #{_stem_and_pool.2} parent=0 // pred_check
    _
  $region11: #{_stem_and_pool.2} parent=0 // pred_check_branch
    %13 = sbr.rel (0) target = $region13
  $region12: #{_stem_and_pool.2} parent=0 // pred_region
    _
  $region13: #{_stem_and_pool.2} parent=0 // pred_fallthru
    _
  %v15 = vld [vmem:[%s0] sm:$0xff]
  %v16 = vld [vmem:[%s0 + $0x8] sm:$0xff]
  %v17 = vld [vmem:[%s0 + $0x10] sm:$0xff]
  %v18 = vld [vmem:[%s0 + $0x18] sm:$0xff]
  %v19 = vld [vmem:[%s0 + $0x20] sm:$0xff]
  %v20 = vld [vmem:[%s0 + $0x28] sm:$0xff]
  %v21 = vld [vmem:[%s0 + $0x30] sm:$0xff]
  %v22 = vld [vmem:[%s0 + $0x38] sm:$0xff]
  %v23 = vld [vmem:[%s0 + $0x40] sm:$0xff]
  %v24 = vld [vmem:[%s0 + $0x48] sm:$0xff]
  %v25 = vld [vmem:[%s0 + $0x50] sm:$0xff]
  %v26 = vld [vmem:[%s0 + $0x58] sm:$0xff]
  %v27 = vld [vmem:[%s0 + $0x60] sm:$0xff]
  %v28 = vld [vmem:[%s0 + $0x68] sm:$0xff]
  %v29 = vld [vmem:[%s0 + $0x70] sm:$0xff]
  %v30 = vld [vmem:[%s0 + $0x78] sm:$0xff]
  %v31 = vld [vmem:[%s0 + $0x80] sm:$0xff]
  %v32 = vld [vmem:[%s0 + $0x88] sm:$0xff]
  %v33 = vld [vmem:[%s0 + $0x90] sm:$0xff]
  %v34 = vld [vmem:[%s0 + $0x98] sm:$0xff]
  %v35 = vld [vmem:[%s0 + $0xa0] sm:$0xff]
  %v36 = vld [vmem:[%s0 + $0xa8] sm:$0xff]
  %v37 = vld [vmem:[%s0 + $0xb0] sm:$0xff]
  %v38 = vld [vmem:[%s0 + $0xb8] sm:$0xff]
  %v39 = vld [vmem:[%s0 + $0xc0] sm:$0xff]
  %v40 = vld [vmem:[%s0 + $0xc8] sm:$0xff]
  %v41 = vld [vmem:[%s0 + $0xd0] sm:$0xff]
  %v42 = vld [vmem:[%s0 + $0xd8] sm:$0xff]
  %v43 = vld [vmem:[%s0 + $0xe0] sm:$0xff]
  %v44 = vld [vmem:[%s0 + $0xe8] sm:$0xff]
  %v45 = vld [vmem:[%s0 + $0xf0] sm:$0xff]
  %v46 = vld [vmem:[%s0 + $0xf8] sm:$0xff]
  %v47 = vld [vmem:[%s0 + $0x100] sm:$0xff]
  %v48 = vld [vmem:[%s0 + $0x108] sm:$0xff]
  %v49 = vld [vmem:[%s0 + $0x110] sm:$0xff]
  %v50 = vld [vmem:[%s0 + $0x118] sm:$0xff]
  %v51 = vld [vmem:[%s0 + $0x120] sm:$0xff]
  %v52 = vld [vmem:[%s0 + $0x128] sm:$0xff]
  %v53 = vld [vmem:[%s0 + $0x130] sm:$0xff]
  %v54 = vld [vmem:[%s0 + $0x138] sm:$0xff]
  %v55 = vld [vmem:[%s0 + $0x140] sm:$0xff]
  %v56 = vld [vmem:[%s0 + $0x148] sm:$0xff]
  %v57 = vld [vmem:[%s0 + $0x150] sm:$0xff]
  %v58 = vld [vmem:[%s0 + $0x158] sm:$0xff]
  %v59 = vld [vmem:[%s0 + $0x160] sm:$0xff]
  %v60 = vld [vmem:[%s0 + $0x168] sm:$0xff]
  %v61 = vld [vmem:[%s0 + $0x170] sm:$0xff]
  %v62 = vld [vmem:[%s0 + $0x178] sm:$0xff]
  %v63 = vld [vmem:[%s0 + $0x180] sm:$0xff]
  %v64 = vld [vmem:[%s0 + $0x188] sm:$0xff]
  %v65 = vld [vmem:[%s0 + $0x190] sm:$0xff]
  %v66 = vld [vmem:[%s0 + $0x198] sm:$0xff]
  %v67 = vld [vmem:[%s0 + $0x1a0] sm:$0xff]
  %v68 = vld [vmem:[%s0 + $0x1a8] sm:$0xff]
  %v69 = vld [vmem:[%s0 + $0x1b0] sm:$0xff]
  %v70 = vld [vmem:[%s0 + $0x1b8] sm:$0xff]
  %v71 = vld [vmem:[%s0 + $0x1c0] sm:$0xff]
  %v72 = vld [vmem:[%s0 + $0x1c8] sm:$0xff]
  %v73 = vld [vmem:[%s0 + $0x1d0] sm:$0xff]
  %v74 = vld [vmem:[%s0 + $0x1d8] sm:$0xff]
  %v75 = vld [vmem:[%s0 + $0x1e0] sm:$0xff]
  %v76 = vld [vmem:[%s0 + $0x1e8] sm:$0xff]
  %v77 = vld [vmem:[%s0 + $0x1f0] sm:$0xff]
  %v78 = vld [vmem:[%s0 + $0x1f8] sm:$0xff]
  %v79 = vld [vmem:[%s0 + $0x200] sm:$0xff]
  %v80 = vld [vmem:[%s0 + $0x208] sm:$0xff]
  %v81 = vld [vmem:[%s0 + $0x210] sm:$0xff]
  %v82 = vld [vmem:[%s0 + $0x218] sm:$0xff]
  %v83 = vld [vmem:[%s0 + $0x220] sm:$0xff]
  %v84 = vld [vmem:[%s0 + $0x228] sm:$0xff]
  %v85 = vld [vmem:[%s0 + $0x230] sm:$0xff]
  %v86 = vld [vmem:[%s0 + $0x238] sm:$0xff]
  %v87 = vld [vmem:[%s0 + $0x240] sm:$0xff]
  %v88 = vld [vmem:[%s0 + $0x248] sm:$0xff]
  %v89 = vld [vmem:[%s0 + $0x250] sm:$0xff]
  %v90 = vld [vmem:[%s0 + $0x258] sm:$0xff]
  %v91 = vld [vmem:[%s0 + $0x260] sm:$0xff]
  %v92 = vld [vmem:[%s0 + $0x268] sm:$0xff]
  %v93 = vld [vmem:[%s0 + $0x270] sm:$0xff]
  %v94 = vld [vmem:[%s0 + $0x278] sm:$0xff]
  %v95 = vld [vmem:[%s0 + $0x280] sm:$0xff]
  %v96 = vld [vmem:[%s0 + $0x288] sm:$0xff]
  %v97 = vld [vmem:[%s0 + $0x290] sm:$0xff]
  %v98 = vld [vmem:[%s0 + $0x298] sm:$0xff]
  %v99 = vld [vmem:[%s0 + $0x2a0] sm:$0xff]
  %v100 = vld [vmem:[%s0 + $0x2a8] sm:$0xff]
  %v101 = vld [vmem:[%s0 + $0x2b0] sm:$0xff]
  %v102 = vld [vmem:[%s0 + $0x2b8] sm:$0xff]
  %v103 = vld [vmem:[%s0 + $0x2c0] sm:$0xff]
  %v104 = vld [vmem:[%s0 + $0x2c8] sm:$0xff]
  %v105 = vld [vmem:[%s0 + $0x2d0] sm:$0xff]
  %v106 = vld [vmem:[%s0 + $0x2d8] sm:$0xff]
  %v107 = vld [vmem:[%s0 + $0x2e0] sm:$0xff]
  %v108 = vld [vmem:[%s0 + $0x2e8] sm:$0xff]
  %v109 = vld [vmem:[%s0 + $0x2f0] sm:$0xff]
  %v110 = vld [vmem:[%s0 + $0x2f8] sm:$0xff]
  %v111 = vld [vmem:[%s0 + $0x300] sm:$0xff]
  %v112 = vld [vmem:[%s0 + $0x308] sm:$0xff]
  %v113 = vld [vmem:[%s0 + $0x310] sm:$0xff]
  %v114 = vld [vmem:[%s0 + $0x318] sm:$0xff]
  %v115 = vld [vmem:[%s0 + $0x320] sm:$0xff]
  %v116 = vld [vmem:[%s0 + $0x328] sm:$0xff]
  %v117 = vld [vmem:[%s0 + $0x330] sm:$0xff]
  %v118 = vld [vmem:[%s0 + $0x338] sm:$0xff]
  %v119 = vld [vmem:[%s0 + $0x340] sm:$0xff]
  %v120 = vld [vmem:[%s0 + $0x348] sm:$0xff]
  %v121 = vld [vmem:[%s0 + $0x350] sm:$0xff]
  %v122 = vld [vmem:[%s0 + $0x358] sm:$0xff]
  %v123 = vld [vmem:[%s0 + $0x360] sm:$0xff]
  %v124 = vld [vmem:[%s0 + $0x368] sm:$0xff]
  %v125 = vld [vmem:[%s0 + $0x370] sm:$0xff]
  %v126 = vld [vmem:[%s0 + $0x378] sm:$0xff]
  %v127 = vld [vmem:[%s0 + $0x380] sm:$0xff]
  %v128 = vld [vmem:[%s0 + $0x388] sm:$0xff]
  %v129 = vld [vmem:[%s0 + $0x390] sm:$0xff]
  %v130 = vld [vmem:[%s0 + $0x398] sm:$0xff]
  %v131 = vld [vmem:[%s0 + $0x3a0] sm:$0xff]
  %v132 = vld [vmem:[%s0 + $0x3a8] sm:$0xff]
  %v133 = vld [vmem:[%s0 + $0x3b0] sm:$0xff]
  %v134 = vld [vmem:[%s0 + $0x3b8] sm:$0xff]
  %v135 = vld [vmem:[%s0 + $0x3c0] sm:$0xff]
  %v136 = vld [vmem:[%s0 + $0x3c8] sm:$0xff]
  %v137 = vld [vmem:[%s0 + $0x3d0] sm:$0xff]
  %v138 = vld [vmem:[%s0 + $0x3d8] sm:$0xff]
  %v139 = vld [vmem:[%s0 + $0x3e0] sm:$0xff]
  %v140 = vld [vmem:[%s0 + $0x3e8] sm:$0xff]
  %v141 = vld [vmem:[%s0 + $0x3f0] sm:$0xff]
  %v142 = vld [vmem:[%s0 + $0x3f8] sm:$0xff]
  %v143 = vld [vmem:[%s0 + $0x400] sm:$0xff]
  %v144 = vld [vmem:[%s0 + $0x408] sm:$0xff]
  %v145 = vld [vmem:[%s0 + $0x410] sm:$0xff]
  %v146 = vld [vmem:[%s0 + $0x418] sm:$0xff]
  %v147 = vld [vmem:[%s0 + $0x420] sm:$0xff]
  %v148 = vld [vmem:[%s0 + $0x428] sm:$0xff]
  %v149 = vld [vmem:[%s0 + $0x430] sm:$0xff]
  %v150 = vld [vmem:[%s0 + $0x438] sm:$0xff]
  %v151 = vld [vmem:[%s0 + $0x440] sm:$0xff]
  %v152 = vld [vmem:[%s0 + $0x448] sm:$0xff]
  %v153 = vld [vmem:[%s0 + $0x450] sm:$0xff]
  %v154 = vld [vmem:[%s0 + $0x458] sm:$0xff]
  %v155 = vld [vmem:[%s0 + $0x460] sm:$0xff]
  %v156 = vld [vmem:[%s0 + $0x468] sm:$0xff]
  %v157 = vld [vmem:[%s0 + $0x470] sm:$0xff]
  %v158 = vld [vmem:[%s0 + $0x478] sm:$0xff]
  %v159 = vld [vmem:[%s0 + $0x480] sm:$0xff]
  %v160 = vld [vmem:[%s0 + $0x488] sm:$0xff]
  %v161 = vld [vmem:[%s0 + $0x490] sm:$0xff]
  %v162 = vld [vmem:[%s0 + $0x498] sm:$0xff]
  %v163 = vld [vmem:[%s0 + $0x4a0] sm:$0xff]
  %v164 = vld [vmem:[%s0 + $0x4a8] sm:$0xff]
  %v165 = vld [vmem:[%s0 + $0x4b0] sm:$0xff]
  %v166 = vld [vmem:[%s0 + $0x4b8] sm:$0xff]
  %v167 = vld [vmem:[%s0 + $0x4c0] sm:$0xff]
  %v168 = vld [vmem:[%s0 + $0x4c8] sm:$0xff]
  %v169 = vld [vmem:[%s0 + $0x4d0] sm:$0xff]
  %v170 = vld [vmem:[%s0 + $0x4d8] sm:$0xff]
  %v171 = vld [vmem:[%s0 + $0x4e0] sm:$0xff]
  %v172 = vld [vmem:[%s0 + $0x4e8] sm:$0xff]
  %v173 = vld [vmem:[%s0 + $0x4f0] sm:$0xff]
  %v174 = vld [vmem:[%s0 + $0x4f8] sm:$0xff]
  %v175 = vld [vmem:[%s0 + $0x500] sm:$0xff]
  %v176 = vld [vmem:[%s0 + $0x508] sm:$0xff]
  %v177 = vld [vmem:[%s0 + $0x510] sm:$0xff]
  %v178 = vld [vmem:[%s0 + $0x518] sm:$0xff]
  %v179 = vld [vmem:[%s0 + $0x520] sm:$0xff]
  %v180 = vld [vmem:[%s0 + $0x528] sm:$0xff]
  %v181 = vld [vmem:[%s0 + $0x530] sm:$0xff]
  %v182 = vld [vmem:[%s0 + $0x538] sm:$0xff]
  %v183 = vld [vmem:[%s0 + $0x540] sm:$0xff]
  %v184 = vld [vmem:[%s0 + $0x548] sm:$0xff]
  %v185 = vld [vmem:[%s0 + $0x550] sm:$0xff]
  %v186 = vld [vmem:[%s0 + $0x558] sm:$0xff]
  %v187 = vld [vmem:[%s0 + $0x560] sm:$0xff]
  %v188 = vld [vmem:[%s0 + $0x568] sm:$0xff]
  %v189 = vld [vmem:[%s0 + $0x570] sm:$0xff]
  %v190 = vld [vmem:[%s0 + $0x578] sm:$0xff]
  %v191 = vld [vmem:[%s0 + $0x580] sm:$0xff]
  %v192 = vld [vmem:[%s0 + $0x588] sm:$0xff]
  %v193 = vld [vmem:[%s0 + $0x590] sm:$0xff]
  %v194 = vld [vmem:[%s0 + $0x598] sm:$0xff]
  %v195 = vld [vmem:[%s0 + $0x5a0] sm:$0xff]
  %v196 = vld [vmem:[%s0 + $0x5a8] sm:$0xff]
  %v197 = vld [vmem:[%s0 + $0x5b0] sm:$0xff]
  %v198 = vld [vmem:[%s0 + $0x5b8] sm:$0xff]
  %v199 = vld [vmem:[%s0 + $0x5c0] sm:$0xff]
  %v200 = vld [vmem:[%s0 + $0x5c8] sm:$0xff]
  %v201 = vld [vmem:[%s0 + $0x5d0] sm:$0xff]
  %v202 = vld [vmem:[%s0 + $0x5d8] sm:$0xff]
  %v203 = vld [vmem:[%s0 + $0x5e0] sm:$0xff]
  %v204 = vld [vmem:[%s0 + $0x5e8] sm:$0xff]
  %v205 = vld [vmem:[%s0 + $0x5f0] sm:$0xff]
  %v206 = vld [vmem:[%s0 + $0x5f8] sm:$0xff]
  %v207 = vld [vmem:[%s0 + $0x600] sm:$0xff]
  %v208 = vld [vmem:[%s0 + $0x608] sm:$0xff]
  %v209 = vld [vmem:[%s0 + $0x610] sm:$0xff]
  %v210 = vld [vmem:[%s0 + $0x618] sm:$0xff]
  %v211 = vld [vmem:[%s0 + $0x620] sm:$0xff]
  %v212 = vld [vmem:[%s0 + $0x628] sm:$0xff]
  %v213 = vld [vmem:[%s0 + $0x630] sm:$0xff]
  %v214 = vld [vmem:[%s0 + $0x638] sm:$0xff]
  %v215 = vld [vmem:[%s0 + $0x640] sm:$0xff]
  %v216 = vld [vmem:[%s0 + $0x648] sm:$0xff]
  %v217 = vld [vmem:[%s0 + $0x650] sm:$0xff]
  %v218 = vld [vmem:[%s0 + $0x658] sm:$0xff]
  %v219 = vld [vmem:[%s0 + $0x660] sm:$0xff]
  %v220 = vld [vmem:[%s0 + $0x668] sm:$0xff]
  %v221 = vld [vmem:[%s0 + $0x670] sm:$0xff]
  %v222 = vld [vmem:[%s0 + $0x678] sm:$0xff]
  %v223 = vld [vmem:[%s0 + $0x680] sm:$0xff]
  %v224 = vld [vmem:[%s0 + $0x688] sm:$0xff]
  %v225 = vld [vmem:[%s0 + $0x690] sm:$0xff]
  %v226 = vld [vmem:[%s0 + $0x698] sm:$0xff]
  %v227 = vld [vmem:[%s0 + $0x6a0] sm:$0xff]
  %v228 = vld [vmem:[%s0 + $0x6a8] sm:$0xff]
  %v229 = vld [vmem:[%s0 + $0x6b0] sm:$0xff]
  %v230 = vld [vmem:[%s0 + $0x6b8] sm:$0xff]
  %v231 = vld [vmem:[%s0 + $0x6c0] sm:$0xff]
  %v232 = vld [vmem:[%s0 + $0x6c8] sm:$0xff]
  %v233 = vld [vmem:[%s0 + $0x6d0] sm:$0xff]
  %v234 = vld [vmem:[%s0 + $0x6d8] sm:$0xff]
  %v235 = vld [vmem:[%s0 + $0x6e0] sm:$0xff]
  %v236 = vld [vmem:[%s0 + $0x6e8] sm:$0xff]
  %v237 = vld [vmem:[%s0 + $0x6f0] sm:$0xff]
  %v238 = vld [vmem:[%s0 + $0x6f8] sm:$0xff]
  %v239 = vld [vmem:[%s0 + $0x700] sm:$0xff]
  %v240 = vld [vmem:[%s0 + $0x708] sm:$0xff]
  %v241 = vld [vmem:[%s0 + $0x710] sm:$0xff]
  %v242 = vld [vmem:[%s0 + $0x718] sm:$0xff]
  %v243 = vld [vmem:[%s0 + $0x720] sm:$0xff]
  %v244 = vld [vmem:[%s0 + $0x728] sm:$0xff]
  %v245 = vld [vmem:[%s0 + $0x730] sm:$0xff]
  %v246 = vld [vmem:[%s0 + $0x738] sm:$0xff]
  %v247 = vld [vmem:[%s0 + $0x740] sm:$0xff]
  %v248 = vld [vmem:[%s0 + $0x748] sm:$0xff]
  %v249 = vld [vmem:[%s0 + $0x750] sm:$0xff]
  %v250 = vld [vmem:[%s0 + $0x758] sm:$0xff]
  %v251 = vld [vmem:[%s0 + $0x760] sm:$0xff]
  %v252 = vld [vmem:[%s0 + $0x768] sm:$0xff]
  %v253 = vld [vmem:[%s0 + $0x770] sm:$0xff]
  %v254 = vld [vmem:[%s0 + $0x778] sm:$0xff]
  %v255 = vld [vmem:[%s0 + $0x780] sm:$0xff]
  %v256 = vld [vmem:[%s0 + $0x788] sm:$0xff]
  %v257 = vld [vmem:[%s0 + $0x790] sm:$0xff]
  %v258 = vld [vmem:[%s0 + $0x798] sm:$0xff]
  %v259 = vld [vmem:[%s0 + $0x7a0] sm:$0xff]
  %v260 = vld [vmem:[%s0 + $0x7a8] sm:$0xff]
  %v261 = vld [vmem:[%s0 + $0x7b0] sm:$0xff]
  %v262 = vld [vmem:[%s0 + $0x7b8] sm:$0xff]
  %v263 = vld [vmem:[%s0 + $0x7c0] sm:$0xff]
  %v264 = vld [vmem:[%s0 + $0x7c8] sm:$0xff]
  %v265 = vld [vmem:[%s0 + $0x7d0] sm:$0xff]
  %v266 = vld [vmem:[%s0 + $0x7d8] sm:$0xff]
  %v267 = vld [vmem:[%s0 + $0x7e0] sm:$0xff]
  %v268 = vld [vmem:[%s0 + $0x7e8] sm:$0xff]
  %v269 = vld [vmem:[%s0 + $0x7f0] sm:$0xff]
  %v270 = vld [vmem:[%s0 + $0x7f8] sm:$0xff]
  %v271 = vld [vmem:[%s1] sm:$0xf]
  %v272 = vld [vmem:[%s1 + $0x4] sm:$0xf]
  %v273 = vld [vmem:[%s1 + $0x8] sm:$0xf]
  %v274 = vld [vmem:[%s1 + $0xc] sm:$0xf]
  %v275 = vld [vmem:[%s1 + $0x10] sm:$0xf]
  %v276 = vld [vmem:[%s1 + $0x14] sm:$0xf]
  %v277 = vld [vmem:[%s1 + $0x18] sm:$0xf]
  %v278 = vld [vmem:[%s1 + $0x1c] sm:$0xf]
  %v279 = vld [vmem:[%s1 + $0x20] sm:$0xf]
  %v280 = vld [vmem:[%s1 + $0x24] sm:$0xf]
  %v281 = vld [vmem:[%s1 + $0x28] sm:$0xf]
  %v282 = vld [vmem:[%s1 + $0x2c] sm:$0xf]
  %v283 = vld [vmem:[%s1 + $0x30] sm:$0xf]
  %v284 = vld [vmem:[%s1 + $0x34] sm:$0xf]
  %v285 = vld [vmem:[%s1 + $0x38] sm:$0xf]
  %v286 = vld [vmem:[%s1 + $0x3c] sm:$0xf]
  %v287 = vld [vmem:[%s1 + $0x40] sm:$0xf]
  %v288 = vld [vmem:[%s1 + $0x44] sm:$0xf]
  %v289 = vld [vmem:[%s1 + $0x48] sm:$0xf]
  %v290 = vld [vmem:[%s1 + $0x4c] sm:$0xf]
  %v291 = vld [vmem:[%s1 + $0x50] sm:$0xf]
  %v292 = vld [vmem:[%s1 + $0x54] sm:$0xf]
  %v293 = vld [vmem:[%s1 + $0x58] sm:$0xf]
  %v294 = vld [vmem:[%s1 + $0x5c] sm:$0xf]
  %v295 = vld [vmem:[%s1 + $0x60] sm:$0xf]
  %v296 = vld [vmem:[%s1 + $0x64] sm:$0xf]
  %v297 = vld [vmem:[%s1 + $0x68] sm:$0xf]
  %v298 = vld [vmem:[%s1 + $0x6c] sm:$0xf]
  %v299 = vld [vmem:[%s1 + $0x70] sm:$0xf]
  %v300 = vld [vmem:[%s1 + $0x74] sm:$0xf]
  %v301 = vld [vmem:[%s1 + $0x78] sm:$0xf]
  %v302 = vld [vmem:[%s1 + $0x7c] sm:$0xf]
  %v303 = vld [vmem:[%s2] sm:$0x1]
  %v305 = vlaneseq
  %v306 = vshrl.u32 %v305, 7
  %v307 = vsub.s32 0, %v306
  %v308 = vrot.slane %v303, %v307
  %v566 = vunpack.c.l.b16 %v15
  %v567 = vunpack.c.h.b16 %v15
  %v568 = vunpack.c.l.b16 %v16
  %v569 = vunpack.c.h.b16 %v16
  %v570 = vunpack.c.l.b16 %v17
  %v571 = vunpack.c.h.b16 %v17
  %v572 = vunpack.c.l.b16 %v18
  %v573 = vunpack.c.h.b16 %v18
  %v574 = vunpack.c.l.b16 %v19
  %v575 = vunpack.c.h.b16 %v19
  %v576 = vunpack.c.l.b16 %v20
  %v577 = vunpack.c.h.b16 %v20
  %v578 = vunpack.c.l.b16 %v21
  %v579 = vunpack.c.h.b16 %v21
  %v580 = vunpack.c.l.b16 %v22
  %v581 = vunpack.c.h.b16 %v22
  %v582 = vunpack.c.l.b16 %v23
  %v583 = vunpack.c.h.b16 %v23
  %v584 = vunpack.c.l.b16 %v24
  %v585 = vunpack.c.h.b16 %v24
  %v586 = vunpack.c.l.b16 %v25
  %v587 = vunpack.c.h.b16 %v25
  %v588 = vunpack.c.l.b16 %v26
  %v589 = vunpack.c.h.b16 %v26
  %v590 = vunpack.c.l.b16 %v27
  %v591 = vunpack.c.h.b16 %v27
  %v592 = vunpack.c.l.b16 %v28
  %v593 = vunpack.c.h.b16 %v28
  %v594 = vunpack.c.l.b16 %v29
  %v595 = vunpack.c.h.b16 %v29
  %v596 = vunpack.c.l.b16 %v30
  %v597 = vunpack.c.h.b16 %v30
  %v598 = vunpack.c.l.b16 %v31
  %v599 = vunpack.c.h.b16 %v31
  %v600 = vunpack.c.l.b16 %v32
  %v601 = vunpack.c.h.b16 %v32
  %v602 = vunpack.c.l.b16 %v33
  %v603 = vunpack.c.h.b16 %v33
  %v604 = vunpack.c.l.b16 %v34
  %v605 = vunpack.c.h.b16 %v34
  %v606 = vunpack.c.l.b16 %v35
  %v607 = vunpack.c.h.b16 %v35
  %v608 = vunpack.c.l.b16 %v36
  %v609 = vunpack.c.h.b16 %v36
  %v610 = vunpack.c.l.b16 %v37
  %v611 = vunpack.c.h.b16 %v37
  %v612 = vunpack.c.l.b16 %v38
  %v613 = vunpack.c.h.b16 %v38
  %v614 = vunpack.c.l.b16 %v39
  %v615 = vunpack.c.h.b16 %v39
  %v616 = vunpack.c.l.b16 %v40
  %v617 = vunpack.c.h.b16 %v40
  %v618 = vunpack.c.l.b16 %v41
  %v619 = vunpack.c.h.b16 %v41
  %v620 = vunpack.c.l.b16 %v42
  %v621 = vunpack.c.h.b16 %v42
  %v622 = vunpack.c.l.b16 %v43
  %v623 = vunpack.c.h.b16 %v43
  %v624 = vunpack.c.l.b16 %v44
  %v625 = vunpack.c.h.b16 %v44
  %v626 = vunpack.c.l.b16 %v45
  %v627 = vunpack.c.h.b16 %v45
  %v628 = vunpack.c.l.b16 %v46
  %v629 = vunpack.c.h.b16 %v46
  %v630 = vunpack.c.l.b16 %v47
  %v631 = vunpack.c.h.b16 %v47
  %v632 = vunpack.c.l.b16 %v48
  %v633 = vunpack.c.h.b16 %v48
  %v634 = vunpack.c.l.b16 %v49
  %v635 = vunpack.c.h.b16 %v49
  %v636 = vunpack.c.l.b16 %v50
  %v637 = vunpack.c.h.b16 %v50
  %v638 = vunpack.c.l.b16 %v51
  %v639 = vunpack.c.h.b16 %v51
  %v640 = vunpack.c.l.b16 %v52
  %v641 = vunpack.c.h.b16 %v52
  %v642 = vunpack.c.l.b16 %v53
  %v643 = vunpack.c.h.b16 %v53
  %v644 = vunpack.c.l.b16 %v54
  %v645 = vunpack.c.h.b16 %v54
  %v646 = vunpack.c.l.b16 %v55
  %v647 = vunpack.c.h.b16 %v55
  %v648 = vunpack.c.l.b16 %v56
  %v649 = vunpack.c.h.b16 %v56
  %v650 = vunpack.c.l.b16 %v57
  %v651 = vunpack.c.h.b16 %v57
  %v652 = vunpack.c.l.b16 %v58
  %v653 = vunpack.c.h.b16 %v58
  %v654 = vunpack.c.l.b16 %v59
  %v655 = vunpack.c.h.b16 %v59
  %v656 = vunpack.c.l.b16 %v60
  %v657 = vunpack.c.h.b16 %v60
  %v658 = vunpack.c.l.b16 %v61
  %v659 = vunpack.c.h.b16 %v61
  %v660 = vunpack.c.l.b16 %v62
  %v661 = vunpack.c.h.b16 %v62
  %v662 = vunpack.c.l.b16 %v63
  %v663 = vunpack.c.h.b16 %v63
  %v664 = vunpack.c.l.b16 %v64
  %v665 = vunpack.c.h.b16 %v64
  %v666 = vunpack.c.l.b16 %v65
  %v667 = vunpack.c.h.b16 %v65
  %v668 = vunpack.c.l.b16 %v66
  %v669 = vunpack.c.h.b16 %v66
  %v670 = vunpack.c.l.b16 %v67
  %v671 = vunpack.c.h.b16 %v67
  %v672 = vunpack.c.l.b16 %v68
  %v673 = vunpack.c.h.b16 %v68
  %v674 = vunpack.c.l.b16 %v69
  %v675 = vunpack.c.h.b16 %v69
  %v676 = vunpack.c.l.b16 %v70
  %v677 = vunpack.c.h.b16 %v70
  %v678 = vunpack.c.l.b16 %v71
  %v679 = vunpack.c.h.b16 %v71
  %v680 = vunpack.c.l.b16 %v72
  %v681 = vunpack.c.h.b16 %v72
  %v682 = vunpack.c.l.b16 %v73
  %v683 = vunpack.c.h.b16 %v73
  %v684 = vunpack.c.l.b16 %v74
  %v685 = vunpack.c.h.b16 %v74
  %v686 = vunpack.c.l.b16 %v75
  %v687 = vunpack.c.h.b16 %v75
  %v688 = vunpack.c.l.b16 %v76
  %v689 = vunpack.c.h.b16 %v76
  %v690 = vunpack.c.l.b16 %v77
  %v691 = vunpack.c.h.b16 %v77
  %v692 = vunpack.c.l.b16 %v78
  %v693 = vunpack.c.h.b16 %v78
  %v694 = vunpack.c.l.b16 %v79
  %v695 = vunpack.c.h.b16 %v79
  %v696 = vunpack.c.l.b16 %v80
  %v697 = vunpack.c.h.b16 %v80
  %v698 = vunpack.c.l.b16 %v81
  %v699 = vunpack.c.h.b16 %v81
  %v700 = vunpack.c.l.b16 %v82
  %v701 = vunpack.c.h.b16 %v82
  %v702 = vunpack.c.l.b16 %v83
  %v703 = vunpack.c.h.b16 %v83
  %v704 = vunpack.c.l.b16 %v84
  %v705 = vunpack.c.h.b16 %v84
  %v706 = vunpack.c.l.b16 %v85
  %v707 = vunpack.c.h.b16 %v85
  %v708 = vunpack.c.l.b16 %v86
  %v709 = vunpack.c.h.b16 %v86
  %v710 = vunpack.c.l.b16 %v87
  %v711 = vunpack.c.h.b16 %v87
  %v712 = vunpack.c.l.b16 %v88
  %v713 = vunpack.c.h.b16 %v88
  %v714 = vunpack.c.l.b16 %v89
  %v715 = vunpack.c.h.b16 %v89
  %v716 = vunpack.c.l.b16 %v90
  %v717 = vunpack.c.h.b16 %v90
  %v718 = vunpack.c.l.b16 %v91
  %v719 = vunpack.c.h.b16 %v91
  %v720 = vunpack.c.l.b16 %v92
  %v721 = vunpack.c.h.b16 %v92
  %v722 = vunpack.c.l.b16 %v93
  %v723 = vunpack.c.h.b16 %v93
  %v724 = vunpack.c.l.b16 %v94
  %v725 = vunpack.c.h.b16 %v94
  %v726 = vunpack.c.l.b16 %v95
  %v727 = vunpack.c.h.b16 %v95
  %v728 = vunpack.c.l.b16 %v96
  %v729 = vunpack.c.h.b16 %v96
  %v730 = vunpack.c.l.b16 %v97
  %v731 = vunpack.c.h.b16 %v97
  %v732 = vunpack.c.l.b16 %v98
  %v733 = vunpack.c.h.b16 %v98
  %v734 = vunpack.c.l.b16 %v99
  %v735 = vunpack.c.h.b16 %v99
  %v736 = vunpack.c.l.b16 %v100
  %v737 = vunpack.c.h.b16 %v100
  %v738 = vunpack.c.l.b16 %v101
  %v739 = vunpack.c.h.b16 %v101
  %v740 = vunpack.c.l.b16 %v102
  %v741 = vunpack.c.h.b16 %v102
  %v742 = vunpack.c.l.b16 %v103
  %v743 = vunpack.c.h.b16 %v103
  %v744 = vunpack.c.l.b16 %v104
  %v745 = vunpack.c.h.b16 %v104
  %v746 = vunpack.c.l.b16 %v105
  %v747 = vunpack.c.h.b16 %v105
  %v748 = vunpack.c.l.b16 %v106
  %v749 = vunpack.c.h.b16 %v106
  %v750 = vunpack.c.l.b16 %v107
  %v751 = vunpack.c.h.b16 %v107
  %v752 = vunpack.c.l.b16 %v108
  %v753 = vunpack.c.h.b16 %v108
  %v754 = vunpack.c.l.b16 %v109
  %v755 = vunpack.c.h.b16 %v109
  %v756 = vunpack.c.l.b16 %v110
  %v757 = vunpack.c.h.b16 %v110
  %v758 = vunpack.c.l.b16 %v111
  %v759 = vunpack.c.h.b16 %v111
  %v760 = vunpack.c.l.b16 %v112
  %v761 = vunpack.c.h.b16 %v112
  %v762 = vunpack.c.l.b16 %v113
  %v763 = vunpack.c.h.b16 %v113
  %v764 = vunpack.c.l.b16 %v114
  %v765 = vunpack.c.h.b16 %v114
  %v766 = vunpack.c.l.b16 %v115
  %v767 = vunpack.c.h.b16 %v115
  %v768 = vunpack.c.l.b16 %v116
  %v769 = vunpack.c.h.b16 %v116
  %v770 = vunpack.c.l.b16 %v117
  %v771 = vunpack.c.h.b16 %v117
  %v772 = vunpack.c.l.b16 %v118
  %v773 = vunpack.c.h.b16 %v118
  %v774 = vunpack.c.l.b16 %v119
  %v775 = vunpack.c.h.b16 %v119
  %v776 = vunpack.c.l.b16 %v120
  %v777 = vunpack.c.h.b16 %v120
  %v778 = vunpack.c.l.b16 %v121
  %v779 = vunpack.c.h.b16 %v121
  %v780 = vunpack.c.l.b16 %v122
  %v781 = vunpack.c.h.b16 %v122
  %v782 = vunpack.c.l.b16 %v123
  %v783 = vunpack.c.h.b16 %v123
  %v784 = vunpack.c.l.b16 %v124
  %v785 = vunpack.c.h.b16 %v124
  %v786 = vunpack.c.l.b16 %v125
  %v787 = vunpack.c.h.b16 %v125
  %v788 = vunpack.c.l.b16 %v126
  %v789 = vunpack.c.h.b16 %v126
  %v790 = vunpack.c.l.b16 %v127
  %v791 = vunpack.c.h.b16 %v127
  %v792 = vunpack.c.l.b16 %v128
  %v793 = vunpack.c.h.b16 %v128
  %v794 = vunpack.c.l.b16 %v129
  %v795 = vunpack.c.h.b16 %v129
  %v796 = vunpack.c.l.b16 %v130
  %v797 = vunpack.c.h.b16 %v130
  %v798 = vunpack.c.l.b16 %v131
  %v799 = vunpack.c.h.b16 %v131
  %v800 = vunpack.c.l.b16 %v132
  %v801 = vunpack.c.h.b16 %v132
  %v802 = vunpack.c.l.b16 %v133
  %v803 = vunpack.c.h.b16 %v133
  %v804 = vunpack.c.l.b16 %v134
  %v805 = vunpack.c.h.b16 %v134
  %v806 = vunpack.c.l.b16 %v135
  %v807 = vunpack.c.h.b16 %v135
  %v808 = vunpack.c.l.b16 %v136
  %v809 = vunpack.c.h.b16 %v136
  %v810 = vunpack.c.l.b16 %v137
  %v811 = vunpack.c.h.b16 %v137
  %v812 = vunpack.c.l.b16 %v138
  %v813 = vunpack.c.h.b16 %v138
  %v814 = vunpack.c.l.b16 %v139
  %v815 = vunpack.c.h.b16 %v139
  %v816 = vunpack.c.l.b16 %v140
  %v817 = vunpack.c.h.b16 %v140
  %v818 = vunpack.c.l.b16 %v141
  %v819 = vunpack.c.h.b16 %v141
  %v820 = vunpack.c.l.b16 %v142
  %v821 = vunpack.c.h.b16 %v142
  %v822 = vunpack.c.l.b16 %v143
  %v823 = vunpack.c.h.b16 %v143
  %v824 = vunpack.c.l.b16 %v144
  %v825 = vunpack.c.h.b16 %v144
  %v826 = vunpack.c.l.b16 %v145
  %v827 = vunpack.c.h.b16 %v145
  %v828 = vunpack.c.l.b16 %v146
  %v829 = vunpack.c.h.b16 %v146
  %v830 = vunpack.c.l.b16 %v147
  %v831 = vunpack.c.h.b16 %v147
  %v832 = vunpack.c.l.b16 %v148
  %v833 = vunpack.c.h.b16 %v148
  %v834 = vunpack.c.l.b16 %v149
  %v835 = vunpack.c.h.b16 %v149
  %v836 = vunpack.c.l.b16 %v150
  %v837 = vunpack.c.h.b16 %v150
  %v838 = vunpack.c.l.b16 %v151
  %v839 = vunpack.c.h.b16 %v151
  %v840 = vunpack.c.l.b16 %v152
  %v841 = vunpack.c.h.b16 %v152
  %v842 = vunpack.c.l.b16 %v153
  %v843 = vunpack.c.h.b16 %v153
  %v844 = vunpack.c.l.b16 %v154
  %v845 = vunpack.c.h.b16 %v154
  %v846 = vunpack.c.l.b16 %v155
  %v847 = vunpack.c.h.b16 %v155
  %v848 = vunpack.c.l.b16 %v156
  %v849 = vunpack.c.h.b16 %v156
  %v850 = vunpack.c.l.b16 %v157
  %v851 = vunpack.c.h.b16 %v157
  %v852 = vunpack.c.l.b16 %v158
  %v853 = vunpack.c.h.b16 %v158
  %v854 = vunpack.c.l.b16 %v159
  %v855 = vunpack.c.h.b16 %v159
  %v856 = vunpack.c.l.b16 %v160
  %v857 = vunpack.c.h.b16 %v160
  %v858 = vunpack.c.l.b16 %v161
  %v859 = vunpack.c.h.b16 %v161
  %v860 = vunpack.c.l.b16 %v162
  %v861 = vunpack.c.h.b16 %v162
  %v862 = vunpack.c.l.b16 %v163
  %v863 = vunpack.c.h.b16 %v163
  %v864 = vunpack.c.l.b16 %v164
  %v865 = vunpack.c.h.b16 %v164
  %v866 = vunpack.c.l.b16 %v165
  %v867 = vunpack.c.h.b16 %v165
  %v868 = vunpack.c.l.b16 %v166
  %v869 = vunpack.c.h.b16 %v166
  %v870 = vunpack.c.l.b16 %v167
  %v871 = vunpack.c.h.b16 %v167
  %v872 = vunpack.c.l.b16 %v168
  %v873 = vunpack.c.h.b16 %v168
  %v874 = vunpack.c.l.b16 %v169
  %v875 = vunpack.c.h.b16 %v169
  %v876 = vunpack.c.l.b16 %v170
  %v877 = vunpack.c.h.b16 %v170
  %v878 = vunpack.c.l.b16 %v171
  %v879 = vunpack.c.h.b16 %v171
  %v880 = vunpack.c.l.b16 %v172
  %v881 = vunpack.c.h.b16 %v172
  %v882 = vunpack.c.l.b16 %v173
  %v883 = vunpack.c.h.b16 %v173
  %v884 = vunpack.c.l.b16 %v174
  %v885 = vunpack.c.h.b16 %v174
  %v886 = vunpack.c.l.b16 %v175
  %v887 = vunpack.c.h.b16 %v175
  %v888 = vunpack.c.l.b16 %v176
  %v889 = vunpack.c.h.b16 %v176
  %v890 = vunpack.c.l.b16 %v177
  %v891 = vunpack.c.h.b16 %v177
  %v892 = vunpack.c.l.b16 %v178
  %v893 = vunpack.c.h.b16 %v178
  %v894 = vunpack.c.l.b16 %v179
  %v895 = vunpack.c.h.b16 %v179
  %v896 = vunpack.c.l.b16 %v180
  %v897 = vunpack.c.h.b16 %v180
  %v898 = vunpack.c.l.b16 %v181
  %v899 = vunpack.c.h.b16 %v181
  %v900 = vunpack.c.l.b16 %v182
  %v901 = vunpack.c.h.b16 %v182
  %v902 = vunpack.c.l.b16 %v183
  %v903 = vunpack.c.h.b16 %v183
  %v904 = vunpack.c.l.b16 %v184
  %v905 = vunpack.c.h.b16 %v184
  %v906 = vunpack.c.l.b16 %v185
  %v907 = vunpack.c.h.b16 %v185
  %v908 = vunpack.c.l.b16 %v186
  %v909 = vunpack.c.h.b16 %v186
  %v910 = vunpack.c.l.b16 %v187
  %v911 = vunpack.c.h.b16 %v187
  %v912 = vunpack.c.l.b16 %v188
  %v913 = vunpack.c.h.b16 %v188
  %v914 = vunpack.c.l.b16 %v189
  %v915 = vunpack.c.h.b16 %v189
  %v916 = vunpack.c.l.b16 %v190
  %v917 = vunpack.c.h.b16 %v190
  %v918 = vunpack.c.l.b16 %v191
  %v919 = vunpack.c.h.b16 %v191
  %v920 = vunpack.c.l.b16 %v192
  %v921 = vunpack.c.h.b16 %v192
  %v922 = vunpack.c.l.b16 %v193
  %v923 = vunpack.c.h.b16 %v193
  %v924 = vunpack.c.l.b16 %v194
  %v925 = vunpack.c.h.b16 %v194
  %v926 = vunpack.c.l.b16 %v195
  %v927 = vunpack.c.h.b16 %v195
  %v928 = vunpack.c.l.b16 %v196
  %v929 = vunpack.c.h.b16 %v196
  %v930 = vunpack.c.l.b16 %v197
  %v931 = vunpack.c.h.b16 %v197
  %v932 = vunpack.c.l.b16 %v198
  %v933 = vunpack.c.h.b16 %v198
  %v934 = vunpack.c.l.b16 %v199
  %v935 = vunpack.c.h.b16 %v199
  %v936 = vunpack.c.l.b16 %v200
  %v937 = vunpack.c.h.b16 %v200
  %v938 = vunpack.c.l.b16 %v201
  %v939 = vunpack.c.h.b16 %v201
  %v940 = vunpack.c.l.b16 %v202
  %v941 = vunpack.c.h.b16 %v202
  %v942 = vunpack.c.l.b16 %v203
  %v943 = vunpack.c.h.b16 %v203
  %v944 = vunpack.c.l.b16 %v204
  %v945 = vunpack.c.h.b16 %v204
  %v946 = vunpack.c.l.b16 %v205
  %v947 = vunpack.c.h.b16 %v205
  %v948 = vunpack.c.l.b16 %v206
  %v949 = vunpack.c.h.b16 %v206
  %v950 = vunpack.c.l.b16 %v207
  %v951 = vunpack.c.h.b16 %v207
  %v952 = vunpack.c.l.b16 %v208
  %v953 = vunpack.c.h.b16 %v208
  %v954 = vunpack.c.l.b16 %v209
  %v955 = vunpack.c.h.b16 %v209
  %v956 = vunpack.c.l.b16 %v210
  %v957 = vunpack.c.h.b16 %v210
  %v958 = vunpack.c.l.b16 %v211
  %v959 = vunpack.c.h.b16 %v211
  %v960 = vunpack.c.l.b16 %v212
  %v961 = vunpack.c.h.b16 %v212
  %v962 = vunpack.c.l.b16 %v213
  %v963 = vunpack.c.h.b16 %v213
  %v964 = vunpack.c.l.b16 %v214
  %v965 = vunpack.c.h.b16 %v214
  %v966 = vunpack.c.l.b16 %v215
  %v967 = vunpack.c.h.b16 %v215
  %v968 = vunpack.c.l.b16 %v216
  %v969 = vunpack.c.h.b16 %v216
  %v970 = vunpack.c.l.b16 %v217
  %v971 = vunpack.c.h.b16 %v217
  %v972 = vunpack.c.l.b16 %v218
  %v973 = vunpack.c.h.b16 %v218
  %v974 = vunpack.c.l.b16 %v219
  %v975 = vunpack.c.h.b16 %v219
  %v976 = vunpack.c.l.b16 %v220
  %v977 = vunpack.c.h.b16 %v220
  %v978 = vunpack.c.l.b16 %v221
  %v979 = vunpack.c.h.b16 %v221
  %v980 = vunpack.c.l.b16 %v222
  %v981 = vunpack.c.h.b16 %v222
  %v982 = vunpack.c.l.b16 %v223
  %v983 = vunpack.c.h.b16 %v223
  %v984 = vunpack.c.l.b16 %v224
  %v985 = vunpack.c.h.b16 %v224
  %v986 = vunpack.c.l.b16 %v225
  %v987 = vunpack.c.h.b16 %v225
  %v988 = vunpack.c.l.b16 %v226
  %v989 = vunpack.c.h.b16 %v226
  %v990 = vunpack.c.l.b16 %v227
  %v991 = vunpack.c.h.b16 %v227
  %v992 = vunpack.c.l.b16 %v228
  %v993 = vunpack.c.h.b16 %v228
  %v994 = vunpack.c.l.b16 %v229
  %v995 = vunpack.c.h.b16 %v229
  %v996 = vunpack.c.l.b16 %v230
  %v997 = vunpack.c.h.b16 %v230
  %v998 = vunpack.c.l.b16 %v231
  %v999 = vunpack.c.h.b16 %v231
  %v1000 = vunpack.c.l.b16 %v232
  %v1001 = vunpack.c.h.b16 %v232
  %v1002 = vunpack.c.l.b16 %v233
  %v1003 = vunpack.c.h.b16 %v233
  %v1004 = vunpack.c.l.b16 %v234
  %v1005 = vunpack.c.h.b16 %v234
  %v1006 = vunpack.c.l.b16 %v235
  %v1007 = vunpack.c.h.b16 %v235
  %v1008 = vunpack.c.l.b16 %v236
  %v1009 = vunpack.c.h.b16 %v236
  %v1010 = vunpack.c.l.b16 %v237
  %v1011 = vunpack.c.h.b16 %v237
  %v1012 = vunpack.c.l.b16 %v238
  %v1013 = vunpack.c.h.b16 %v238
  %v1014 = vunpack.c.l.b16 %v239
  %v1015 = vunpack.c.h.b16 %v239
  %v1016 = vunpack.c.l.b16 %v240
  %v1017 = vunpack.c.h.b16 %v240
  %v1018 = vunpack.c.l.b16 %v241
  %v1019 = vunpack.c.h.b16 %v241
  %v1020 = vunpack.c.l.b16 %v242
  %v1021 = vunpack.c.h.b16 %v242
  %v1022 = vunpack.c.l.b16 %v243
  %v1023 = vunpack.c.h.b16 %v243
  %v1024 = vunpack.c.l.b16 %v244
  %v1025 = vunpack.c.h.b16 %v244
  %v1026 = vunpack.c.l.b16 %v245
  %v1027 = vunpack.c.h.b16 %v245
  %v1028 = vunpack.c.l.b16 %v246
  %v1029 = vunpack.c.h.b16 %v246
  %v1030 = vunpack.c.l.b16 %v247
  %v1031 = vunpack.c.h.b16 %v247
  %v1032 = vunpack.c.l.b16 %v248
  %v1033 = vunpack.c.h.b16 %v248
  %v1034 = vunpack.c.l.b16 %v249
  %v1035 = vunpack.c.h.b16 %v249
  %v1036 = vunpack.c.l.b16 %v250
  %v1037 = vunpack.c.h.b16 %v250
  %v1038 = vunpack.c.l.b16 %v251
  %v1039 = vunpack.c.h.b16 %v251
  %v1040 = vunpack.c.l.b16 %v252
  %v1041 = vunpack.c.h.b16 %v252
  %v1042 = vunpack.c.l.b16 %v253
  %v1043 = vunpack.c.h.b16 %v253
  %v1044 = vunpack.c.l.b16 %v254
  %v1045 = vunpack.c.h.b16 %v254
  %v1046 = vunpack.c.l.b16 %v255
  %v1047 = vunpack.c.h.b16 %v255
  %v1048 = vunpack.c.l.b16 %v256
  %v1049 = vunpack.c.h.b16 %v256
  %v1050 = vunpack.c.l.b16 %v257
  %v1051 = vunpack.c.h.b16 %v257
  %v1052 = vunpack.c.l.b16 %v258
  %v1053 = vunpack.c.h.b16 %v258
  %v1054 = vunpack.c.l.b16 %v259
  %v1055 = vunpack.c.h.b16 %v259
  %v1056 = vunpack.c.l.b16 %v260
  %v1057 = vunpack.c.h.b16 %v260
  %v1058 = vunpack.c.l.b16 %v261
  %v1059 = vunpack.c.h.b16 %v261
  %v1060 = vunpack.c.l.b16 %v262
  %v1061 = vunpack.c.h.b16 %v262
  %v1062 = vunpack.c.l.b16 %v263
  %v1063 = vunpack.c.h.b16 %v263
  %v1064 = vunpack.c.l.b16 %v264
  %v1065 = vunpack.c.h.b16 %v264
  %v1066 = vunpack.c.l.b16 %v265
  %v1067 = vunpack.c.h.b16 %v265
  %v1068 = vunpack.c.l.b16 %v266
  %v1069 = vunpack.c.h.b16 %v266
  %v1070 = vunpack.c.l.b16 %v267
  %v1071 = vunpack.c.h.b16 %v267
  %v1072 = vunpack.c.l.b16 %v268
  %v1073 = vunpack.c.h.b16 %v268
  %v1074 = vunpack.c.l.b16 %v269
  %v1075 = vunpack.c.h.b16 %v269
  %v1076 = vunpack.c.l.b16 %v270
  %v1077 = vunpack.c.h.b16 %v270
  %v1078 = vpack.c.b16 %v568, %v566
  %v1079 = vpack.c.b16 %v569, %v567
  %v1080 = vpack.c.b16 %v572, %v570
  %v1081 = vpack.c.b16 %v573, %v571
  %v1082 = vpack.c.b16 %v576, %v574
  %v1083 = vpack.c.b16 %v577, %v575
  %v1084 = vpack.c.b16 %v580, %v578
  %v1085 = vpack.c.b16 %v581, %v579
  %v1086 = vpack.c.b16 %v584, %v582
  %v1087 = vpack.c.b16 %v585, %v583
  %v1088 = vpack.c.b16 %v588, %v586
  %v1089 = vpack.c.b16 %v589, %v587
  %v1090 = vpack.c.b16 %v592, %v590
  %v1091 = vpack.c.b16 %v593, %v591
  %v1092 = vpack.c.b16 %v596, %v594
  %v1093 = vpack.c.b16 %v597, %v595
  %v1094 = vpack.c.b16 %v600, %v598
  %v1095 = vpack.c.b16 %v601, %v599
  %v1096 = vpack.c.b16 %v604, %v602
  %v1097 = vpack.c.b16 %v605, %v603
  %v1098 = vpack.c.b16 %v608, %v606
  %v1099 = vpack.c.b16 %v609, %v607
  %v1100 = vpack.c.b16 %v612, %v610
  %v1101 = vpack.c.b16 %v613, %v611
  %v1102 = vpack.c.b16 %v616, %v614
  %v1103 = vpack.c.b16 %v617, %v615
  %v1104 = vpack.c.b16 %v620, %v618
  %v1105 = vpack.c.b16 %v621, %v619
  %v1106 = vpack.c.b16 %v624, %v622
  %v1107 = vpack.c.b16 %v625, %v623
  %v1108 = vpack.c.b16 %v628, %v626
  %v1109 = vpack.c.b16 %v629, %v627
  %v1110 = vpack.c.b16 %v632, %v630
  %v1111 = vpack.c.b16 %v633, %v631
  %v1112 = vpack.c.b16 %v636, %v634
  %v1113 = vpack.c.b16 %v637, %v635
  %v1114 = vpack.c.b16 %v640, %v638
  %v1115 = vpack.c.b16 %v641, %v639
  %v1116 = vpack.c.b16 %v644, %v642
  %v1117 = vpack.c.b16 %v645, %v643
  %v1118 = vpack.c.b16 %v648, %v646
  %v1119 = vpack.c.b16 %v649, %v647
  %v1120 = vpack.c.b16 %v652, %v650
  %v1121 = vpack.c.b16 %v653, %v651
  %v1122 = vpack.c.b16 %v656, %v654
  %v1123 = vpack.c.b16 %v657, %v655
  %v1124 = vpack.c.b16 %v660, %v658
  %v1125 = vpack.c.b16 %v661, %v659
  %v1126 = vpack.c.b16 %v664, %v662
  %v1127 = vpack.c.b16 %v665, %v663
  %v1128 = vpack.c.b16 %v668, %v666
  %v1129 = vpack.c.b16 %v669, %v667
  %v1130 = vpack.c.b16 %v672, %v670
  %v1131 = vpack.c.b16 %v673, %v671
  %v1132 = vpack.c.b16 %v676, %v674
  %v1133 = vpack.c.b16 %v677, %v675
  %v1134 = vpack.c.b16 %v680, %v678
  %v1135 = vpack.c.b16 %v681, %v679
  %v1136 = vpack.c.b16 %v684, %v682
  %v1137 = vpack.c.b16 %v685, %v683
  %v1138 = vpack.c.b16 %v688, %v686
  %v1139 = vpack.c.b16 %v689, %v687
  %v1140 = vpack.c.b16 %v692, %v690
  %v1141 = vpack.c.b16 %v693, %v691
  %v1142 = vpack.c.b16 %v696, %v694
  %v1143 = vpack.c.b16 %v697, %v695
  %v1144 = vpack.c.b16 %v700, %v698
  %v1145 = vpack.c.b16 %v701, %v699
  %v1146 = vpack.c.b16 %v704, %v702
  %v1147 = vpack.c.b16 %v705, %v703
  %v1148 = vpack.c.b16 %v708, %v706
  %v1149 = vpack.c.b16 %v709, %v707
  %v1150 = vpack.c.b16 %v712, %v710
  %v1151 = vpack.c.b16 %v713, %v711
  %v1152 = vpack.c.b16 %v716, %v714
  %v1153 = vpack.c.b16 %v717, %v715
  %v1154 = vpack.c.b16 %v720, %v718
  %v1155 = vpack.c.b16 %v721, %v719
  %v1156 = vpack.c.b16 %v724, %v722
  %v1157 = vpack.c.b16 %v725, %v723
  %v1158 = vpack.c.b16 %v728, %v726
  %v1159 = vpack.c.b16 %v729, %v727
  %v1160 = vpack.c.b16 %v732, %v730
  %v1161 = vpack.c.b16 %v733, %v731
  %v1162 = vpack.c.b16 %v736, %v734
  %v1163 = vpack.c.b16 %v737, %v735
  %v1164 = vpack.c.b16 %v740, %v738
  %v1165 = vpack.c.b16 %v741, %v739
  %v1166 = vpack.c.b16 %v744, %v742
  %v1167 = vpack.c.b16 %v745, %v743
  %v1168 = vpack.c.b16 %v748, %v746
  %v1169 = vpack.c.b16 %v749, %v747
  %v1170 = vpack.c.b16 %v752, %v750
  %v1171 = vpack.c.b16 %v753, %v751
  %v1172 = vpack.c.b16 %v756, %v754
  %v1173 = vpack.c.b16 %v757, %v755
  %v1174 = vpack.c.b16 %v760, %v758
  %v1175 = vpack.c.b16 %v761, %v759
  %v1176 = vpack.c.b16 %v764, %v762
  %v1177 = vpack.c.b16 %v765, %v763
  %v1178 = vpack.c.b16 %v768, %v766
  %v1179 = vpack.c.b16 %v769, %v767
  %v1180 = vpack.c.b16 %v772, %v770
  %v1181 = vpack.c.b16 %v773, %v771
  %v1182 = vpack.c.b16 %v776, %v774
  %v1183 = vpack.c.b16 %v777, %v775
  %v1184 = vpack.c.b16 %v780, %v778
  %v1185 = vpack.c.b16 %v781, %v779
  %v1186 = vpack.c.b16 %v784, %v782
  %v1187 = vpack.c.b16 %v785, %v783
  %v1188 = vpack.c.b16 %v788, %v786
  %v1189 = vpack.c.b16 %v789, %v787
  %v1190 = vpack.c.b16 %v792, %v790
  %v1191 = vpack.c.b16 %v793, %v791
  %v1192 = vpack.c.b16 %v796, %v794
  %v1193 = vpack.c.b16 %v797, %v795
  %v1194 = vpack.c.b16 %v800, %v798
  %v1195 = vpack.c.b16 %v801, %v799
  %v1196 = vpack.c.b16 %v804, %v802
  %v1197 = vpack.c.b16 %v805, %v803
  %v1198 = vpack.c.b16 %v808, %v806
  %v1199 = vpack.c.b16 %v809, %v807
  %v1200 = vpack.c.b16 %v812, %v810
  %v1201 = vpack.c.b16 %v813, %v811
  %v1202 = vpack.c.b16 %v816, %v814
  %v1203 = vpack.c.b16 %v817, %v815
  %v1204 = vpack.c.b16 %v820, %v818
  %v1205 = vpack.c.b16 %v821, %v819
  %v1206 = vpack.c.b16 %v824, %v822
  %v1207 = vpack.c.b16 %v825, %v823
  %v1208 = vpack.c.b16 %v828, %v826
  %v1209 = vpack.c.b16 %v829, %v827
  %v1210 = vpack.c.b16 %v832, %v830
  %v1211 = vpack.c.b16 %v833, %v831
  %v1212 = vpack.c.b16 %v836, %v834
  %v1213 = vpack.c.b16 %v837, %v835
  %v1214 = vpack.c.b16 %v840, %v838
  %v1215 = vpack.c.b16 %v841, %v839
  %v1216 = vpack.c.b16 %v844, %v842
  %v1217 = vpack.c.b16 %v845, %v843
  %v1218 = vpack.c.b16 %v848, %v846
  %v1219 = vpack.c.b16 %v849, %v847
  %v1220 = vpack.c.b16 %v852, %v850
  %v1221 = vpack.c.b16 %v853, %v851
  %v1222 = vpack.c.b16 %v856, %v854
  %v1223 = vpack.c.b16 %v857, %v855
  %v1224 = vpack.c.b16 %v860, %v858
  %v1225 = vpack.c.b16 %v861, %v859
  %v1226 = vpack.c.b16 %v864, %v862
  %v1227 = vpack.c.b16 %v865, %v863
  %v1228 = vpack.c.b16 %v868, %v866
  %v1229 = vpack.c.b16 %v869, %v867
  %v1230 = vpack.c.b16 %v872, %v870
  %v1231 = vpack.c.b16 %v873, %v871
  %v1232 = vpack.c.b16 %v876, %v874
  %v1233 = vpack.c.b16 %v877, %v875
  %v1234 = vpack.c.b16 %v880, %v878
  %v1235 = vpack.c.b16 %v881, %v879
  %v1236 = vpack.c.b16 %v884, %v882
  %v1237 = vpack.c.b16 %v885, %v883
  %v1238 = vpack.c.b16 %v888, %v886
  %v1239 = vpack.c.b16 %v889, %v887
  %v1240 = vpack.c.b16 %v892, %v890
  %v1241 = vpack.c.b16 %v893, %v891
  %v1242 = vpack.c.b16 %v896, %v894
  %v1243 = vpack.c.b16 %v897, %v895
  %v1244 = vpack.c.b16 %v900, %v898
  %v1245 = vpack.c.b16 %v901, %v899
  %v1246 = vpack.c.b16 %v904, %v902
  %v1247 = vpack.c.b16 %v905, %v903
  %v1248 = vpack.c.b16 %v908, %v906
  %v1249 = vpack.c.b16 %v909, %v907
  %v1250 = vpack.c.b16 %v912, %v910
  %v1251 = vpack.c.b16 %v913, %v911
  %v1252 = vpack.c.b16 %v916, %v914
  %v1253 = vpack.c.b16 %v917, %v915
  %v1254 = vpack.c.b16 %v920, %v918
  %v1255 = vpack.c.b16 %v921, %v919
  %v1256 = vpack.c.b16 %v924, %v922
  %v1257 = vpack.c.b16 %v925, %v923
  %v1258 = vpack.c.b16 %v928, %v926
  %v1259 = vpack.c.b16 %v929, %v927
  %v1260 = vpack.c.b16 %v932, %v930
  %v1261 = vpack.c.b16 %v933, %v931
  %v1262 = vpack.c.b16 %v936, %v934
  %v1263 = vpack.c.b16 %v937, %v935
  %v1264 = vpack.c.b16 %v940, %v938
  %v1265 = vpack.c.b16 %v941, %v939
  %v1266 = vpack.c.b16 %v944, %v942
  %v1267 = vpack.c.b16 %v945, %v943
  %v1268 = vpack.c.b16 %v948, %v946
  %v1269 = vpack.c.b16 %v949, %v947
  %v1270 = vpack.c.b16 %v952, %v950
  %v1271 = vpack.c.b16 %v953, %v951
  %v1272 = vpack.c.b16 %v956, %v954
  %v1273 = vpack.c.b16 %v957, %v955
  %v1274 = vpack.c.b16 %v960, %v958
  %v1275 = vpack.c.b16 %v961, %v959
  %v1276 = vpack.c.b16 %v964, %v962
  %v1277 = vpack.c.b16 %v965, %v963
  %v1278 = vpack.c.b16 %v968, %v966
  %v1279 = vpack.c.b16 %v969, %v967
  %v1280 = vpack.c.b16 %v972, %v970
  %v1281 = vpack.c.b16 %v973, %v971
  %v1282 = vpack.c.b16 %v976, %v974
  %v1283 = vpack.c.b16 %v977, %v975
  %v1284 = vpack.c.b16 %v980, %v978
  %v1285 = vpack.c.b16 %v981, %v979
  %v1286 = vpack.c.b16 %v984, %v982
  %v1287 = vpack.c.b16 %v985, %v983
  %v1288 = vpack.c.b16 %v988, %v986
  %v1289 = vpack.c.b16 %v989, %v987
  %v1290 = vpack.c.b16 %v992, %v990
  %v1291 = vpack.c.b16 %v993, %v991
  %v1292 = vpack.c.b16 %v996, %v994
  %v1293 = vpack.c.b16 %v997, %v995
  %v1294 = vpack.c.b16 %v1000, %v998
  %v1295 = vpack.c.b16 %v1001, %v999
  %v1296 = vpack.c.b16 %v1004, %v1002
  %v1297 = vpack.c.b16 %v1005, %v1003
  %v1298 = vpack.c.b16 %v1008, %v1006
  %v1299 = vpack.c.b16 %v1009, %v1007
  %v1300 = vpack.c.b16 %v1012, %v1010
  %v1301 = vpack.c.b16 %v1013, %v1011
  %v1302 = vpack.c.b16 %v1016, %v1014
  %v1303 = vpack.c.b16 %v1017, %v1015
  %v1304 = vpack.c.b16 %v1020, %v1018
  %v1305 = vpack.c.b16 %v1021, %v1019
  %v1306 = vpack.c.b16 %v1024, %v1022
  %v1307 = vpack.c.b16 %v1025, %v1023
  %v1308 = vpack.c.b16 %v1028, %v1026
  %v1309 = vpack.c.b16 %v1029, %v1027
  %v1310 = vpack.c.b16 %v1032, %v1030
  %v1311 = vpack.c.b16 %v1033, %v1031
  %v1312 = vpack.c.b16 %v1036, %v1034
  %v1313 = vpack.c.b16 %v1037, %v1035
  %v1314 = vpack.c.b16 %v1040, %v1038
  %v1315 = vpack.c.b16 %v1041, %v1039
  %v1316 = vpack.c.b16 %v1044, %v1042
  %v1317 = vpack.c.b16 %v1045, %v1043
  %v1318 = vpack.c.b16 %v1048, %v1046
  %v1319 = vpack.c.b16 %v1049, %v1047
  %v1320 = vpack.c.b16 %v1052, %v1050
  %v1321 = vpack.c.b16 %v1053, %v1051
  %v1322 = vpack.c.b16 %v1056, %v1054
  %v1323 = vpack.c.b16 %v1057, %v1055
  %v1324 = vpack.c.b16 %v1060, %v1058
  %v1325 = vpack.c.b16 %v1061, %v1059
  %v1326 = vpack.c.b16 %v1064, %v1062
  %v1327 = vpack.c.b16 %v1065, %v1063
  %v1328 = vpack.c.b16 %v1068, %v1066
  %v1329 = vpack.c.b16 %v1069, %v1067
  %v1330 = vpack.c.b16 %v1072, %v1070
  %v1331 = vpack.c.b16 %v1073, %v1071
  %v1332 = vpack.c.b16 %v1076, %v1074
  %v1333 = vpack.c.b16 %v1077, %v1075
  %v1622 = vunpack.c.l.b16 %v271
  %v1623 = vunpack.c.l.b16 %v272
  %v1624 = vunpack.c.l.b16 %v273
  %v1625 = vunpack.c.l.b16 %v274
  %v1626 = vunpack.c.l.b16 %v275
  %v1627 = vunpack.c.l.b16 %v276
  %v1628 = vunpack.c.l.b16 %v277
  %v1629 = vunpack.c.l.b16 %v278
  %v1630 = vunpack.c.l.b16 %v279
  %v1631 = vunpack.c.l.b16 %v280
  %v1632 = vunpack.c.l.b16 %v281
  %v1633 = vunpack.c.l.b16 %v282
  %v1634 = vunpack.c.l.b16 %v283
  %v1635 = vunpack.c.l.b16 %v284
  %v1636 = vunpack.c.l.b16 %v285
  %v1637 = vunpack.c.l.b16 %v286
  %v1638 = vunpack.c.l.b16 %v287
  %v1639 = vunpack.c.l.b16 %v288
  %v1640 = vunpack.c.l.b16 %v289
  %v1641 = vunpack.c.l.b16 %v290
  %v1642 = vunpack.c.l.b16 %v291
  %v1643 = vunpack.c.l.b16 %v292
  %v1644 = vunpack.c.l.b16 %v293
  %v1645 = vunpack.c.l.b16 %v294
  %v1646 = vunpack.c.l.b16 %v295
  %v1647 = vunpack.c.l.b16 %v296
  %v1648 = vunpack.c.l.b16 %v297
  %v1649 = vunpack.c.l.b16 %v298
  %v1650 = vunpack.c.l.b16 %v299
  %v1651 = vunpack.c.l.b16 %v300
  %v1652 = vunpack.c.l.b16 %v301
  %v1653 = vunpack.c.l.b16 %v302
  %v1654 = vpack.c.b16 %v1623, %v1622
  %v1655 = vpack.c.b16 %v1625, %v1624
  %v1656 = vpack.c.b16 %v1627, %v1626
  %v1657 = vpack.c.b16 %v1629, %v1628
  %v1658 = vpack.c.b16 %v1631, %v1630
  %v1659 = vpack.c.b16 %v1633, %v1632
  %v1660 = vpack.c.b16 %v1635, %v1634
  %v1661 = vpack.c.b16 %v1637, %v1636
  %v1662 = vpack.c.b16 %v1639, %v1638
  %v1663 = vpack.c.b16 %v1641, %v1640
  %v1664 = vpack.c.b16 %v1643, %v1642
  %v1665 = vpack.c.b16 %v1645, %v1644
  %v1666 = vpack.c.b16 %v1647, %v1646
  %v1667 = vpack.c.b16 %v1649, %v1648
  %v1668 = vpack.c.b16 %v1651, %v1650
  %v1669 = vpack.c.b16 %v1653, %v1652
  %1686 = vmatprep.subr.bf16.mxu0 0
  %1687 = vmatpush1.bf16.msra.mxu0 %v1654
  %1688 = vmatprep.subr.bf16.mxu0 0
  %1689 = vmatpush1.bf16.msra.mxu0 %v1655
  %1690 = vmatprep.subr.bf16.mxu0 0
  %1691 = vmatpush1.bf16.msra.mxu0 %v1656
  %1692 = vmatprep.subr.bf16.mxu0 0
  %1693 = vmatpush1.bf16.msra.mxu0 %v1657
  %1694 = vmatprep.subr.bf16.mxu0 0
  %1695 = vmatpush1.bf16.msra.mxu0 %v1658
  %1696 = vmatprep.subr.bf16.mxu0 0
  %1697 = vmatpush1.bf16.msra.mxu0 %v1659
  %1698 = vmatprep.subr.bf16.mxu0 0
  %1699 = vmatpush1.bf16.msra.mxu0 %v1660
  %1700 = vmatprep.subr.bf16.mxu0 0
  %1701 = vmatpush1.bf16.msra.mxu0 %v1661
  %1702 = vmatprep.subr.bf16.mxu0 0
  %1703 = vmatpush1.bf16.msra.mxu0 %v1662
  %1704 = vmatprep.subr.bf16.mxu0 0
  %1705 = vmatpush1.bf16.msra.mxu0 %v1663
  %1706 = vmatprep.subr.bf16.mxu0 0
  %1707 = vmatpush1.bf16.msra.mxu0 %v1664
  %1708 = vmatprep.subr.bf16.mxu0 0
  %1709 = vmatpush1.bf16.msra.mxu0 %v1665
  %1710 = vmatprep.subr.bf16.mxu0 0
  %1711 = vmatpush1.bf16.msra.mxu0 %v1666
  %1712 = vmatprep.subr.bf16.mxu0 0
  %1713 = vmatpush1.bf16.msra.mxu0 %v1667
  %1714 = vmatprep.subr.bf16.mxu0 0
  %1715 = vmatpush1.bf16.msra.mxu0 %v1668
  %1716 = vmatprep.subr.bf16.mxu0 0
  %1717 = vmatpush1.bf16.msra.mxu0 %v1669
  %1718 = vmatprep.mubr.bf16.mxu0 %v1079
  %1719 = vmatmul.mubr.bf16.gmra.mrb[0].mxu0 %v1078
  %v1720 = vpop.f32.mrb[0].mxu0
  %v1721 = vadd.f32 %v308, %v1720
  %v1722 = vpop.f32.mrb[0].mxu0
  %v1723 = vpop.f32.mrb[0].mxu0
  %v1724 = vadd.f32 %v308, %v1723
  %v1725 = vpop.f32.mrb[0].mxu0
  %1726 = vmatprep.mubr.bf16.mxu0 %v1081
  %1727 = vmatmul.mubr.bf16.gmra.mrb[0].mxu0 %v1080
  %v1728 = vpop.f32.mrb[0].mxu0
  %v1729 = vadd.f32 %v308, %v1728
  %v1730 = vpop.f32.mrb[0].mxu0
  %v1731 = vpop.f32.mrb[0].mxu0
  %v1732 = vadd.f32 %v308, %v1731
  %v1733 = vpop.f32.mrb[0].mxu0
  %1734 = vmatprep.mubr.bf16.mxu0 %v1083
  %1735 = vmatmul.mubr.bf16.gmra.mrb[0].mxu0 %v1082
  %v1736 = vpop.f32.mrb[0].mxu0
  %v1737 = vadd.f32 %v308, %v1736
  %v1738 = vpop.f32.mrb[0].mxu0
  %v1739 = vpop.f32.mrb[0].mxu0
  %v1740 = vadd.f32 %v308, %v1739
  %v1741 = vpop.f32.mrb[0].mxu0
  %1742 = vmatprep.mubr.bf16.mxu0 %v1085
  %1743 = vmatmul.mubr.bf16.gmra.mrb[0].mxu0 %v1084
  %v1744 = vpop.f32.mrb[0].mxu0
  %v1745 = vadd.f32 %v308, %v1744
  %v1746 = vpop.f32.mrb[0].mxu0
  %v1747 = vpop.f32.mrb[0].mxu0
  %v1748 = vadd.f32 %v308, %v1747
  %v1749 = vpop.f32.mrb[0].mxu0
  %1750 = vmatprep.mubr.bf16.mxu0 %v1087
  %1751 = vmatmul.mubr.bf16.gmra.mrb[0].mxu0 %v1086
  %v1752 = vpop.f32.mrb[0].mxu0
  %v1753 = vadd.f32 %v308, %v1752
  %v1754 = vpop.f32.mrb[0].mxu0
  %v1755 = vpop.f32.mrb[0].mxu0
  %v1756 = vadd.f32 %v308, %v1755
  %v1757 = vpop.f32.mrb[0].mxu0
  %1758 = vmatprep.mubr.bf16.mxu0 %v1089
  %1759 = vmatmul.mubr.bf16.gmra.mrb[0].mxu0 %v1088
  %v1760 = vpop.f32.mrb[0].mxu0
  %v1761 = vadd.f32 %v308, %v1760
  %v1762 = vpop.f32.mrb[0].mxu0
  %v1763 = vpop.f32.mrb[0].mxu0
  %v1764 = vadd.f32 %v308, %v1763
  %v1765 = vpop.f32.mrb[0].mxu0
  %1766 = vmatprep.mubr.bf16.mxu0 %v1091
  %1767 = vmatmul.mubr.bf16.gmra.mrb[0].mxu0 %v1090
  %v1768 = vpop.f32.mrb[0].mxu0
  %v1769 = vadd.f32 %v308, %v1768
  %v1770 = vpop.f32.mrb[0].mxu0
  %v1771 = vpop.f32.mrb[0].mxu0
  %v1772 = vadd.f32 %v308, %v1771
  %v1773 = vpop.f32.mrb[0].mxu0
  %1774 = vmatprep.mubr.bf16.mxu0 %v1093
  %1775 = vmatmul.mubr.bf16.gmra.mrb[0].mxu0 %v1092
  %v1776 = vpop.f32.mrb[0].mxu0
  %v1777 = vadd.f32 %v308, %v1776
  %v1778 = vpop.f32.mrb[0].mxu0
  %v1779 = vpop.f32.mrb[0].mxu0
  %v1780 = vadd.f32 %v308, %v1779
  %v1781 = vpop.f32.mrb[0].mxu0
  %1782 = vmatprep.mubr.bf16.mxu0 %v1095
  %1783 = vmatmul.mubr.bf16.gmra.mrb[0].mxu0 %v1094
  %v1784 = vpop.f32.mrb[0].mxu0
  %v1785 = vadd.f32 %v308, %v1784
  %v1786 = vpop.f32.mrb[0].mxu0
  %v1787 = vpop.f32.mrb[0].mxu0
  %v1788 = vadd.f32 %v308, %v1787
  %v1789 = vpop.f32.mrb[0].mxu0
  %1790 = vmatprep.mubr.bf16.mxu0 %v1097
  %1791 = vmatmul.mubr.bf16.gmra.mrb[0].mxu0 %v1096
  %v1792 = vpop.f32.mrb[0].mxu0
  %v1793 = vadd.f32 %v308, %v1792
  %v1794 = vpop.f32.mrb[0].mxu0
  %v1795 = vpop.f32.mrb[0].mxu0
  %v1796 = vadd.f32 %v308, %v1795
  %v1797 = vpop.f32.mrb[0].mxu0
  %1798 = vmatprep.mubr.bf16.mxu0 %v1099
  %1799 = vmatmul.mubr.bf16.gmra.mrb[0].mxu0 %v1098
  %v1800 = vpop.f32.mrb[0].mxu0
  %v1801 = vadd.f32 %v308, %v1800
  %v1802 = vpop.f32.mrb[0].mxu0
  %v1803 = vpop.f32.mrb[0].mxu0
  %v1804 = vadd.f32 %v308, %v1803
  %v1805 = vpop.f32.mrb[0].mxu0
  %1806 = vmatprep.mubr.bf16.mxu0 %v1101
  %1807 = vmatmul.mubr.bf16.gmra.mrb[0].mxu0 %v1100
  %v1808 = vpop.f32.mrb[0].mxu0
  %v1809 = vadd.f32 %v308, %v1808
  %v1810 = vpop.f32.mrb[0].mxu0
  %v1811 = vpop.f32.mrb[0].mxu0
  %v1812 = vadd.f32 %v308, %v1811
  %v1813 = vpop.f32.mrb[0].mxu0
  %1814 = vmatprep.mubr.bf16.mxu0 %v1103
  %1815 = vmatmul.mubr.bf16.gmra.mrb[0].mxu0 %v1102
  %v1816 = vpop.f32.mrb[0].mxu0
  %v1817 = vadd.f32 %v308, %v1816
  %v1818 = vpop.f32.mrb[0].mxu0
  %v1819 = vpop.f32.mrb[0].mxu0
  %v1820 = vadd.f32 %v308, %v1819
  %v1821 = vpop.f32.mrb[0].mxu0
  %1822 = vmatprep.mubr.bf16.mxu0 %v1105
  %1823 = vmatmul.mubr.bf16.gmra.mrb[0].mxu0 %v1104
  %v1824 = vpop.f32.mrb[0].mxu0
  %v1825 = vadd.f32 %v308, %v1824
  %v1826 = vpop.f32.mrb[0].mxu0
  %v1827 = vpop.f32.mrb[0].mxu0
  %v1828 = vadd.f32 %v308, %v1827
  %v1829 = vpop.f32.mrb[0].mxu0
  %1830 = vmatprep.mubr.bf16.mxu0 %v1107
  %1831 = vmatmul.mubr.bf16.gmra.mrb[0].mxu0 %v1106
  %v1832 = vpop.f32.mrb[0].mxu0
  %v1833 = vadd.f32 %v308, %v1832
  %v1834 = vpop.f32.mrb[0].mxu0
  %v1835 = vpop.f32.mrb[0].mxu0
  %v1836 = vadd.f32 %v308, %v1835
  %v1837 = vpop.f32.mrb[0].mxu0
  %1838 = vmatprep.mubr.bf16.mxu0 %v1109
  %1839 = vmatmul.mubr.bf16.gmra.mrb[0].mxu0 %v1108
  %v1840 = vpop.f32.mrb[0].mxu0
  %v1841 = vadd.f32 %v308, %v1840
  %v1842 = vpop.f32.mrb[0].mxu0
  %v1843 = vpop.f32.mrb[0].mxu0
  %v1844 = vadd.f32 %v308, %v1843
  %v1845 = vpop.f32.mrb[0].mxu0
  %1846 = vmatprep.mubr.bf16.mxu0 %v1111
  %1847 = vmatmul.mubr.bf16.gmra.mrb[0].mxu0 %v1110
  %v1848 = vpop.f32.mrb[0].mxu0
  %v1849 = vadd.f32 %v308, %v1848
  %v1850 = vpop.f32.mrb[0].mxu0
  %v1851 = vpop.f32.mrb[0].mxu0
  %v1852 = vadd.f32 %v308, %v1851
  %v1853 = vpop.f32.mrb[0].mxu0
  %1854 = vmatprep.mubr.bf16.mxu0 %v1113
  %1855 = vmatmul.mubr.bf16.gmra.mrb[0].mxu0 %v1112
  %v1856 = vpop.f32.mrb[0].mxu0
  %v1857 = vadd.f32 %v308, %v1856
  %v1858 = vpop.f32.mrb[0].mxu0
  %v1859 = vpop.f32.mrb[0].mxu0
  %v1860 = vadd.f32 %v308, %v1859
  %v1861 = vpop.f32.mrb[0].mxu0
  %1862 = vmatprep.mubr.bf16.mxu0 %v1115
  %1863 = vmatmul.mubr.bf16.gmra.mrb[0].mxu0 %v1114
  %v1864 = vpop.f32.mrb[0].mxu0
  %v1865 = vadd.f32 %v308, %v1864
  %v1866 = vpop.f32.mrb[0].mxu0
  %v1867 = vpop.f32.mrb[0].mxu0
  %v1868 = vadd.f32 %v308, %v1867
  %v1869 = vpop.f32.mrb[0].mxu0
  %1870 = vmatprep.mubr.bf16.mxu0 %v1117
  %1871 = vmatmul.mubr.bf16.gmra.mrb[0].mxu0 %v1116
  %v1872 = vpop.f32.mrb[0].mxu0
  %v1873 = vadd.f32 %v308, %v1872
  %v1874 = vpop.f32.mrb[0].mxu0
  %v1875 = vpop.f32.mrb[0].mxu0
  %v1876 = vadd.f32 %v308, %v1875
  %v1877 = vpop.f32.mrb[0].mxu0
  %1878 = vmatprep.mubr.bf16.mxu0 %v1119
  %1879 = vmatmul.mubr.bf16.gmra.mrb[0].mxu0 %v1118
  %v1880 = vpop.f32.mrb[0].mxu0
  %v1881 = vadd.f32 %v308, %v1880
  %v1882 = vpop.f32.mrb[0].mxu0
  %v1883 = vpop.f32.mrb[0].mxu0
  %v1884 = vadd.f32 %v308, %v1883
  %v1885 = vpop.f32.mrb[0].mxu0
  %1886 = vmatprep.mubr.bf16.mxu0 %v1121
  %1887 = vmatmul.mubr.bf16.gmra.mrb[0].mxu0 %v1120
  %v1888 = vpop.f32.mrb[0].mxu0
  %v1889 = vadd.f32 %v308, %v1888
  %v1890 = vpop.f32.mrb[0].mxu0
  %v1891 = vpop.f32.mrb[0].mxu0
  %v1892 = vadd.f32 %v308, %v1891
  %v1893 = vpop.f32.mrb[0].mxu0
  %1894 = vmatprep.mubr.bf16.mxu0 %v1123
  %1895 = vmatmul.mubr.bf16.gmra.mrb[0].mxu0 %v1122
  %v1896 = vpop.f32.mrb[0].mxu0
  %v1897 = vadd.f32 %v308, %v1896
  %v1898 = vpop.f32.mrb[0].mxu0
  %v1899 = vpop.f32.mrb[0].mxu0
  %v1900 = vadd.f32 %v308, %v1899
  %v1901 = vpop.f32.mrb[0].mxu0
  %1902 = vmatprep.mubr.bf16.mxu0 %v1125
  %1903 = vmatmul.mubr.bf16.gmra.mrb[0].mxu0 %v1124
  %v1904 = vpop.f32.mrb[0].mxu0
  %v1905 = vadd.f32 %v308, %v1904
  %v1906 = vpop.f32.mrb[0].mxu0
  %v1907 = vpop.f32.mrb[0].mxu0
  %v1908 = vadd.f32 %v308, %v1907
  %v1909 = vpop.f32.mrb[0].mxu0
  %1910 = vmatprep.mubr.bf16.mxu0 %v1127
  %1911 = vmatmul.mubr.bf16.gmra.mrb[0].mxu0 %v1126
  %v1912 = vpop.f32.mrb[0].mxu0
  %v1913 = vadd.f32 %v308, %v1912
  %v1914 = vpop.f32.mrb[0].mxu0
  %v1915 = vpop.f32.mrb[0].mxu0
  %v1916 = vadd.f32 %v308, %v1915
  %v1917 = vpop.f32.mrb[0].mxu0
  %1918 = vmatprep.mubr.bf16.mxu0 %v1129
  %1919 = vmatmul.mubr.bf16.gmra.mrb[0].mxu0 %v1128
  %v1920 = vpop.f32.mrb[0].mxu0
  %v1921 = vadd.f32 %v308, %v1920
  %v1922 = vpop.f32.mrb[0].mxu0
  %v1923 = vpop.f32.mrb[0].mxu0
  %v1924 = vadd.f32 %v308, %v1923
  %v1925 = vpop.f32.mrb[0].mxu0
  %1926 = vmatprep.mubr.bf16.mxu0 %v1131
  %1927 = vmatmul.mubr.bf16.gmra.mrb[0].mxu0 %v1130
  %v1928 = vpop.f32.mrb[0].mxu0
  %v1929 = vadd.f32 %v308, %v1928
  %v1930 = vpop.f32.mrb[0].mxu0
  %v1931 = vpop.f32.mrb[0].mxu0
  %v1932 = vadd.f32 %v308, %v1931
  %v1933 = vpop.f32.mrb[0].mxu0
  %1934 = vmatprep.mubr.bf16.mxu0 %v1133
  %1935 = vmatmul.mubr.bf16.gmra.mrb[0].mxu0 %v1132
  %v1936 = vpop.f32.mrb[0].mxu0
  %v1937 = vadd.f32 %v308, %v1936
  %v1938 = vpop.f32.mrb[0].mxu0
  %v1939 = vpop.f32.mrb[0].mxu0
  %v1940 = vadd.f32 %v308, %v1939
  %v1941 = vpop.f32.mrb[0].mxu0
  %1942 = vmatprep.mubr.bf16.mxu0 %v1135
  %1943 = vmatmul.mubr.bf16.gmra.mrb[0].mxu0 %v1134
  %v1944 = vpop.f32.mrb[0].mxu0
  %v1945 = vadd.f32 %v308, %v1944
  %v1946 = vpop.f32.mrb[0].mxu0
  %v1947 = vpop.f32.mrb[0].mxu0
  %v1948 = vadd.f32 %v308, %v1947
  %v1949 = vpop.f32.mrb[0].mxu0
  %1950 = vmatprep.mubr.bf16.mxu0 %v1137
  %1951 = vmatmul.mubr.bf16.gmra.mrb[0].mxu0 %v1136
  %v1952 = vpop.f32.mrb[0].mxu0
  %v1953 = vadd.f32 %v308, %v1952
  %v1954 = vpop.f32.mrb[0].mxu0
  %v1955 = vpop.f32.mrb[0].mxu0
  %v1956 = vadd.f32 %v308, %v1955
  %v1957 = vpop.f32.mrb[0].mxu0
  %1958 = vmatprep.mubr.bf16.mxu0 %v1139
  %1959 = vmatmul.mubr.bf16.gmra.mrb[0].mxu0 %v1138
  %v1960 = vpop.f32.mrb[0].mxu0
  %v1961 = vadd.f32 %v308, %v1960
  %v1962 = vpop.f32.mrb[0].mxu0
  %v1963 = vpop.f32.mrb[0].mxu0
  %v1964 = vadd.f32 %v308, %v1963
  %v1965 = vpop.f32.mrb[0].mxu0
  %1966 = vmatprep.mubr.bf16.mxu0 %v1141
  %1967 = vmatmul.mubr.bf16.gmra.mrb[0].mxu0 %v1140
  %v1968 = vpop.f32.mrb[0].mxu0
  %v1969 = vadd.f32 %v308, %v1968
  %v1970 = vpop.f32.mrb[0].mxu0
  %v1971 = vpop.f32.mrb[0].mxu0
  %v1972 = vadd.f32 %v308, %v1971
  %v1973 = vpop.f32.mrb[0].mxu0
  %1974 = vmatprep.mubr.bf16.mxu0 %v1143
  %1975 = vmatmul.mubr.bf16.gmra.mrb[0].mxu0 %v1142
  %v1976 = vpop.f32.mrb[0].mxu0
  %v1977 = vadd.f32 %v308, %v1976
  %v1978 = vpop.f32.mrb[0].mxu0
  %v1979 = vpop.f32.mrb[0].mxu0
  %v1980 = vadd.f32 %v308, %v1979
  %v1981 = vpop.f32.mrb[0].mxu0
  %1982 = vmatprep.mubr.bf16.mxu0 %v1145
  %1983 = vmatmul.mubr.bf16.gmra.mrb[0].mxu0 %v1144
  %v1984 = vpop.f32.mrb[0].mxu0
  %v1985 = vadd.f32 %v308, %v1984
  %v1986 = vpop.f32.mrb[0].mxu0
  %v1987 = vpop.f32.mrb[0].mxu0
  %v1988 = vadd.f32 %v308, %v1987
  %v1989 = vpop.f32.mrb[0].mxu0
  %1990 = vmatprep.mubr.bf16.mxu0 %v1147
  %1991 = vmatmul.mubr.bf16.gmra.mrb[0].mxu0 %v1146
  %v1992 = vpop.f32.mrb[0].mxu0
  %v1993 = vadd.f32 %v308, %v1992
  %v1994 = vpop.f32.mrb[0].mxu0
  %v1995 = vpop.f32.mrb[0].mxu0
  %v1996 = vadd.f32 %v308, %v1995
  %v1997 = vpop.f32.mrb[0].mxu0
  %1998 = vmatprep.mubr.bf16.mxu0 %v1149
  %1999 = vmatmul.mubr.bf16.gmra.mrb[0].mxu0 %v1148
  %v2000 = vpop.f32.mrb[0].mxu0
  %v2001 = vadd.f32 %v308, %v2000
  %v2002 = vpop.f32.mrb[0].mxu0
  %v2003 = vpop.f32.mrb[0].mxu0
  %v2004 = vadd.f32 %v308, %v2003
  %v2005 = vpop.f32.mrb[0].mxu0
  %2006 = vmatprep.mubr.bf16.mxu0 %v1151
  %2007 = vmatmul.mubr.bf16.gmra.mrb[0].mxu0 %v1150
  %v2008 = vpop.f32.mrb[0].mxu0
  %v2009 = vadd.f32 %v308, %v2008
  %v2010 = vpop.f32.mrb[0].mxu0
  %v2011 = vpop.f32.mrb[0].mxu0
  %v2012 = vadd.f32 %v308, %v2011
  %v2013 = vpop.f32.mrb[0].mxu0
  %2014 = vmatprep.mubr.bf16.mxu0 %v1153
  %2015 = vmatmul.mubr.bf16.gmra.mrb[0].mxu0 %v1152
  %v2016 = vpop.f32.mrb[0].mxu0
  %v2017 = vadd.f32 %v308, %v2016
  %v2018 = vpop.f32.mrb[0].mxu0
  %v2019 = vpop.f32.mrb[0].mxu0
  %v2020 = vadd.f32 %v308, %v2019
  %v2021 = vpop.f32.mrb[0].mxu0
  %2022 = vmatprep.mubr.bf16.mxu0 %v1155
  %2023 = vmatmul.mubr.bf16.gmra.mrb[0].mxu0 %v1154
  %v2024 = vpop.f32.mrb[0].mxu0
  %v2025 = vadd.f32 %v308, %v2024
  %v2026 = vpop.f32.mrb[0].mxu0
  %v2027 = vpop.f32.mrb[0].mxu0
  %v2028 = vadd.f32 %v308, %v2027
  %v2029 = vpop.f32.mrb[0].mxu0
  %2030 = vmatprep.mubr.bf16.mxu0 %v1157
  %2031 = vmatmul.mubr.bf16.gmra.mrb[0].mxu0 %v1156
  %v2032 = vpop.f32.mrb[0].mxu0
  %v2033 = vadd.f32 %v308, %v2032
  %v2034 = vpop.f32.mrb[0].mxu0
  %v2035 = vpop.f32.mrb[0].mxu0
  %v2036 = vadd.f32 %v308, %v2035
  %v2037 = vpop.f32.mrb[0].mxu0
  %2038 = vmatprep.mubr.bf16.mxu0 %v1159
  %2039 = vmatmul.mubr.bf16.gmra.mrb[0].mxu0 %v1158
  %v2040 = vpop.f32.mrb[0].mxu0
  %v2041 = vadd.f32 %v308, %v2040
  %v2042 = vpop.f32.mrb[0].mxu0
  %v2043 = vpop.f32.mrb[0].mxu0
  %v2044 = vadd.f32 %v308, %v2043
  %v2045 = vpop.f32.mrb[0].mxu0
  %2046 = vmatprep.mubr.bf16.mxu0 %v1161
  %2047 = vmatmul.mubr.bf16.gmra.mrb[0].mxu0 %v1160
  %v2048 = vpop.f32.mrb[0].mxu0
  %v2049 = vadd.f32 %v308, %v2048
  %v2050 = vpop.f32.mrb[0].mxu0
  %v2051 = vpop.f32.mrb[0].mxu0
  %v2052 = vadd.f32 %v308, %v2051
  %v2053 = vpop.f32.mrb[0].mxu0
  %2054 = vmatprep.mubr.bf16.mxu0 %v1163
  %2055 = vmatmul.mubr.bf16.gmra.mrb[0].mxu0 %v1162
  %v2056 = vpop.f32.mrb[0].mxu0
  %v2057 = vadd.f32 %v308, %v2056
  %v2058 = vpop.f32.mrb[0].mxu0
  %v2059 = vpop.f32.mrb[0].mxu0
  %v2060 = vadd.f32 %v308, %v2059
  %v2061 = vpop.f32.mrb[0].mxu0
  %2062 = vmatprep.mubr.bf16.mxu0 %v1165
  %2063 = vmatmul.mubr.bf16.gmra.mrb[0].mxu0 %v1164
  %v2064 = vpop.f32.mrb[0].mxu0
  %v2065 = vadd.f32 %v308, %v2064
  %v2066 = vpop.f32.mrb[0].mxu0
  %v2067 = vpop.f32.mrb[0].mxu0
  %v2068 = vadd.f32 %v308, %v2067
  %v2069 = vpop.f32.mrb[0].mxu0
  %2070 = vmatprep.mubr.bf16.mxu0 %v1167
  %2071 = vmatmul.mubr.bf16.gmra.mrb[0].mxu0 %v1166
  %v2072 = vpop.f32.mrb[0].mxu0
  %v2073 = vadd.f32 %v308, %v2072
  %v2074 = vpop.f32.mrb[0].mxu0
  %v2075 = vpop.f32.mrb[0].mxu0
  %v2076 = vadd.f32 %v308, %v2075
  %v2077 = vpop.f32.mrb[0].mxu0
  %2078 = vmatprep.mubr.bf16.mxu0 %v1169
  %2079 = vmatmul.mubr.bf16.gmra.mrb[0].mxu0 %v1168
  %v2080 = vpop.f32.mrb[0].mxu0
  %v2081 = vadd.f32 %v308, %v2080
  %v2082 = vpop.f32.mrb[0].mxu0
  %v2083 = vpop.f32.mrb[0].mxu0
  %v2084 = vadd.f32 %v308, %v2083
  %v2085 = vpop.f32.mrb[0].mxu0
  %2086 = vmatprep.mubr.bf16.mxu0 %v1171
  %2087 = vmatmul.mubr.bf16.gmra.mrb[0].mxu0 %v1170
  %v2088 = vpop.f32.mrb[0].mxu0
  %v2089 = vadd.f32 %v308, %v2088
  %v2090 = vpop.f32.mrb[0].mxu0
  %v2091 = vpop.f32.mrb[0].mxu0
  %v2092 = vadd.f32 %v308, %v2091
  %v2093 = vpop.f32.mrb[0].mxu0
  %2094 = vmatprep.mubr.bf16.mxu0 %v1173
  %2095 = vmatmul.mubr.bf16.gmra.mrb[0].mxu0 %v1172
  %v2096 = vpop.f32.mrb[0].mxu0
  %v2097 = vadd.f32 %v308, %v2096
  %v2098 = vpop.f32.mrb[0].mxu0
  %v2099 = vpop.f32.mrb[0].mxu0
  %v2100 = vadd.f32 %v308, %v2099
  %v2101 = vpop.f32.mrb[0].mxu0
  %2102 = vmatprep.mubr.bf16.mxu0 %v1175
  %2103 = vmatmul.mubr.bf16.gmra.mrb[0].mxu0 %v1174
  %v2104 = vpop.f32.mrb[0].mxu0
  %v2105 = vadd.f32 %v308, %v2104
  %v2106 = vpop.f32.mrb[0].mxu0
  %v2107 = vpop.f32.mrb[0].mxu0
  %v2108 = vadd.f32 %v308, %v2107
  %v2109 = vpop.f32.mrb[0].mxu0
  %2110 = vmatprep.mubr.bf16.mxu0 %v1177
  %2111 = vmatmul.mubr.bf16.gmra.mrb[0].mxu0 %v1176
  %v2112 = vpop.f32.mrb[0].mxu0
  %v2113 = vadd.f32 %v308, %v2112
  %v2114 = vpop.f32.mrb[0].mxu0
  %v2115 = vpop.f32.mrb[0].mxu0
  %v2116 = vadd.f32 %v308, %v2115
  %v2117 = vpop.f32.mrb[0].mxu0
  %2118 = vmatprep.mubr.bf16.mxu0 %v1179
  %2119 = vmatmul.mubr.bf16.gmra.mrb[0].mxu0 %v1178
  %v2120 = vpop.f32.mrb[0].mxu0
  %v2121 = vadd.f32 %v308, %v2120
  %v2122 = vpop.f32.mrb[0].mxu0
  %v2123 = vpop.f32.mrb[0].mxu0
  %v2124 = vadd.f32 %v308, %v2123
  %v2125 = vpop.f32.mrb[0].mxu0
  %2126 = vmatprep.mubr.bf16.mxu0 %v1181
  %2127 = vmatmul.mubr.bf16.gmra.mrb[0].mxu0 %v1180
  %v2128 = vpop.f32.mrb[0].mxu0
  %v2129 = vadd.f32 %v308, %v2128
  %v2130 = vpop.f32.mrb[0].mxu0
  %v2131 = vpop.f32.mrb[0].mxu0
  %v2132 = vadd.f32 %v308, %v2131
  %v2133 = vpop.f32.mrb[0].mxu0
  %2134 = vmatprep.mubr.bf16.mxu0 %v1183
  %2135 = vmatmul.mubr.bf16.gmra.mrb[0].mxu0 %v1182
  %v2136 = vpop.f32.mrb[0].mxu0
  %v2137 = vadd.f32 %v308, %v2136
  %v2138 = vpop.f32.mrb[0].mxu0
  %v2139 = vpop.f32.mrb[0].mxu0
  %v2140 = vadd.f32 %v308, %v2139
  %v2141 = vpop.f32.mrb[0].mxu0
  %2142 = vmatprep.mubr.bf16.mxu0 %v1185
  %2143 = vmatmul.mubr.bf16.gmra.mrb[0].mxu0 %v1184
  %v2144 = vpop.f32.mrb[0].mxu0
  %v2145 = vadd.f32 %v308, %v2144
  %v2146 = vpop.f32.mrb[0].mxu0
  %v2147 = vpop.f32.mrb[0].mxu0
  %v2148 = vadd.f32 %v308, %v2147
  %v2149 = vpop.f32.mrb[0].mxu0
  %2150 = vmatprep.mubr.bf16.mxu0 %v1187
  %2151 = vmatmul.mubr.bf16.gmra.mrb[0].mxu0 %v1186
  %v2152 = vpop.f32.mrb[0].mxu0
  %v2153 = vadd.f32 %v308, %v2152
  %v2154 = vpop.f32.mrb[0].mxu0
  %v2155 = vpop.f32.mrb[0].mxu0
  %v2156 = vadd.f32 %v308, %v2155
  %v2157 = vpop.f32.mrb[0].mxu0
  %2158 = vmatprep.mubr.bf16.mxu0 %v1189
  %2159 = vmatmul.mubr.bf16.gmra.mrb[0].mxu0 %v1188
  %v2160 = vpop.f32.mrb[0].mxu0
  %v2161 = vadd.f32 %v308, %v2160
  %v2162 = vpop.f32.mrb[0].mxu0
  %v2163 = vpop.f32.mrb[0].mxu0
  %v2164 = vadd.f32 %v308, %v2163
  %v2165 = vpop.f32.mrb[0].mxu0
  %2166 = vmatprep.mubr.bf16.mxu0 %v1191
  %2167 = vmatmul.mubr.bf16.gmra.mrb[0].mxu0 %v1190
  %v2168 = vpop.f32.mrb[0].mxu0
  %v2169 = vadd.f32 %v308, %v2168
  %v2170 = vpop.f32.mrb[0].mxu0
  %v2171 = vpop.f32.mrb[0].mxu0
  %v2172 = vadd.f32 %v308, %v2171
  %v2173 = vpop.f32.mrb[0].mxu0
  %2174 = vmatprep.mubr.bf16.mxu0 %v1193
  %2175 = vmatmul.mubr.bf16.gmra.mrb[0].mxu0 %v1192
  %v2176 = vpop.f32.mrb[0].mxu0
  %v2177 = vadd.f32 %v308, %v2176
  %v2178 = vpop.f32.mrb[0].mxu0
  %v2179 = vpop.f32.mrb[0].mxu0
  %v2180 = vadd.f32 %v308, %v2179
  %v2181 = vpop.f32.mrb[0].mxu0
  %2182 = vmatprep.mubr.bf16.mxu0 %v1195
  %2183 = vmatmul.mubr.bf16.gmra.mrb[0].mxu0 %v1194
  %v2184 = vpop.f32.mrb[0].mxu0
  %v2185 = vadd.f32 %v308, %v2184
  %v2186 = vpop.f32.mrb[0].mxu0
  %v2187 = vpop.f32.mrb[0].mxu0
  %v2188 = vadd.f32 %v308, %v2187
  %v2189 = vpop.f32.mrb[0].mxu0
  %2190 = vmatprep.mubr.bf16.mxu0 %v1197
  %2191 = vmatmul.mubr.bf16.gmra.mrb[0].mxu0 %v1196
  %v2192 = vpop.f32.mrb[0].mxu0
  %v2193 = vadd.f32 %v308, %v2192
  %v2194 = vpop.f32.mrb[0].mxu0
  %v2195 = vpop.f32.mrb[0].mxu0
  %v2196 = vadd.f32 %v308, %v2195
  %v2197 = vpop.f32.mrb[0].mxu0
  %2198 = vmatprep.mubr.bf16.mxu0 %v1199
  %2199 = vmatmul.mubr.bf16.gmra.mrb[0].mxu0 %v1198
  %v2200 = vpop.f32.mrb[0].mxu0
  %v2201 = vadd.f32 %v308, %v2200
  %v2202 = vpop.f32.mrb[0].mxu0
  %v2203 = vpop.f32.mrb[0].mxu0
  %v2204 = vadd.f32 %v308, %v2203
  %v2205 = vpop.f32.mrb[0].mxu0
  %2206 = vmatprep.mubr.bf16.mxu0 %v1201
  %2207 = vmatmul.mubr.bf16.gmra.mrb[0].mxu0 %v1200
  %v2208 = vpop.f32.mrb[0].mxu0
  %v2209 = vadd.f32 %v308, %v2208
  %v2210 = vpop.f32.mrb[0].mxu0
  %v2211 = vpop.f32.mrb[0].mxu0
  %v2212 = vadd.f32 %v308, %v2211
  %v2213 = vpop.f32.mrb[0].mxu0
  %2214 = vmatprep.mubr.bf16.mxu0 %v1203
  %2215 = vmatmul.mubr.bf16.gmra.mrb[0].mxu0 %v1202
  %v2216 = vpop.f32.mrb[0].mxu0
  %v2217 = vadd.f32 %v308, %v2216
  %v2218 = vpop.f32.mrb[0].mxu0
  %v2219 = vpop.f32.mrb[0].mxu0
  %v2220 = vadd.f32 %v308, %v2219
  %v2221 = vpop.f32.mrb[0].mxu0
  %2222 = vmatprep.mubr.bf16.mxu0 %v1205
  %2223 = vmatmul.mubr.bf16.gmra.mrb[0].mxu0 %v1204
  %v2224 = vpop.f32.mrb[0].mxu0
  %v2225 = vadd.f32 %v308, %v2224
  %v2226 = vpop.f32.mrb[0].mxu0
  %v2227 = vpop.f32.mrb[0].mxu0
  %v2228 = vadd.f32 %v308, %v2227
  %v2229 = vpop.f32.mrb[0].mxu0
  %2230 = vmatprep.mubr.bf16.mxu0 %v1207
  %2231 = vmatmul.mubr.bf16.gmra.mrb[0].mxu0 %v1206
  %v2232 = vpop.f32.mrb[0].mxu0
  %v2233 = vadd.f32 %v308, %v2232
  %v2234 = vpop.f32.mrb[0].mxu0
  %v2235 = vpop.f32.mrb[0].mxu0
  %v2236 = vadd.f32 %v308, %v2235
  %v2237 = vpop.f32.mrb[0].mxu0
  %2238 = vmatprep.mubr.bf16.mxu0 %v1209
  %2239 = vmatmul.mubr.bf16.gmra.mrb[0].mxu0 %v1208
  %v2240 = vpop.f32.mrb[0].mxu0
  %v2241 = vadd.f32 %v308, %v2240
  %v2242 = vpop.f32.mrb[0].mxu0
  %v2243 = vpop.f32.mrb[0].mxu0
  %v2244 = vadd.f32 %v308, %v2243
  %v2245 = vpop.f32.mrb[0].mxu0
  %2246 = vmatprep.mubr.bf16.mxu0 %v1211
  %2247 = vmatmul.mubr.bf16.gmra.mrb[0].mxu0 %v1210
  %v2248 = vpop.f32.mrb[0].mxu0
  %v2249 = vadd.f32 %v308, %v2248
  %v2250 = vpop.f32.mrb[0].mxu0
  %v2251 = vpop.f32.mrb[0].mxu0
  %v2252 = vadd.f32 %v308, %v2251
  %v2253 = vpop.f32.mrb[0].mxu0
  %2254 = vmatprep.mubr.bf16.mxu0 %v1213
  %2255 = vmatmul.mubr.bf16.gmra.mrb[0].mxu0 %v1212
  %v2256 = vpop.f32.mrb[0].mxu0
  %v2257 = vadd.f32 %v308, %v2256
  %v2258 = vpop.f32.mrb[0].mxu0
  %v2259 = vpop.f32.mrb[0].mxu0
  %v2260 = vadd.f32 %v308, %v2259
  %v2261 = vpop.f32.mrb[0].mxu0
  %2262 = vmatprep.mubr.bf16.mxu0 %v1215
  %2263 = vmatmul.mubr.bf16.gmra.mrb[0].mxu0 %v1214
  %v2264 = vpop.f32.mrb[0].mxu0
  %v2265 = vadd.f32 %v308, %v2264
  %v2266 = vpop.f32.mrb[0].mxu0
  %v2267 = vpop.f32.mrb[0].mxu0
  %v2268 = vadd.f32 %v308, %v2267
  %v2269 = vpop.f32.mrb[0].mxu0
  %2270 = vmatprep.mubr.bf16.mxu0 %v1217
  %2271 = vmatmul.mubr.bf16.gmra.mrb[0].mxu0 %v1216
  %v2272 = vpop.f32.mrb[0].mxu0
  %v2273 = vadd.f32 %v308, %v2272
  %v2274 = vpop.f32.mrb[0].mxu0
  %v2275 = vpop.f32.mrb[0].mxu0
  %v2276 = vadd.f32 %v308, %v2275
  %v2277 = vpop.f32.mrb[0].mxu0
  %2278 = vmatprep.mubr.bf16.mxu0 %v1219
  %2279 = vmatmul.mubr.bf16.gmra.mrb[0].mxu0 %v1218
  %v2280 = vpop.f32.mrb[0].mxu0
  %v2281 = vadd.f32 %v308, %v2280
  %v2282 = vpop.f32.mrb[0].mxu0
  %v2283 = vpop.f32.mrb[0].mxu0
  %v2284 = vadd.f32 %v308, %v2283
  %v2285 = vpop.f32.mrb[0].mxu0
  %2286 = vmatprep.mubr.bf16.mxu0 %v1221
  %2287 = vmatmul.mubr.bf16.gmra.mrb[0].mxu0 %v1220
  %v2288 = vpop.f32.mrb[0].mxu0
  %v2289 = vadd.f32 %v308, %v2288
  %v2290 = vpop.f32.mrb[0].mxu0
  %v2291 = vpop.f32.mrb[0].mxu0
  %v2292 = vadd.f32 %v308, %v2291
  %v2293 = vpop.f32.mrb[0].mxu0
  %2294 = vmatprep.mubr.bf16.mxu0 %v1223
  %2295 = vmatmul.mubr.bf16.gmra.mrb[0].mxu0 %v1222
  %v2296 = vpop.f32.mrb[0].mxu0
  %v2297 = vadd.f32 %v308, %v2296
  %v2298 = vpop.f32.mrb[0].mxu0
  %v2299 = vpop.f32.mrb[0].mxu0
  %v2300 = vadd.f32 %v308, %v2299
  %v2301 = vpop.f32.mrb[0].mxu0
  %2302 = vmatprep.mubr.bf16.mxu0 %v1225
  %2303 = vmatmul.mubr.bf16.gmra.mrb[0].mxu0 %v1224
  %v2304 = vpop.f32.mrb[0].mxu0
  %v2305 = vadd.f32 %v308, %v2304
  %v2306 = vpop.f32.mrb[0].mxu0
  %v2307 = vpop.f32.mrb[0].mxu0
  %v2308 = vadd.f32 %v308, %v2307
  %v2309 = vpop.f32.mrb[0].mxu0
  %2310 = vmatprep.mubr.bf16.mxu0 %v1227
  %2311 = vmatmul.mubr.bf16.gmra.mrb[0].mxu0 %v1226
  %v2312 = vpop.f32.mrb[0].mxu0
  %v2313 = vadd.f32 %v308, %v2312
  %v2314 = vpop.f32.mrb[0].mxu0
  %v2315 = vpop.f32.mrb[0].mxu0
  %v2316 = vadd.f32 %v308, %v2315
  %v2317 = vpop.f32.mrb[0].mxu0
  %2318 = vmatprep.mubr.bf16.mxu0 %v1229
  %2319 = vmatmul.mubr.bf16.gmra.mrb[0].mxu0 %v1228
  %v2320 = vpop.f32.mrb[0].mxu0
  %v2321 = vadd.f32 %v308, %v2320
  %v2322 = vpop.f32.mrb[0].mxu0
  %v2323 = vpop.f32.mrb[0].mxu0
  %v2324 = vadd.f32 %v308, %v2323
  %v2325 = vpop.f32.mrb[0].mxu0
  %2326 = vmatprep.mubr.bf16.mxu0 %v1231
  %2327 = vmatmul.mubr.bf16.gmra.mrb[0].mxu0 %v1230
  %v2328 = vpop.f32.mrb[0].mxu0
  %v2329 = vadd.f32 %v308, %v2328
  %v2330 = vpop.f32.mrb[0].mxu0
  %v2331 = vpop.f32.mrb[0].mxu0
  %v2332 = vadd.f32 %v308, %v2331
  %v2333 = vpop.f32.mrb[0].mxu0
  %2334 = vmatprep.mubr.bf16.mxu0 %v1233
  %2335 = vmatmul.mubr.bf16.gmra.mrb[0].mxu0 %v1232
  %v2336 = vpop.f32.mrb[0].mxu0
  %v2337 = vadd.f32 %v308, %v2336
  %v2338 = vpop.f32.mrb[0].mxu0
  %v2339 = vpop.f32.mrb[0].mxu0
  %v2340 = vadd.f32 %v308, %v2339
  %v2341 = vpop.f32.mrb[0].mxu0
  %2342 = vmatprep.mubr.bf16.mxu0 %v1235
  %2343 = vmatmul.mubr.bf16.gmra.mrb[0].mxu0 %v1234
  %v2344 = vpop.f32.mrb[0].mxu0
  %v2345 = vadd.f32 %v308, %v2344
  %v2346 = vpop.f32.mrb[0].mxu0
  %v2347 = vpop.f32.mrb[0].mxu0
  %v2348 = vadd.f32 %v308, %v2347
  %v2349 = vpop.f32.mrb[0].mxu0
  %2350 = vmatprep.mubr.bf16.mxu0 %v1237
  %2351 = vmatmul.mubr.bf16.gmra.mrb[0].mxu0 %v1236
  %v2352 = vpop.f32.mrb[0].mxu0
  %v2353 = vadd.f32 %v308, %v2352
  %v2354 = vpop.f32.mrb[0].mxu0
  %v2355 = vpop.f32.mrb[0].mxu0
  %v2356 = vadd.f32 %v308, %v2355
  %v2357 = vpop.f32.mrb[0].mxu0
  %2358 = vmatprep.mubr.bf16.mxu0 %v1239
  %2359 = vmatmul.mubr.bf16.gmra.mrb[0].mxu0 %v1238
  %v2360 = vpop.f32.mrb[0].mxu0
  %v2361 = vadd.f32 %v308, %v2360
  %v2362 = vpop.f32.mrb[0].mxu0
  %v2363 = vpop.f32.mrb[0].mxu0
  %v2364 = vadd.f32 %v308, %v2363
  %v2365 = vpop.f32.mrb[0].mxu0
  %2366 = vmatprep.mubr.bf16.mxu0 %v1241
  %2367 = vmatmul.mubr.bf16.gmra.mrb[0].mxu0 %v1240
  %v2368 = vpop.f32.mrb[0].mxu0
  %v2369 = vadd.f32 %v308, %v2368
  %v2370 = vpop.f32.mrb[0].mxu0
  %v2371 = vpop.f32.mrb[0].mxu0
  %v2372 = vadd.f32 %v308, %v2371
  %v2373 = vpop.f32.mrb[0].mxu0
  %2374 = vmatprep.mubr.bf16.mxu0 %v1243
  %2375 = vmatmul.mubr.bf16.gmra.mrb[0].mxu0 %v1242
  %v2376 = vpop.f32.mrb[0].mxu0
  %v2377 = vadd.f32 %v308, %v2376
  %v2378 = vpop.f32.mrb[0].mxu0
  %v2379 = vpop.f32.mrb[0].mxu0
  %v2380 = vadd.f32 %v308, %v2379
  %v2381 = vpop.f32.mrb[0].mxu0
  %2382 = vmatprep.mubr.bf16.mxu0 %v1245
  %2383 = vmatmul.mubr.bf16.gmra.mrb[0].mxu0 %v1244
  %v2384 = vpop.f32.mrb[0].mxu0
  %v2385 = vadd.f32 %v308, %v2384
  %v2386 = vpop.f32.mrb[0].mxu0
  %v2387 = vpop.f32.mrb[0].mxu0
  %v2388 = vadd.f32 %v308, %v2387
  %v2389 = vpop.f32.mrb[0].mxu0
  %2390 = vmatprep.mubr.bf16.mxu0 %v1247
  %2391 = vmatmul.mubr.bf16.gmra.mrb[0].mxu0 %v1246
  %v2392 = vpop.f32.mrb[0].mxu0
  %v2393 = vadd.f32 %v308, %v2392
  %v2394 = vpop.f32.mrb[0].mxu0
  %v2395 = vpop.f32.mrb[0].mxu0
  %v2396 = vadd.f32 %v308, %v2395
  %v2397 = vpop.f32.mrb[0].mxu0
  %2398 = vmatprep.mubr.bf16.mxu0 %v1249
  %2399 = vmatmul.mubr.bf16.gmra.mrb[0].mxu0 %v1248
  %v2400 = vpop.f32.mrb[0].mxu0
  %v2401 = vadd.f32 %v308, %v2400
  %v2402 = vpop.f32.mrb[0].mxu0
  %v2403 = vpop.f32.mrb[0].mxu0
  %v2404 = vadd.f32 %v308, %v2403
  %v2405 = vpop.f32.mrb[0].mxu0
  %2406 = vmatprep.mubr.bf16.mxu0 %v1251
  %2407 = vmatmul.mubr.bf16.gmra.mrb[0].mxu0 %v1250
  %v2408 = vpop.f32.mrb[0].mxu0
  %v2409 = vadd.f32 %v308, %v2408
  %v2410 = vpop.f32.mrb[0].mxu0
  %v2411 = vpop.f32.mrb[0].mxu0
  %v2412 = vadd.f32 %v308, %v2411
  %v2413 = vpop.f32.mrb[0].mxu0
  %2414 = vmatprep.mubr.bf16.mxu0 %v1253
  %2415 = vmatmul.mubr.bf16.gmra.mrb[0].mxu0 %v1252
  %v2416 = vpop.f32.mrb[0].mxu0
  %v2417 = vadd.f32 %v308, %v2416
  %v2418 = vpop.f32.mrb[0].mxu0
  %v2419 = vpop.f32.mrb[0].mxu0
  %v2420 = vadd.f32 %v308, %v2419
  %v2421 = vpop.f32.mrb[0].mxu0
  %2422 = vmatprep.mubr.bf16.mxu0 %v1255
  %2423 = vmatmul.mubr.bf16.gmra.mrb[0].mxu0 %v1254
  %v2424 = vpop.f32.mrb[0].mxu0
  %v2425 = vadd.f32 %v308, %v2424
  %v2426 = vpop.f32.mrb[0].mxu0
  %v2427 = vpop.f32.mrb[0].mxu0
  %v2428 = vadd.f32 %v308, %v2427
  %v2429 = vpop.f32.mrb[0].mxu0
  %2430 = vmatprep.mubr.bf16.mxu0 %v1257
  %2431 = vmatmul.mubr.bf16.gmra.mrb[0].mxu0 %v1256
  %v2432 = vpop.f32.mrb[0].mxu0
  %v2433 = vadd.f32 %v308, %v2432
  %v2434 = vpop.f32.mrb[0].mxu0
  %v2435 = vpop.f32.mrb[0].mxu0
  %v2436 = vadd.f32 %v308, %v2435
  %v2437 = vpop.f32.mrb[0].mxu0
  %2438 = vmatprep.mubr.bf16.mxu0 %v1259
  %2439 = vmatmul.mubr.bf16.gmra.mrb[0].mxu0 %v1258
  %v2440 = vpop.f32.mrb[0].mxu0
  %v2441 = vadd.f32 %v308, %v2440
  %v2442 = vpop.f32.mrb[0].mxu0
  %v2443 = vpop.f32.mrb[0].mxu0
  %v2444 = vadd.f32 %v308, %v2443
  %v2445 = vpop.f32.mrb[0].mxu0
  %2446 = vmatprep.mubr.bf16.mxu0 %v1261
  %2447 = vmatmul.mubr.bf16.gmra.mrb[0].mxu0 %v1260
  %v2448 = vpop.f32.mrb[0].mxu0
  %v2449 = vadd.f32 %v308, %v2448
  %v2450 = vpop.f32.mrb[0].mxu0
  %v2451 = vpop.f32.mrb[0].mxu0
  %v2452 = vadd.f32 %v308, %v2451
  %v2453 = vpop.f32.mrb[0].mxu0
  %2454 = vmatprep.mubr.bf16.mxu0 %v1263
  %2455 = vmatmul.mubr.bf16.gmra.mrb[0].mxu0 %v1262
  %v2456 = vpop.f32.mrb[0].mxu0
  %v2457 = vadd.f32 %v308, %v2456
  %v2458 = vpop.f32.mrb[0].mxu0
  %v2459 = vpop.f32.mrb[0].mxu0
  %v2460 = vadd.f32 %v308, %v2459
  %v2461 = vpop.f32.mrb[0].mxu0
  %2462 = vmatprep.mubr.bf16.mxu0 %v1265
  %2463 = vmatmul.mubr.bf16.gmra.mrb[0].mxu0 %v1264
  %v2464 = vpop.f32.mrb[0].mxu0
  %v2465 = vadd.f32 %v308, %v2464
  %v2466 = vpop.f32.mrb[0].mxu0
  %v2467 = vpop.f32.mrb[0].mxu0
  %v2468 = vadd.f32 %v308, %v2467
  %v2469 = vpop.f32.mrb[0].mxu0
  %2470 = vmatprep.mubr.bf16.mxu0 %v1267
  %2471 = vmatmul.mubr.bf16.gmra.mrb[0].mxu0 %v1266
  %v2472 = vpop.f32.mrb[0].mxu0
  %v2473 = vadd.f32 %v308, %v2472
  %v2474 = vpop.f32.mrb[0].mxu0
  %v2475 = vpop.f32.mrb[0].mxu0
  %v2476 = vadd.f32 %v308, %v2475
  %v2477 = vpop.f32.mrb[0].mxu0
  %2478 = vmatprep.mubr.bf16.mxu0 %v1269
  %2479 = vmatmul.mubr.bf16.gmra.mrb[0].mxu0 %v1268
  %v2480 = vpop.f32.mrb[0].mxu0
  %v2481 = vadd.f32 %v308, %v2480
  %v2482 = vpop.f32.mrb[0].mxu0
  %v2483 = vpop.f32.mrb[0].mxu0
  %v2484 = vadd.f32 %v308, %v2483
  %v2485 = vpop.f32.mrb[0].mxu0
  %2486 = vmatprep.mubr.bf16.mxu0 %v1271
  %2487 = vmatmul.mubr.bf16.gmra.mrb[0].mxu0 %v1270
  %v2488 = vpop.f32.mrb[0].mxu0
  %v2489 = vadd.f32 %v308, %v2488
  %v2490 = vpop.f32.mrb[0].mxu0
  %v2491 = vpop.f32.mrb[0].mxu0
  %v2492 = vadd.f32 %v308, %v2491
  %v2493 = vpop.f32.mrb[0].mxu0
  %2494 = vmatprep.mubr.bf16.mxu0 %v1273
  %2495 = vmatmul.mubr.bf16.gmra.mrb[0].mxu0 %v1272
  %v2496 = vpop.f32.mrb[0].mxu0
  %v2497 = vadd.f32 %v308, %v2496
  %v2498 = vpop.f32.mrb[0].mxu0
  %v2499 = vpop.f32.mrb[0].mxu0
  %v2500 = vadd.f32 %v308, %v2499
  %v2501 = vpop.f32.mrb[0].mxu0
  %2502 = vmatprep.mubr.bf16.mxu0 %v1275
  %2503 = vmatmul.mubr.bf16.gmra.mrb[0].mxu0 %v1274
  %v2504 = vpop.f32.mrb[0].mxu0
  %v2505 = vadd.f32 %v308, %v2504
  %v2506 = vpop.f32.mrb[0].mxu0
  %v2507 = vpop.f32.mrb[0].mxu0
  %v2508 = vadd.f32 %v308, %v2507
  %v2509 = vpop.f32.mrb[0].mxu0
  %2510 = vmatprep.mubr.bf16.mxu0 %v1277
  %2511 = vmatmul.mubr.bf16.gmra.mrb[0].mxu0 %v1276
  %v2512 = vpop.f32.mrb[0].mxu0
  %v2513 = vadd.f32 %v308, %v2512
  %v2514 = vpop.f32.mrb[0].mxu0
  %v2515 = vpop.f32.mrb[0].mxu0
  %v2516 = vadd.f32 %v308, %v2515
  %v2517 = vpop.f32.mrb[0].mxu0
  %2518 = vmatprep.mubr.bf16.mxu0 %v1279
  %2519 = vmatmul.mubr.bf16.gmra.mrb[0].mxu0 %v1278
  %v2520 = vpop.f32.mrb[0].mxu0
  %v2521 = vadd.f32 %v308, %v2520
  %v2522 = vpop.f32.mrb[0].mxu0
  %v2523 = vpop.f32.mrb[0].mxu0
  %v2524 = vadd.f32 %v308, %v2523
  %v2525 = vpop.f32.mrb[0].mxu0
  %2526 = vmatprep.mubr.bf16.mxu0 %v1281
  %2527 = vmatmul.mubr.bf16.gmra.mrb[0].mxu0 %v1280
  %v2528 = vpop.f32.mrb[0].mxu0
  %v2529 = vadd.f32 %v308, %v2528
  %v2530 = vpop.f32.mrb[0].mxu0
  %v2531 = vpop.f32.mrb[0].mxu0
  %v2532 = vadd.f32 %v308, %v2531
  %v2533 = vpop.f32.mrb[0].mxu0
  %2534 = vmatprep.mubr.bf16.mxu0 %v1283
  %2535 = vmatmul.mubr.bf16.gmra.mrb[0].mxu0 %v1282
  %v2536 = vpop.f32.mrb[0].mxu0
  %v2537 = vadd.f32 %v308, %v2536
  %v2538 = vpop.f32.mrb[0].mxu0
  %v2539 = vpop.f32.mrb[0].mxu0
  %v2540 = vadd.f32 %v308, %v2539
  %v2541 = vpop.f32.mrb[0].mxu0
  %2542 = vmatprep.mubr.bf16.mxu0 %v1285
  %2543 = vmatmul.mubr.bf16.gmra.mrb[0].mxu0 %v1284
  %v2544 = vpop.f32.mrb[0].mxu0
  %v2545 = vadd.f32 %v308, %v2544
  %v2546 = vpop.f32.mrb[0].mxu0
  %v2547 = vpop.f32.mrb[0].mxu0
  %v2548 = vadd.f32 %v308, %v2547
  %v2549 = vpop.f32.mrb[0].mxu0
  %2550 = vmatprep.mubr.bf16.mxu0 %v1287
  %2551 = vmatmul.mubr.bf16.gmra.mrb[0].mxu0 %v1286
  %v2552 = vpop.f32.mrb[0].mxu0
  %v2553 = vadd.f32 %v308, %v2552
  %v2554 = vpop.f32.mrb[0].mxu0
  %v2555 = vpop.f32.mrb[0].mxu0
  %v2556 = vadd.f32 %v308, %v2555
  %v2557 = vpop.f32.mrb[0].mxu0
  %2558 = vmatprep.mubr.bf16.mxu0 %v1289
  %2559 = vmatmul.mubr.bf16.gmra.mrb[0].mxu0 %v1288
  %v2560 = vpop.f32.mrb[0].mxu0
  %v2561 = vadd.f32 %v308, %v2560
  %v2562 = vpop.f32.mrb[0].mxu0
  %v2563 = vpop.f32.mrb[0].mxu0
  %v2564 = vadd.f32 %v308, %v2563
  %v2565 = vpop.f32.mrb[0].mxu0
  %2566 = vmatprep.mubr.bf16.mxu0 %v1291
  %2567 = vmatmul.mubr.bf16.gmra.mrb[0].mxu0 %v1290
  %v2568 = vpop.f32.mrb[0].mxu0
  %v2569 = vadd.f32 %v308, %v2568
  %v2570 = vpop.f32.mrb[0].mxu0
  %v2571 = vpop.f32.mrb[0].mxu0
  %v2572 = vadd.f32 %v308, %v2571
  %v2573 = vpop.f32.mrb[0].mxu0
  %2574 = vmatprep.mubr.bf16.mxu0 %v1293
  %2575 = vmatmul.mubr.bf16.gmra.mrb[0].mxu0 %v1292
  %v2576 = vpop.f32.mrb[0].mxu0
  %v2577 = vadd.f32 %v308, %v2576
  %v2578 = vpop.f32.mrb[0].mxu0
  %v2579 = vpop.f32.mrb[0].mxu0
  %v2580 = vadd.f32 %v308, %v2579
  %v2581 = vpop.f32.mrb[0].mxu0
  %2582 = vmatprep.mubr.bf16.mxu0 %v1295
  %2583 = vmatmul.mubr.bf16.gmra.mrb[0].mxu0 %v1294
  %v2584 = vpop.f32.mrb[0].mxu0
  %v2585 = vadd.f32 %v308, %v2584
  %v2586 = vpop.f32.mrb[0].mxu0
  %v2587 = vpop.f32.mrb[0].mxu0
  %v2588 = vadd.f32 %v308, %v2587
  %v2589 = vpop.f32.mrb[0].mxu0
  %2590 = vmatprep.mubr.bf16.mxu0 %v1297
  %2591 = vmatmul.mubr.bf16.gmra.mrb[0].mxu0 %v1296
  %v2592 = vpop.f32.mrb[0].mxu0
  %v2593 = vadd.f32 %v308, %v2592
  %v2594 = vpop.f32.mrb[0].mxu0
  %v2595 = vpop.f32.mrb[0].mxu0
  %v2596 = vadd.f32 %v308, %v2595
  %v2597 = vpop.f32.mrb[0].mxu0
  %2598 = vmatprep.mubr.bf16.mxu0 %v1299
  %2599 = vmatmul.mubr.bf16.gmra.mrb[0].mxu0 %v1298
  %v2600 = vpop.f32.mrb[0].mxu0
  %v2601 = vadd.f32 %v308, %v2600
  %v2602 = vpop.f32.mrb[0].mxu0
  %v2603 = vpop.f32.mrb[0].mxu0
  %v2604 = vadd.f32 %v308, %v2603
  %v2605 = vpop.f32.mrb[0].mxu0
  %2606 = vmatprep.mubr.bf16.mxu0 %v1301
  %2607 = vmatmul.mubr.bf16.gmra.mrb[0].mxu0 %v1300
  %v2608 = vpop.f32.mrb[0].mxu0
  %v2609 = vadd.f32 %v308, %v2608
  %v2610 = vpop.f32.mrb[0].mxu0
  %v2611 = vpop.f32.mrb[0].mxu0
  %v2612 = vadd.f32 %v308, %v2611
  %v2613 = vpop.f32.mrb[0].mxu0
  %2614 = vmatprep.mubr.bf16.mxu0 %v1303
  %2615 = vmatmul.mubr.bf16.gmra.mrb[0].mxu0 %v1302
  %v2616 = vpop.f32.mrb[0].mxu0
  %v2617 = vadd.f32 %v308, %v2616
  %v2618 = vpop.f32.mrb[0].mxu0
  %v2619 = vpop.f32.mrb[0].mxu0
  %v2620 = vadd.f32 %v308, %v2619
  %v2621 = vpop.f32.mrb[0].mxu0
  %2622 = vmatprep.mubr.bf16.mxu0 %v1305
  %2623 = vmatmul.mubr.bf16.gmra.mrb[0].mxu0 %v1304
  %v2624 = vpop.f32.mrb[0].mxu0
  %v2625 = vadd.f32 %v308, %v2624
  %v2626 = vpop.f32.mrb[0].mxu0
  %v2627 = vpop.f32.mrb[0].mxu0
  %v2628 = vadd.f32 %v308, %v2627
  %v2629 = vpop.f32.mrb[0].mxu0
  %2630 = vmatprep.mubr.bf16.mxu0 %v1307
  %2631 = vmatmul.mubr.bf16.gmra.mrb[0].mxu0 %v1306
  %v2632 = vpop.f32.mrb[0].mxu0
  %v2633 = vadd.f32 %v308, %v2632
  %v2634 = vpop.f32.mrb[0].mxu0
  %v2635 = vpop.f32.mrb[0].mxu0
  %v2636 = vadd.f32 %v308, %v2635
  %v2637 = vpop.f32.mrb[0].mxu0
  %2638 = vmatprep.mubr.bf16.mxu0 %v1309
  %2639 = vmatmul.mubr.bf16.gmra.mrb[0].mxu0 %v1308
  %v2640 = vpop.f32.mrb[0].mxu0
  %v2641 = vadd.f32 %v308, %v2640
  %v2642 = vpop.f32.mrb[0].mxu0
  %v2643 = vpop.f32.mrb[0].mxu0
  %v2644 = vadd.f32 %v308, %v2643
  %v2645 = vpop.f32.mrb[0].mxu0
  %2646 = vmatprep.mubr.bf16.mxu0 %v1311
  %2647 = vmatmul.mubr.bf16.gmra.mrb[0].mxu0 %v1310
  %v2648 = vpop.f32.mrb[0].mxu0
  %v2649 = vadd.f32 %v308, %v2648
  %v2650 = vpop.f32.mrb[0].mxu0
  %v2651 = vpop.f32.mrb[0].mxu0
  %v2652 = vadd.f32 %v308, %v2651
  %v2653 = vpop.f32.mrb[0].mxu0
  %2654 = vmatprep.mubr.bf16.mxu0 %v1313
  %2655 = vmatmul.mubr.bf16.gmra.mrb[0].mxu0 %v1312
  %v2656 = vpop.f32.mrb[0].mxu0
  %v2657 = vadd.f32 %v308, %v2656
  %v2658 = vpop.f32.mrb[0].mxu0
  %v2659 = vpop.f32.mrb[0].mxu0
  %v2660 = vadd.f32 %v308, %v2659
  %v2661 = vpop.f32.mrb[0].mxu0
  %2662 = vmatprep.mubr.bf16.mxu0 %v1315
  %2663 = vmatmul.mubr.bf16.gmra.mrb[0].mxu0 %v1314
  %v2664 = vpop.f32.mrb[0].mxu0
  %v2665 = vadd.f32 %v308, %v2664
  %v2666 = vpop.f32.mrb[0].mxu0
  %v2667 = vpop.f32.mrb[0].mxu0
  %v2668 = vadd.f32 %v308, %v2667
  %v2669 = vpop.f32.mrb[0].mxu0
  %2670 = vmatprep.mubr.bf16.mxu0 %v1317
  %2671 = vmatmul.mubr.bf16.gmra.mrb[0].mxu0 %v1316
  %v2672 = vpop.f32.mrb[0].mxu0
  %v2673 = vadd.f32 %v308, %v2672
  %v2674 = vpop.f32.mrb[0].mxu0
  %v2675 = vpop.f32.mrb[0].mxu0
  %v2676 = vadd.f32 %v308, %v2675
  %v2677 = vpop.f32.mrb[0].mxu0
  %2678 = vmatprep.mubr.bf16.mxu0 %v1319
  %2679 = vmatmul.mubr.bf16.gmra.mrb[0].mxu0 %v1318
  %v2680 = vpop.f32.mrb[0].mxu0
  %v2681 = vadd.f32 %v308, %v2680
  %v2682 = vpop.f32.mrb[0].mxu0
  %v2683 = vpop.f32.mrb[0].mxu0
  %v2684 = vadd.f32 %v308, %v2683
  %v2685 = vpop.f32.mrb[0].mxu0
  %2686 = vmatprep.mubr.bf16.mxu0 %v1321
  %2687 = vmatmul.mubr.bf16.gmra.mrb[0].mxu0 %v1320
  %v2688 = vpop.f32.mrb[0].mxu0
  %v2689 = vadd.f32 %v308, %v2688
  %v2690 = vpop.f32.mrb[0].mxu0
  %v2691 = vpop.f32.mrb[0].mxu0
  %v2692 = vadd.f32 %v308, %v2691
  %v2693 = vpop.f32.mrb[0].mxu0
  %2694 = vmatprep.mubr.bf16.mxu0 %v1323
  %2695 = vmatmul.mubr.bf16.gmra.mrb[0].mxu0 %v1322
  %v2696 = vpop.f32.mrb[0].mxu0
  %v2697 = vadd.f32 %v308, %v2696
  %v2698 = vpop.f32.mrb[0].mxu0
  %v2699 = vpop.f32.mrb[0].mxu0
  %v2700 = vadd.f32 %v308, %v2699
  %v2701 = vpop.f32.mrb[0].mxu0
  %2702 = vmatprep.mubr.bf16.mxu0 %v1325
  %2703 = vmatmul.mubr.bf16.gmra.mrb[0].mxu0 %v1324
  %v2704 = vpop.f32.mrb[0].mxu0
  %v2705 = vadd.f32 %v308, %v2704
  %v2706 = vpop.f32.mrb[0].mxu0
  %v2707 = vpop.f32.mrb[0].mxu0
  %v2708 = vadd.f32 %v308, %v2707
  %v2709 = vpop.f32.mrb[0].mxu0
  %2710 = vmatprep.mubr.bf16.mxu0 %v1327
  %2711 = vmatmul.mubr.bf16.gmra.mrb[0].mxu0 %v1326
  %v2712 = vpop.f32.mrb[0].mxu0
  %v2713 = vadd.f32 %v308, %v2712
  %v2714 = vpop.f32.mrb[0].mxu0
  %v2715 = vpop.f32.mrb[0].mxu0
  %v2716 = vadd.f32 %v308, %v2715
  %v2717 = vpop.f32.mrb[0].mxu0
  %2718 = vmatprep.mubr.bf16.mxu0 %v1329
  %2719 = vmatmul.mubr.bf16.gmra.mrb[0].mxu0 %v1328
  %v2720 = vpop.f32.mrb[0].mxu0
  %v2721 = vadd.f32 %v308, %v2720
  %v2722 = vpop.f32.mrb[0].mxu0
  %v2723 = vpop.f32.mrb[0].mxu0
  %v2724 = vadd.f32 %v308, %v2723
  %v2725 = vpop.f32.mrb[0].mxu0
  %2726 = vmatprep.mubr.bf16.mxu0 %v1331
  %2727 = vmatmul.mubr.bf16.gmra.mrb[0].mxu0 %v1330
  %v2728 = vpop.f32.mrb[0].mxu0
  %v2729 = vadd.f32 %v308, %v2728
  %v2730 = vpop.f32.mrb[0].mxu0
  %v2731 = vpop.f32.mrb[0].mxu0
  %v2732 = vadd.f32 %v308, %v2731
  %v2733 = vpop.f32.mrb[0].mxu0
  %2734 = vmatprep.mubr.bf16.mxu0 %v1333
  %2735 = vmatmul.mubr.bf16.gmra.mrb[0].mxu0 %v1332
  %v2736 = vpop.f32.mrb[0].mxu0
  %v2737 = vadd.f32 %v308, %v2736
  %v2738 = vpop.f32.mrb[0].mxu0
  %v2739 = vpop.f32.mrb[0].mxu0
  %v2740 = vadd.f32 %v308, %v2739
  %v2741 = vpop.f32.mrb[0].mxu0
  %2742 = vdwg.mxu0
  %v2743 = vmax.f32 %v1721, 0.0
  %v2744 = vmax.f32 %v1724, 0.0
  %v2745 = vmax.f32 %v1729, 0.0
  %v2746 = vmax.f32 %v1732, 0.0
  %v2747 = vmax.f32 %v1737, 0.0
  %v2748 = vmax.f32 %v1740, 0.0
  %v2749 = vmax.f32 %v1745, 0.0
  %v2750 = vmax.f32 %v1748, 0.0
  %v2751 = vmax.f32 %v1753, 0.0
  %v2752 = vmax.f32 %v1756, 0.0
  %v2753 = vmax.f32 %v1761, 0.0
  %v2754 = vmax.f32 %v1764, 0.0
  %v2755 = vmax.f32 %v1769, 0.0
  %v2756 = vmax.f32 %v1772, 0.0
  %v2757 = vmax.f32 %v1777, 0.0
  %v2758 = vmax.f32 %v1780, 0.0
  %v2759 = vmax.f32 %v1785, 0.0
  %v2760 = vmax.f32 %v1788, 0.0
  %v2761 = vmax.f32 %v1793, 0.0
  %v2762 = vmax.f32 %v1796, 0.0
  %v2763 = vmax.f32 %v1801, 0.0
  %v2764 = vmax.f32 %v1804, 0.0
  %v2765 = vmax.f32 %v1809, 0.0
  %v2766 = vmax.f32 %v1812, 0.0
  %v2767 = vmax.f32 %v1817, 0.0
  %v2768 = vmax.f32 %v1820, 0.0
  %v2769 = vmax.f32 %v1825, 0.0
  %v2770 = vmax.f32 %v1828, 0.0
  %v2771 = vmax.f32 %v1833, 0.0
  %v2772 = vmax.f32 %v1836, 0.0
  %v2773 = vmax.f32 %v1841, 0.0
  %v2774 = vmax.f32 %v1844, 0.0
  %v2775 = vmax.f32 %v1849, 0.0
  %v2776 = vmax.f32 %v1852, 0.0
  %v2777 = vmax.f32 %v1857, 0.0
  %v2778 = vmax.f32 %v1860, 0.0
  %v2779 = vmax.f32 %v1865, 0.0
  %v2780 = vmax.f32 %v1868, 0.0
  %v2781 = vmax.f32 %v1873, 0.0
  %v2782 = vmax.f32 %v1876, 0.0
  %v2783 = vmax.f32 %v1881, 0.0
  %v2784 = vmax.f32 %v1884, 0.0
  %v2785 = vmax.f32 %v1889, 0.0
  %v2786 = vmax.f32 %v1892, 0.0
  %v2787 = vmax.f32 %v1897, 0.0
  %v2788 = vmax.f32 %v1900, 0.0
  %v2789 = vmax.f32 %v1905, 0.0
  %v2790 = vmax.f32 %v1908, 0.0
  %v2791 = vmax.f32 %v1913, 0.0
  %v2792 = vmax.f32 %v1916, 0.0
  %v2793 = vmax.f32 %v1921, 0.0
  %v2794 = vmax.f32 %v1924, 0.0
  %v2795 = vmax.f32 %v1929, 0.0
  %v2796 = vmax.f32 %v1932, 0.0
  %v2797 = vmax.f32 %v1937, 0.0
  %v2798 = vmax.f32 %v1940, 0.0
  %v2799 = vmax.f32 %v1945, 0.0
  %v2800 = vmax.f32 %v1948, 0.0
  %v2801 = vmax.f32 %v1953, 0.0
  %v2802 = vmax.f32 %v1956, 0.0
  %v2803 = vmax.f32 %v1961, 0.0
  %v2804 = vmax.f32 %v1964, 0.0
  %v2805 = vmax.f32 %v1969, 0.0
  %v2806 = vmax.f32 %v1972, 0.0
  %v2807 = vmax.f32 %v1977, 0.0
  %v2808 = vmax.f32 %v1980, 0.0
  %v2809 = vmax.f32 %v1985, 0.0
  %v2810 = vmax.f32 %v1988, 0.0
  %v2811 = vmax.f32 %v1993, 0.0
  %v2812 = vmax.f32 %v1996, 0.0
  %v2813 = vmax.f32 %v2001, 0.0
  %v2814 = vmax.f32 %v2004, 0.0
  %v2815 = vmax.f32 %v2009, 0.0
  %v2816 = vmax.f32 %v2012, 0.0
  %v2817 = vmax.f32 %v2017, 0.0
  %v2818 = vmax.f32 %v2020, 0.0
  %v2819 = vmax.f32 %v2025, 0.0
  %v2820 = vmax.f32 %v2028, 0.0
  %v2821 = vmax.f32 %v2033, 0.0
  %v2822 = vmax.f32 %v2036, 0.0
  %v2823 = vmax.f32 %v2041, 0.0
  %v2824 = vmax.f32 %v2044, 0.0
  %v2825 = vmax.f32 %v2049, 0.0
  %v2826 = vmax.f32 %v2052, 0.0
  %v2827 = vmax.f32 %v2057, 0.0
  %v2828 = vmax.f32 %v2060, 0.0
  %v2829 = vmax.f32 %v2065, 0.0
  %v2830 = vmax.f32 %v2068, 0.0
  %v2831 = vmax.f32 %v2073, 0.0
  %v2832 = vmax.f32 %v2076, 0.0
  %v2833 = vmax.f32 %v2081, 0.0
  %v2834 = vmax.f32 %v2084, 0.0
  %v2835 = vmax.f32 %v2089, 0.0
  %v2836 = vmax.f32 %v2092, 0.0
  %v2837 = vmax.f32 %v2097, 0.0
  %v2838 = vmax.f32 %v2100, 0.0
  %v2839 = vmax.f32 %v2105, 0.0
  %v2840 = vmax.f32 %v2108, 0.0
  %v2841 = vmax.f32 %v2113, 0.0
  %v2842 = vmax.f32 %v2116, 0.0
  %v2843 = vmax.f32 %v2121, 0.0
  %v2844 = vmax.f32 %v2124, 0.0
  %v2845 = vmax.f32 %v2129, 0.0
  %v2846 = vmax.f32 %v2132, 0.0
  %v2847 = vmax.f32 %v2137, 0.0
  %v2848 = vmax.f32 %v2140, 0.0
  %v2849 = vmax.f32 %v2145, 0.0
  %v2850 = vmax.f32 %v2148, 0.0
  %v2851 = vmax.f32 %v2153, 0.0
  %v2852 = vmax.f32 %v2156, 0.0
  %v2853 = vmax.f32 %v2161, 0.0
  %v2854 = vmax.f32 %v2164, 0.0
  %v2855 = vmax.f32 %v2169, 0.0
  %v2856 = vmax.f32 %v2172, 0.0
  %v2857 = vmax.f32 %v2177, 0.0
  %v2858 = vmax.f32 %v2180, 0.0
  %v2859 = vmax.f32 %v2185, 0.0
  %v2860 = vmax.f32 %v2188, 0.0
  %v2861 = vmax.f32 %v2193, 0.0
  %v2862 = vmax.f32 %v2196, 0.0
  %v2863 = vmax.f32 %v2201, 0.0
  %v2864 = vmax.f32 %v2204, 0.0
  %v2865 = vmax.f32 %v2209, 0.0
  %v2866 = vmax.f32 %v2212, 0.0
  %v2867 = vmax.f32 %v2217, 0.0
  %v2868 = vmax.f32 %v2220, 0.0
  %v2869 = vmax.f32 %v2225, 0.0
  %v2870 = vmax.f32 %v2228, 0.0
  %v2871 = vmax.f32 %v2233, 0.0
  %v2872 = vmax.f32 %v2236, 0.0
  %v2873 = vmax.f32 %v2241, 0.0
  %v2874 = vmax.f32 %v2244, 0.0
  %v2875 = vmax.f32 %v2249, 0.0
  %v2876 = vmax.f32 %v2252, 0.0
  %v2877 = vmax.f32 %v2257, 0.0
  %v2878 = vmax.f32 %v2260, 0.0
  %v2879 = vmax.f32 %v2265, 0.0
  %v2880 = vmax.f32 %v2268, 0.0
  %v2881 = vmax.f32 %v2273, 0.0
  %v2882 = vmax.f32 %v2276, 0.0
  %v2883 = vmax.f32 %v2281, 0.0
  %v2884 = vmax.f32 %v2284, 0.0
  %v2885 = vmax.f32 %v2289, 0.0
  %v2886 = vmax.f32 %v2292, 0.0
  %v2887 = vmax.f32 %v2297, 0.0
  %v2888 = vmax.f32 %v2300, 0.0
  %v2889 = vmax.f32 %v2305, 0.0
  %v2890 = vmax.f32 %v2308, 0.0
  %v2891 = vmax.f32 %v2313, 0.0
  %v2892 = vmax.f32 %v2316, 0.0
  %v2893 = vmax.f32 %v2321, 0.0
  %v2894 = vmax.f32 %v2324, 0.0
  %v2895 = vmax.f32 %v2329, 0.0
  %v2896 = vmax.f32 %v2332, 0.0
  %v2897 = vmax.f32 %v2337, 0.0
  %v2898 = vmax.f32 %v2340, 0.0
  %v2899 = vmax.f32 %v2345, 0.0
  %v2900 = vmax.f32 %v2348, 0.0
  %v2901 = vmax.f32 %v2353, 0.0
  %v2902 = vmax.f32 %v2356, 0.0
  %v2903 = vmax.f32 %v2361, 0.0
  %v2904 = vmax.f32 %v2364, 0.0
  %v2905 = vmax.f32 %v2369, 0.0
  %v2906 = vmax.f32 %v2372, 0.0
  %v2907 = vmax.f32 %v2377, 0.0
  %v2908 = vmax.f32 %v2380, 0.0
  %v2909 = vmax.f32 %v2385, 0.0
  %v2910 = vmax.f32 %v2388, 0.0
  %v2911 = vmax.f32 %v2393, 0.0
  %v2912 = vmax.f32 %v2396, 0.0
  %v2913 = vmax.f32 %v2401, 0.0
  %v2914 = vmax.f32 %v2404, 0.0
  %v2915 = vmax.f32 %v2409, 0.0
  %v2916 = vmax.f32 %v2412, 0.0
  %v2917 = vmax.f32 %v2417, 0.0
  %v2918 = vmax.f32 %v2420, 0.0
  %v2919 = vmax.f32 %v2425, 0.0
  %v2920 = vmax.f32 %v2428, 0.0
  %v2921 = vmax.f32 %v2433, 0.0
  %v2922 = vmax.f32 %v2436, 0.0
  %v2923 = vmax.f32 %v2441, 0.0
  %v2924 = vmax.f32 %v2444, 0.0
  %v2925 = vmax.f32 %v2449, 0.0
  %v2926 = vmax.f32 %v2452, 0.0
  %v2927 = vmax.f32 %v2457, 0.0
  %v2928 = vmax.f32 %v2460, 0.0
  %v2929 = vmax.f32 %v2465, 0.0
  %v2930 = vmax.f32 %v2468, 0.0
  %v2931 = vmax.f32 %v2473, 0.0
  %v2932 = vmax.f32 %v2476, 0.0
  %v2933 = vmax.f32 %v2481, 0.0
  %v2934 = vmax.f32 %v2484, 0.0
  %v2935 = vmax.f32 %v2489, 0.0
  %v2936 = vmax.f32 %v2492, 0.0
  %v2937 = vmax.f32 %v2497, 0.0
  %v2938 = vmax.f32 %v2500, 0.0
  %v2939 = vmax.f32 %v2505, 0.0
  %v2940 = vmax.f32 %v2508, 0.0
  %v2941 = vmax.f32 %v2513, 0.0
  %v2942 = vmax.f32 %v2516, 0.0
  %v2943 = vmax.f32 %v2521, 0.0
  %v2944 = vmax.f32 %v2524, 0.0
  %v2945 = vmax.f32 %v2529, 0.0
  %v2946 = vmax.f32 %v2532, 0.0
  %v2947 = vmax.f32 %v2537, 0.0
  %v2948 = vmax.f32 %v2540, 0.0
  %v2949 = vmax.f32 %v2545, 0.0
  %v2950 = vmax.f32 %v2548, 0.0
  %v2951 = vmax.f32 %v2553, 0.0
  %v2952 = vmax.f32 %v2556, 0.0
  %v2953 = vmax.f32 %v2561, 0.0
  %v2954 = vmax.f32 %v2564, 0.0
  %v2955 = vmax.f32 %v2569, 0.0
  %v2956 = vmax.f32 %v2572, 0.0
  %v2957 = vmax.f32 %v2577, 0.0
  %v2958 = vmax.f32 %v2580, 0.0
  %v2959 = vmax.f32 %v2585, 0.0
  %v2960 = vmax.f32 %v2588, 0.0
  %v2961 = vmax.f32 %v2593, 0.0
  %v2962 = vmax.f32 %v2596, 0.0
  %v2963 = vmax.f32 %v2601, 0.0
  %v2964 = vmax.f32 %v2604, 0.0
  %v2965 = vmax.f32 %v2609, 0.0
  %v2966 = vmax.f32 %v2612, 0.0
  %v2967 = vmax.f32 %v2617, 0.0
  %v2968 = vmax.f32 %v2620, 0.0
  %v2969 = vmax.f32 %v2625, 0.0
  %v2970 = vmax.f32 %v2628, 0.0
  %v2971 = vmax.f32 %v2633, 0.0
  %v2972 = vmax.f32 %v2636, 0.0
  %v2973 = vmax.f32 %v2641, 0.0
  %v2974 = vmax.f32 %v2644, 0.0
  %v2975 = vmax.f32 %v2649, 0.0
  %v2976 = vmax.f32 %v2652, 0.0
  %v2977 = vmax.f32 %v2657, 0.0
  %v2978 = vmax.f32 %v2660, 0.0
  %v2979 = vmax.f32 %v2665, 0.0
  %v2980 = vmax.f32 %v2668, 0.0
  %v2981 = vmax.f32 %v2673, 0.0
  %v2982 = vmax.f32 %v2676, 0.0
  %v2983 = vmax.f32 %v2681, 0.0
  %v2984 = vmax.f32 %v2684, 0.0
  %v2985 = vmax.f32 %v2689, 0.0
  %v2986 = vmax.f32 %v2692, 0.0
  %v2987 = vmax.f32 %v2697, 0.0
  %v2988 = vmax.f32 %v2700, 0.0
  %v2989 = vmax.f32 %v2705, 0.0
  %v2990 = vmax.f32 %v2708, 0.0
  %v2991 = vmax.f32 %v2713, 0.0
  %v2992 = vmax.f32 %v2716, 0.0
  %v2993 = vmax.f32 %v2721, 0.0
  %v2994 = vmax.f32 %v2724, 0.0
  %v2995 = vmax.f32 %v2729, 0.0
  %v2996 = vmax.f32 %v2732, 0.0
  %v2997 = vmax.f32 %v2737, 0.0
  %v2998 = vmax.f32 %v2740, 0.0
  %v2999 = vpack.c.bf16 %v2744, %v2743
  %v3000 = vpack.c.bf16 %v2746, %v2745
  %v3001 = vpack.c.bf16 %v2748, %v2747
  %v3002 = vpack.c.bf16 %v2750, %v2749
  %v3003 = vpack.c.bf16 %v2752, %v2751
  %v3004 = vpack.c.bf16 %v2754, %v2753
  %v3005 = vpack.c.bf16 %v2756, %v2755
  %v3006 = vpack.c.bf16 %v2758, %v2757
  %v3007 = vpack.c.bf16 %v2760, %v2759
  %v3008 = vpack.c.bf16 %v2762, %v2761
  %v3009 = vpack.c.bf16 %v2764, %v2763
  %v3010 = vpack.c.bf16 %v2766, %v2765
  %v3011 = vpack.c.bf16 %v2768, %v2767
  %v3012 = vpack.c.bf16 %v2770, %v2769
  %v3013 = vpack.c.bf16 %v2772, %v2771
  %v3014 = vpack.c.bf16 %v2774, %v2773
  %v3015 = vpack.c.bf16 %v2776, %v2775
  %v3016 = vpack.c.bf16 %v2778, %v2777
  %v3017 = vpack.c.bf16 %v2780, %v2779
  %v3018 = vpack.c.bf16 %v2782, %v2781
  %v3019 = vpack.c.bf16 %v2784, %v2783
  %v3020 = vpack.c.bf16 %v2786, %v2785
  %v3021 = vpack.c.bf16 %v2788, %v2787
  %v3022 = vpack.c.bf16 %v2790, %v2789
  %v3023 = vpack.c.bf16 %v2792, %v2791
  %v3024 = vpack.c.bf16 %v2794, %v2793
  %v3025 = vpack.c.bf16 %v2796, %v2795
  %v3026 = vpack.c.bf16 %v2798, %v2797
  %v3027 = vpack.c.bf16 %v2800, %v2799
  %v3028 = vpack.c.bf16 %v2802, %v2801
  %v3029 = vpack.c.bf16 %v2804, %v2803
  %v3030 = vpack.c.bf16 %v2806, %v2805
  %v3031 = vpack.c.bf16 %v2808, %v2807
  %v3032 = vpack.c.bf16 %v2810, %v2809
  %v3033 = vpack.c.bf16 %v2812, %v2811
  %v3034 = vpack.c.bf16 %v2814, %v2813
  %v3035 = vpack.c.bf16 %v2816, %v2815
  %v3036 = vpack.c.bf16 %v2818, %v2817
  %v3037 = vpack.c.bf16 %v2820, %v2819
  %v3038 = vpack.c.bf16 %v2822, %v2821
  %v3039 = vpack.c.bf16 %v2824, %v2823
  %v3040 = vpack.c.bf16 %v2826, %v2825
  %v3041 = vpack.c.bf16 %v2828, %v2827
  %v3042 = vpack.c.bf16 %v2830, %v2829
  %v3043 = vpack.c.bf16 %v2832, %v2831
  %v3044 = vpack.c.bf16 %v2834, %v2833
  %v3045 = vpack.c.bf16 %v2836, %v2835
  %v3046 = vpack.c.bf16 %v2838, %v2837
  %v3047 = vpack.c.bf16 %v2840, %v2839
  %v3048 = vpack.c.bf16 %v2842, %v2841
  %v3049 = vpack.c.bf16 %v2844, %v2843
  %v3050 = vpack.c.bf16 %v2846, %v2845
  %v3051 = vpack.c.bf16 %v2848, %v2847
  %v3052 = vpack.c.bf16 %v2850, %v2849
  %v3053 = vpack.c.bf16 %v2852, %v2851
  %v3054 = vpack.c.bf16 %v2854, %v2853
  %v3055 = vpack.c.bf16 %v2856, %v2855
  %v3056 = vpack.c.bf16 %v2858, %v2857
  %v3057 = vpack.c.bf16 %v2860, %v2859
  %v3058 = vpack.c.bf16 %v2862, %v2861
  %v3059 = vpack.c.bf16 %v2864, %v2863
  %v3060 = vpack.c.bf16 %v2866, %v2865
  %v3061 = vpack.c.bf16 %v2868, %v2867
  %v3062 = vpack.c.bf16 %v2870, %v2869
  %v3063 = vpack.c.bf16 %v2872, %v2871
  %v3064 = vpack.c.bf16 %v2874, %v2873
  %v3065 = vpack.c.bf16 %v2876, %v2875
  %v3066 = vpack.c.bf16 %v2878, %v2877
  %v3067 = vpack.c.bf16 %v2880, %v2879
  %v3068 = vpack.c.bf16 %v2882, %v2881
  %v3069 = vpack.c.bf16 %v2884, %v2883
  %v3070 = vpack.c.bf16 %v2886, %v2885
  %v3071 = vpack.c.bf16 %v2888, %v2887
  %v3072 = vpack.c.bf16 %v2890, %v2889
  %v3073 = vpack.c.bf16 %v2892, %v2891
  %v3074 = vpack.c.bf16 %v2894, %v2893
  %v3075 = vpack.c.bf16 %v2896, %v2895
  %v3076 = vpack.c.bf16 %v2898, %v2897
  %v3077 = vpack.c.bf16 %v2900, %v2899
  %v3078 = vpack.c.bf16 %v2902, %v2901
  %v3079 = vpack.c.bf16 %v2904, %v2903
  %v3080 = vpack.c.bf16 %v2906, %v2905
  %v3081 = vpack.c.bf16 %v2908, %v2907
  %v3082 = vpack.c.bf16 %v2910, %v2909
  %v3083 = vpack.c.bf16 %v2912, %v2911
  %v3084 = vpack.c.bf16 %v2914, %v2913
  %v3085 = vpack.c.bf16 %v2916, %v2915
  %v3086 = vpack.c.bf16 %v2918, %v2917
  %v3087 = vpack.c.bf16 %v2920, %v2919
  %v3088 = vpack.c.bf16 %v2922, %v2921
  %v3089 = vpack.c.bf16 %v2924, %v2923
  %v3090 = vpack.c.bf16 %v2926, %v2925
  %v3091 = vpack.c.bf16 %v2928, %v2927
  %v3092 = vpack.c.bf16 %v2930, %v2929
  %v3093 = vpack.c.bf16 %v2932, %v2931
  %v3094 = vpack.c.bf16 %v2934, %v2933
  %v3095 = vpack.c.bf16 %v2936, %v2935
  %v3096 = vpack.c.bf16 %v2938, %v2937
  %v3097 = vpack.c.bf16 %v2940, %v2939
  %v3098 = vpack.c.bf16 %v2942, %v2941
  %v3099 = vpack.c.bf16 %v2944, %v2943
  %v3100 = vpack.c.bf16 %v2946, %v2945
  %v3101 = vpack.c.bf16 %v2948, %v2947
  %v3102 = vpack.c.bf16 %v2950, %v2949
  %v3103 = vpack.c.bf16 %v2952, %v2951
  %v3104 = vpack.c.bf16 %v2954, %v2953
  %v3105 = vpack.c.bf16 %v2956, %v2955
  %v3106 = vpack.c.bf16 %v2958, %v2957
  %v3107 = vpack.c.bf16 %v2960, %v2959
  %v3108 = vpack.c.bf16 %v2962, %v2961
  %v3109 = vpack.c.bf16 %v2964, %v2963
  %v3110 = vpack.c.bf16 %v2966, %v2965
  %v3111 = vpack.c.bf16 %v2968, %v2967
  %v3112 = vpack.c.bf16 %v2970, %v2969
  %v3113 = vpack.c.bf16 %v2972, %v2971
  %v3114 = vpack.c.bf16 %v2974, %v2973
  %v3115 = vpack.c.bf16 %v2976, %v2975
  %v3116 = vpack.c.bf16 %v2978, %v2977
  %v3117 = vpack.c.bf16 %v2980, %v2979
  %v3118 = vpack.c.bf16 %v2982, %v2981
  %v3119 = vpack.c.bf16 %v2984, %v2983
  %v3120 = vpack.c.bf16 %v2986, %v2985
  %v3121 = vpack.c.bf16 %v2988, %v2987
  %v3122 = vpack.c.bf16 %v2990, %v2989
  %v3123 = vpack.c.bf16 %v2992, %v2991
  %v3124 = vpack.c.bf16 %v2994, %v2993
  %v3125 = vpack.c.bf16 %v2996, %v2995
  %v3126 = vpack.c.bf16 %v2998, %v2997
  %v3255 = vunpack.c.l.b16 %v2999
  %v3256 = vunpack.c.h.b16 %v2999
  %v3257 = vunpack.c.l.b16 %v3000
  %v3258 = vunpack.c.h.b16 %v3000
  %v3259 = vunpack.c.l.b16 %v3001
  %v3260 = vunpack.c.h.b16 %v3001
  %v3261 = vunpack.c.l.b16 %v3002
  %v3262 = vunpack.c.h.b16 %v3002
  %v3263 = vunpack.c.l.b16 %v3003
  %v3264 = vunpack.c.h.b16 %v3003
  %v3265 = vunpack.c.l.b16 %v3004
  %v3266 = vunpack.c.h.b16 %v3004
  %v3267 = vunpack.c.l.b16 %v3005
  %v3268 = vunpack.c.h.b16 %v3005
  %v3269 = vunpack.c.l.b16 %v3006
  %v3270 = vunpack.c.h.b16 %v3006
  %v3271 = vunpack.c.l.b16 %v3007
  %v3272 = vunpack.c.h.b16 %v3007
  %v3273 = vunpack.c.l.b16 %v3008
  %v3274 = vunpack.c.h.b16 %v3008
  %v3275 = vunpack.c.l.b16 %v3009
  %v3276 = vunpack.c.h.b16 %v3009
  %v3277 = vunpack.c.l.b16 %v3010
  %v3278 = vunpack.c.h.b16 %v3010
  %v3279 = vunpack.c.l.b16 %v3011
  %v3280 = vunpack.c.h.b16 %v3011
  %v3281 = vunpack.c.l.b16 %v3012
  %v3282 = vunpack.c.h.b16 %v3012
  %v3283 = vunpack.c.l.b16 %v3013
  %v3284 = vunpack.c.h.b16 %v3013
  %v3285 = vunpack.c.l.b16 %v3014
  %v3286 = vunpack.c.h.b16 %v3014
  %v3287 = vunpack.c.l.b16 %v3015
  %v3288 = vunpack.c.h.b16 %v3015
  %v3289 = vunpack.c.l.b16 %v3016
  %v3290 = vunpack.c.h.b16 %v3016
  %v3291 = vunpack.c.l.b16 %v3017
  %v3292 = vunpack.c.h.b16 %v3017
  %v3293 = vunpack.c.l.b16 %v3018
  %v3294 = vunpack.c.h.b16 %v3018
  %v3295 = vunpack.c.l.b16 %v3019
  %v3296 = vunpack.c.h.b16 %v3019
  %v3297 = vunpack.c.l.b16 %v3020
  %v3298 = vunpack.c.h.b16 %v3020
  %v3299 = vunpack.c.l.b16 %v3021
  %v3300 = vunpack.c.h.b16 %v3021
  %v3301 = vunpack.c.l.b16 %v3022
  %v3302 = vunpack.c.h.b16 %v3022
  %v3303 = vunpack.c.l.b16 %v3023
  %v3304 = vunpack.c.h.b16 %v3023
  %v3305 = vunpack.c.l.b16 %v3024
  %v3306 = vunpack.c.h.b16 %v3024
  %v3307 = vunpack.c.l.b16 %v3025
  %v3308 = vunpack.c.h.b16 %v3025
  %v3309 = vunpack.c.l.b16 %v3026
  %v3310 = vunpack.c.h.b16 %v3026
  %v3311 = vunpack.c.l.b16 %v3027
  %v3312 = vunpack.c.h.b16 %v3027
  %v3313 = vunpack.c.l.b16 %v3028
  %v3314 = vunpack.c.h.b16 %v3028
  %v3315 = vunpack.c.l.b16 %v3029
  %v3316 = vunpack.c.h.b16 %v3029
  %v3317 = vunpack.c.l.b16 %v3030
  %v3318 = vunpack.c.h.b16 %v3030
  %v3319 = vunpack.c.l.b16 %v3031
  %v3320 = vunpack.c.h.b16 %v3031
  %v3321 = vunpack.c.l.b16 %v3032
  %v3322 = vunpack.c.h.b16 %v3032
  %v3323 = vunpack.c.l.b16 %v3033
  %v3324 = vunpack.c.h.b16 %v3033
  %v3325 = vunpack.c.l.b16 %v3034
  %v3326 = vunpack.c.h.b16 %v3034
  %v3327 = vunpack.c.l.b16 %v3035
  %v3328 = vunpack.c.h.b16 %v3035
  %v3329 = vunpack.c.l.b16 %v3036
  %v3330 = vunpack.c.h.b16 %v3036
  %v3331 = vunpack.c.l.b16 %v3037
  %v3332 = vunpack.c.h.b16 %v3037
  %v3333 = vunpack.c.l.b16 %v3038
  %v3334 = vunpack.c.h.b16 %v3038
  %v3335 = vunpack.c.l.b16 %v3039
  %v3336 = vunpack.c.h.b16 %v3039
  %v3337 = vunpack.c.l.b16 %v3040
  %v3338 = vunpack.c.h.b16 %v3040
  %v3339 = vunpack.c.l.b16 %v3041
  %v3340 = vunpack.c.h.b16 %v3041
  %v3341 = vunpack.c.l.b16 %v3042
  %v3342 = vunpack.c.h.b16 %v3042
  %v3343 = vunpack.c.l.b16 %v3043
  %v3344 = vunpack.c.h.b16 %v3043
  %v3345 = vunpack.c.l.b16 %v3044
  %v3346 = vunpack.c.h.b16 %v3044
  %v3347 = vunpack.c.l.b16 %v3045
  %v3348 = vunpack.c.h.b16 %v3045
  %v3349 = vunpack.c.l.b16 %v3046
  %v3350 = vunpack.c.h.b16 %v3046
  %v3351 = vunpack.c.l.b16 %v3047
  %v3352 = vunpack.c.h.b16 %v3047
  %v3353 = vunpack.c.l.b16 %v3048
  %v3354 = vunpack.c.h.b16 %v3048
  %v3355 = vunpack.c.l.b16 %v3049
  %v3356 = vunpack.c.h.b16 %v3049
  %v3357 = vunpack.c.l.b16 %v3050
  %v3358 = vunpack.c.h.b16 %v3050
  %v3359 = vunpack.c.l.b16 %v3051
  %v3360 = vunpack.c.h.b16 %v3051
  %v3361 = vunpack.c.l.b16 %v3052
  %v3362 = vunpack.c.h.b16 %v3052
  %v3363 = vunpack.c.l.b16 %v3053
  %v3364 = vunpack.c.h.b16 %v3053
  %v3365 = vunpack.c.l.b16 %v3054
  %v3366 = vunpack.c.h.b16 %v3054
  %v3367 = vunpack.c.l.b16 %v3055
  %v3368 = vunpack.c.h.b16 %v3055
  %v3369 = vunpack.c.l.b16 %v3056
  %v3370 = vunpack.c.h.b16 %v3056
  %v3371 = vunpack.c.l.b16 %v3057
  %v3372 = vunpack.c.h.b16 %v3057
  %v3373 = vunpack.c.l.b16 %v3058
  %v3374 = vunpack.c.h.b16 %v3058
  %v3375 = vunpack.c.l.b16 %v3059
  %v3376 = vunpack.c.h.b16 %v3059
  %v3377 = vunpack.c.l.b16 %v3060
  %v3378 = vunpack.c.h.b16 %v3060
  %v3379 = vunpack.c.l.b16 %v3061
  %v3380 = vunpack.c.h.b16 %v3061
  %v3381 = vunpack.c.l.b16 %v3062
  %v3382 = vunpack.c.h.b16 %v3062
  %v3383 = vunpack.c.l.b16 %v3063
  %v3384 = vunpack.c.h.b16 %v3063
  %v3385 = vunpack.c.l.b16 %v3064
  %v3386 = vunpack.c.h.b16 %v3064
  %v3387 = vunpack.c.l.b16 %v3065
  %v3388 = vunpack.c.h.b16 %v3065
  %v3389 = vunpack.c.l.b16 %v3066
  %v3390 = vunpack.c.h.b16 %v3066
  %v3391 = vunpack.c.l.b16 %v3067
  %v3392 = vunpack.c.h.b16 %v3067
  %v3393 = vunpack.c.l.b16 %v3068
  %v3394 = vunpack.c.h.b16 %v3068
  %v3395 = vunpack.c.l.b16 %v3069
  %v3396 = vunpack.c.h.b16 %v3069
  %v3397 = vunpack.c.l.b16 %v3070
  %v3398 = vunpack.c.h.b16 %v3070
  %v3399 = vunpack.c.l.b16 %v3071
  %v3400 = vunpack.c.h.b16 %v3071
  %v3401 = vunpack.c.l.b16 %v3072
  %v3402 = vunpack.c.h.b16 %v3072
  %v3403 = vunpack.c.l.b16 %v3073
  %v3404 = vunpack.c.h.b16 %v3073
  %v3405 = vunpack.c.l.b16 %v3074
  %v3406 = vunpack.c.h.b16 %v3074
  %v3407 = vunpack.c.l.b16 %v3075
  %v3408 = vunpack.c.h.b16 %v3075
  %v3409 = vunpack.c.l.b16 %v3076
  %v3410 = vunpack.c.h.b16 %v3076
  %v3411 = vunpack.c.l.b16 %v3077
  %v3412 = vunpack.c.h.b16 %v3077
  %v3413 = vunpack.c.l.b16 %v3078
  %v3414 = vunpack.c.h.b16 %v3078
  %v3415 = vunpack.c.l.b16 %v3079
  %v3416 = vunpack.c.h.b16 %v3079
  %v3417 = vunpack.c.l.b16 %v3080
  %v3418 = vunpack.c.h.b16 %v3080
  %v3419 = vunpack.c.l.b16 %v3081
  %v3420 = vunpack.c.h.b16 %v3081
  %v3421 = vunpack.c.l.b16 %v3082
  %v3422 = vunpack.c.h.b16 %v3082
  %v3423 = vunpack.c.l.b16 %v3083
  %v3424 = vunpack.c.h.b16 %v3083
  %v3425 = vunpack.c.l.b16 %v3084
  %v3426 = vunpack.c.h.b16 %v3084
  %v3427 = vunpack.c.l.b16 %v3085
  %v3428 = vunpack.c.h.b16 %v3085
  %v3429 = vunpack.c.l.b16 %v3086
  %v3430 = vunpack.c.h.b16 %v3086
  %v3431 = vunpack.c.l.b16 %v3087
  %v3432 = vunpack.c.h.b16 %v3087
  %v3433 = vunpack.c.l.b16 %v3088
  %v3434 = vunpack.c.h.b16 %v3088
  %v3435 = vunpack.c.l.b16 %v3089
  %v3436 = vunpack.c.h.b16 %v3089
  %v3437 = vunpack.c.l.b16 %v3090
  %v3438 = vunpack.c.h.b16 %v3090
  %v3439 = vunpack.c.l.b16 %v3091
  %v3440 = vunpack.c.h.b16 %v3091
  %v3441 = vunpack.c.l.b16 %v3092
  %v3442 = vunpack.c.h.b16 %v3092
  %v3443 = vunpack.c.l.b16 %v3093
  %v3444 = vunpack.c.h.b16 %v3093
  %v3445 = vunpack.c.l.b16 %v3094
  %v3446 = vunpack.c.h.b16 %v3094
  %v3447 = vunpack.c.l.b16 %v3095
  %v3448 = vunpack.c.h.b16 %v3095
  %v3449 = vunpack.c.l.b16 %v3096
  %v3450 = vunpack.c.h.b16 %v3096
  %v3451 = vunpack.c.l.b16 %v3097
  %v3452 = vunpack.c.h.b16 %v3097
  %v3453 = vunpack.c.l.b16 %v3098
  %v3454 = vunpack.c.h.b16 %v3098
  %v3455 = vunpack.c.l.b16 %v3099
  %v3456 = vunpack.c.h.b16 %v3099
  %v3457 = vunpack.c.l.b16 %v3100
  %v3458 = vunpack.c.h.b16 %v3100
  %v3459 = vunpack.c.l.b16 %v3101
  %v3460 = vunpack.c.h.b16 %v3101
  %v3461 = vunpack.c.l.b16 %v3102
  %v3462 = vunpack.c.h.b16 %v3102
  %v3463 = vunpack.c.l.b16 %v3103
  %v3464 = vunpack.c.h.b16 %v3103
  %v3465 = vunpack.c.l.b16 %v3104
  %v3466 = vunpack.c.h.b16 %v3104
  %v3467 = vunpack.c.l.b16 %v3105
  %v3468 = vunpack.c.h.b16 %v3105
  %v3469 = vunpack.c.l.b16 %v3106
  %v3470 = vunpack.c.h.b16 %v3106
  %v3471 = vunpack.c.l.b16 %v3107
  %v3472 = vunpack.c.h.b16 %v3107
  %v3473 = vunpack.c.l.b16 %v3108
  %v3474 = vunpack.c.h.b16 %v3108
  %v3475 = vunpack.c.l.b16 %v3109
  %v3476 = vunpack.c.h.b16 %v3109
  %v3477 = vunpack.c.l.b16 %v3110
  %v3478 = vunpack.c.h.b16 %v3110
  %v3479 = vunpack.c.l.b16 %v3111
  %v3480 = vunpack.c.h.b16 %v3111
  %v3481 = vunpack.c.l.b16 %v3112
  %v3482 = vunpack.c.h.b16 %v3112
  %v3483 = vunpack.c.l.b16 %v3113
  %v3484 = vunpack.c.h.b16 %v3113
  %v3485 = vunpack.c.l.b16 %v3114
  %v3486 = vunpack.c.h.b16 %v3114
  %v3487 = vunpack.c.l.b16 %v3115
  %v3488 = vunpack.c.h.b16 %v3115
  %v3489 = vunpack.c.l.b16 %v3116
  %v3490 = vunpack.c.h.b16 %v3116
  %v3491 = vunpack.c.l.b16 %v3117
  %v3492 = vunpack.c.h.b16 %v3117
  %v3493 = vunpack.c.l.b16 %v3118
  %v3494 = vunpack.c.h.b16 %v3118
  %v3495 = vunpack.c.l.b16 %v3119
  %v3496 = vunpack.c.h.b16 %v3119
  %v3497 = vunpack.c.l.b16 %v3120
  %v3498 = vunpack.c.h.b16 %v3120
  %v3499 = vunpack.c.l.b16 %v3121
  %v3500 = vunpack.c.h.b16 %v3121
  %v3501 = vunpack.c.l.b16 %v3122
  %v3502 = vunpack.c.h.b16 %v3122
  %v3503 = vunpack.c.l.b16 %v3123
  %v3504 = vunpack.c.h.b16 %v3123
  %v3505 = vunpack.c.l.b16 %v3124
  %v3506 = vunpack.c.h.b16 %v3124
  %v3507 = vunpack.c.l.b16 %v3125
  %v3508 = vunpack.c.h.b16 %v3125
  %v3509 = vunpack.c.l.b16 %v3126
  %v3510 = vunpack.c.h.b16 %v3126
  %v3511 = vpack.c.b16 %v3255, %v3255
  %v3512 = vpack.c.b16 %v3256, %v3256
  %v3513 = vpack.c.b16 %v3257, %v3257
  %v3514 = vpack.c.b16 %v3258, %v3258
  %v3515 = vpack.c.b16 %v3259, %v3259
  %v3516 = vpack.c.b16 %v3260, %v3260
  %v3517 = vpack.c.b16 %v3261, %v3261
  %v3518 = vpack.c.b16 %v3262, %v3262
  %v3519 = vpack.c.b16 %v3263, %v3263
  %v3520 = vpack.c.b16 %v3264, %v3264
  %v3521 = vpack.c.b16 %v3265, %v3265
  %v3522 = vpack.c.b16 %v3266, %v3266
  %v3523 = vpack.c.b16 %v3267, %v3267
  %v3524 = vpack.c.b16 %v3268, %v3268
  %v3525 = vpack.c.b16 %v3269, %v3269
  %v3526 = vpack.c.b16 %v3270, %v3270
  %v3527 = vpack.c.b16 %v3271, %v3271
  %v3528 = vpack.c.b16 %v3272, %v3272
  %v3529 = vpack.c.b16 %v3273, %v3273
  %v3530 = vpack.c.b16 %v3274, %v3274
  %v3531 = vpack.c.b16 %v3275, %v3275
  %v3532 = vpack.c.b16 %v3276, %v3276
  %v3533 = vpack.c.b16 %v3277, %v3277
  %v3534 = vpack.c.b16 %v3278, %v3278
  %v3535 = vpack.c.b16 %v3279, %v3279
  %v3536 = vpack.c.b16 %v3280, %v3280
  %v3537 = vpack.c.b16 %v3281, %v3281
  %v3538 = vpack.c.b16 %v3282, %v3282
  %v3539 = vpack.c.b16 %v3283, %v3283
  %v3540 = vpack.c.b16 %v3284, %v3284
  %v3541 = vpack.c.b16 %v3285, %v3285
  %v3542 = vpack.c.b16 %v3286, %v3286
  %v3543 = vpack.c.b16 %v3287, %v3287
  %v3544 = vpack.c.b16 %v3288, %v3288
  %v3545 = vpack.c.b16 %v3289, %v3289
  %v3546 = vpack.c.b16 %v3290, %v3290
  %v3547 = vpack.c.b16 %v3291, %v3291
  %v3548 = vpack.c.b16 %v3292, %v3292
  %v3549 = vpack.c.b16 %v3293, %v3293
  %v3550 = vpack.c.b16 %v3294, %v3294
  %v3551 = vpack.c.b16 %v3295, %v3295
  %v3552 = vpack.c.b16 %v3296, %v3296
  %v3553 = vpack.c.b16 %v3297, %v3297
  %v3554 = vpack.c.b16 %v3298, %v3298
  %v3555 = vpack.c.b16 %v3299, %v3299
  %v3556 = vpack.c.b16 %v3300, %v3300
  %v3557 = vpack.c.b16 %v3301, %v3301
  %v3558 = vpack.c.b16 %v3302, %v3302
  %v3559 = vpack.c.b16 %v3303, %v3303
  %v3560 = vpack.c.b16 %v3304, %v3304
  %v3561 = vpack.c.b16 %v3305, %v3305
  %v3562 = vpack.c.b16 %v3306, %v3306
  %v3563 = vpack.c.b16 %v3307, %v3307
  %v3564 = vpack.c.b16 %v3308, %v3308
  %v3565 = vpack.c.b16 %v3309, %v3309
  %v3566 = vpack.c.b16 %v3310, %v3310
  %v3567 = vpack.c.b16 %v3311, %v3311
  %v3568 = vpack.c.b16 %v3312, %v3312
  %v3569 = vpack.c.b16 %v3313, %v3313
  %v3570 = vpack.c.b16 %v3314, %v3314
  %v3571 = vpack.c.b16 %v3315, %v3315
  %v3572 = vpack.c.b16 %v3316, %v3316
  %v3573 = vpack.c.b16 %v3317, %v3317
  %v3574 = vpack.c.b16 %v3318, %v3318
  %v3575 = vpack.c.b16 %v3319, %v3319
  %v3576 = vpack.c.b16 %v3320, %v3320
  %v3577 = vpack.c.b16 %v3321, %v3321
  %v3578 = vpack.c.b16 %v3322, %v3322
  %v3579 = vpack.c.b16 %v3323, %v3323
  %v3580 = vpack.c.b16 %v3324, %v3324
  %v3581 = vpack.c.b16 %v3325, %v3325
  %v3582 = vpack.c.b16 %v3326, %v3326
  %v3583 = vpack.c.b16 %v3327, %v3327
  %v3584 = vpack.c.b16 %v3328, %v3328
  %v3585 = vpack.c.b16 %v3329, %v3329
  %v3586 = vpack.c.b16 %v3330, %v3330
  %v3587 = vpack.c.b16 %v3331, %v3331
  %v3588 = vpack.c.b16 %v3332, %v3332
  %v3589 = vpack.c.b16 %v3333, %v3333
  %v3590 = vpack.c.b16 %v3334, %v3334
  %v3591 = vpack.c.b16 %v3335, %v3335
  %v3592 = vpack.c.b16 %v3336, %v3336
  %v3593 = vpack.c.b16 %v3337, %v3337
  %v3594 = vpack.c.b16 %v3338, %v3338
  %v3595 = vpack.c.b16 %v3339, %v3339
  %v3596 = vpack.c.b16 %v3340, %v3340
  %v3597 = vpack.c.b16 %v3341, %v3341
  %v3598 = vpack.c.b16 %v3342, %v3342
  %v3599 = vpack.c.b16 %v3343, %v3343
  %v3600 = vpack.c.b16 %v3344, %v3344
  %v3601 = vpack.c.b16 %v3345, %v3345
  %v3602 = vpack.c.b16 %v3346, %v3346
  %v3603 = vpack.c.b16 %v3347, %v3347
  %v3604 = vpack.c.b16 %v3348, %v3348
  %v3605 = vpack.c.b16 %v3349, %v3349
  %v3606 = vpack.c.b16 %v3350, %v3350
  %v3607 = vpack.c.b16 %v3351, %v3351
  %v3608 = vpack.c.b16 %v3352, %v3352
  %v3609 = vpack.c.b16 %v3353, %v3353
  %v3610 = vpack.c.b16 %v3354, %v3354
  %v3611 = vpack.c.b16 %v3355, %v3355
  %v3612 = vpack.c.b16 %v3356, %v3356
  %v3613 = vpack.c.b16 %v3357, %v3357
  %v3614 = vpack.c.b16 %v3358, %v3358
  %v3615 = vpack.c.b16 %v3359, %v3359
  %v3616 = vpack.c.b16 %v3360, %v3360
  %v3617 = vpack.c.b16 %v3361, %v3361
  %v3618 = vpack.c.b16 %v3362, %v3362
  %v3619 = vpack.c.b16 %v3363, %v3363
  %v3620 = vpack.c.b16 %v3364, %v3364
  %v3621 = vpack.c.b16 %v3365, %v3365
  %v3622 = vpack.c.b16 %v3366, %v3366
  %v3623 = vpack.c.b16 %v3367, %v3367
  %v3624 = vpack.c.b16 %v3368, %v3368
  %v3625 = vpack.c.b16 %v3369, %v3369
  %v3626 = vpack.c.b16 %v3370, %v3370
  %v3627 = vpack.c.b16 %v3371, %v3371
  %v3628 = vpack.c.b16 %v3372, %v3372
  %v3629 = vpack.c.b16 %v3373, %v3373
  %v3630 = vpack.c.b16 %v3374, %v3374
  %v3631 = vpack.c.b16 %v3375, %v3375
  %v3632 = vpack.c.b16 %v3376, %v3376
  %v3633 = vpack.c.b16 %v3377, %v3377
  %v3634 = vpack.c.b16 %v3378, %v3378
  %v3635 = vpack.c.b16 %v3379, %v3379
  %v3636 = vpack.c.b16 %v3380, %v3380
  %v3637 = vpack.c.b16 %v3381, %v3381
  %v3638 = vpack.c.b16 %v3382, %v3382
  %v3639 = vpack.c.b16 %v3383, %v3383
  %v3640 = vpack.c.b16 %v3384, %v3384
  %v3641 = vpack.c.b16 %v3385, %v3385
  %v3642 = vpack.c.b16 %v3386, %v3386
  %v3643 = vpack.c.b16 %v3387, %v3387
  %v3644 = vpack.c.b16 %v3388, %v3388
  %v3645 = vpack.c.b16 %v3389, %v3389
  %v3646 = vpack.c.b16 %v3390, %v3390
  %v3647 = vpack.c.b16 %v3391, %v3391
  %v3648 = vpack.c.b16 %v3392, %v3392
  %v3649 = vpack.c.b16 %v3393, %v3393
  %v3650 = vpack.c.b16 %v3394, %v3394
  %v3651 = vpack.c.b16 %v3395, %v3395
  %v3652 = vpack.c.b16 %v3396, %v3396
  %v3653 = vpack.c.b16 %v3397, %v3397
  %v3654 = vpack.c.b16 %v3398, %v3398
  %v3655 = vpack.c.b16 %v3399, %v3399
  %v3656 = vpack.c.b16 %v3400, %v3400
  %v3657 = vpack.c.b16 %v3401, %v3401
  %v3658 = vpack.c.b16 %v3402, %v3402
  %v3659 = vpack.c.b16 %v3403, %v3403
  %v3660 = vpack.c.b16 %v3404, %v3404
  %v3661 = vpack.c.b16 %v3405, %v3405
  %v3662 = vpack.c.b16 %v3406, %v3406
  %v3663 = vpack.c.b16 %v3407, %v3407
  %v3664 = vpack.c.b16 %v3408, %v3408
  %v3665 = vpack.c.b16 %v3409, %v3409
  %v3666 = vpack.c.b16 %v3410, %v3410
  %v3667 = vpack.c.b16 %v3411, %v3411
  %v3668 = vpack.c.b16 %v3412, %v3412
  %v3669 = vpack.c.b16 %v3413, %v3413
  %v3670 = vpack.c.b16 %v3414, %v3414
  %v3671 = vpack.c.b16 %v3415, %v3415
  %v3672 = vpack.c.b16 %v3416, %v3416
  %v3673 = vpack.c.b16 %v3417, %v3417
  %v3674 = vpack.c.b16 %v3418, %v3418
  %v3675 = vpack.c.b16 %v3419, %v3419
  %v3676 = vpack.c.b16 %v3420, %v3420
  %v3677 = vpack.c.b16 %v3421, %v3421
  %v3678 = vpack.c.b16 %v3422, %v3422
  %v3679 = vpack.c.b16 %v3423, %v3423
  %v3680 = vpack.c.b16 %v3424, %v3424
  %v3681 = vpack.c.b16 %v3425, %v3425
  %v3682 = vpack.c.b16 %v3426, %v3426
  %v3683 = vpack.c.b16 %v3427, %v3427
  %v3684 = vpack.c.b16 %v3428, %v3428
  %v3685 = vpack.c.b16 %v3429, %v3429
  %v3686 = vpack.c.b16 %v3430, %v3430
  %v3687 = vpack.c.b16 %v3431, %v3431
  %v3688 = vpack.c.b16 %v3432, %v3432
  %v3689 = vpack.c.b16 %v3433, %v3433
  %v3690 = vpack.c.b16 %v3434, %v3434
  %v3691 = vpack.c.b16 %v3435, %v3435
  %v3692 = vpack.c.b16 %v3436, %v3436
  %v3693 = vpack.c.b16 %v3437, %v3437
  %v3694 = vpack.c.b16 %v3438, %v3438
  %v3695 = vpack.c.b16 %v3439, %v3439
  %v3696 = vpack.c.b16 %v3440, %v3440
  %v3697 = vpack.c.b16 %v3441, %v3441
  %v3698 = vpack.c.b16 %v3442, %v3442
  %v3699 = vpack.c.b16 %v3443, %v3443
  %v3700 = vpack.c.b16 %v3444, %v3444
  %v3701 = vpack.c.b16 %v3445, %v3445
  %v3702 = vpack.c.b16 %v3446, %v3446
  %v3703 = vpack.c.b16 %v3447, %v3447
  %v3704 = vpack.c.b16 %v3448, %v3448
  %v3705 = vpack.c.b16 %v3449, %v3449
  %v3706 = vpack.c.b16 %v3450, %v3450
  %v3707 = vpack.c.b16 %v3451, %v3451
  %v3708 = vpack.c.b16 %v3452, %v3452
  %v3709 = vpack.c.b16 %v3453, %v3453
  %v3710 = vpack.c.b16 %v3454, %v3454
  %v3711 = vpack.c.b16 %v3455, %v3455
  %v3712 = vpack.c.b16 %v3456, %v3456
  %v3713 = vpack.c.b16 %v3457, %v3457
  %v3714 = vpack.c.b16 %v3458, %v3458
  %v3715 = vpack.c.b16 %v3459, %v3459
  %v3716 = vpack.c.b16 %v3460, %v3460
  %v3717 = vpack.c.b16 %v3461, %v3461
  %v3718 = vpack.c.b16 %v3462, %v3462
  %v3719 = vpack.c.b16 %v3463, %v3463
  %v3720 = vpack.c.b16 %v3464, %v3464
  %v3721 = vpack.c.b16 %v3465, %v3465
  %v3722 = vpack.c.b16 %v3466, %v3466
  %v3723 = vpack.c.b16 %v3467, %v3467
  %v3724 = vpack.c.b16 %v3468, %v3468
  %v3725 = vpack.c.b16 %v3469, %v3469
  %v3726 = vpack.c.b16 %v3470, %v3470
  %v3727 = vpack.c.b16 %v3471, %v3471
  %v3728 = vpack.c.b16 %v3472, %v3472
  %v3729 = vpack.c.b16 %v3473, %v3473
  %v3730 = vpack.c.b16 %v3474, %v3474
  %v3731 = vpack.c.b16 %v3475, %v3475
  %v3732 = vpack.c.b16 %v3476, %v3476
  %v3733 = vpack.c.b16 %v3477, %v3477
  %v3734 = vpack.c.b16 %v3478, %v3478
  %v3735 = vpack.c.b16 %v3479, %v3479
  %v3736 = vpack.c.b16 %v3480, %v3480
  %v3737 = vpack.c.b16 %v3481, %v3481
  %v3738 = vpack.c.b16 %v3482, %v3482
  %v3739 = vpack.c.b16 %v3483, %v3483
  %v3740 = vpack.c.b16 %v3484, %v3484
  %v3741 = vpack.c.b16 %v3485, %v3485
  %v3742 = vpack.c.b16 %v3486, %v3486
  %v3743 = vpack.c.b16 %v3487, %v3487
  %v3744 = vpack.c.b16 %v3488, %v3488
  %v3745 = vpack.c.b16 %v3489, %v3489
  %v3746 = vpack.c.b16 %v3490, %v3490
  %v3747 = vpack.c.b16 %v3491, %v3491
  %v3748 = vpack.c.b16 %v3492, %v3492
  %v3749 = vpack.c.b16 %v3493, %v3493
  %v3750 = vpack.c.b16 %v3494, %v3494
  %v3751 = vpack.c.b16 %v3495, %v3495
  %v3752 = vpack.c.b16 %v3496, %v3496
  %v3753 = vpack.c.b16 %v3497, %v3497
  %v3754 = vpack.c.b16 %v3498, %v3498
  %v3755 = vpack.c.b16 %v3499, %v3499
  %v3756 = vpack.c.b16 %v3500, %v3500
  %v3757 = vpack.c.b16 %v3501, %v3501
  %v3758 = vpack.c.b16 %v3502, %v3502
  %v3759 = vpack.c.b16 %v3503, %v3503
  %v3760 = vpack.c.b16 %v3504, %v3504
  %v3761 = vpack.c.b16 %v3505, %v3505
  %v3762 = vpack.c.b16 %v3506, %v3506
  %v3763 = vpack.c.b16 %v3507, %v3507
  %v3764 = vpack.c.b16 %v3508, %v3508
  %v3765 = vpack.c.b16 %v3509, %v3509
  %v3766 = vpack.c.b16 %v3510, %v3510
  %vm4023 = vcmask 519168
  %4024 = vst.msk [vmem:[%s3] sm:$0xf] %vm4023, %v3511
  %4025 = vst.msk [vmem:[%s3 + $0x4] sm:$0xf] %vm4023, %v3512
  %4026 = vst.msk [vmem:[%s3 + $0x8] sm:$0xf] %vm4023, %v3513
  %4027 = vst.msk [vmem:[%s3 + $0xc] sm:$0xf] %vm4023, %v3514
  %4028 = vst.msk [vmem:[%s3 + $0x10] sm:$0xf] %vm4023, %v3515
  %4029 = vst.msk [vmem:[%s3 + $0x14] sm:$0xf] %vm4023, %v3516
  %4030 = vst.msk [vmem:[%s3 + $0x18] sm:$0xf] %vm4023, %v3517
  %4031 = vst.msk [vmem:[%s3 + $0x1c] sm:$0xf] %vm4023, %v3518
  %4032 = vst.msk [vmem:[%s3 + $0x20] sm:$0xf] %vm4023, %v3519
  %4033 = vst.msk [vmem:[%s3 + $0x24] sm:$0xf] %vm4023, %v3520
  %4034 = vst.msk [vmem:[%s3 + $0x28] sm:$0xf] %vm4023, %v3521
  %4035 = vst.msk [vmem:[%s3 + $0x2c] sm:$0xf] %vm4023, %v3522
  %4036 = vst.msk [vmem:[%s3 + $0x30] sm:$0xf] %vm4023, %v3523
  %4037 = vst.msk [vmem:[%s3 + $0x34] sm:$0xf] %vm4023, %v3524
  %4038 = vst.msk [vmem:[%s3 + $0x38] sm:$0xf] %vm4023, %v3525
  %4039 = vst.msk [vmem:[%s3 + $0x3c] sm:$0xf] %vm4023, %v3526
  %4040 = vst.msk [vmem:[%s3 + $0x40] sm:$0xf] %vm4023, %v3527
  %4041 = vst.msk [vmem:[%s3 + $0x44] sm:$0xf] %vm4023, %v3528
  %4042 = vst.msk [vmem:[%s3 + $0x48] sm:$0xf] %vm4023, %v3529
  %4043 = vst.msk [vmem:[%s3 + $0x4c] sm:$0xf] %vm4023, %v3530
  %4044 = vst.msk [vmem:[%s3 + $0x50] sm:$0xf] %vm4023, %v3531
  %4045 = vst.msk [vmem:[%s3 + $0x54] sm:$0xf] %vm4023, %v3532
  %4046 = vst.msk [vmem:[%s3 + $0x58] sm:$0xf] %vm4023, %v3533
  %4047 = vst.msk [vmem:[%s3 + $0x5c] sm:$0xf] %vm4023, %v3534
  %4048 = vst.msk [vmem:[%s3 + $0x60] sm:$0xf] %vm4023, %v3535
  %4049 = vst.msk [vmem:[%s3 + $0x64] sm:$0xf] %vm4023, %v3536
  %4050 = vst.msk [vmem:[%s3 + $0x68] sm:$0xf] %vm4023, %v3537
  %4051 = vst.msk [vmem:[%s3 + $0x6c] sm:$0xf] %vm4023, %v3538
  %4052 = vst.msk [vmem:[%s3 + $0x70] sm:$0xf] %vm4023, %v3539
  %4053 = vst.msk [vmem:[%s3 + $0x74] sm:$0xf] %vm4023, %v3540
  %4054 = vst.msk [vmem:[%s3 + $0x78] sm:$0xf] %vm4023, %v3541
  %4055 = vst.msk [vmem:[%s3 + $0x7c] sm:$0xf] %vm4023, %v3542
  %4056 = vst.msk [vmem:[%s3 + $0x80] sm:$0xf] %vm4023, %v3543
  %4057 = vst.msk [vmem:[%s3 + $0x84] sm:$0xf] %vm4023, %v3544
  %4058 = vst.msk [vmem:[%s3 + $0x88] sm:$0xf] %vm4023, %v3545
  %4059 = vst.msk [vmem:[%s3 + $0x8c] sm:$0xf] %vm4023, %v3546
  %4060 = vst.msk [vmem:[%s3 + $0x90] sm:$0xf] %vm4023, %v3547
  %4061 = vst.msk [vmem:[%s3 + $0x94] sm:$0xf] %vm4023, %v3548
  %4062 = vst.msk [vmem:[%s3 + $0x98] sm:$0xf] %vm4023, %v3549
  %4063 = vst.msk [vmem:[%s3 + $0x9c] sm:$0xf] %vm4023, %v3550
  %4064 = vst.msk [vmem:[%s3 + $0xa0] sm:$0xf] %vm4023, %v3551
  %4065 = vst.msk [vmem:[%s3 + $0xa4] sm:$0xf] %vm4023, %v3552
  %4066 = vst.msk [vmem:[%s3 + $0xa8] sm:$0xf] %vm4023, %v3553
  %4067 = vst.msk [vmem:[%s3 + $0xac] sm:$0xf] %vm4023, %v3554
  %4068 = vst.msk [vmem:[%s3 + $0xb0] sm:$0xf] %vm4023, %v3555
  %4069 = vst.msk [vmem:[%s3 + $0xb4] sm:$0xf] %vm4023, %v3556
  %4070 = vst.msk [vmem:[%s3 + $0xb8] sm:$0xf] %vm4023, %v3557
  %4071 = vst.msk [vmem:[%s3 + $0xbc] sm:$0xf] %vm4023, %v3558
  %4072 = vst.msk [vmem:[%s3 + $0xc0] sm:$0xf] %vm4023, %v3559
  %4073 = vst.msk [vmem:[%s3 + $0xc4] sm:$0xf] %vm4023, %v3560
  %4074 = vst.msk [vmem:[%s3 + $0xc8] sm:$0xf] %vm4023, %v3561
  %4075 = vst.msk [vmem:[%s3 + $0xcc] sm:$0xf] %vm4023, %v3562
  %4076 = vst.msk [vmem:[%s3 + $0xd0] sm:$0xf] %vm4023, %v3563
  %4077 = vst.msk [vmem:[%s3 + $0xd4] sm:$0xf] %vm4023, %v3564
  %4078 = vst.msk [vmem:[%s3 + $0xd8] sm:$0xf] %vm4023, %v3565
  %4079 = vst.msk [vmem:[%s3 + $0xdc] sm:$0xf] %vm4023, %v3566
  %4080 = vst.msk [vmem:[%s3 + $0xe0] sm:$0xf] %vm4023, %v3567
  %4081 = vst.msk [vmem:[%s3 + $0xe4] sm:$0xf] %vm4023, %v3568
  %4082 = vst.msk [vmem:[%s3 + $0xe8] sm:$0xf] %vm4023, %v3569
  %4083 = vst.msk [vmem:[%s3 + $0xec] sm:$0xf] %vm4023, %v3570
  %4084 = vst.msk [vmem:[%s3 + $0xf0] sm:$0xf] %vm4023, %v3571
  %4085 = vst.msk [vmem:[%s3 + $0xf4] sm:$0xf] %vm4023, %v3572
  %4086 = vst.msk [vmem:[%s3 + $0xf8] sm:$0xf] %vm4023, %v3573
  %4087 = vst.msk [vmem:[%s3 + $0xfc] sm:$0xf] %vm4023, %v3574
  %4088 = vst.msk [vmem:[%s3 + $0x100] sm:$0xf] %vm4023, %v3575
  %4089 = vst.msk [vmem:[%s3 + $0x104] sm:$0xf] %vm4023, %v3576
  %4090 = vst.msk [vmem:[%s3 + $0x108] sm:$0xf] %vm4023, %v3577
  %4091 = vst.msk [vmem:[%s3 + $0x10c] sm:$0xf] %vm4023, %v3578
  %4092 = vst.msk [vmem:[%s3 + $0x110] sm:$0xf] %vm4023, %v3579
  %4093 = vst.msk [vmem:[%s3 + $0x114] sm:$0xf] %vm4023, %v3580
  %4094 = vst.msk [vmem:[%s3 + $0x118] sm:$0xf] %vm4023, %v3581
  %4095 = vst.msk [vmem:[%s3 + $0x11c] sm:$0xf] %vm4023, %v3582
  %4096 = vst.msk [vmem:[%s3 + $0x120] sm:$0xf] %vm4023, %v3583
  %4097 = vst.msk [vmem:[%s3 + $0x124] sm:$0xf] %vm4023, %v3584
  %4098 = vst.msk [vmem:[%s3 + $0x128] sm:$0xf] %vm4023, %v3585
  %4099 = vst.msk [vmem:[%s3 + $0x12c] sm:$0xf] %vm4023, %v3586
  %4100 = vst.msk [vmem:[%s3 + $0x130] sm:$0xf] %vm4023, %v3587
  %4101 = vst.msk [vmem:[%s3 + $0x134] sm:$0xf] %vm4023, %v3588
  %4102 = vst.msk [vmem:[%s3 + $0x138] sm:$0xf] %vm4023, %v3589
  %4103 = vst.msk [vmem:[%s3 + $0x13c] sm:$0xf] %vm4023, %v3590
  %4104 = vst.msk [vmem:[%s3 + $0x140] sm:$0xf] %vm4023, %v3591
  %4105 = vst.msk [vmem:[%s3 + $0x144] sm:$0xf] %vm4023, %v3592
  %4106 = vst.msk [vmem:[%s3 + $0x148] sm:$0xf] %vm4023, %v3593
  %4107 = vst.msk [vmem:[%s3 + $0x14c] sm:$0xf] %vm4023, %v3594
  %4108 = vst.msk [vmem:[%s3 + $0x150] sm:$0xf] %vm4023, %v3595
  %4109 = vst.msk [vmem:[%s3 + $0x154] sm:$0xf] %vm4023, %v3596
  %4110 = vst.msk [vmem:[%s3 + $0x158] sm:$0xf] %vm4023, %v3597
  %4111 = vst.msk [vmem:[%s3 + $0x15c] sm:$0xf] %vm4023, %v3598
  %4112 = vst.msk [vmem:[%s3 + $0x160] sm:$0xf] %vm4023, %v3599
  %4113 = vst.msk [vmem:[%s3 + $0x164] sm:$0xf] %vm4023, %v3600
  %4114 = vst.msk [vmem:[%s3 + $0x168] sm:$0xf] %vm4023, %v3601
  %4115 = vst.msk [vmem:[%s3 + $0x16c] sm:$0xf] %vm4023, %v3602
  %4116 = vst.msk [vmem:[%s3 + $0x170] sm:$0xf] %vm4023, %v3603
  %4117 = vst.msk [vmem:[%s3 + $0x174] sm:$0xf] %vm4023, %v3604
  %4118 = vst.msk [vmem:[%s3 + $0x178] sm:$0xf] %vm4023, %v3605
  %4119 = vst.msk [vmem:[%s3 + $0x17c] sm:$0xf] %vm4023, %v3606
  %4120 = vst.msk [vmem:[%s3 + $0x180] sm:$0xf] %vm4023, %v3607
  %4121 = vst.msk [vmem:[%s3 + $0x184] sm:$0xf] %vm4023, %v3608
  %4122 = vst.msk [vmem:[%s3 + $0x188] sm:$0xf] %vm4023, %v3609
  %4123 = vst.msk [vmem:[%s3 + $0x18c] sm:$0xf] %vm4023, %v3610
  %4124 = vst.msk [vmem:[%s3 + $0x190] sm:$0xf] %vm4023, %v3611
  %4125 = vst.msk [vmem:[%s3 + $0x194] sm:$0xf] %vm4023, %v3612
  %4126 = vst.msk [vmem:[%s3 + $0x198] sm:$0xf] %vm4023, %v3613
  %4127 = vst.msk [vmem:[%s3 + $0x19c] sm:$0xf] %vm4023, %v3614
  %4128 = vst.msk [vmem:[%s3 + $0x1a0] sm:$0xf] %vm4023, %v3615
  %4129 = vst.msk [vmem:[%s3 + $0x1a4] sm:$0xf] %vm4023, %v3616
  %4130 = vst.msk [vmem:[%s3 + $0x1a8] sm:$0xf] %vm4023, %v3617
  %4131 = vst.msk [vmem:[%s3 + $0x1ac] sm:$0xf] %vm4023, %v3618
  %4132 = vst.msk [vmem:[%s3 + $0x1b0] sm:$0xf] %vm4023, %v3619
  %4133 = vst.msk [vmem:[%s3 + $0x1b4] sm:$0xf] %vm4023, %v3620
  %4134 = vst.msk [vmem:[%s3 + $0x1b8] sm:$0xf] %vm4023, %v3621
  %4135 = vst.msk [vmem:[%s3 + $0x1bc] sm:$0xf] %vm4023, %v3622
  %4136 = vst.msk [vmem:[%s3 + $0x1c0] sm:$0xf] %vm4023, %v3623
  %4137 = vst.msk [vmem:[%s3 + $0x1c4] sm:$0xf] %vm4023, %v3624
  %4138 = vst.msk [vmem:[%s3 + $0x1c8] sm:$0xf] %vm4023, %v3625
  %4139 = vst.msk [vmem:[%s3 + $0x1cc] sm:$0xf] %vm4023, %v3626
  %4140 = vst.msk [vmem:[%s3 + $0x1d0] sm:$0xf] %vm4023, %v3627
  %4141 = vst.msk [vmem:[%s3 + $0x1d4] sm:$0xf] %vm4023, %v3628
  %4142 = vst.msk [vmem:[%s3 + $0x1d8] sm:$0xf] %vm4023, %v3629
  %4143 = vst.msk [vmem:[%s3 + $0x1dc] sm:$0xf] %vm4023, %v3630
  %4144 = vst.msk [vmem:[%s3 + $0x1e0] sm:$0xf] %vm4023, %v3631
  %4145 = vst.msk [vmem:[%s3 + $0x1e4] sm:$0xf] %vm4023, %v3632
  %4146 = vst.msk [vmem:[%s3 + $0x1e8] sm:$0xf] %vm4023, %v3633
  %4147 = vst.msk [vmem:[%s3 + $0x1ec] sm:$0xf] %vm4023, %v3634
  %4148 = vst.msk [vmem:[%s3 + $0x1f0] sm:$0xf] %vm4023, %v3635
  %4149 = vst.msk [vmem:[%s3 + $0x1f4] sm:$0xf] %vm4023, %v3636
  %4150 = vst.msk [vmem:[%s3 + $0x1f8] sm:$0xf] %vm4023, %v3637
  %4151 = vst.msk [vmem:[%s3 + $0x1fc] sm:$0xf] %vm4023, %v3638
  %4152 = vst.msk [vmem:[%s3 + $0x200] sm:$0xf] %vm4023, %v3639
  %4153 = vst.msk [vmem:[%s3 + $0x204] sm:$0xf] %vm4023, %v3640
  %4154 = vst.msk [vmem:[%s3 + $0x208] sm:$0xf] %vm4023, %v3641
  %4155 = vst.msk [vmem:[%s3 + $0x20c] sm:$0xf] %vm4023, %v3642
  %4156 = vst.msk [vmem:[%s3 + $0x210] sm:$0xf] %vm4023, %v3643
  %4157 = vst.msk [vmem:[%s3 + $0x214] sm:$0xf] %vm4023, %v3644
  %4158 = vst.msk [vmem:[%s3 + $0x218] sm:$0xf] %vm4023, %v3645
  %4159 = vst.msk [vmem:[%s3 + $0x21c] sm:$0xf] %vm4023, %v3646
  %4160 = vst.msk [vmem:[%s3 + $0x220] sm:$0xf] %vm4023, %v3647
  %4161 = vst.msk [vmem:[%s3 + $0x224] sm:$0xf] %vm4023, %v3648
  %4162 = vst.msk [vmem:[%s3 + $0x228] sm:$0xf] %vm4023, %v3649
  %4163 = vst.msk [vmem:[%s3 + $0x22c] sm:$0xf] %vm4023, %v3650
  %4164 = vst.msk [vmem:[%s3 + $0x230] sm:$0xf] %vm4023, %v3651
  %4165 = vst.msk [vmem:[%s3 + $0x234] sm:$0xf] %vm4023, %v3652
  %4166 = vst.msk [vmem:[%s3 + $0x238] sm:$0xf] %vm4023, %v3653
  %4167 = vst.msk [vmem:[%s3 + $0x23c] sm:$0xf] %vm4023, %v3654
  %4168 = vst.msk [vmem:[%s3 + $0x240] sm:$0xf] %vm4023, %v3655
  %4169 = vst.msk [vmem:[%s3 + $0x244] sm:$0xf] %vm4023, %v3656
  %4170 = vst.msk [vmem:[%s3 + $0x248] sm:$0xf] %vm4023, %v3657
  %4171 = vst.msk [vmem:[%s3 + $0x24c] sm:$0xf] %vm4023, %v3658
  %4172 = vst.msk [vmem:[%s3 + $0x250] sm:$0xf] %vm4023, %v3659
  %4173 = vst.msk [vmem:[%s3 + $0x254] sm:$0xf] %vm4023, %v3660
  %4174 = vst.msk [vmem:[%s3 + $0x258] sm:$0xf] %vm4023, %v3661
  %4175 = vst.msk [vmem:[%s3 + $0x25c] sm:$0xf] %vm4023, %v3662
  %4176 = vst.msk [vmem:[%s3 + $0x260] sm:$0xf] %vm4023, %v3663
  %4177 = vst.msk [vmem:[%s3 + $0x264] sm:$0xf] %vm4023, %v3664
  %4178 = vst.msk [vmem:[%s3 + $0x268] sm:$0xf] %vm4023, %v3665
  %4179 = vst.msk [vmem:[%s3 + $0x26c] sm:$0xf] %vm4023, %v3666
  %4180 = vst.msk [vmem:[%s3 + $0x270] sm:$0xf] %vm4023, %v3667
  %4181 = vst.msk [vmem:[%s3 + $0x274] sm:$0xf] %vm4023, %v3668
  %4182 = vst.msk [vmem:[%s3 + $0x278] sm:$0xf] %vm4023, %v3669
  %4183 = vst.msk [vmem:[%s3 + $0x27c] sm:$0xf] %vm4023, %v3670
  %4184 = vst.msk [vmem:[%s3 + $0x280] sm:$0xf] %vm4023, %v3671
  %4185 = vst.msk [vmem:[%s3 + $0x284] sm:$0xf] %vm4023, %v3672
  %4186 = vst.msk [vmem:[%s3 + $0x288] sm:$0xf] %vm4023, %v3673
  %4187 = vst.msk [vmem:[%s3 + $0x28c] sm:$0xf] %vm4023, %v3674
  %4188 = vst.msk [vmem:[%s3 + $0x290] sm:$0xf] %vm4023, %v3675
  %4189 = vst.msk [vmem:[%s3 + $0x294] sm:$0xf] %vm4023, %v3676
  %4190 = vst.msk [vmem:[%s3 + $0x298] sm:$0xf] %vm4023, %v3677
  %4191 = vst.msk [vmem:[%s3 + $0x29c] sm:$0xf] %vm4023, %v3678
  %4192 = vst.msk [vmem:[%s3 + $0x2a0] sm:$0xf] %vm4023, %v3679
  %4193 = vst.msk [vmem:[%s3 + $0x2a4] sm:$0xf] %vm4023, %v3680
  %4194 = vst.msk [vmem:[%s3 + $0x2a8] sm:$0xf] %vm4023, %v3681
  %4195 = vst.msk [vmem:[%s3 + $0x2ac] sm:$0xf] %vm4023, %v3682
  %4196 = vst.msk [vmem:[%s3 + $0x2b0] sm:$0xf] %vm4023, %v3683
  %4197 = vst.msk [vmem:[%s3 + $0x2b4] sm:$0xf] %vm4023, %v3684
  %4198 = vst.msk [vmem:[%s3 + $0x2b8] sm:$0xf] %vm4023, %v3685
  %4199 = vst.msk [vmem:[%s3 + $0x2bc] sm:$0xf] %vm4023, %v3686
  %4200 = vst.msk [vmem:[%s3 + $0x2c0] sm:$0xf] %vm4023, %v3687
  %4201 = vst.msk [vmem:[%s3 + $0x2c4] sm:$0xf] %vm4023, %v3688
  %4202 = vst.msk [vmem:[%s3 + $0x2c8] sm:$0xf] %vm4023, %v3689
  %4203 = vst.msk [vmem:[%s3 + $0x2cc] sm:$0xf] %vm4023, %v3690
  %4204 = vst.msk [vmem:[%s3 + $0x2d0] sm:$0xf] %vm4023, %v3691
  %4205 = vst.msk [vmem:[%s3 + $0x2d4] sm:$0xf] %vm4023, %v3692
  %4206 = vst.msk [vmem:[%s3 + $0x2d8] sm:$0xf] %vm4023, %v3693
  %4207 = vst.msk [vmem:[%s3 + $0x2dc] sm:$0xf] %vm4023, %v3694
  %4208 = vst.msk [vmem:[%s3 + $0x2e0] sm:$0xf] %vm4023, %v3695
  %4209 = vst.msk [vmem:[%s3 + $0x2e4] sm:$0xf] %vm4023, %v3696
  %4210 = vst.msk [vmem:[%s3 + $0x2e8] sm:$0xf] %vm4023, %v3697
  %4211 = vst.msk [vmem:[%s3 + $0x2ec] sm:$0xf] %vm4023, %v3698
  %4212 = vst.msk [vmem:[%s3 + $0x2f0] sm:$0xf] %vm4023, %v3699
  %4213 = vst.msk [vmem:[%s3 + $0x2f4] sm:$0xf] %vm4023, %v3700
  %4214 = vst.msk [vmem:[%s3 + $0x2f8] sm:$0xf] %vm4023, %v3701
  %4215 = vst.msk [vmem:[%s3 + $0x2fc] sm:$0xf] %vm4023, %v3702
  %4216 = vst.msk [vmem:[%s3 + $0x300] sm:$0xf] %vm4023, %v3703
  %4217 = vst.msk [vmem:[%s3 + $0x304] sm:$0xf] %vm4023, %v3704
  %4218 = vst.msk [vmem:[%s3 + $0x308] sm:$0xf] %vm4023, %v3705
  %4219 = vst.msk [vmem:[%s3 + $0x30c] sm:$0xf] %vm4023, %v3706
  %4220 = vst.msk [vmem:[%s3 + $0x310] sm:$0xf] %vm4023, %v3707
  %4221 = vst.msk [vmem:[%s3 + $0x314] sm:$0xf] %vm4023, %v3708
  %4222 = vst.msk [vmem:[%s3 + $0x318] sm:$0xf] %vm4023, %v3709
  %4223 = vst.msk [vmem:[%s3 + $0x31c] sm:$0xf] %vm4023, %v3710
  %4224 = vst.msk [vmem:[%s3 + $0x320] sm:$0xf] %vm4023, %v3711
  %4225 = vst.msk [vmem:[%s3 + $0x324] sm:$0xf] %vm4023, %v3712
  %4226 = vst.msk [vmem:[%s3 + $0x328] sm:$0xf] %vm4023, %v3713
  %4227 = vst.msk [vmem:[%s3 + $0x32c] sm:$0xf] %vm4023, %v3714
  %4228 = vst.msk [vmem:[%s3 + $0x330] sm:$0xf] %vm4023, %v3715
  %4229 = vst.msk [vmem:[%s3 + $0x334] sm:$0xf] %vm4023, %v3716
  %4230 = vst.msk [vmem:[%s3 + $0x338] sm:$0xf] %vm4023, %v3717
  %4231 = vst.msk [vmem:[%s3 + $0x33c] sm:$0xf] %vm4023, %v3718
  %4232 = vst.msk [vmem:[%s3 + $0x340] sm:$0xf] %vm4023, %v3719
  %4233 = vst.msk [vmem:[%s3 + $0x344] sm:$0xf] %vm4023, %v3720
  %4234 = vst.msk [vmem:[%s3 + $0x348] sm:$0xf] %vm4023, %v3721
  %4235 = vst.msk [vmem:[%s3 + $0x34c] sm:$0xf] %vm4023, %v3722
  %4236 = vst.msk [vmem:[%s3 + $0x350] sm:$0xf] %vm4023, %v3723
  %4237 = vst.msk [vmem:[%s3 + $0x354] sm:$0xf] %vm4023, %v3724
  %4238 = vst.msk [vmem:[%s3 + $0x358] sm:$0xf] %vm4023, %v3725
  %4239 = vst.msk [vmem:[%s3 + $0x35c] sm:$0xf] %vm4023, %v3726
  %4240 = vst.msk [vmem:[%s3 + $0x360] sm:$0xf] %vm4023, %v3727
  %4241 = vst.msk [vmem:[%s3 + $0x364] sm:$0xf] %vm4023, %v3728
  %4242 = vst.msk [vmem:[%s3 + $0x368] sm:$0xf] %vm4023, %v3729
  %4243 = vst.msk [vmem:[%s3 + $0x36c] sm:$0xf] %vm4023, %v3730
  %4244 = vst.msk [vmem:[%s3 + $0x370] sm:$0xf] %vm4023, %v3731
  %4245 = vst.msk [vmem:[%s3 + $0x374] sm:$0xf] %vm4023, %v3732
  %4246 = vst.msk [vmem:[%s3 + $0x378] sm:$0xf] %vm4023, %v3733
  %4247 = vst.msk [vmem:[%s3 + $0x37c] sm:$0xf] %vm4023, %v3734
  %4248 = vst.msk [vmem:[%s3 + $0x380] sm:$0xf] %vm4023, %v3735
  %4249 = vst.msk [vmem:[%s3 + $0x384] sm:$0xf] %vm4023, %v3736
  %4250 = vst.msk [vmem:[%s3 + $0x388] sm:$0xf] %vm4023, %v3737
  %4251 = vst.msk [vmem:[%s3 + $0x38c] sm:$0xf] %vm4023, %v3738
  %4252 = vst.msk [vmem:[%s3 + $0x390] sm:$0xf] %vm4023, %v3739
  %4253 = vst.msk [vmem:[%s3 + $0x394] sm:$0xf] %vm4023, %v3740
  %4254 = vst.msk [vmem:[%s3 + $0x398] sm:$0xf] %vm4023, %v3741
  %4255 = vst.msk [vmem:[%s3 + $0x39c] sm:$0xf] %vm4023, %v3742
  %4256 = vst.msk [vmem:[%s3 + $0x3a0] sm:$0xf] %vm4023, %v3743
  %4257 = vst.msk [vmem:[%s3 + $0x3a4] sm:$0xf] %vm4023, %v3744
  %4258 = vst.msk [vmem:[%s3 + $0x3a8] sm:$0xf] %vm4023, %v3745
  %4259 = vst.msk [vmem:[%s3 + $0x3ac] sm:$0xf] %vm4023, %v3746
  %4260 = vst.msk [vmem:[%s3 + $0x3b0] sm:$0xf] %vm4023, %v3747
  %4261 = vst.msk [vmem:[%s3 + $0x3b4] sm:$0xf] %vm4023, %v3748
  %4262 = vst.msk [vmem:[%s3 + $0x3b8] sm:$0xf] %vm4023, %v3749
  %4263 = vst.msk [vmem:[%s3 + $0x3bc] sm:$0xf] %vm4023, %v3750
  %4264 = vst.msk [vmem:[%s3 + $0x3c0] sm:$0xf] %vm4023, %v3751
  %4265 = vst.msk [vmem:[%s3 + $0x3c4] sm:$0xf] %vm4023, %v3752
  %4266 = vst.msk [vmem:[%s3 + $0x3c8] sm:$0xf] %vm4023, %v3753
  %4267 = vst.msk [vmem:[%s3 + $0x3cc] sm:$0xf] %vm4023, %v3754
  %4268 = vst.msk [vmem:[%s3 + $0x3d0] sm:$0xf] %vm4023, %v3755
  %4269 = vst.msk [vmem:[%s3 + $0x3d4] sm:$0xf] %vm4023, %v3756
  %4270 = vst.msk [vmem:[%s3 + $0x3d8] sm:$0xf] %vm4023, %v3757
  %4271 = vst.msk [vmem:[%s3 + $0x3dc] sm:$0xf] %vm4023, %v3758
  %4272 = vst.msk [vmem:[%s3 + $0x3e0] sm:$0xf] %vm4023, %v3759
  %4273 = vst.msk [vmem:[%s3 + $0x3e4] sm:$0xf] %vm4023, %v3760
  %4274 = vst.msk [vmem:[%s3 + $0x3e8] sm:$0xf] %vm4023, %v3761
  %4275 = vst.msk [vmem:[%s3 + $0x3ec] sm:$0xf] %vm4023, %v3762
  %4276 = vst.msk [vmem:[%s3 + $0x3f0] sm:$0xf] %vm4023, %v3763
  %4277 = vst.msk [vmem:[%s3 + $0x3f4] sm:$0xf] %vm4023, %v3764
  %4278 = vst.msk [vmem:[%s3 + $0x3f8] sm:$0xf] %vm4023, %v3765
  %4279 = vst.msk [vmem:[%s3 + $0x3fc] sm:$0xf] %vm4023, %v3766
  // Predicated region
  $region14: #{_stem_and_pool.2} parent=0 // pred_check
    _
  $region15: #{_stem_and_pool.2} parent=0 // pred_check_branch
    %4281 = sbr.rel (0) target = $region17
  $region16: #{_stem_and_pool.2} parent=0 // pred_region
    _
  $region17: #{_stem_and_pool.2} parent=0 // pred_fallthru
    _
  // Predicated region
  $region18: #{_stem_and_pool.2} parent=0 // pred_check
    _
  $region19: #{_stem_and_pool.2} parent=0 // pred_check_branch
    %4283 = sbr.rel (0) target = $region21
  $region20: #{_stem_and_pool.2} parent=0 // pred_region
    _
  $region21: #{_stem_and_pool.2} parent=0 // pred_fallthru
    _

// kernel: _stem_and_pool.3
$region0: #{_stem_and_pool.3}
  #allocation0 [shape = 'u32[]', space=smem, size = 0x4, offset = 0x4, fixed_abs, tag = 'smem constant byte address 0x4 - core index']
  #allocation1 [shape = 'u32[144,128]{1,0:T(1,128)}', space=vmem, size = 0x12000, scoped, tag = 'internal scratch']
  %s0 = inlined_call_operand.vmem [shape: bf16[4,596,64], index: 0, kind: input, shape index: {}]
  %s1 = inlined_call_operand.vmem [shape: bf16[578,64], index: 1, kind: output, shape index: {}]
  %s2 = sld [smem:[#allocation0]]
  $region14: #{_stem_and_pool.3} parent=0
    _
  %s4 = ssub.s32 1, %s2
  %s5 = scalar_select 0, %s4, %s2
  // Predicated region
  $region2: #{_stem_and_pool.3} parent=0 // pred_check
    _
  $region3: #{_stem_and_pool.3} parent=0 // pred_check_branch
    %7 = sbr.rel (0) target = $region5
  $region4: #{_stem_and_pool.3} parent=0 // pred_region
    _
  $region5: #{_stem_and_pool.3} parent=0 // pred_fallthru
    _
  %v8 = vld [vmem:[%s0] sm:$0xf]
  %v9 = vld [vmem:[%s0 + $0x4] sm:$0xf]
  %v10 = vld [vmem:[%s0 + $0x8] sm:$0xf]
  %v11 = vld [vmem:[%s0 + $0xc] sm:$0xf]
  %v12 = vld [vmem:[%s0 + $0x10] sm:$0xf]
  %v13 = vld [vmem:[%s0 + $0x14] sm:$0xf]
  %v14 = vld [vmem:[%s0 + $0x18] sm:$0xf]
  %v15 = vld [vmem:[%s0 + $0x1c] sm:$0xf]
  %v16 = vld [vmem:[%s0 + $0x20] sm:$0xf]
  %v17 = vld [vmem:[%s0 + $0x24] sm:$0xf]
  %v18 = vld [vmem:[%s0 + $0x28] sm:$0xf]
  %v19 = vld [vmem:[%s0 + $0x2c] sm:$0xf]
  %v20 = vld [vmem:[%s0 + $0x30] sm:$0xf]
  %v21 = vld [vmem:[%s0 + $0x34] sm:$0xf]
  %v22 = vld [vmem:[%s0 + $0x38] sm:$0xf]
  %v23 = vld [vmem:[%s0 + $0x3c] sm:$0xf]
  %v24 = vld [vmem:[%s0 + $0x40] sm:$0xf]
  %v25 = vld [vmem:[%s0 + $0x44] sm:$0xf]
  %v26 = vld [vmem:[%s0 + $0x48] sm:$0xf]
  %v27 = vld [vmem:[%s0 + $0x4c] sm:$0xf]
  %v28 = vld [vmem:[%s0 + $0x50] sm:$0xf]
  %v29 = vld [vmem:[%s0 + $0x54] sm:$0xf]
  %v30 = vld [vmem:[%s0 + $0x58] sm:$0xf]
  %v31 = vld [vmem:[%s0 + $0x5c] sm:$0xf]
  %v32 = vld [vmem:[%s0 + $0x60] sm:$0xf]
  %v33 = vld [vmem:[%s0 + $0x64] sm:$0xf]
  %v34 = vld [vmem:[%s0 + $0x68] sm:$0xf]
  %v35 = vld [vmem:[%s0 + $0x6c] sm:$0xf]
  %v36 = vld [vmem:[%s0 + $0x70] sm:$0xf]
  %v37 = vld [vmem:[%s0 + $0x74] sm:$0xf]
  %v38 = vld [vmem:[%s0 + $0x78] sm:$0xf]
  %v39 = vld [vmem:[%s0 + $0x7c] sm:$0xf]
  %v40 = vld [vmem:[%s0 + $0x80] sm:$0xf]
  %v41 = vld [vmem:[%s0 + $0x84] sm:$0xf]
  %v42 = vld [vmem:[%s0 + $0x88] sm:$0xf]
  %v43 = vld [vmem:[%s0 + $0x8c] sm:$0xf]
  %v44 = vld [vmem:[%s0 + $0x90] sm:$0xf]
  %v45 = vld [vmem:[%s0 + $0x94] sm:$0xf]
  %v46 = vld [vmem:[%s0 + $0x98] sm:$0xf]
  %v47 = vld [vmem:[%s0 + $0x9c] sm:$0xf]
  %v48 = vld [vmem:[%s0 + $0xa0] sm:$0xf]
  %v49 = vld [vmem:[%s0 + $0xa4] sm:$0xf]
  %v50 = vld [vmem:[%s0 + $0xa8] sm:$0xf]
  %v51 = vld [vmem:[%s0 + $0xac] sm:$0xf]
  %v52 = vld [vmem:[%s0 + $0xb0] sm:$0xf]
  %v53 = vld [vmem:[%s0 + $0xb4] sm:$0xf]
  %v54 = vld [vmem:[%s0 + $0xb8] sm:$0xf]
  %v55 = vld [vmem:[%s0 + $0xbc] sm:$0xf]
  %v56 = vld [vmem:[%s0 + $0xc0] sm:$0xf]
  %v57 = vld [vmem:[%s0 + $0xc4] sm:$0xf]
  %v58 = vld [vmem:[%s0 + $0xc8] sm:$0xf]
  %v59 = vld [vmem:[%s0 + $0xcc] sm:$0xf]
  %v60 = vld [vmem:[%s0 + $0xd0] sm:$0xf]
  %v61 = vld [vmem:[%s0 + $0xd4] sm:$0xf]
  %v62 = vld [vmem:[%s0 + $0xd8] sm:$0xf]
  %v63 = vld [vmem:[%s0 + $0xdc] sm:$0xf]
  %v64 = vld [vmem:[%s0 + $0xe0] sm:$0xf]
  %v65 = vld [vmem:[%s0 + $0xe4] sm:$0xf]
  %v66 = vld [vmem:[%s0 + $0xe8] sm:$0xf]
  %v67 = vld [vmem:[%s0 + $0xec] sm:$0xf]
  %v68 = vld [vmem:[%s0 + $0xf0] sm:$0xf]
  %v69 = vld [vmem:[%s0 + $0xf4] sm:$0xf]
  %v70 = vld [vmem:[%s0 + $0xf8] sm:$0xf]
  %v71 = vld [vmem:[%s0 + $0xfc] sm:$0xf]
  %v72 = vld [vmem:[%s0 + $0x100] sm:$0xf]
  %v73 = vld [vmem:[%s0 + $0x104] sm:$0xf]
  %v74 = vld [vmem:[%s0 + $0x108] sm:$0xf]
  %v75 = vld [vmem:[%s0 + $0x10c] sm:$0xf]
  %v76 = vld [vmem:[%s0 + $0x110] sm:$0xf]
  %v77 = vld [vmem:[%s0 + $0x114] sm:$0xf]
  %v78 = vld [vmem:[%s0 + $0x118] sm:$0xf]
  %v79 = vld [vmem:[%s0 + $0x11c] sm:$0xf]
  %v80 = vld [vmem:[%s0 + $0x120] sm:$0x1]
  %s81 = scalar_lea.vmem %s0, 300
  %v82 = vld [vmem:[%s81] sm:$0xf]
  %v83 = vld [vmem:[%s81 + $0x4] sm:$0xf]
  %v84 = vld [vmem:[%s81 + $0x8] sm:$0xf]
  %v85 = vld [vmem:[%s81 + $0xc] sm:$0xf]
  %v86 = vld [vmem:[%s81 + $0x10] sm:$0xf]
  %v87 = vld [vmem:[%s81 + $0x14] sm:$0xf]
  %v88 = vld [vmem:[%s81 + $0x18] sm:$0xf]
  %v89 = vld [vmem:[%s81 + $0x1c] sm:$0xf]
  %v90 = vld [vmem:[%s81 + $0x20] sm:$0xf]
  %v91 = vld [vmem:[%s81 + $0x24] sm:$0xf]
  %v92 = vld [vmem:[%s81 + $0x28] sm:$0xf]
  %v93 = vld [vmem:[%s81 + $0x2c] sm:$0xf]
  %v94 = vld [vmem:[%s81 + $0x30] sm:$0xf]
  %v95 = vld [vmem:[%s81 + $0x34] sm:$0xf]
  %v96 = vld [vmem:[%s81 + $0x38] sm:$0xf]
  %v97 = vld [vmem:[%s81 + $0x3c] sm:$0xf]
  %v98 = vld [vmem:[%s81 + $0x40] sm:$0xf]
  %v99 = vld [vmem:[%s81 + $0x44] sm:$0xf]
  %v100 = vld [vmem:[%s81 + $0x48] sm:$0xf]
  %v101 = vld [vmem:[%s81 + $0x4c] sm:$0xf]
  %v102 = vld [vmem:[%s81 + $0x50] sm:$0xf]
  %v103 = vld [vmem:[%s81 + $0x54] sm:$0xf]
  %v104 = vld [vmem:[%s81 + $0x58] sm:$0xf]
  %v105 = vld [vmem:[%s81 + $0x5c] sm:$0xf]
  %v106 = vld [vmem:[%s81 + $0x60] sm:$0xf]
  %v107 = vld [vmem:[%s81 + $0x64] sm:$0xf]
  %v108 = vld [vmem:[%s81 + $0x68] sm:$0xf]
  %v109 = vld [vmem:[%s81 + $0x6c] sm:$0xf]
  %v110 = vld [vmem:[%s81 + $0x70] sm:$0xf]
  %v111 = vld [vmem:[%s81 + $0x74] sm:$0xf]
  %v112 = vld [vmem:[%s81 + $0x78] sm:$0xf]
  %v113 = vld [vmem:[%s81 + $0x7c] sm:$0xf]
  %v114 = vld [vmem:[%s81 + $0x80] sm:$0xf]
  %v115 = vld [vmem:[%s81 + $0x84] sm:$0xf]
  %v116 = vld [vmem:[%s81 + $0x88] sm:$0xf]
  %v117 = vld [vmem:[%s81 + $0x8c] sm:$0xf]
  %v118 = vld [vmem:[%s81 + $0x90] sm:$0xf]
  %v119 = vld [vmem:[%s81 + $0x94] sm:$0xf]
  %v120 = vld [vmem:[%s81 + $0x98] sm:$0xf]
  %v121 = vld [vmem:[%s81 + $0x9c] sm:$0xf]
  %v122 = vld [vmem:[%s81 + $0xa0] sm:$0xf]
  %v123 = vld [vmem:[%s81 + $0xa4] sm:$0xf]
  %v124 = vld [vmem:[%s81 + $0xa8] sm:$0xf]
  %v125 = vld [vmem:[%s81 + $0xac] sm:$0xf]
  %v126 = vld [vmem:[%s81 + $0xb0] sm:$0xf]
  %v127 = vld [vmem:[%s81 + $0xb4] sm:$0xf]
  %v128 = vld [vmem:[%s81 + $0xb8] sm:$0xf]
  %v129 = vld [vmem:[%s81 + $0xbc] sm:$0xf]
  %v130 = vld [vmem:[%s81 + $0xc0] sm:$0xf]
  %v131 = vld [vmem:[%s81 + $0xc4] sm:$0xf]
  %v132 = vld [vmem:[%s81 + $0xc8] sm:$0xf]
  %v133 = vld [vmem:[%s81 + $0xcc] sm:$0xf]
  %v134 = vld [vmem:[%s81 + $0xd0] sm:$0xf]
  %v135 = vld [vmem:[%s81 + $0xd4] sm:$0xf]
  %v136 = vld [vmem:[%s81 + $0xd8] sm:$0xf]
  %v137 = vld [vmem:[%s81 + $0xdc] sm:$0xf]
  %v138 = vld [vmem:[%s81 + $0xe0] sm:$0xf]
  %v139 = vld [vmem:[%s81 + $0xe4] sm:$0xf]
  %v140 = vld [vmem:[%s81 + $0xe8] sm:$0xf]
  %v141 = vld [vmem:[%s81 + $0xec] sm:$0xf]
  %v142 = vld [vmem:[%s81 + $0xf0] sm:$0xf]
  %v143 = vld [vmem:[%s81 + $0xf4] sm:$0xf]
  %v144 = vld [vmem:[%s81 + $0xf8] sm:$0xf]
  %v145 = vld [vmem:[%s81 + $0xfc] sm:$0xf]
  %v146 = vld [vmem:[%s81 + $0x100] sm:$0xf]
  %v147 = vld [vmem:[%s81 + $0x104] sm:$0xf]
  %v148 = vld [vmem:[%s81 + $0x108] sm:$0xf]
  %v149 = vld [vmem:[%s81 + $0x10c] sm:$0xf]
  %v150 = vld [vmem:[%s81 + $0x110] sm:$0xf]
  %v151 = vld [vmem:[%s81 + $0x114] sm:$0xf]
  %v152 = vld [vmem:[%s81 + $0x118] sm:$0xf]
  %v153 = vld [vmem:[%s81 + $0x11c] sm:$0xf]
  %v154 = vld [vmem:[%s81 + $0x120] sm:$0x1]
  %v155 = vmax.bf16 %v8, %v82
  %v156 = vmax.bf16 %v9, %v83
  %v157 = vmax.bf16 %v10, %v84
  %v158 = vmax.bf16 %v11, %v85
  %v159 = vmax.bf16 %v12, %v86
  %v160 = vmax.bf16 %v13, %v87
  %v161 = vmax.bf16 %v14, %v88
  %v162 = vmax.bf16 %v15, %v89
  %v163 = vmax.bf16 %v16, %v90
  %v164 = vmax.bf16 %v17, %v91
  %v165 = vmax.bf16 %v18, %v92
  %v166 = vmax.bf16 %v19, %v93
  %v167 = vmax.bf16 %v20, %v94
  %v168 = vmax.bf16 %v21, %v95
  %v169 = vmax.bf16 %v22, %v96
  %v170 = vmax.bf16 %v23, %v97
  %v171 = vmax.bf16 %v24, %v98
  %v172 = vmax.bf16 %v25, %v99
  %v173 = vmax.bf16 %v26, %v100
  %v174 = vmax.bf16 %v27, %v101
  %v175 = vmax.bf16 %v28, %v102
  %v176 = vmax.bf16 %v29, %v103
  %v177 = vmax.bf16 %v30, %v104
  %v178 = vmax.bf16 %v31, %v105
  %v179 = vmax.bf16 %v32, %v106
  %v180 = vmax.bf16 %v33, %v107
  %v181 = vmax.bf16 %v34, %v108
  %v182 = vmax.bf16 %v35, %v109
  %v183 = vmax.bf16 %v36, %v110
  %v184 = vmax.bf16 %v37, %v111
  %v185 = vmax.bf16 %v38, %v112
  %v186 = vmax.bf16 %v39, %v113
  %v187 = vmax.bf16 %v40, %v114
  %v188 = vmax.bf16 %v41, %v115
  %v189 = vmax.bf16 %v42, %v116
  %v190 = vmax.bf16 %v43, %v117
  %v191 = vmax.bf16 %v44, %v118
  %v192 = vmax.bf16 %v45, %v119
  %v193 = vmax.bf16 %v46, %v120
  %v194 = vmax.bf16 %v47, %v121
  %v195 = vmax.bf16 %v48, %v122
  %v196 = vmax.bf16 %v49, %v123
  %v197 = vmax.bf16 %v50, %v124
  %v198 = vmax.bf16 %v51, %v125
  %v199 = vmax.bf16 %v52, %v126
  %v200 = vmax.bf16 %v53, %v127
  %v201 = vmax.bf16 %v54, %v128
  %v202 = vmax.bf16 %v55, %v129
  %v203 = vmax.bf16 %v56, %v130
  %v204 = vmax.bf16 %v57, %v131
  %v205 = vmax.bf16 %v58, %v132
  %v206 = vmax.bf16 %v59, %v133
  %v207 = vmax.bf16 %v60, %v134
  %v208 = vmax.bf16 %v61, %v135
  %v209 = vmax.bf16 %v62, %v136
  %v210 = vmax.bf16 %v63, %v137
  %v211 = vmax.bf16 %v64, %v138
  %v212 = vmax.bf16 %v65, %v139
  %v213 = vmax.bf16 %v66, %v140
  %v214 = vmax.bf16 %v67, %v141
  %v215 = vmax.bf16 %v68, %v142
  %v216 = vmax.bf16 %v69, %v143
  %v217 = vmax.bf16 %v70, %v144
  %v218 = vmax.bf16 %v71, %v145
  %v219 = vmax.bf16 %v72, %v146
  %v220 = vmax.bf16 %v73, %v147
  %v221 = vmax.bf16 %v74, %v148
  %v222 = vmax.bf16 %v75, %v149
  %v223 = vmax.bf16 %v76, %v150
  %v224 = vmax.bf16 %v77, %v151
  %v225 = vmax.bf16 %v78, %v152
  %v226 = vmax.bf16 %v79, %v153
  %v227 = vmax.bf16 %v80, %v154
  %v228 = vld [vmem:[%s0 + $0x120] sm:$0x3]
  %vm229 = vsmask.f32 3328
  %vm230 = vsmask.f32 7440
  %vm231 = vmor %vm229, %vm230
  %v233 = vshrl.u32 %v8, 16
  %v235 = vrot.slane %v233, 4
  %v236 = vshll.u32 %v8, 16
  %v238 = vrot.slane %v236, 5
  %v239 = vor.u32 %v235, %v238
  %v240 = vrot.slane %v239, 4
  %v242 = vshll.u32 %v9, 16
  %v244 = vrot.slane %v242, 5
  %v245 = vsel %vm231, %v240, %v244
  %v246 = vshrl.u32 %v9, 16
  %v248 = vrot.slane %v246, 4
  %v249 = vor.u32 %v248, %v244
  %v250 = vrot.slane %v249, 4
  %v252 = vshll.u32 %v10, 16
  %v254 = vrot.slane %v252, 5
  %v255 = vsel %vm231, %v250, %v254
  %v256 = vshrl.u32 %v10, 16
  %v258 = vrot.slane %v256, 4
  %v259 = vor.u32 %v258, %v254
  %v260 = vrot.slane %v259, 4
  %v262 = vshll.u32 %v11, 16
  %v264 = vrot.slane %v262, 5
  %v265 = vsel %vm231, %v260, %v264
  %v266 = vshrl.u32 %v11, 16
  %v268 = vrot.slane %v266, 4
  %v269 = vor.u32 %v268, %v264
  %v270 = vrot.slane %v269, 4
  %v272 = vshll.u32 %v12, 16
  %v274 = vrot.slane %v272, 5
  %v275 = vsel %vm231, %v270, %v274
  %v276 = vshrl.u32 %v12, 16
  %v278 = vrot.slane %v276, 4
  %v279 = vor.u32 %v278, %v274
  %v280 = vrot.slane %v279, 4
  %v282 = vshll.u32 %v13, 16
  %v284 = vrot.slane %v282, 5
  %v285 = vsel %vm231, %v280, %v284
  %v286 = vshrl.u32 %v13, 16
  %v288 = vrot.slane %v286, 4
  %v289 = vor.u32 %v288, %v284
  %v290 = vrot.slane %v289, 4
  %v292 = vshll.u32 %v14, 16
  %v294 = vrot.slane %v292, 5
  %v295 = vsel %vm231, %v290, %v294
  %v296 = vshrl.u32 %v14, 16
  %v298 = vrot.slane %v296, 4
  %v299 = vor.u32 %v298, %v294
  %v300 = vrot.slane %v299, 4
  %v302 = vshll.u32 %v15, 16
  %v304 = vrot.slane %v302, 5
  %v305 = vsel %vm231, %v300, %v304
  %v306 = vshrl.u32 %v15, 16
  %v308 = vrot.slane %v306, 4
  %v309 = vor.u32 %v308, %v304
  %v310 = vrot.slane %v309, 4
  %v312 = vshll.u32 %v16, 16
  %v314 = vrot.slane %v312, 5
  %v315 = vsel %vm231, %v310, %v314
  %v316 = vshrl.u32 %v16, 16
  %v318 = vrot.slane %v316, 4
  %v319 = vor.u32 %v318, %v314
  %v320 = vrot.slane %v319, 4
  %v322 = vshll.u32 %v17, 16
  %v324 = vrot.slane %v322, 5
  %v325 = vsel %vm231, %v320, %v324
  %v326 = vshrl.u32 %v17, 16
  %v328 = vrot.slane %v326, 4
  %v329 = vor.u32 %v328, %v324
  %v330 = vrot.slane %v329, 4
  %v332 = vshll.u32 %v18, 16
  %v334 = vrot.slane %v332, 5
  %v335 = vsel %vm231, %v330, %v334
  %v336 = vshrl.u32 %v18, 16
  %v338 = vrot.slane %v336, 4
  %v339 = vor.u32 %v338, %v334
  %v340 = vrot.slane %v339, 4
  %v342 = vshll.u32 %v19, 16
  %v344 = vrot.slane %v342, 5
  %v345 = vsel %vm231, %v340, %v344
  %v346 = vshrl.u32 %v19, 16
  %v348 = vrot.slane %v346, 4
  %v349 = vor.u32 %v348, %v344
  %v350 = vrot.slane %v349, 4
  %v352 = vshll.u32 %v20, 16
  %v354 = vrot.slane %v352, 5
  %v355 = vsel %vm231, %v350, %v354
  %v356 = vshrl.u32 %v20, 16
  %v358 = vrot.slane %v356, 4
  %v359 = vor.u32 %v358, %v354
  %v360 = vrot.slane %v359, 4
  %v362 = vshll.u32 %v21, 16
  %v364 = vrot.slane %v362, 5
  %v365 = vsel %vm231, %v360, %v364
  %v366 = vshrl.u32 %v21, 16
  %v368 = vrot.slane %v366, 4
  %v369 = vor.u32 %v368, %v364
  %v370 = vrot.slane %v369, 4
  %v372 = vshll.u32 %v22, 16
  %v374 = vrot.slane %v372, 5
  %v375 = vsel %vm231, %v370, %v374
  %v376 = vshrl.u32 %v22, 16
  %v378 = vrot.slane %v376, 4
  %v379 = vor.u32 %v378, %v374
  %v380 = vrot.slane %v379, 4
  %v382 = vshll.u32 %v23, 16
  %v384 = vrot.slane %v382, 5
  %v385 = vsel %vm231, %v380, %v384
  %v386 = vshrl.u32 %v23, 16
  %v388 = vrot.slane %v386, 4
  %v389 = vor.u32 %v388, %v384
  %v390 = vrot.slane %v389, 4
  %v392 = vshll.u32 %v24, 16
  %v394 = vrot.slane %v392, 5
  %v395 = vsel %vm231, %v390, %v394
  %v396 = vshrl.u32 %v24, 16
  %v398 = vrot.slane %v396, 4
  %v399 = vor.u32 %v398, %v394
  %v400 = vrot.slane %v399, 4
  %v402 = vshll.u32 %v25, 16
  %v404 = vrot.slane %v402, 5
  %v405 = vsel %vm231, %v400, %v404
  %v406 = vshrl.u32 %v25, 16
  %v408 = vrot.slane %v406, 4
  %v409 = vor.u32 %v408, %v404
  %v410 = vrot.slane %v409, 4
  %v412 = vshll.u32 %v26, 16
  %v414 = vrot.slane %v412, 5
  %v415 = vsel %vm231, %v410, %v414
  %v416 = vshrl.u32 %v26, 16
  %v418 = vrot.slane %v416, 4
  %v419 = vor.u32 %v418, %v414
  %v420 = vrot.slane %v419, 4
  %v422 = vshll.u32 %v27, 16
  %v424 = vrot.slane %v422, 5
  %v425 = vsel %vm231, %v420, %v424
  %v426 = vshrl.u32 %v27, 16
  %v428 = vrot.slane %v426, 4
  %v429 = vor.u32 %v428, %v424
  %v430 = vrot.slane %v429, 4
  %v432 = vshll.u32 %v28, 16
  %v434 = vrot.slane %v432, 5
  %v435 = vsel %vm231, %v430, %v434
  %v436 = vshrl.u32 %v28, 16
  %v438 = vrot.slane %v436, 4
  %v439 = vor.u32 %v438, %v434
  %v440 = vrot.slane %v439, 4
  %v442 = vshll.u32 %v29, 16
  %v444 = vrot.slane %v442, 5
  %v445 = vsel %vm231, %v440, %v444
  %v446 = vshrl.u32 %v29, 16
  %v448 = vrot.slane %v446, 4
  %v449 = vor.u32 %v448, %v444
  %v450 = vrot.slane %v449, 4
  %v452 = vshll.u32 %v30, 16
  %v454 = vrot.slane %v452, 5
  %v455 = vsel %vm231, %v450, %v454
  %v456 = vshrl.u32 %v30, 16
  %v458 = vrot.slane %v456, 4
  %v459 = vor.u32 %v458, %v454
  %v460 = vrot.slane %v459, 4
  %v462 = vshll.u32 %v31, 16
  %v464 = vrot.slane %v462, 5
  %v465 = vsel %vm231, %v460, %v464
  %v466 = vshrl.u32 %v31, 16
  %v468 = vrot.slane %v466, 4
  %v469 = vor.u32 %v468, %v464
  %v470 = vrot.slane %v469, 4
  %v472 = vshll.u32 %v32, 16
  %v474 = vrot.slane %v472, 5
  %v475 = vsel %vm231, %v470, %v474
  %v476 = vshrl.u32 %v32, 16
  %v478 = vrot.slane %v476, 4
  %v479 = vor.u32 %v478, %v474
  %v480 = vrot.slane %v479, 4
  %v482 = vshll.u32 %v33, 16
  %v484 = vrot.slane %v482, 5
  %v485 = vsel %vm231, %v480, %v484
  %v486 = vshrl.u32 %v33, 16
  %v488 = vrot.slane %v486, 4
  %v489 = vor.u32 %v488, %v484
  %v490 = vrot.slane %v489, 4
  %v492 = vshll.u32 %v34, 16
  %v494 = vrot.slane %v492, 5
  %v495 = vsel %vm231, %v490, %v494
  %v496 = vshrl.u32 %v34, 16
  %v498 = vrot.slane %v496, 4
  %v499 = vor.u32 %v498, %v494
  %v500 = vrot.slane %v499, 4
  %v502 = vshll.u32 %v35, 16
  %v504 = vrot.slane %v502, 5
  %v505 = vsel %vm231, %v500, %v504
  %v506 = vshrl.u32 %v35, 16
  %v508 = vrot.slane %v506, 4
  %v509 = vor.u32 %v508, %v504
  %v510 = vrot.slane %v509, 4
  %v512 = vshll.u32 %v36, 16
  %v514 = vrot.slane %v512, 5
  %v515 = vsel %vm231, %v510, %v514
  %v516 = vshrl.u32 %v36, 16
  %v518 = vrot.slane %v516, 4
  %v519 = vor.u32 %v518, %v514
  %v520 = vrot.slane %v519, 4
  %v522 = vshll.u32 %v37, 16
  %v524 = vrot.slane %v522, 5
  %v525 = vsel %vm231, %v520, %v524
  %v526 = vshrl.u32 %v37, 16
  %v528 = vrot.slane %v526, 4
  %v529 = vor.u32 %v528, %v524
  %v530 = vrot.slane %v529, 4
  %v532 = vshll.u32 %v38, 16
  %v534 = vrot.slane %v532, 5
  %v535 = vsel %vm231, %v530, %v534
  %v536 = vshrl.u32 %v38, 16
  %v538 = vrot.slane %v536, 4
  %v539 = vor.u32 %v538, %v534
  %v540 = vrot.slane %v539, 4
  %v542 = vshll.u32 %v39, 16
  %v544 = vrot.slane %v542, 5
  %v545 = vsel %vm231, %v540, %v544
  %v546 = vshrl.u32 %v39, 16
  %v548 = vrot.slane %v546, 4
  %v549 = vor.u32 %v548, %v544
  %v550 = vrot.slane %v549, 4
  %v552 = vshll.u32 %v40, 16
  %v554 = vrot.slane %v552, 5
  %v555 = vsel %vm231, %v550, %v554
  %v556 = vshrl.u32 %v40, 16
  %v558 = vrot.slane %v556, 4
  %v559 = vor.u32 %v558, %v554
  %v560 = vrot.slane %v559, 4
  %v562 = vshll.u32 %v41, 16
  %v564 = vrot.slane %v562, 5
  %v565 = vsel %vm231, %v560, %v564
  %v566 = vshrl.u32 %v41, 16
  %v568 = vrot.slane %v566, 4
  %v569 = vor.u32 %v568, %v564
  %v570 = vrot.slane %v569, 4
  %v572 = vshll.u32 %v42, 16
  %v574 = vrot.slane %v572, 5
  %v575 = vsel %vm231, %v570, %v574
  %v576 = vshrl.u32 %v42, 16
  %v578 = vrot.slane %v576, 4
  %v579 = vor.u32 %v578, %v574
  %v580 = vrot.slane %v579, 4
  %v582 = vshll.u32 %v43, 16
  %v584 = vrot.slane %v582, 5
  %v585 = vsel %vm231, %v580, %v584
  %v586 = vshrl.u32 %v43, 16
  %v588 = vrot.slane %v586, 4
  %v589 = vor.u32 %v588, %v584
  %v590 = vrot.slane %v589, 4
  %v592 = vshll.u32 %v44, 16
  %v594 = vrot.slane %v592, 5
  %v595 = vsel %vm231, %v590, %v594
  %v596 = vshrl.u32 %v44, 16
  %v598 = vrot.slane %v596, 4
  %v599 = vor.u32 %v598, %v594
  %v600 = vrot.slane %v599, 4
  %v602 = vshll.u32 %v45, 16
  %v604 = vrot.slane %v602, 5
  %v605 = vsel %vm231, %v600, %v604
  %v606 = vshrl.u32 %v45, 16
  %v608 = vrot.slane %v606, 4
  %v609 = vor.u32 %v608, %v604
  %v610 = vrot.slane %v609, 4
  %v612 = vshll.u32 %v46, 16
  %v614 = vrot.slane %v612, 5
  %v615 = vsel %vm231, %v610, %v614
  %v616 = vshrl.u32 %v46, 16
  %v618 = vrot.slane %v616, 4
  %v619 = vor.u32 %v618, %v614
  %v620 = vrot.slane %v619, 4
  %v622 = vshll.u32 %v47, 16
  %v624 = vrot.slane %v622, 5
  %v625 = vsel %vm231, %v620, %v624
  %v626 = vshrl.u32 %v47, 16
  %v628 = vrot.slane %v626, 4
  %v629 = vor.u32 %v628, %v624
  %v630 = vrot.slane %v629, 4
  %v632 = vshll.u32 %v48, 16
  %v634 = vrot.slane %v632, 5
  %v635 = vsel %vm231, %v630, %v634
  %v636 = vshrl.u32 %v48, 16
  %v638 = vrot.slane %v636, 4
  %v639 = vor.u32 %v638, %v634
  %v640 = vrot.slane %v639, 4
  %v642 = vshll.u32 %v49, 16
  %v644 = vrot.slane %v642, 5
  %v645 = vsel %vm231, %v640, %v644
  %v646 = vshrl.u32 %v49, 16
  %v648 = vrot.slane %v646, 4
  %v649 = vor.u32 %v648, %v644
  %v650 = vrot.slane %v649, 4
  %v652 = vshll.u32 %v50, 16
  %v654 = vrot.slane %v652, 5
  %v655 = vsel %vm231, %v650, %v654
  %v656 = vshrl.u32 %v50, 16
  %v658 = vrot.slane %v656, 4
  %v659 = vor.u32 %v658, %v654
  %v660 = vrot.slane %v659, 4
  %v662 = vshll.u32 %v51, 16
  %v664 = vrot.slane %v662, 5
  %v665 = vsel %vm231, %v660, %v664
  %v666 = vshrl.u32 %v51, 16
  %v668 = vrot.slane %v666, 4
  %v669 = vor.u32 %v668, %v664
  %v670 = vrot.slane %v669, 4
  %v672 = vshll.u32 %v52, 16
  %v674 = vrot.slane %v672, 5
  %v675 = vsel %vm231, %v670, %v674
  %v676 = vshrl.u32 %v52, 16
  %v678 = vrot.slane %v676, 4
  %v679 = vor.u32 %v678, %v674
  %v680 = vrot.slane %v679, 4
  %v682 = vshll.u32 %v53, 16
  %v684 = vrot.slane %v682, 5
  %v685 = vsel %vm231, %v680, %v684
  %v686 = vshrl.u32 %v53, 16
  %v688 = vrot.slane %v686, 4
  %v689 = vor.u32 %v688, %v684
  %v690 = vrot.slane %v689, 4
  %v692 = vshll.u32 %v54, 16
  %v694 = vrot.slane %v692, 5
  %v695 = vsel %vm231, %v690, %v694
  %v696 = vshrl.u32 %v54, 16
  %v698 = vrot.slane %v696, 4
  %v699 = vor.u32 %v698, %v694
  %v700 = vrot.slane %v699, 4
  %v702 = vshll.u32 %v55, 16
  %v704 = vrot.slane %v702, 5
  %v705 = vsel %vm231, %v700, %v704
  %v706 = vshrl.u32 %v55, 16
  %v708 = vrot.slane %v706, 4
  %v709 = vor.u32 %v708, %v704
  %v710 = vrot.slane %v709, 4
  %v712 = vshll.u32 %v56, 16
  %v714 = vrot.slane %v712, 5
  %v715 = vsel %vm231, %v710, %v714
  %v716 = vshrl.u32 %v56, 16
  %v718 = vrot.slane %v716, 4
  %v719 = vor.u32 %v718, %v714
  %v720 = vrot.slane %v719, 4
  %v722 = vshll.u32 %v57, 16
  %v724 = vrot.slane %v722, 5
  %v725 = vsel %vm231, %v720, %v724
  %v726 = vshrl.u32 %v57, 16
  %v728 = vrot.slane %v726, 4
  %v729 = vor.u32 %v728, %v724
  %v730 = vrot.slane %v729, 4
  %v732 = vshll.u32 %v58, 16
  %v734 = vrot.slane %v732, 5
  %v735 = vsel %vm231, %v730, %v734
  %v736 = vshrl.u32 %v58, 16
  %v738 = vrot.slane %v736, 4
  %v739 = vor.u32 %v738, %v734
  %v740 = vrot.slane %v739, 4
  %v742 = vshll.u32 %v59, 16
  %v744 = vrot.slane %v742, 5
  %v745 = vsel %vm231, %v740, %v744
  %v746 = vshrl.u32 %v59, 16
  %v748 = vrot.slane %v746, 4
  %v749 = vor.u32 %v748, %v744
  %v750 = vrot.slane %v749, 4
  %v752 = vshll.u32 %v60, 16
  %v754 = vrot.slane %v752, 5
  %v755 = vsel %vm231, %v750, %v754
  %v756 = vshrl.u32 %v60, 16
  %v758 = vrot.slane %v756, 4
  %v759 = vor.u32 %v758, %v754
  %v760 = vrot.slane %v759, 4
  %v762 = vshll.u32 %v61, 16
  %v764 = vrot.slane %v762, 5
  %v765 = vsel %vm231, %v760, %v764
  %v766 = vshrl.u32 %v61, 16
  %v768 = vrot.slane %v766, 4
  %v769 = vor.u32 %v768, %v764
  %v770 = vrot.slane %v769, 4
  %v772 = vshll.u32 %v62, 16
  %v774 = vrot.slane %v772, 5
  %v775 = vsel %vm231, %v770, %v774
  %v776 = vshrl.u32 %v62, 16
  %v778 = vrot.slane %v776, 4
  %v779 = vor.u32 %v778, %v774
  %v780 = vrot.slane %v779, 4
  %v782 = vshll.u32 %v63, 16
  %v784 = vrot.slane %v782, 5
  %v785 = vsel %vm231, %v780, %v784
  %v786 = vshrl.u32 %v63, 16
  %v788 = vrot.slane %v786, 4
  %v789 = vor.u32 %v788, %v784
  %v790 = vrot.slane %v789, 4
  %v792 = vshll.u32 %v64, 16
  %v794 = vrot.slane %v792, 5
  %v795 = vsel %vm231, %v790, %v794
  %v796 = vshrl.u32 %v64, 16
  %v798 = vrot.slane %v796, 4
  %v799 = vor.u32 %v798, %v794
  %v800 = vrot.slane %v799, 4
  %v802 = vshll.u32 %v65, 16
  %v804 = vrot.slane %v802, 5
  %v805 = vsel %vm231, %v800, %v804
  %v806 = vshrl.u32 %v65, 16
  %v808 = vrot.slane %v806, 4
  %v809 = vor.u32 %v808, %v804
  %v810 = vrot.slane %v809, 4
  %v812 = vshll.u32 %v66, 16
  %v814 = vrot.slane %v812, 5
  %v815 = vsel %vm231, %v810, %v814
  %v816 = vshrl.u32 %v66, 16
  %v818 = vrot.slane %v816, 4
  %v819 = vor.u32 %v818, %v814
  %v820 = vrot.slane %v819, 4
  %v822 = vshll.u32 %v67, 16
  %v824 = vrot.slane %v822, 5
  %v825 = vsel %vm231, %v820, %v824
  %v826 = vshrl.u32 %v67, 16
  %v828 = vrot.slane %v826, 4
  %v829 = vor.u32 %v828, %v824
  %v830 = vrot.slane %v829, 4
  %v832 = vshll.u32 %v68, 16
  %v834 = vrot.slane %v832, 5
  %v835 = vsel %vm231, %v830, %v834
  %v836 = vshrl.u32 %v68, 16
  %v838 = vrot.slane %v836, 4
  %v839 = vor.u32 %v838, %v834
  %v840 = vrot.slane %v839, 4
  %v842 = vshll.u32 %v69, 16
  %v844 = vrot.slane %v842, 5
  %v845 = vsel %vm231, %v840, %v844
  %v846 = vshrl.u32 %v69, 16
  %v848 = vrot.slane %v846, 4
  %v849 = vor.u32 %v848, %v844
  %v850 = vrot.slane %v849, 4
  %v852 = vshll.u32 %v70, 16
  %v854 = vrot.slane %v852, 5
  %v855 = vsel %vm231, %v850, %v854
  %v856 = vshrl.u32 %v70, 16
  %v858 = vrot.slane %v856, 4
  %v859 = vor.u32 %v858, %v854
  %v860 = vrot.slane %v859, 4
  %v862 = vshll.u32 %v71, 16
  %v864 = vrot.slane %v862, 5
  %v865 = vsel %vm231, %v860, %v864
  %v866 = vshrl.u32 %v71, 16
  %v868 = vrot.slane %v866, 4
  %v869 = vor.u32 %v868, %v864
  %v870 = vrot.slane %v869, 4
  %v872 = vshll.u32 %v72, 16
  %v874 = vrot.slane %v872, 5
  %v875 = vsel %vm231, %v870, %v874
  %v876 = vshrl.u32 %v72, 16
  %v878 = vrot.slane %v876, 4
  %v879 = vor.u32 %v878, %v874
  %v880 = vrot.slane %v879, 4
  %v882 = vshll.u32 %v73, 16
  %v884 = vrot.slane %v882, 5
  %v885 = vsel %vm231, %v880, %v884
  %v886 = vshrl.u32 %v73, 16
  %v888 = vrot.slane %v886, 4
  %v889 = vor.u32 %v888, %v884
  %v890 = vrot.slane %v889, 4
  %v892 = vshll.u32 %v74, 16
  %v894 = vrot.slane %v892, 5
  %v895 = vsel %vm231, %v890, %v894
  %v896 = vshrl.u32 %v74, 16
  %v898 = vrot.slane %v896, 4
  %v899 = vor.u32 %v898, %v894
  %v900 = vrot.slane %v899, 4
  %v902 = vshll.u32 %v75, 16
  %v904 = vrot.slane %v902, 5
  %v905 = vsel %vm231, %v900, %v904
  %v906 = vshrl.u32 %v75, 16
  %v908 = vrot.slane %v906, 4
  %v909 = vor.u32 %v908, %v904
  %v910 = vrot.slane %v909, 4
  %v912 = vshll.u32 %v76, 16
  %v914 = vrot.slane %v912, 5
  %v915 = vsel %vm231, %v910, %v914
  %v916 = vshrl.u32 %v76, 16
  %v918 = vrot.slane %v916, 4
  %v919 = vor.u32 %v918, %v914
  %v920 = vrot.slane %v919, 4
  %v922 = vshll.u32 %v77, 16
  %v924 = vrot.slane %v922, 5
  %v925 = vsel %vm231, %v920, %v924
  %v926 = vshrl.u32 %v77, 16
  %v928 = vrot.slane %v926, 4
  %v929 = vor.u32 %v928, %v924
  %v930 = vrot.slane %v929, 4
  %v932 = vshll.u32 %v78, 16
  %v934 = vrot.slane %v932, 5
  %v935 = vsel %vm231, %v930, %v934
  %v936 = vshrl.u32 %v78, 16
  %v938 = vrot.slane %v936, 4
  %v939 = vor.u32 %v938, %v934
  %v940 = vrot.slane %v939, 4
  %v942 = vshll.u32 %v79, 16
  %v944 = vrot.slane %v942, 5
  %v945 = vsel %vm231, %v940, %v944
  %v946 = vshrl.u32 %v79, 16
  %v948 = vrot.slane %v946, 4
  %v949 = vor.u32 %v948, %v944
  %v950 = vrot.slane %v949, 4
  %v952 = vshll.u32 %v228, 16
  %v954 = vrot.slane %v952, 5
  %v955 = vsel %vm231, %v950, %v954
  %v956 = vshrl.u32 %v228, 16
  %v958 = vrot.slane %v956, 4
  %v959 = vor.u32 %v958, %v954
  %v960 = vrot.slane %v959, 4
  %v1034 = vmax.bf16 %v155, %v245
  %v1035 = vmax.bf16 %v156, %v255
  %v1036 = vmax.bf16 %v157, %v265
  %v1037 = vmax.bf16 %v158, %v275
  %v1038 = vmax.bf16 %v159, %v285
  %v1039 = vmax.bf16 %v160, %v295
  %v1040 = vmax.bf16 %v161, %v305
  %v1041 = vmax.bf16 %v162, %v315
  %v1042 = vmax.bf16 %v163, %v325
  %v1043 = vmax.bf16 %v164, %v335
  %v1044 = vmax.bf16 %v165, %v345
  %v1045 = vmax.bf16 %v166, %v355
  %v1046 = vmax.bf16 %v167, %v365
  %v1047 = vmax.bf16 %v168, %v375
  %v1048 = vmax.bf16 %v169, %v385
  %v1049 = vmax.bf16 %v170, %v395
  %v1050 = vmax.bf16 %v171, %v405
  %v1051 = vmax.bf16 %v172, %v415
  %v1052 = vmax.bf16 %v173, %v425
  %v1053 = vmax.bf16 %v174, %v435
  %v1054 = vmax.bf16 %v175, %v445
  %v1055 = vmax.bf16 %v176, %v455
  %v1056 = vmax.bf16 %v177, %v465
  %v1057 = vmax.bf16 %v178, %v475
  %v1058 = vmax.bf16 %v179, %v485
  %v1059 = vmax.bf16 %v180, %v495
  %v1060 = vmax.bf16 %v181, %v505
  %v1061 = vmax.bf16 %v182, %v515
  %v1062 = vmax.bf16 %v183, %v525
  %v1063 = vmax.bf16 %v184, %v535
  %v1064 = vmax.bf16 %v185, %v545
  %v1065 = vmax.bf16 %v186, %v555
  %v1066 = vmax.bf16 %v187, %v565
  %v1067 = vmax.bf16 %v188, %v575
  %v1068 = vmax.bf16 %v189, %v585
  %v1069 = vmax.bf16 %v190, %v595
  %v1070 = vmax.bf16 %v191, %v605
  %v1071 = vmax.bf16 %v192, %v615
  %v1072 = vmax.bf16 %v193, %v625
  %v1073 = vmax.bf16 %v194, %v635
  %v1074 = vmax.bf16 %v195, %v645
  %v1075 = vmax.bf16 %v196, %v655
  %v1076 = vmax.bf16 %v197, %v665
  %v1077 = vmax.bf16 %v198, %v675
  %v1078 = vmax.bf16 %v199, %v685
  %v1079 = vmax.bf16 %v200, %v695
  %v1080 = vmax.bf16 %v201, %v705
  %v1081 = vmax.bf16 %v202, %v715
  %v1082 = vmax.bf16 %v203, %v725
  %v1083 = vmax.bf16 %v204, %v735
  %v1084 = vmax.bf16 %v205, %v745
  %v1085 = vmax.bf16 %v206, %v755
  %v1086 = vmax.bf16 %v207, %v765
  %v1087 = vmax.bf16 %v208, %v775
  %v1088 = vmax.bf16 %v209, %v785
  %v1089 = vmax.bf16 %v210, %v795
  %v1090 = vmax.bf16 %v211, %v805
  %v1091 = vmax.bf16 %v212, %v815
  %v1092 = vmax.bf16 %v213, %v825
  %v1093 = vmax.bf16 %v214, %v835
  %v1094 = vmax.bf16 %v215, %v845
  %v1095 = vmax.bf16 %v216, %v855
  %v1096 = vmax.bf16 %v217, %v865
  %v1097 = vmax.bf16 %v218, %v875
  %v1098 = vmax.bf16 %v219, %v885
  %v1099 = vmax.bf16 %v220, %v895
  %v1100 = vmax.bf16 %v221, %v905
  %v1101 = vmax.bf16 %v222, %v915
  %v1102 = vmax.bf16 %v223, %v925
  %v1103 = vmax.bf16 %v224, %v935
  %v1104 = vmax.bf16 %v225, %v945
  %v1105 = vmax.bf16 %v226, %v955
  %v1106 = vmax.bf16 %v227, %v960
  %s1107 = scalar_lea.vmem %s0, 600
  %v1108 = vld [vmem:[%s1107] sm:$0xf]
  %v1109 = vld [vmem:[%s1107 + $0x4] sm:$0xf]
  %v1110 = vld [vmem:[%s1107 + $0x8] sm:$0xf]
  %v1111 = vld [vmem:[%s1107 + $0xc] sm:$0xf]
  %v1112 = vld [vmem:[%s1107 + $0x10] sm:$0xf]
  %v1113 = vld [vmem:[%s1107 + $0x14] sm:$0xf]
  %v1114 = vld [vmem:[%s1107 + $0x18] sm:$0xf]
  %v1115 = vld [vmem:[%s1107 + $0x1c] sm:$0xf]
  %v1116 = vld [vmem:[%s1107 + $0x20] sm:$0xf]
  %v1117 = vld [vmem:[%s1107 + $0x24] sm:$0xf]
  %v1118 = vld [vmem:[%s1107 + $0x28] sm:$0xf]
  %v1119 = vld [vmem:[%s1107 + $0x2c] sm:$0xf]
  %v1120 = vld [vmem:[%s1107 + $0x30] sm:$0xf]
  %v1121 = vld [vmem:[%s1107 + $0x34] sm:$0xf]
  %v1122 = vld [vmem:[%s1107 + $0x38] sm:$0xf]
  %v1123 = vld [vmem:[%s1107 + $0x3c] sm:$0xf]
  %v1124 = vld [vmem:[%s1107 + $0x40] sm:$0xf]
  %v1125 = vld [vmem:[%s1107 + $0x44] sm:$0xf]
  %v1126 = vld [vmem:[%s1107 + $0x48] sm:$0xf]
  %v1127 = vld [vmem:[%s1107 + $0x4c] sm:$0xf]
  %v1128 = vld [vmem:[%s1107 + $0x50] sm:$0xf]
  %v1129 = vld [vmem:[%s1107 + $0x54] sm:$0xf]
  %v1130 = vld [vmem:[%s1107 + $0x58] sm:$0xf]
  %v1131 = vld [vmem:[%s1107 + $0x5c] sm:$0xf]
  %v1132 = vld [vmem:[%s1107 + $0x60] sm:$0xf]
  %v1133 = vld [vmem:[%s1107 + $0x64] sm:$0xf]
  %v1134 = vld [vmem:[%s1107 + $0x68] sm:$0xf]
  %v1135 = vld [vmem:[%s1107 + $0x6c] sm:$0xf]
  %v1136 = vld [vmem:[%s1107 + $0x70] sm:$0xf]
  %v1137 = vld [vmem:[%s1107 + $0x74] sm:$0xf]
  %v1138 = vld [vmem:[%s1107 + $0x78] sm:$0xf]
  %v1139 = vld [vmem:[%s1107 + $0x7c] sm:$0xf]
  %v1140 = vld [vmem:[%s1107 + $0x80] sm:$0xf]
  %v1141 = vld [vmem:[%s1107 + $0x84] sm:$0xf]
  %v1142 = vld [vmem:[%s1107 + $0x88] sm:$0xf]
  %v1143 = vld [vmem:[%s1107 + $0x8c] sm:$0xf]
  %v1144 = vld [vmem:[%s1107 + $0x90] sm:$0xf]
  %v1145 = vld [vmem:[%s1107 + $0x94] sm:$0xf]
  %v1146 = vld [vmem:[%s1107 + $0x98] sm:$0xf]
  %v1147 = vld [vmem:[%s1107 + $0x9c] sm:$0xf]
  %v1148 = vld [vmem:[%s1107 + $0xa0] sm:$0xf]
  %v1149 = vld [vmem:[%s1107 + $0xa4] sm:$0xf]
  %v1150 = vld [vmem:[%s1107 + $0xa8] sm:$0xf]
  %v1151 = vld [vmem:[%s1107 + $0xac] sm:$0xf]
  %v1152 = vld [vmem:[%s1107 + $0xb0] sm:$0xf]
  %v1153 = vld [vmem:[%s1107 + $0xb4] sm:$0xf]
  %v1154 = vld [vmem:[%s1107 + $0xb8] sm:$0xf]
  %v1155 = vld [vmem:[%s1107 + $0xbc] sm:$0xf]
  %v1156 = vld [vmem:[%s1107 + $0xc0] sm:$0xf]
  %v1157 = vld [vmem:[%s1107 + $0xc4] sm:$0xf]
  %v1158 = vld [vmem:[%s1107 + $0xc8] sm:$0xf]
  %v1159 = vld [vmem:[%s1107 + $0xcc] sm:$0xf]
  %v1160 = vld [vmem:[%s1107 + $0xd0] sm:$0xf]
  %v1161 = vld [vmem:[%s1107 + $0xd4] sm:$0xf]
  %v1162 = vld [vmem:[%s1107 + $0xd8] sm:$0xf]
  %v1163 = vld [vmem:[%s1107 + $0xdc] sm:$0xf]
  %v1164 = vld [vmem:[%s1107 + $0xe0] sm:$0xf]
  %v1165 = vld [vmem:[%s1107 + $0xe4] sm:$0xf]
  %v1166 = vld [vmem:[%s1107 + $0xe8] sm:$0xf]
  %v1167 = vld [vmem:[%s1107 + $0xec] sm:$0xf]
  %v1168 = vld [vmem:[%s1107 + $0xf0] sm:$0xf]
  %v1169 = vld [vmem:[%s1107 + $0xf4] sm:$0xf]
  %v1170 = vld [vmem:[%s1107 + $0xf8] sm:$0xf]
  %v1171 = vld [vmem:[%s1107 + $0xfc] sm:$0xf]
  %v1172 = vld [vmem:[%s1107 + $0x100] sm:$0xf]
  %v1173 = vld [vmem:[%s1107 + $0x104] sm:$0xf]
  %v1174 = vld [vmem:[%s1107 + $0x108] sm:$0xf]
  %v1175 = vld [vmem:[%s1107 + $0x10c] sm:$0xf]
  %v1176 = vld [vmem:[%s1107 + $0x110] sm:$0xf]
  %v1177 = vld [vmem:[%s1107 + $0x114] sm:$0xf]
  %v1178 = vld [vmem:[%s1107 + $0x118] sm:$0xf]
  %v1179 = vld [vmem:[%s1107 + $0x11c] sm:$0xf]
  %v1180 = vld [vmem:[%s1107 + $0x120] sm:$0x1]
  %v1181 = vmax.bf16 %v1034, %v1108
  %v1182 = vmax.bf16 %v1035, %v1109
  %v1183 = vmax.bf16 %v1036, %v1110
  %v1184 = vmax.bf16 %v1037, %v1111
  %v1185 = vmax.bf16 %v1038, %v1112
  %v1186 = vmax.bf16 %v1039, %v1113
  %v1187 = vmax.bf16 %v1040, %v1114
  %v1188 = vmax.bf16 %v1041, %v1115
  %v1189 = vmax.bf16 %v1042, %v1116
  %v1190 = vmax.bf16 %v1043, %v1117
  %v1191 = vmax.bf16 %v1044, %v1118
  %v1192 = vmax.bf16 %v1045, %v1119
  %v1193 = vmax.bf16 %v1046, %v1120
  %v1194 = vmax.bf16 %v1047, %v1121
  %v1195 = vmax.bf16 %v1048, %v1122
  %v1196 = vmax.bf16 %v1049, %v1123
  %v1197 = vmax.bf16 %v1050, %v1124
  %v1198 = vmax.bf16 %v1051, %v1125
  %v1199 = vmax.bf16 %v1052, %v1126
  %v1200 = vmax.bf16 %v1053, %v1127
  %v1201 = vmax.bf16 %v1054, %v1128
  %v1202 = vmax.bf16 %v1055, %v1129
  %v1203 = vmax.bf16 %v1056, %v1130
  %v1204 = vmax.bf16 %v1057, %v1131
  %v1205 = vmax.bf16 %v1058, %v1132
  %v1206 = vmax.bf16 %v1059, %v1133
  %v1207 = vmax.bf16 %v1060, %v1134
  %v1208 = vmax.bf16 %v1061, %v1135
  %v1209 = vmax.bf16 %v1062, %v1136
  %v1210 = vmax.bf16 %v1063, %v1137
  %v1211 = vmax.bf16 %v1064, %v1138
  %v1212 = vmax.bf16 %v1065, %v1139
  %v1213 = vmax.bf16 %v1066, %v1140
  %v1214 = vmax.bf16 %v1067, %v1141
  %v1215 = vmax.bf16 %v1068, %v1142
  %v1216 = vmax.bf16 %v1069, %v1143
  %v1217 = vmax.bf16 %v1070, %v1144
  %v1218 = vmax.bf16 %v1071, %v1145
  %v1219 = vmax.bf16 %v1072, %v1146
  %v1220 = vmax.bf16 %v1073, %v1147
  %v1221 = vmax.bf16 %v1074, %v1148
  %v1222 = vmax.bf16 %v1075, %v1149
  %v1223 = vmax.bf16 %v1076, %v1150
  %v1224 = vmax.bf16 %v1077, %v1151
  %v1225 = vmax.bf16 %v1078, %v1152
  %v1226 = vmax.bf16 %v1079, %v1153
  %v1227 = vmax.bf16 %v1080, %v1154
  %v1228 = vmax.bf16 %v1081, %v1155
  %v1229 = vmax.bf16 %v1082, %v1156
  %v1230 = vmax.bf16 %v1083, %v1157
  %v1231 = vmax.bf16 %v1084, %v1158
  %v1232 = vmax.bf16 %v1085, %v1159
  %v1233 = vmax.bf16 %v1086, %v1160
  %v1234 = vmax.bf16 %v1087, %v1161
  %v1235 = vmax.bf16 %v1088, %v1162
  %v1236 = vmax.bf16 %v1089, %v1163
  %v1237 = vmax.bf16 %v1090, %v1164
  %v1238 = vmax.bf16 %v1091, %v1165
  %v1239 = vmax.bf16 %v1092, %v1166
  %v1240 = vmax.bf16 %v1093, %v1167
  %v1241 = vmax.bf16 %v1094, %v1168
  %v1242 = vmax.bf16 %v1095, %v1169
  %v1243 = vmax.bf16 %v1096, %v1170
  %v1244 = vmax.bf16 %v1097, %v1171
  %v1245 = vmax.bf16 %v1098, %v1172
  %v1246 = vmax.bf16 %v1099, %v1173
  %v1247 = vmax.bf16 %v1100, %v1174
  %v1248 = vmax.bf16 %v1101, %v1175
  %v1249 = vmax.bf16 %v1102, %v1176
  %v1250 = vmax.bf16 %v1103, %v1177
  %v1251 = vmax.bf16 %v1104, %v1178
  %v1252 = vmax.bf16 %v1105, %v1179
  %v1253 = vmax.bf16 %v1106, %v1180
  %s1254 = scalar_lea.vmem %s0, 900
  %v1255 = vld [vmem:[%s1254] sm:$0xf]
  %v1256 = vld [vmem:[%s1254 + $0x4] sm:$0xf]
  %v1257 = vld [vmem:[%s1254 + $0x8] sm:$0xf]
  %v1258 = vld [vmem:[%s1254 + $0xc] sm:$0xf]
  %v1259 = vld [vmem:[%s1254 + $0x10] sm:$0xf]
  %v1260 = vld [vmem:[%s1254 + $0x14] sm:$0xf]
  %v1261 = vld [vmem:[%s1254 + $0x18] sm:$0xf]
  %v1262 = vld [vmem:[%s1254 + $0x1c] sm:$0xf]
  %v1263 = vld [vmem:[%s1254 + $0x20] sm:$0xf]
  %v1264 = vld [vmem:[%s1254 + $0x24] sm:$0xf]
  %v1265 = vld [vmem:[%s1254 + $0x28] sm:$0xf]
  %v1266 = vld [vmem:[%s1254 + $0x2c] sm:$0xf]
  %v1267 = vld [vmem:[%s1254 + $0x30] sm:$0xf]
  %v1268 = vld [vmem:[%s1254 + $0x34] sm:$0xf]
  %v1269 = vld [vmem:[%s1254 + $0x38] sm:$0xf]
  %v1270 = vld [vmem:[%s1254 + $0x3c] sm:$0xf]
  %v1271 = vld [vmem:[%s1254 + $0x40] sm:$0xf]
  %v1272 = vld [vmem:[%s1254 + $0x44] sm:$0xf]
  %v1273 = vld [vmem:[%s1254 + $0x48] sm:$0xf]
  %v1274 = vld [vmem:[%s1254 + $0x4c] sm:$0xf]
  %v1275 = vld [vmem:[%s1254 + $0x50] sm:$0xf]
  %v1276 = vld [vmem:[%s1254 + $0x54] sm:$0xf]
  %v1277 = vld [vmem:[%s1254 + $0x58] sm:$0xf]
  %v1278 = vld [vmem:[%s1254 + $0x5c] sm:$0xf]
  %v1279 = vld [vmem:[%s1254 + $0x60] sm:$0xf]
  %v1280 = vld [vmem:[%s1254 + $0x64] sm:$0xf]
  %v1281 = vld [vmem:[%s1254 + $0x68] sm:$0xf]
  %v1282 = vld [vmem:[%s1254 + $0x6c] sm:$0xf]
  %v1283 = vld [vmem:[%s1254 + $0x70] sm:$0xf]
  %v1284 = vld [vmem:[%s1254 + $0x74] sm:$0xf]
  %v1285 = vld [vmem:[%s1254 + $0x78] sm:$0xf]
  %v1286 = vld [vmem:[%s1254 + $0x7c] sm:$0xf]
  %v1287 = vld [vmem:[%s1254 + $0x80] sm:$0xf]
  %v1288 = vld [vmem:[%s1254 + $0x84] sm:$0xf]
  %v1289 = vld [vmem:[%s1254 + $0x88] sm:$0xf]
  %v1290 = vld [vmem:[%s1254 + $0x8c] sm:$0xf]
  %v1291 = vld [vmem:[%s1254 + $0x90] sm:$0xf]
  %v1292 = vld [vmem:[%s1254 + $0x94] sm:$0xf]
  %v1293 = vld [vmem:[%s1254 + $0x98] sm:$0xf]
  %v1294 = vld [vmem:[%s1254 + $0x9c] sm:$0xf]
  %v1295 = vld [vmem:[%s1254 + $0xa0] sm:$0xf]
  %v1296 = vld [vmem:[%s1254 + $0xa4] sm:$0xf]
  %v1297 = vld [vmem:[%s1254 + $0xa8] sm:$0xf]
  %v1298 = vld [vmem:[%s1254 + $0xac] sm:$0xf]
  %v1299 = vld [vmem:[%s1254 + $0xb0] sm:$0xf]
  %v1300 = vld [vmem:[%s1254 + $0xb4] sm:$0xf]
  %v1301 = vld [vmem:[%s1254 + $0xb8] sm:$0xf]
  %v1302 = vld [vmem:[%s1254 + $0xbc] sm:$0xf]
  %v1303 = vld [vmem:[%s1254 + $0xc0] sm:$0xf]
  %v1304 = vld [vmem:[%s1254 + $0xc4] sm:$0xf]
  %v1305 = vld [vmem:[%s1254 + $0xc8] sm:$0xf]
  %v1306 = vld [vmem:[%s1254 + $0xcc] sm:$0xf]
  %v1307 = vld [vmem:[%s1254 + $0xd0] sm:$0xf]
  %v1308 = vld [vmem:[%s1254 + $0xd4] sm:$0xf]
  %v1309 = vld [vmem:[%s1254 + $0xd8] sm:$0xf]
  %v1310 = vld [vmem:[%s1254 + $0xdc] sm:$0xf]
  %v1311 = vld [vmem:[%s1254 + $0xe0] sm:$0xf]
  %v1312 = vld [vmem:[%s1254 + $0xe4] sm:$0xf]
  %v1313 = vld [vmem:[%s1254 + $0xe8] sm:$0xf]
  %v1314 = vld [vmem:[%s1254 + $0xec] sm:$0xf]
  %v1315 = vld [vmem:[%s1254 + $0xf0] sm:$0xf]
  %v1316 = vld [vmem:[%s1254 + $0xf4] sm:$0xf]
  %v1317 = vld [vmem:[%s1254 + $0xf8] sm:$0xf]
  %v1318 = vld [vmem:[%s1254 + $0xfc] sm:$0xf]
  %v1319 = vld [vmem:[%s1254 + $0x100] sm:$0xf]
  %v1320 = vld [vmem:[%s1254 + $0x104] sm:$0xf]
  %v1321 = vld [vmem:[%s1254 + $0x108] sm:$0xf]
  %v1322 = vld [vmem:[%s1254 + $0x10c] sm:$0xf]
  %v1323 = vld [vmem:[%s1254 + $0x110] sm:$0xf]
  %v1324 = vld [vmem:[%s1254 + $0x114] sm:$0xf]
  %v1325 = vld [vmem:[%s1254 + $0x118] sm:$0xf]
  %v1326 = vld [vmem:[%s1254 + $0x11c] sm:$0xf]
  %v1327 = vld [vmem:[%s1254 + $0x120] sm:$0x1]
  %v1328 = vmax.bf16 %v1181, %v1255
  %v1329 = vmax.bf16 %v1182, %v1256
  %v1330 = vmax.bf16 %v1183, %v1257
  %v1331 = vmax.bf16 %v1184, %v1258
  %v1332 = vmax.bf16 %v1185, %v1259
  %v1333 = vmax.bf16 %v1186, %v1260
  %v1334 = vmax.bf16 %v1187, %v1261
  %v1335 = vmax.bf16 %v1188, %v1262
  %v1336 = vmax.bf16 %v1189, %v1263
  %v1337 = vmax.bf16 %v1190, %v1264
  %v1338 = vmax.bf16 %v1191, %v1265
  %v1339 = vmax.bf16 %v1192, %v1266
  %v1340 = vmax.bf16 %v1193, %v1267
  %v1341 = vmax.bf16 %v1194, %v1268
  %v1342 = vmax.bf16 %v1195, %v1269
  %v1343 = vmax.bf16 %v1196, %v1270
  %v1344 = vmax.bf16 %v1197, %v1271
  %v1345 = vmax.bf16 %v1198, %v1272
  %v1346 = vmax.bf16 %v1199, %v1273
  %v1347 = vmax.bf16 %v1200, %v1274
  %v1348 = vmax.bf16 %v1201, %v1275
  %v1349 = vmax.bf16 %v1202, %v1276
  %v1350 = vmax.bf16 %v1203, %v1277
  %v1351 = vmax.bf16 %v1204, %v1278
  %v1352 = vmax.bf16 %v1205, %v1279
  %v1353 = vmax.bf16 %v1206, %v1280
  %v1354 = vmax.bf16 %v1207, %v1281
  %v1355 = vmax.bf16 %v1208, %v1282
  %v1356 = vmax.bf16 %v1209, %v1283
  %v1357 = vmax.bf16 %v1210, %v1284
  %v1358 = vmax.bf16 %v1211, %v1285
  %v1359 = vmax.bf16 %v1212, %v1286
  %v1360 = vmax.bf16 %v1213, %v1287
  %v1361 = vmax.bf16 %v1214, %v1288
  %v1362 = vmax.bf16 %v1215, %v1289
  %v1363 = vmax.bf16 %v1216, %v1290
  %v1364 = vmax.bf16 %v1217, %v1291
  %v1365 = vmax.bf16 %v1218, %v1292
  %v1366 = vmax.bf16 %v1219, %v1293
  %v1367 = vmax.bf16 %v1220, %v1294
  %v1368 = vmax.bf16 %v1221, %v1295
  %v1369 = vmax.bf16 %v1222, %v1296
  %v1370 = vmax.bf16 %v1223, %v1297
  %v1371 = vmax.bf16 %v1224, %v1298
  %v1372 = vmax.bf16 %v1225, %v1299
  %v1373 = vmax.bf16 %v1226, %v1300
  %v1374 = vmax.bf16 %v1227, %v1301
  %v1375 = vmax.bf16 %v1228, %v1302
  %v1376 = vmax.bf16 %v1229, %v1303
  %v1377 = vmax.bf16 %v1230, %v1304
  %v1378 = vmax.bf16 %v1231, %v1305
  %v1379 = vmax.bf16 %v1232, %v1306
  %v1380 = vmax.bf16 %v1233, %v1307
  %v1381 = vmax.bf16 %v1234, %v1308
  %v1382 = vmax.bf16 %v1235, %v1309
  %v1383 = vmax.bf16 %v1236, %v1310
  %v1384 = vmax.bf16 %v1237, %v1311
  %v1385 = vmax.bf16 %v1238, %v1312
  %v1386 = vmax.bf16 %v1239, %v1313
  %v1387 = vmax.bf16 %v1240, %v1314
  %v1388 = vmax.bf16 %v1241, %v1315
  %v1389 = vmax.bf16 %v1242, %v1316
  %v1390 = vmax.bf16 %v1243, %v1317
  %v1391 = vmax.bf16 %v1244, %v1318
  %v1392 = vmax.bf16 %v1245, %v1319
  %v1393 = vmax.bf16 %v1246, %v1320
  %v1394 = vmax.bf16 %v1247, %v1321
  %v1395 = vmax.bf16 %v1248, %v1322
  %v1396 = vmax.bf16 %v1249, %v1323
  %v1397 = vmax.bf16 %v1250, %v1324
  %v1398 = vmax.bf16 %v1251, %v1325
  %v1399 = vmax.bf16 %v1252, %v1326
  %v1400 = vmax.bf16 %v1253, %v1327
  %v1401 = vld [vmem:[%s1107 + $0x120] sm:$0x3]
  %v1403 = vshrl.u32 %v1108, 16
  %v1405 = vrot.slane %v1403, 4
  %v1406 = vshll.u32 %v1108, 16
  %v1408 = vrot.slane %v1406, 5
  %v1409 = vor.u32 %v1405, %v1408
  %v1410 = vrot.slane %v1409, 4
  %v1412 = vshll.u32 %v1109, 16
  %v1414 = vrot.slane %v1412, 5
  %v1415 = vsel %vm231, %v1410, %v1414
  %v1416 = vshrl.u32 %v1109, 16
  %v1418 = vrot.slane %v1416, 4
  %v1419 = vor.u32 %v1418, %v1414
  %v1420 = vrot.slane %v1419, 4
  %v1422 = vshll.u32 %v1110, 16
  %v1424 = vrot.slane %v1422, 5
  %v1425 = vsel %vm231, %v1420, %v1424
  %v1426 = vshrl.u32 %v1110, 16
  %v1428 = vrot.slane %v1426, 4
  %v1429 = vor.u32 %v1428, %v1424
  %v1430 = vrot.slane %v1429, 4
  %v1432 = vshll.u32 %v1111, 16
  %v1434 = vrot.slane %v1432, 5
  %v1435 = vsel %vm231, %v1430, %v1434
  %v1436 = vshrl.u32 %v1111, 16
  %v1438 = vrot.slane %v1436, 4
  %v1439 = vor.u32 %v1438, %v1434
  %v1440 = vrot.slane %v1439, 4
  %v1442 = vshll.u32 %v1112, 16
  %v1444 = vrot.slane %v1442, 5
  %v1445 = vsel %vm231, %v1440, %v1444
  %v1446 = vshrl.u32 %v1112, 16
  %v1448 = vrot.slane %v1446, 4
  %v1449 = vor.u32 %v1448, %v1444
  %v1450 = vrot.slane %v1449, 4
  %v1452 = vshll.u32 %v1113, 16
  %v1454 = vrot.slane %v1452, 5
  %v1455 = vsel %vm231, %v1450, %v1454
  %v1456 = vshrl.u32 %v1113, 16
  %v1458 = vrot.slane %v1456, 4
  %v1459 = vor.u32 %v1458, %v1454
  %v1460 = vrot.slane %v1459, 4
  %v1462 = vshll.u32 %v1114, 16
  %v1464 = vrot.slane %v1462, 5
  %v1465 = vsel %vm231, %v1460, %v1464
  %v1466 = vshrl.u32 %v1114, 16
  %v1468 = vrot.slane %v1466, 4
  %v1469 = vor.u32 %v1468, %v1464
  %v1470 = vrot.slane %v1469, 4
  %v1472 = vshll.u32 %v1115, 16
  %v1474 = vrot.slane %v1472, 5
  %v1475 = vsel %vm231, %v1470, %v1474
  %v1476 = vshrl.u32 %v1115, 16
  %v1478 = vrot.slane %v1476, 4
  %v1479 = vor.u32 %v1478, %v1474
  %v1480 = vrot.slane %v1479, 4
  %v1482 = vshll.u32 %v1116, 16
  %v1484 = vrot.slane %v1482, 5
  %v1485 = vsel %vm231, %v1480, %v1484
  %v1486 = vshrl.u32 %v1116, 16
  %v1488 = vrot.slane %v1486, 4
  %v1489 = vor.u32 %v1488, %v1484
  %v1490 = vrot.slane %v1489, 4
  %v1492 = vshll.u32 %v1117, 16
  %v1494 = vrot.slane %v1492, 5
  %v1495 = vsel %vm231, %v1490, %v1494
  %v1496 = vshrl.u32 %v1117, 16
  %v1498 = vrot.slane %v1496, 4
  %v1499 = vor.u32 %v1498, %v1494
  %v1500 = vrot.slane %v1499, 4
  %v1502 = vshll.u32 %v1118, 16
  %v1504 = vrot.slane %v1502, 5
  %v1505 = vsel %vm231, %v1500, %v1504
  %v1506 = vshrl.u32 %v1118, 16
  %v1508 = vrot.slane %v1506, 4
  %v1509 = vor.u32 %v1508, %v1504
  %v1510 = vrot.slane %v1509, 4
  %v1512 = vshll.u32 %v1119, 16
  %v1514 = vrot.slane %v1512, 5
  %v1515 = vsel %vm231, %v1510, %v1514
  %v1516 = vshrl.u32 %v1119, 16
  %v1518 = vrot.slane %v1516, 4
  %v1519 = vor.u32 %v1518, %v1514
  %v1520 = vrot.slane %v1519, 4
  %v1522 = vshll.u32 %v1120, 16
  %v1524 = vrot.slane %v1522, 5
  %v1525 = vsel %vm231, %v1520, %v1524
  %v1526 = vshrl.u32 %v1120, 16
  %v1528 = vrot.slane %v1526, 4
  %v1529 = vor.u32 %v1528, %v1524
  %v1530 = vrot.slane %v1529, 4
  %v1532 = vshll.u32 %v1121, 16
  %v1534 = vrot.slane %v1532, 5
  %v1535 = vsel %vm231, %v1530, %v1534
  %v1536 = vshrl.u32 %v1121, 16
  %v1538 = vrot.slane %v1536, 4
  %v1539 = vor.u32 %v1538, %v1534
  %v1540 = vrot.slane %v1539, 4
  %v1542 = vshll.u32 %v1122, 16
  %v1544 = vrot.slane %v1542, 5
  %v1545 = vsel %vm231, %v1540, %v1544
  %v1546 = vshrl.u32 %v1122, 16
  %v1548 = vrot.slane %v1546, 4
  %v1549 = vor.u32 %v1548, %v1544
  %v1550 = vrot.slane %v1549, 4
  %v1552 = vshll.u32 %v1123, 16
  %v1554 = vrot.slane %v1552, 5
  %v1555 = vsel %vm231, %v1550, %v1554
  %v1556 = vshrl.u32 %v1123, 16
  %v1558 = vrot.slane %v1556, 4
  %v1559 = vor.u32 %v1558, %v1554
  %v1560 = vrot.slane %v1559, 4
  %v1562 = vshll.u32 %v1124, 16
  %v1564 = vrot.slane %v1562, 5
  %v1565 = vsel %vm231, %v1560, %v1564
  %v1566 = vshrl.u32 %v1124, 16
  %v1568 = vrot.slane %v1566, 4
  %v1569 = vor.u32 %v1568, %v1564
  %v1570 = vrot.slane %v1569, 4
  %v1572 = vshll.u32 %v1125, 16
  %v1574 = vrot.slane %v1572, 5
  %v1575 = vsel %vm231, %v1570, %v1574
  %v1576 = vshrl.u32 %v1125, 16
  %v1578 = vrot.slane %v1576, 4
  %v1579 = vor.u32 %v1578, %v1574
  %v1580 = vrot.slane %v1579, 4
  %v1582 = vshll.u32 %v1126, 16
  %v1584 = vrot.slane %v1582, 5
  %v1585 = vsel %vm231, %v1580, %v1584
  %v1586 = vshrl.u32 %v1126, 16
  %v1588 = vrot.slane %v1586, 4
  %v1589 = vor.u32 %v1588, %v1584
  %v1590 = vrot.slane %v1589, 4
  %v1592 = vshll.u32 %v1127, 16
  %v1594 = vrot.slane %v1592, 5
  %v1595 = vsel %vm231, %v1590, %v1594
  %v1596 = vshrl.u32 %v1127, 16
  %v1598 = vrot.slane %v1596, 4
  %v1599 = vor.u32 %v1598, %v1594
  %v1600 = vrot.slane %v1599, 4
  %v1602 = vshll.u32 %v1128, 16
  %v1604 = vrot.slane %v1602, 5
  %v1605 = vsel %vm231, %v1600, %v1604
  %v1606 = vshrl.u32 %v1128, 16
  %v1608 = vrot.slane %v1606, 4
  %v1609 = vor.u32 %v1608, %v1604
  %v1610 = vrot.slane %v1609, 4
  %v1612 = vshll.u32 %v1129, 16
  %v1614 = vrot.slane %v1612, 5
  %v1615 = vsel %vm231, %v1610, %v1614
  %v1616 = vshrl.u32 %v1129, 16
  %v1618 = vrot.slane %v1616, 4
  %v1619 = vor.u32 %v1618, %v1614
  %v1620 = vrot.slane %v1619, 4
  %v1622 = vshll.u32 %v1130, 16
  %v1624 = vrot.slane %v1622, 5
  %v1625 = vsel %vm231, %v1620, %v1624
  %v1626 = vshrl.u32 %v1130, 16
  %v1628 = vrot.slane %v1626, 4
  %v1629 = vor.u32 %v1628, %v1624
  %v1630 = vrot.slane %v1629, 4
  %v1632 = vshll.u32 %v1131, 16
  %v1634 = vrot.slane %v1632, 5
  %v1635 = vsel %vm231, %v1630, %v1634
  %v1636 = vshrl.u32 %v1131, 16
  %v1638 = vrot.slane %v1636, 4
  %v1639 = vor.u32 %v1638, %v1634
  %v1640 = vrot.slane %v1639, 4
  %v1642 = vshll.u32 %v1132, 16
  %v1644 = vrot.slane %v1642, 5
  %v1645 = vsel %vm231, %v1640, %v1644
  %v1646 = vshrl.u32 %v1132, 16
  %v1648 = vrot.slane %v1646, 4
  %v1649 = vor.u32 %v1648, %v1644
  %v1650 = vrot.slane %v1649, 4
  %v1652 = vshll.u32 %v1133, 16
  %v1654 = vrot.slane %v1652, 5
  %v1655 = vsel %vm231, %v1650, %v1654
  %v1656 = vshrl.u32 %v1133, 16
  %v1658 = vrot.slane %v1656, 4
  %v1659 = vor.u32 %v1658, %v1654
  %v1660 = vrot.slane %v1659, 4
  %v1662 = vshll.u32 %v1134, 16
  %v1664 = vrot.slane %v1662, 5
  %v1665 = vsel %vm231, %v1660, %v1664
  %v1666 = vshrl.u32 %v1134, 16
  %v1668 = vrot.slane %v1666, 4
  %v1669 = vor.u32 %v1668, %v1664
  %v1670 = vrot.slane %v1669, 4
  %v1672 = vshll.u32 %v1135, 16
  %v1674 = vrot.slane %v1672, 5
  %v1675 = vsel %vm231, %v1670, %v1674
  %v1676 = vshrl.u32 %v1135, 16
  %v1678 = vrot.slane %v1676, 4
  %v1679 = vor.u32 %v1678, %v1674
  %v1680 = vrot.slane %v1679, 4
  %v1682 = vshll.u32 %v1136, 16
  %v1684 = vrot.slane %v1682, 5
  %v1685 = vsel %vm231, %v1680, %v1684
  %v1686 = vshrl.u32 %v1136, 16
  %v1688 = vrot.slane %v1686, 4
  %v1689 = vor.u32 %v1688, %v1684
  %v1690 = vrot.slane %v1689, 4
  %v1692 = vshll.u32 %v1137, 16
  %v1694 = vrot.slane %v1692, 5
  %v1695 = vsel %vm231, %v1690, %v1694
  %v1696 = vshrl.u32 %v1137, 16
  %v1698 = vrot.slane %v1696, 4
  %v1699 = vor.u32 %v1698, %v1694
  %v1700 = vrot.slane %v1699, 4
  %v1702 = vshll.u32 %v1138, 16
  %v1704 = vrot.slane %v1702, 5
  %v1705 = vsel %vm231, %v1700, %v1704
  %v1706 = vshrl.u32 %v1138, 16
  %v1708 = vrot.slane %v1706, 4
  %v1709 = vor.u32 %v1708, %v1704
  %v1710 = vrot.slane %v1709, 4
  %v1712 = vshll.u32 %v1139, 16
  %v1714 = vrot.slane %v1712, 5
  %v1715 = vsel %vm231, %v1710, %v1714
  %v1716 = vshrl.u32 %v1139, 16
  %v1718 = vrot.slane %v1716, 4
  %v1719 = vor.u32 %v1718, %v1714
  %v1720 = vrot.slane %v1719, 4
  %v1722 = vshll.u32 %v1140, 16
  %v1724 = vrot.slane %v1722, 5
  %v1725 = vsel %vm231, %v1720, %v1724
  %v1726 = vshrl.u32 %v1140, 16
  %v1728 = vrot.slane %v1726, 4
  %v1729 = vor.u32 %v1728, %v1724
  %v1730 = vrot.slane %v1729, 4
  %v1732 = vshll.u32 %v1141, 16
  %v1734 = vrot.slane %v1732, 5
  %v1735 = vsel %vm231, %v1730, %v1734
  %v1736 = vshrl.u32 %v1141, 16
  %v1738 = vrot.slane %v1736, 4
  %v1739 = vor.u32 %v1738, %v1734
  %v1740 = vrot.slane %v1739, 4
  %v1742 = vshll.u32 %v1142, 16
  %v1744 = vrot.slane %v1742, 5
  %v1745 = vsel %vm231, %v1740, %v1744
  %v1746 = vshrl.u32 %v1142, 16
  %v1748 = vrot.slane %v1746, 4
  %v1749 = vor.u32 %v1748, %v1744
  %v1750 = vrot.slane %v1749, 4
  %v1752 = vshll.u32 %v1143, 16
  %v1754 = vrot.slane %v1752, 5
  %v1755 = vsel %vm231, %v1750, %v1754
  %v1756 = vshrl.u32 %v1143, 16
  %v1758 = vrot.slane %v1756, 4
  %v1759 = vor.u32 %v1758, %v1754
  %v1760 = vrot.slane %v1759, 4
  %v1762 = vshll.u32 %v1144, 16
  %v1764 = vrot.slane %v1762, 5
  %v1765 = vsel %vm231, %v1760, %v1764
  %v1766 = vshrl.u32 %v1144, 16
  %v1768 = vrot.slane %v1766, 4
  %v1769 = vor.u32 %v1768, %v1764
  %v1770 = vrot.slane %v1769, 4
  %v1772 = vshll.u32 %v1145, 16
  %v1774 = vrot.slane %v1772, 5
  %v1775 = vsel %vm231, %v1770, %v1774
  %v1776 = vshrl.u32 %v1145, 16
  %v1778 = vrot.slane %v1776, 4
  %v1779 = vor.u32 %v1778, %v1774
  %v1780 = vrot.slane %v1779, 4
  %v1782 = vshll.u32 %v1146, 16
  %v1784 = vrot.slane %v1782, 5
  %v1785 = vsel %vm231, %v1780, %v1784
  %v1786 = vshrl.u32 %v1146, 16
  %v1788 = vrot.slane %v1786, 4
  %v1789 = vor.u32 %v1788, %v1784
  %v1790 = vrot.slane %v1789, 4
  %v1792 = vshll.u32 %v1147, 16
  %v1794 = vrot.slane %v1792, 5
  %v1795 = vsel %vm231, %v1790, %v1794
  %v1796 = vshrl.u32 %v1147, 16
  %v1798 = vrot.slane %v1796, 4
  %v1799 = vor.u32 %v1798, %v1794
  %v1800 = vrot.slane %v1799, 4
  %v1802 = vshll.u32 %v1148, 16
  %v1804 = vrot.slane %v1802, 5
  %v1805 = vsel %vm231, %v1800, %v1804
  %v1806 = vshrl.u32 %v1148, 16
  %v1808 = vrot.slane %v1806, 4
  %v1809 = vor.u32 %v1808, %v1804
  %v1810 = vrot.slane %v1809, 4
  %v1812 = vshll.u32 %v1149, 16
  %v1814 = vrot.slane %v1812, 5
  %v1815 = vsel %vm231, %v1810, %v1814
  %v1816 = vshrl.u32 %v1149, 16
  %v1818 = vrot.slane %v1816, 4
  %v1819 = vor.u32 %v1818, %v1814
  %v1820 = vrot.slane %v1819, 4
  %v1822 = vshll.u32 %v1150, 16
  %v1824 = vrot.slane %v1822, 5
  %v1825 = vsel %vm231, %v1820, %v1824
  %v1826 = vshrl.u32 %v1150, 16
  %v1828 = vrot.slane %v1826, 4
  %v1829 = vor.u32 %v1828, %v1824
  %v1830 = vrot.slane %v1829, 4
  %v1832 = vshll.u32 %v1151, 16
  %v1834 = vrot.slane %v1832, 5
  %v1835 = vsel %vm231, %v1830, %v1834
  %v1836 = vshrl.u32 %v1151, 16
  %v1838 = vrot.slane %v1836, 4
  %v1839 = vor.u32 %v1838, %v1834
  %v1840 = vrot.slane %v1839, 4
  %v1842 = vshll.u32 %v1152, 16
  %v1844 = vrot.slane %v1842, 5
  %v1845 = vsel %vm231, %v1840, %v1844
  %v1846 = vshrl.u32 %v1152, 16
  %v1848 = vrot.slane %v1846, 4
  %v1849 = vor.u32 %v1848, %v1844
  %v1850 = vrot.slane %v1849, 4
  %v1852 = vshll.u32 %v1153, 16
  %v1854 = vrot.slane %v1852, 5
  %v1855 = vsel %vm231, %v1850, %v1854
  %v1856 = vshrl.u32 %v1153, 16
  %v1858 = vrot.slane %v1856, 4
  %v1859 = vor.u32 %v1858, %v1854
  %v1860 = vrot.slane %v1859, 4
  %v1862 = vshll.u32 %v1154, 16
  %v1864 = vrot.slane %v1862, 5
  %v1865 = vsel %vm231, %v1860, %v1864
  %v1866 = vshrl.u32 %v1154, 16
  %v1868 = vrot.slane %v1866, 4
  %v1869 = vor.u32 %v1868, %v1864
  %v1870 = vrot.slane %v1869, 4
  %v1872 = vshll.u32 %v1155, 16
  %v1874 = vrot.slane %v1872, 5
  %v1875 = vsel %vm231, %v1870, %v1874
  %v1876 = vshrl.u32 %v1155, 16
  %v1878 = vrot.slane %v1876, 4
  %v1879 = vor.u32 %v1878, %v1874
  %v1880 = vrot.slane %v1879, 4
  %v1882 = vshll.u32 %v1156, 16
  %v1884 = vrot.slane %v1882, 5
  %v1885 = vsel %vm231, %v1880, %v1884
  %v1886 = vshrl.u32 %v1156, 16
  %v1888 = vrot.slane %v1886, 4
  %v1889 = vor.u32 %v1888, %v1884
  %v1890 = vrot.slane %v1889, 4
  %v1892 = vshll.u32 %v1157, 16
  %v1894 = vrot.slane %v1892, 5
  %v1895 = vsel %vm231, %v1890, %v1894
  %v1896 = vshrl.u32 %v1157, 16
  %v1898 = vrot.slane %v1896, 4
  %v1899 = vor.u32 %v1898, %v1894
  %v1900 = vrot.slane %v1899, 4
  %v1902 = vshll.u32 %v1158, 16
  %v1904 = vrot.slane %v1902, 5
  %v1905 = vsel %vm231, %v1900, %v1904
  %v1906 = vshrl.u32 %v1158, 16
  %v1908 = vrot.slane %v1906, 4
  %v1909 = vor.u32 %v1908, %v1904
  %v1910 = vrot.slane %v1909, 4
  %v1912 = vshll.u32 %v1159, 16
  %v1914 = vrot.slane %v1912, 5
  %v1915 = vsel %vm231, %v1910, %v1914
  %v1916 = vshrl.u32 %v1159, 16
  %v1918 = vrot.slane %v1916, 4
  %v1919 = vor.u32 %v1918, %v1914
  %v1920 = vrot.slane %v1919, 4
  %v1922 = vshll.u32 %v1160, 16
  %v1924 = vrot.slane %v1922, 5
  %v1925 = vsel %vm231, %v1920, %v1924
  %v1926 = vshrl.u32 %v1160, 16
  %v1928 = vrot.slane %v1926, 4
  %v1929 = vor.u32 %v1928, %v1924
  %v1930 = vrot.slane %v1929, 4
  %v1932 = vshll.u32 %v1161, 16
  %v1934 = vrot.slane %v1932, 5
  %v1935 = vsel %vm231, %v1930, %v1934
  %v1936 = vshrl.u32 %v1161, 16
  %v1938 = vrot.slane %v1936, 4
  %v1939 = vor.u32 %v1938, %v1934
  %v1940 = vrot.slane %v1939, 4
  %v1942 = vshll.u32 %v1162, 16
  %v1944 = vrot.slane %v1942, 5
  %v1945 = vsel %vm231, %v1940, %v1944
  %v1946 = vshrl.u32 %v1162, 16
  %v1948 = vrot.slane %v1946, 4
  %v1949 = vor.u32 %v1948, %v1944
  %v1950 = vrot.slane %v1949, 4
  %v1952 = vshll.u32 %v1163, 16
  %v1954 = vrot.slane %v1952, 5
  %v1955 = vsel %vm231, %v1950, %v1954
  %v1956 = vshrl.u32 %v1163, 16
  %v1958 = vrot.slane %v1956, 4
  %v1959 = vor.u32 %v1958, %v1954
  %v1960 = vrot.slane %v1959, 4
  %v1962 = vshll.u32 %v1164, 16
  %v1964 = vrot.slane %v1962, 5
  %v1965 = vsel %vm231, %v1960, %v1964
  %v1966 = vshrl.u32 %v1164, 16
  %v1968 = vrot.slane %v1966, 4
  %v1969 = vor.u32 %v1968, %v1964
  %v1970 = vrot.slane %v1969, 4
  %v1972 = vshll.u32 %v1165, 16
  %v1974 = vrot.slane %v1972, 5
  %v1975 = vsel %vm231, %v1970, %v1974
  %v1976 = vshrl.u32 %v1165, 16
  %v1978 = vrot.slane %v1976, 4
  %v1979 = vor.u32 %v1978, %v1974
  %v1980 = vrot.slane %v1979, 4
  %v1982 = vshll.u32 %v1166, 16
  %v1984 = vrot.slane %v1982, 5
  %v1985 = vsel %vm231, %v1980, %v1984
  %v1986 = vshrl.u32 %v1166, 16
  %v1988 = vrot.slane %v1986, 4
  %v1989 = vor.u32 %v1988, %v1984
  %v1990 = vrot.slane %v1989, 4
  %v1992 = vshll.u32 %v1167, 16
  %v1994 = vrot.slane %v1992, 5
  %v1995 = vsel %vm231, %v1990, %v1994
  %v1996 = vshrl.u32 %v1167, 16
  %v1998 = vrot.slane %v1996, 4
  %v1999 = vor.u32 %v1998, %v1994
  %v2000 = vrot.slane %v1999, 4
  %v2002 = vshll.u32 %v1168, 16
  %v2004 = vrot.slane %v2002, 5
  %v2005 = vsel %vm231, %v2000, %v2004
  %v2006 = vshrl.u32 %v1168, 16
  %v2008 = vrot.slane %v2006, 4
  %v2009 = vor.u32 %v2008, %v2004
  %v2010 = vrot.slane %v2009, 4
  %v2012 = vshll.u32 %v1169, 16
  %v2014 = vrot.slane %v2012, 5
  %v2015 = vsel %vm231, %v2010, %v2014
  %v2016 = vshrl.u32 %v1169, 16
  %v2018 = vrot.slane %v2016, 4
  %v2019 = vor.u32 %v2018, %v2014
  %v2020 = vrot.slane %v2019, 4
  %v2022 = vshll.u32 %v1170, 16
  %v2024 = vrot.slane %v2022, 5
  %v2025 = vsel %vm231, %v2020, %v2024
  %v2026 = vshrl.u32 %v1170, 16
  %v2028 = vrot.slane %v2026, 4
  %v2029 = vor.u32 %v2028, %v2024
  %v2030 = vrot.slane %v2029, 4
  %v2032 = vshll.u32 %v1171, 16
  %v2034 = vrot.slane %v2032, 5
  %v2035 = vsel %vm231, %v2030, %v2034
  %v2036 = vshrl.u32 %v1171, 16
  %v2038 = vrot.slane %v2036, 4
  %v2039 = vor.u32 %v2038, %v2034
  %v2040 = vrot.slane %v2039, 4
  %v2042 = vshll.u32 %v1172, 16
  %v2044 = vrot.slane %v2042, 5
  %v2045 = vsel %vm231, %v2040, %v2044
  %v2046 = vshrl.u32 %v1172, 16
  %v2048 = vrot.slane %v2046, 4
  %v2049 = vor.u32 %v2048, %v2044
  %v2050 = vrot.slane %v2049, 4
  %v2052 = vshll.u32 %v1173, 16
  %v2054 = vrot.slane %v2052, 5
  %v2055 = vsel %vm231, %v2050, %v2054
  %v2056 = vshrl.u32 %v1173, 16
  %v2058 = vrot.slane %v2056, 4
  %v2059 = vor.u32 %v2058, %v2054
  %v2060 = vrot.slane %v2059, 4
  %v2062 = vshll.u32 %v1174, 16
  %v2064 = vrot.slane %v2062, 5
  %v2065 = vsel %vm231, %v2060, %v2064
  %v2066 = vshrl.u32 %v1174, 16
  %v2068 = vrot.slane %v2066, 4
  %v2069 = vor.u32 %v2068, %v2064
  %v2070 = vrot.slane %v2069, 4
  %v2072 = vshll.u32 %v1175, 16
  %v2074 = vrot.slane %v2072, 5
  %v2075 = vsel %vm231, %v2070, %v2074
  %v2076 = vshrl.u32 %v1175, 16
  %v2078 = vrot.slane %v2076, 4
  %v2079 = vor.u32 %v2078, %v2074
  %v2080 = vrot.slane %v2079, 4
  %v2082 = vshll.u32 %v1176, 16
  %v2084 = vrot.slane %v2082, 5
  %v2085 = vsel %vm231, %v2080, %v2084
  %v2086 = vshrl.u32 %v1176, 16
  %v2088 = vrot.slane %v2086, 4
  %v2089 = vor.u32 %v2088, %v2084
  %v2090 = vrot.slane %v2089, 4
  %v2092 = vshll.u32 %v1177, 16
  %v2094 = vrot.slane %v2092, 5
  %v2095 = vsel %vm231, %v2090, %v2094
  %v2096 = vshrl.u32 %v1177, 16
  %v2098 = vrot.slane %v2096, 4
  %v2099 = vor.u32 %v2098, %v2094
  %v2100 = vrot.slane %v2099, 4
  %v2102 = vshll.u32 %v1178, 16
  %v2104 = vrot.slane %v2102, 5
  %v2105 = vsel %vm231, %v2100, %v2104
  %v2106 = vshrl.u32 %v1178, 16
  %v2108 = vrot.slane %v2106, 4
  %v2109 = vor.u32 %v2108, %v2104
  %v2110 = vrot.slane %v2109, 4
  %v2112 = vshll.u32 %v1179, 16
  %v2114 = vrot.slane %v2112, 5
  %v2115 = vsel %vm231, %v2110, %v2114
  %v2116 = vshrl.u32 %v1179, 16
  %v2118 = vrot.slane %v2116, 4
  %v2119 = vor.u32 %v2118, %v2114
  %v2120 = vrot.slane %v2119, 4
  %v2122 = vshll.u32 %v1401, 16
  %v2124 = vrot.slane %v2122, 5
  %v2125 = vsel %vm231, %v2120, %v2124
  %v2126 = vshrl.u32 %v1401, 16
  %v2128 = vrot.slane %v2126, 4
  %v2129 = vor.u32 %v2128, %v2124
  %v2130 = vrot.slane %v2129, 4
  %v2204 = vmax.bf16 %v1328, %v1415
  %v2205 = vmax.bf16 %v1329, %v1425
  %v2206 = vmax.bf16 %v1330, %v1435
  %v2207 = vmax.bf16 %v1331, %v1445
  %v2208 = vmax.bf16 %v1332, %v1455
  %v2209 = vmax.bf16 %v1333, %v1465
  %v2210 = vmax.bf16 %v1334, %v1475
  %v2211 = vmax.bf16 %v1335, %v1485
  %v2212 = vmax.bf16 %v1336, %v1495
  %v2213 = vmax.bf16 %v1337, %v1505
  %v2214 = vmax.bf16 %v1338, %v1515
  %v2215 = vmax.bf16 %v1339, %v1525
  %v2216 = vmax.bf16 %v1340, %v1535
  %v2217 = vmax.bf16 %v1341, %v1545
  %v2218 = vmax.bf16 %v1342, %v1555
  %v2219 = vmax.bf16 %v1343, %v1565
  %v2220 = vmax.bf16 %v1344, %v1575
  %v2221 = vmax.bf16 %v1345, %v1585
  %v2222 = vmax.bf16 %v1346, %v1595
  %v2223 = vmax.bf16 %v1347, %v1605
  %v2224 = vmax.bf16 %v1348, %v1615
  %v2225 = vmax.bf16 %v1349, %v1625
  %v2226 = vmax.bf16 %v1350, %v1635
  %v2227 = vmax.bf16 %v1351, %v1645
  %v2228 = vmax.bf16 %v1352, %v1655
  %v2229 = vmax.bf16 %v1353, %v1665
  %v2230 = vmax.bf16 %v1354, %v1675
  %v2231 = vmax.bf16 %v1355, %v1685
  %v2232 = vmax.bf16 %v1356, %v1695
  %v2233 = vmax.bf16 %v1357, %v1705
  %v2234 = vmax.bf16 %v1358, %v1715
  %v2235 = vmax.bf16 %v1359, %v1725
  %v2236 = vmax.bf16 %v1360, %v1735
  %v2237 = vmax.bf16 %v1361, %v1745
  %v2238 = vmax.bf16 %v1362, %v1755
  %v2239 = vmax.bf16 %v1363, %v1765
  %v2240 = vmax.bf16 %v1364, %v1775
  %v2241 = vmax.bf16 %v1365, %v1785
  %v2242 = vmax.bf16 %v1366, %v1795
  %v2243 = vmax.bf16 %v1367, %v1805
  %v2244 = vmax.bf16 %v1368, %v1815
  %v2245 = vmax.bf16 %v1369, %v1825
  %v2246 = vmax.bf16 %v1370, %v1835
  %v2247 = vmax.bf16 %v1371, %v1845
  %v2248 = vmax.bf16 %v1372, %v1855
  %v2249 = vmax.bf16 %v1373, %v1865
  %v2250 = vmax.bf16 %v1374, %v1875
  %v2251 = vmax.bf16 %v1375, %v1885
  %v2252 = vmax.bf16 %v1376, %v1895
  %v2253 = vmax.bf16 %v1377, %v1905
  %v2254 = vmax.bf16 %v1378, %v1915
  %v2255 = vmax.bf16 %v1379, %v1925
  %v2256 = vmax.bf16 %v1380, %v1935
  %v2257 = vmax.bf16 %v1381, %v1945
  %v2258 = vmax.bf16 %v1382, %v1955
  %v2259 = vmax.bf16 %v1383, %v1965
  %v2260 = vmax.bf16 %v1384, %v1975
  %v2261 = vmax.bf16 %v1385, %v1985
  %v2262 = vmax.bf16 %v1386, %v1995
  %v2263 = vmax.bf16 %v1387, %v2005
  %v2264 = vmax.bf16 %v1388, %v2015
  %v2265 = vmax.bf16 %v1389, %v2025
  %v2266 = vmax.bf16 %v1390, %v2035
  %v2267 = vmax.bf16 %v1391, %v2045
  %v2268 = vmax.bf16 %v1392, %v2055
  %v2269 = vmax.bf16 %v1393, %v2065
  %v2270 = vmax.bf16 %v1394, %v2075
  %v2271 = vmax.bf16 %v1395, %v2085
  %v2272 = vmax.bf16 %v1396, %v2095
  %v2273 = vmax.bf16 %v1397, %v2105
  %v2274 = vmax.bf16 %v1398, %v2115
  %v2275 = vmax.bf16 %v1399, %v2125
  %v2276 = vmax.bf16 %v1400, %v2130
  %v2277 = vld [vmem:[%s0 + $0x120] sm:$0xf]
  %v2278 = vld [vmem:[%s0 + $0x124] sm:$0xf]
  %v2279 = vld [vmem:[%s0 + $0x128] sm:$0x3]
  %v2281 = vshll.u32 %v2277, 16
  %v2283 = vrot.slane %v2281, 5
  %v2284 = vsel %vm231, %v950, %v2283
  %v2285 = vshrl.u32 %v2277, 16
  %v2287 = vrot.slane %v2285, 4
  %v2288 = vor.u32 %v2287, %v2283
  %v2289 = vrot.slane %v2288, 4
  %v2291 = vshll.u32 %v2278, 16
  %v2293 = vrot.slane %v2291, 5
  %v2294 = vsel %vm231, %v2289, %v2293
  %v2295 = vshrl.u32 %v2278, 16
  %v2297 = vrot.slane %v2295, 4
  %v2298 = vor.u32 %v2297, %v2293
  %v2299 = vrot.slane %v2298, 4
  %v2301 = vshll.u32 %v2279, 16
  %v2303 = vrot.slane %v2301, 5
  %v2304 = vsel %vm231, %v2299, %v2303
  %v2305 = vshrl.u32 %v2279, 16
  %v2307 = vrot.slane %v2305, 4
  %v2308 = vor.u32 %v2307, %v2303
  %v2309 = vrot.slane %v2308, 4
  %v2314 = vmax.bf16 %v2204, %v265
  %v2315 = vmax.bf16 %v2205, %v275
  %v2316 = vmax.bf16 %v2206, %v285
  %v2317 = vmax.bf16 %v2207, %v295
  %v2318 = vmax.bf16 %v2208, %v305
  %v2319 = vmax.bf16 %v2209, %v315
  %v2320 = vmax.bf16 %v2210, %v325
  %v2321 = vmax.bf16 %v2211, %v335
  %v2322 = vmax.bf16 %v2212, %v345
  %v2323 = vmax.bf16 %v2213, %v355
  %v2324 = vmax.bf16 %v2214, %v365
  %v2325 = vmax.bf16 %v2215, %v375
  %v2326 = vmax.bf16 %v2216, %v385
  %v2327 = vmax.bf16 %v2217, %v395
  %v2328 = vmax.bf16 %v2218, %v405
  %v2329 = vmax.bf16 %v2219, %v415
  %v2330 = vmax.bf16 %v2220, %v425
  %v2331 = vmax.bf16 %v2221, %v435
  %v2332 = vmax.bf16 %v2222, %v445
  %v2333 = vmax.bf16 %v2223, %v455
  %v2334 = vmax.bf16 %v2224, %v465
  %v2335 = vmax.bf16 %v2225, %v475
  %v2336 = vmax.bf16 %v2226, %v485
  %v2337 = vmax.bf16 %v2227, %v495
  %v2338 = vmax.bf16 %v2228, %v505
  %v2339 = vmax.bf16 %v2229, %v515
  %v2340 = vmax.bf16 %v2230, %v525
  %v2341 = vmax.bf16 %v2231, %v535
  %v2342 = vmax.bf16 %v2232, %v545
  %v2343 = vmax.bf16 %v2233, %v555
  %v2344 = vmax.bf16 %v2234, %v565
  %v2345 = vmax.bf16 %v2235, %v575
  %v2346 = vmax.bf16 %v2236, %v585
  %v2347 = vmax.bf16 %v2237, %v595
  %v2348 = vmax.bf16 %v2238, %v605
  %v2349 = vmax.bf16 %v2239, %v615
  %v2350 = vmax.bf16 %v2240, %v625
  %v2351 = vmax.bf16 %v2241, %v635
  %v2352 = vmax.bf16 %v2242, %v645
  %v2353 = vmax.bf16 %v2243, %v655
  %v2354 = vmax.bf16 %v2244, %v665
  %v2355 = vmax.bf16 %v2245, %v675
  %v2356 = vmax.bf16 %v2246, %v685
  %v2357 = vmax.bf16 %v2247, %v695
  %v2358 = vmax.bf16 %v2248, %v705
  %v2359 = vmax.bf16 %v2249, %v715
  %v2360 = vmax.bf16 %v2250, %v725
  %v2361 = vmax.bf16 %v2251, %v735
  %v2362 = vmax.bf16 %v2252, %v745
  %v2363 = vmax.bf16 %v2253, %v755
  %v2364 = vmax.bf16 %v2254, %v765
  %v2365 = vmax.bf16 %v2255, %v775
  %v2366 = vmax.bf16 %v2256, %v785
  %v2367 = vmax.bf16 %v2257, %v795
  %v2368 = vmax.bf16 %v2258, %v805
  %v2369 = vmax.bf16 %v2259, %v815
  %v2370 = vmax.bf16 %v2260, %v825
  %v2371 = vmax.bf16 %v2261, %v835
  %v2372 = vmax.bf16 %v2262, %v845
  %v2373 = vmax.bf16 %v2263, %v855
  %v2374 = vmax.bf16 %v2264, %v865
  %v2375 = vmax.bf16 %v2265, %v875
  %v2376 = vmax.bf16 %v2266, %v885
  %v2377 = vmax.bf16 %v2267, %v895
  %v2378 = vmax.bf16 %v2268, %v905
  %v2379 = vmax.bf16 %v2269, %v915
  %v2380 = vmax.bf16 %v2270, %v925
  %v2381 = vmax.bf16 %v2271, %v935
  %v2382 = vmax.bf16 %v2272, %v945
  %v2383 = vmax.bf16 %v2273, %v2284
  %v2384 = vmax.bf16 %v2274, %v2294
  %v2385 = vmax.bf16 %v2275, %v2304
  %v2386 = vmax.bf16 %v2276, %v2309
  %v2387 = vld [vmem:[%s81 + $0x120] sm:$0xf]
  %v2388 = vld [vmem:[%s81 + $0x124] sm:$0xf]
  %v2389 = vld [vmem:[%s81 + $0x128] sm:$0x3]
  %v2391 = vshrl.u32 %v84, 16
  %v2393 = vrot.slane %v2391, 4
  %v2394 = vshll.u32 %v84, 16
  %v2396 = vrot.slane %v2394, 5
  %v2397 = vor.u32 %v2393, %v2396
  %v2398 = vrot.slane %v2397, 4
  %v2400 = vshll.u32 %v85, 16
  %v2402 = vrot.slane %v2400, 5
  %v2403 = vsel %vm231, %v2398, %v2402
  %v2404 = vshrl.u32 %v85, 16
  %v2406 = vrot.slane %v2404, 4
  %v2407 = vor.u32 %v2406, %v2402
  %v2408 = vrot.slane %v2407, 4
  %v2410 = vshll.u32 %v86, 16
  %v2412 = vrot.slane %v2410, 5
  %v2413 = vsel %vm231, %v2408, %v2412
  %v2414 = vshrl.u32 %v86, 16
  %v2416 = vrot.slane %v2414, 4
  %v2417 = vor.u32 %v2416, %v2412
  %v2418 = vrot.slane %v2417, 4
  %v2420 = vshll.u32 %v87, 16
  %v2422 = vrot.slane %v2420, 5
  %v2423 = vsel %vm231, %v2418, %v2422
  %v2424 = vshrl.u32 %v87, 16
  %v2426 = vrot.slane %v2424, 4
  %v2427 = vor.u32 %v2426, %v2422
  %v2428 = vrot.slane %v2427, 4
  %v2430 = vshll.u32 %v88, 16
  %v2432 = vrot.slane %v2430, 5
  %v2433 = vsel %vm231, %v2428, %v2432
  %v2434 = vshrl.u32 %v88, 16
  %v2436 = vrot.slane %v2434, 4
  %v2437 = vor.u32 %v2436, %v2432
  %v2438 = vrot.slane %v2437, 4
  %v2440 = vshll.u32 %v89, 16
  %v2442 = vrot.slane %v2440, 5
  %v2443 = vsel %vm231, %v2438, %v2442
  %v2444 = vshrl.u32 %v89, 16
  %v2446 = vrot.slane %v2444, 4
  %v2447 = vor.u32 %v2446, %v2442
  %v2448 = vrot.slane %v2447, 4
  %v2450 = vshll.u32 %v90, 16
  %v2452 = vrot.slane %v2450, 5
  %v2453 = vsel %vm231, %v2448, %v2452
  %v2454 = vshrl.u32 %v90, 16
  %v2456 = vrot.slane %v2454, 4
  %v2457 = vor.u32 %v2456, %v2452
  %v2458 = vrot.slane %v2457, 4
  %v2460 = vshll.u32 %v91, 16
  %v2462 = vrot.slane %v2460, 5
  %v2463 = vsel %vm231, %v2458, %v2462
  %v2464 = vshrl.u32 %v91, 16
  %v2466 = vrot.slane %v2464, 4
  %v2467 = vor.u32 %v2466, %v2462
  %v2468 = vrot.slane %v2467, 4
  %v2470 = vshll.u32 %v92, 16
  %v2472 = vrot.slane %v2470, 5
  %v2473 = vsel %vm231, %v2468, %v2472
  %v2474 = vshrl.u32 %v92, 16
  %v2476 = vrot.slane %v2474, 4
  %v2477 = vor.u32 %v2476, %v2472
  %v2478 = vrot.slane %v2477, 4
  %v2480 = vshll.u32 %v93, 16
  %v2482 = vrot.slane %v2480, 5
  %v2483 = vsel %vm231, %v2478, %v2482
  %v2484 = vshrl.u32 %v93, 16
  %v2486 = vrot.slane %v2484, 4
  %v2487 = vor.u32 %v2486, %v2482
  %v2488 = vrot.slane %v2487, 4
  %v2490 = vshll.u32 %v94, 16
  %v2492 = vrot.slane %v2490, 5
  %v2493 = vsel %vm231, %v2488, %v2492
  %v2494 = vshrl.u32 %v94, 16
  %v2496 = vrot.slane %v2494, 4
  %v2497 = vor.u32 %v2496, %v2492
  %v2498 = vrot.slane %v2497, 4
  %v2500 = vshll.u32 %v95, 16
  %v2502 = vrot.slane %v2500, 5
  %v2503 = vsel %vm231, %v2498, %v2502
  %v2504 = vshrl.u32 %v95, 16
  %v2506 = vrot.slane %v2504, 4
  %v2507 = vor.u32 %v2506, %v2502
  %v2508 = vrot.slane %v2507, 4
  %v2510 = vshll.u32 %v96, 16
  %v2512 = vrot.slane %v2510, 5
  %v2513 = vsel %vm231, %v2508, %v2512
  %v2514 = vshrl.u32 %v96, 16
  %v2516 = vrot.slane %v2514, 4
  %v2517 = vor.u32 %v2516, %v2512
  %v2518 = vrot.slane %v2517, 4
  %v2520 = vshll.u32 %v97, 16
  %v2522 = vrot.slane %v2520, 5
  %v2523 = vsel %vm231, %v2518, %v2522
  %v2524 = vshrl.u32 %v97, 16
  %v2526 = vrot.slane %v2524, 4
  %v2527 = vor.u32 %v2526, %v2522
  %v2528 = vrot.slane %v2527, 4
  %v2530 = vshll.u32 %v98, 16
  %v2532 = vrot.slane %v2530, 5
  %v2533 = vsel %vm231, %v2528, %v2532
  %v2534 = vshrl.u32 %v98, 16
  %v2536 = vrot.slane %v2534, 4
  %v2537 = vor.u32 %v2536, %v2532
  %v2538 = vrot.slane %v2537, 4
  %v2540 = vshll.u32 %v99, 16
  %v2542 = vrot.slane %v2540, 5
  %v2543 = vsel %vm231, %v2538, %v2542
  %v2544 = vshrl.u32 %v99, 16
  %v2546 = vrot.slane %v2544, 4
  %v2547 = vor.u32 %v2546, %v2542
  %v2548 = vrot.slane %v2547, 4
  %v2550 = vshll.u32 %v100, 16
  %v2552 = vrot.slane %v2550, 5
  %v2553 = vsel %vm231, %v2548, %v2552
  %v2554 = vshrl.u32 %v100, 16
  %v2556 = vrot.slane %v2554, 4
  %v2557 = vor.u32 %v2556, %v2552
  %v2558 = vrot.slane %v2557, 4
  %v2560 = vshll.u32 %v101, 16
  %v2562 = vrot.slane %v2560, 5
  %v2563 = vsel %vm231, %v2558, %v2562
  %v2564 = vshrl.u32 %v101, 16
  %v2566 = vrot.slane %v2564, 4
  %v2567 = vor.u32 %v2566, %v2562
  %v2568 = vrot.slane %v2567, 4
  %v2570 = vshll.u32 %v102, 16
  %v2572 = vrot.slane %v2570, 5
  %v2573 = vsel %vm231, %v2568, %v2572
  %v2574 = vshrl.u32 %v102, 16
  %v2576 = vrot.slane %v2574, 4
  %v2577 = vor.u32 %v2576, %v2572
  %v2578 = vrot.slane %v2577, 4
  %v2580 = vshll.u32 %v103, 16
  %v2582 = vrot.slane %v2580, 5
  %v2583 = vsel %vm231, %v2578, %v2582
  %v2584 = vshrl.u32 %v103, 16
  %v2586 = vrot.slane %v2584, 4
  %v2587 = vor.u32 %v2586, %v2582
  %v2588 = vrot.slane %v2587, 4
  %v2590 = vshll.u32 %v104, 16
  %v2592 = vrot.slane %v2590, 5
  %v2593 = vsel %vm231, %v2588, %v2592
  %v2594 = vshrl.u32 %v104, 16
  %v2596 = vrot.slane %v2594, 4
  %v2597 = vor.u32 %v2596, %v2592
  %v2598 = vrot.slane %v2597, 4
  %v2600 = vshll.u32 %v105, 16
  %v2602 = vrot.slane %v2600, 5
  %v2603 = vsel %vm231, %v2598, %v2602
  %v2604 = vshrl.u32 %v105, 16
  %v2606 = vrot.slane %v2604, 4
  %v2607 = vor.u32 %v2606, %v2602
  %v2608 = vrot.slane %v2607, 4
  %v2610 = vshll.u32 %v106, 16
  %v2612 = vrot.slane %v2610, 5
  %v2613 = vsel %vm231, %v2608, %v2612
  %v2614 = vshrl.u32 %v106, 16
  %v2616 = vrot.slane %v2614, 4
  %v2617 = vor.u32 %v2616, %v2612
  %v2618 = vrot.slane %v2617, 4
  %v2620 = vshll.u32 %v107, 16
  %v2622 = vrot.slane %v2620, 5
  %v2623 = vsel %vm231, %v2618, %v2622
  %v2624 = vshrl.u32 %v107, 16
  %v2626 = vrot.slane %v2624, 4
  %v2627 = vor.u32 %v2626, %v2622
  %v2628 = vrot.slane %v2627, 4
  %v2630 = vshll.u32 %v108, 16
  %v2632 = vrot.slane %v2630, 5
  %v2633 = vsel %vm231, %v2628, %v2632
  %v2634 = vshrl.u32 %v108, 16
  %v2636 = vrot.slane %v2634, 4
  %v2637 = vor.u32 %v2636, %v2632
  %v2638 = vrot.slane %v2637, 4
  %v2640 = vshll.u32 %v109, 16
  %v2642 = vrot.slane %v2640, 5
  %v2643 = vsel %vm231, %v2638, %v2642
  %v2644 = vshrl.u32 %v109, 16
  %v2646 = vrot.slane %v2644, 4
  %v2647 = vor.u32 %v2646, %v2642
  %v2648 = vrot.slane %v2647, 4
  %v2650 = vshll.u32 %v110, 16
  %v2652 = vrot.slane %v2650, 5
  %v2653 = vsel %vm231, %v2648, %v2652
  %v2654 = vshrl.u32 %v110, 16
  %v2656 = vrot.slane %v2654, 4
  %v2657 = vor.u32 %v2656, %v2652
  %v2658 = vrot.slane %v2657, 4
  %v2660 = vshll.u32 %v111, 16
  %v2662 = vrot.slane %v2660, 5
  %v2663 = vsel %vm231, %v2658, %v2662
  %v2664 = vshrl.u32 %v111, 16
  %v2666 = vrot.slane %v2664, 4
  %v2667 = vor.u32 %v2666, %v2662
  %v2668 = vrot.slane %v2667, 4
  %v2670 = vshll.u32 %v112, 16
  %v2672 = vrot.slane %v2670, 5
  %v2673 = vsel %vm231, %v2668, %v2672
  %v2674 = vshrl.u32 %v112, 16
  %v2676 = vrot.slane %v2674, 4
  %v2677 = vor.u32 %v2676, %v2672
  %v2678 = vrot.slane %v2677, 4
  %v2680 = vshll.u32 %v113, 16
  %v2682 = vrot.slane %v2680, 5
  %v2683 = vsel %vm231, %v2678, %v2682
  %v2684 = vshrl.u32 %v113, 16
  %v2686 = vrot.slane %v2684, 4
  %v2687 = vor.u32 %v2686, %v2682
  %v2688 = vrot.slane %v2687, 4
  %v2690 = vshll.u32 %v114, 16
  %v2692 = vrot.slane %v2690, 5
  %v2693 = vsel %vm231, %v2688, %v2692
  %v2694 = vshrl.u32 %v114, 16
  %v2696 = vrot.slane %v2694, 4
  %v2697 = vor.u32 %v2696, %v2692
  %v2698 = vrot.slane %v2697, 4
  %v2700 = vshll.u32 %v115, 16
  %v2702 = vrot.slane %v2700, 5
  %v2703 = vsel %vm231, %v2698, %v2702
  %v2704 = vshrl.u32 %v115, 16
  %v2706 = vrot.slane %v2704, 4
  %v2707 = vor.u32 %v2706, %v2702
  %v2708 = vrot.slane %v2707, 4
  %v2710 = vshll.u32 %v116, 16
  %v2712 = vrot.slane %v2710, 5
  %v2713 = vsel %vm231, %v2708, %v2712
  %v2714 = vshrl.u32 %v116, 16
  %v2716 = vrot.slane %v2714, 4
  %v2717 = vor.u32 %v2716, %v2712
  %v2718 = vrot.slane %v2717, 4
  %v2720 = vshll.u32 %v117, 16
  %v2722 = vrot.slane %v2720, 5
  %v2723 = vsel %vm231, %v2718, %v2722
  %v2724 = vshrl.u32 %v117, 16
  %v2726 = vrot.slane %v2724, 4
  %v2727 = vor.u32 %v2726, %v2722
  %v2728 = vrot.slane %v2727, 4
  %v2730 = vshll.u32 %v118, 16
  %v2732 = vrot.slane %v2730, 5
  %v2733 = vsel %vm231, %v2728, %v2732
  %v2734 = vshrl.u32 %v118, 16
  %v2736 = vrot.slane %v2734, 4
  %v2737 = vor.u32 %v2736, %v2732
  %v2738 = vrot.slane %v2737, 4
  %v2740 = vshll.u32 %v119, 16
  %v2742 = vrot.slane %v2740, 5
  %v2743 = vsel %vm231, %v2738, %v2742
  %v2744 = vshrl.u32 %v119, 16
  %v2746 = vrot.slane %v2744, 4
  %v2747 = vor.u32 %v2746, %v2742
  %v2748 = vrot.slane %v2747, 4
  %v2750 = vshll.u32 %v120, 16
  %v2752 = vrot.slane %v2750, 5
  %v2753 = vsel %vm231, %v2748, %v2752
  %v2754 = vshrl.u32 %v120, 16
  %v2756 = vrot.slane %v2754, 4
  %v2757 = vor.u32 %v2756, %v2752
  %v2758 = vrot.slane %v2757, 4
  %v2760 = vshll.u32 %v121, 16
  %v2762 = vrot.slane %v2760, 5
  %v2763 = vsel %vm231, %v2758, %v2762
  %v2764 = vshrl.u32 %v121, 16
  %v2766 = vrot.slane %v2764, 4
  %v2767 = vor.u32 %v2766, %v2762
  %v2768 = vrot.slane %v2767, 4
  %v2770 = vshll.u32 %v122, 16
  %v2772 = vrot.slane %v2770, 5
  %v2773 = vsel %vm231, %v2768, %v2772
  %v2774 = vshrl.u32 %v122, 16
  %v2776 = vrot.slane %v2774, 4
  %v2777 = vor.u32 %v2776, %v2772
  %v2778 = vrot.slane %v2777, 4
  %v2780 = vshll.u32 %v123, 16
  %v2782 = vrot.slane %v2780, 5
  %v2783 = vsel %vm231, %v2778, %v2782
  %v2784 = vshrl.u32 %v123, 16
  %v2786 = vrot.slane %v2784, 4
  %v2787 = vor.u32 %v2786, %v2782
  %v2788 = vrot.slane %v2787, 4
  %v2790 = vshll.u32 %v124, 16
  %v2792 = vrot.slane %v2790, 5
  %v2793 = vsel %vm231, %v2788, %v2792
  %v2794 = vshrl.u32 %v124, 16
  %v2796 = vrot.slane %v2794, 4
  %v2797 = vor.u32 %v2796, %v2792
  %v2798 = vrot.slane %v2797, 4
  %v2800 = vshll.u32 %v125, 16
  %v2802 = vrot.slane %v2800, 5
  %v2803 = vsel %vm231, %v2798, %v2802
  %v2804 = vshrl.u32 %v125, 16
  %v2806 = vrot.slane %v2804, 4
  %v2807 = vor.u32 %v2806, %v2802
  %v2808 = vrot.slane %v2807, 4
  %v2810 = vshll.u32 %v126, 16
  %v2812 = vrot.slane %v2810, 5
  %v2813 = vsel %vm231, %v2808, %v2812
  %v2814 = vshrl.u32 %v126, 16
  %v2816 = vrot.slane %v2814, 4
  %v2817 = vor.u32 %v2816, %v2812
  %v2818 = vrot.slane %v2817, 4
  %v2820 = vshll.u32 %v127, 16
  %v2822 = vrot.slane %v2820, 5
  %v2823 = vsel %vm231, %v2818, %v2822
  %v2824 = vshrl.u32 %v127, 16
  %v2826 = vrot.slane %v2824, 4
  %v2827 = vor.u32 %v2826, %v2822
  %v2828 = vrot.slane %v2827, 4
  %v2830 = vshll.u32 %v128, 16
  %v2832 = vrot.slane %v2830, 5
  %v2833 = vsel %vm231, %v2828, %v2832
  %v2834 = vshrl.u32 %v128, 16
  %v2836 = vrot.slane %v2834, 4
  %v2837 = vor.u32 %v2836, %v2832
  %v2838 = vrot.slane %v2837, 4
  %v2840 = vshll.u32 %v129, 16
  %v2842 = vrot.slane %v2840, 5
  %v2843 = vsel %vm231, %v2838, %v2842
  %v2844 = vshrl.u32 %v129, 16
  %v2846 = vrot.slane %v2844, 4
  %v2847 = vor.u32 %v2846, %v2842
  %v2848 = vrot.slane %v2847, 4
  %v2850 = vshll.u32 %v130, 16
  %v2852 = vrot.slane %v2850, 5
  %v2853 = vsel %vm231, %v2848, %v2852
  %v2854 = vshrl.u32 %v130, 16
  %v2856 = vrot.slane %v2854, 4
  %v2857 = vor.u32 %v2856, %v2852
  %v2858 = vrot.slane %v2857, 4
  %v2860 = vshll.u32 %v131, 16
  %v2862 = vrot.slane %v2860, 5
  %v2863 = vsel %vm231, %v2858, %v2862
  %v2864 = vshrl.u32 %v131, 16
  %v2866 = vrot.slane %v2864, 4
  %v2867 = vor.u32 %v2866, %v2862
  %v2868 = vrot.slane %v2867, 4
  %v2870 = vshll.u32 %v132, 16
  %v2872 = vrot.slane %v2870, 5
  %v2873 = vsel %vm231, %v2868, %v2872
  %v2874 = vshrl.u32 %v132, 16
  %v2876 = vrot.slane %v2874, 4
  %v2877 = vor.u32 %v2876, %v2872
  %v2878 = vrot.slane %v2877, 4
  %v2880 = vshll.u32 %v133, 16
  %v2882 = vrot.slane %v2880, 5
  %v2883 = vsel %vm231, %v2878, %v2882
  %v2884 = vshrl.u32 %v133, 16
  %v2886 = vrot.slane %v2884, 4
  %v2887 = vor.u32 %v2886, %v2882
  %v2888 = vrot.slane %v2887, 4
  %v2890 = vshll.u32 %v134, 16
  %v2892 = vrot.slane %v2890, 5
  %v2893 = vsel %vm231, %v2888, %v2892
  %v2894 = vshrl.u32 %v134, 16
  %v2896 = vrot.slane %v2894, 4
  %v2897 = vor.u32 %v2896, %v2892
  %v2898 = vrot.slane %v2897, 4
  %v2900 = vshll.u32 %v135, 16
  %v2902 = vrot.slane %v2900, 5
  %v2903 = vsel %vm231, %v2898, %v2902
  %v2904 = vshrl.u32 %v135, 16
  %v2906 = vrot.slane %v2904, 4
  %v2907 = vor.u32 %v2906, %v2902
  %v2908 = vrot.slane %v2907, 4
  %v2910 = vshll.u32 %v136, 16
  %v2912 = vrot.slane %v2910, 5
  %v2913 = vsel %vm231, %v2908, %v2912
  %v2914 = vshrl.u32 %v136, 16
  %v2916 = vrot.slane %v2914, 4
  %v2917 = vor.u32 %v2916, %v2912
  %v2918 = vrot.slane %v2917, 4
  %v2920 = vshll.u32 %v137, 16
  %v2922 = vrot.slane %v2920, 5
  %v2923 = vsel %vm231, %v2918, %v2922
  %v2924 = vshrl.u32 %v137, 16
  %v2926 = vrot.slane %v2924, 4
  %v2927 = vor.u32 %v2926, %v2922
  %v2928 = vrot.slane %v2927, 4
  %v2930 = vshll.u32 %v138, 16
  %v2932 = vrot.slane %v2930, 5
  %v2933 = vsel %vm231, %v2928, %v2932
  %v2934 = vshrl.u32 %v138, 16
  %v2936 = vrot.slane %v2934, 4
  %v2937 = vor.u32 %v2936, %v2932
  %v2938 = vrot.slane %v2937, 4
  %v2940 = vshll.u32 %v139, 16
  %v2942 = vrot.slane %v2940, 5
  %v2943 = vsel %vm231, %v2938, %v2942
  %v2944 = vshrl.u32 %v139, 16
  %v2946 = vrot.slane %v2944, 4
  %v2947 = vor.u32 %v2946, %v2942
  %v2948 = vrot.slane %v2947, 4
  %v2950 = vshll.u32 %v140, 16
  %v2952 = vrot.slane %v2950, 5
  %v2953 = vsel %vm231, %v2948, %v2952
  %v2954 = vshrl.u32 %v140, 16
  %v2956 = vrot.slane %v2954, 4
  %v2957 = vor.u32 %v2956, %v2952
  %v2958 = vrot.slane %v2957, 4
  %v2960 = vshll.u32 %v141, 16
  %v2962 = vrot.slane %v2960, 5
  %v2963 = vsel %vm231, %v2958, %v2962
  %v2964 = vshrl.u32 %v141, 16
  %v2966 = vrot.slane %v2964, 4
  %v2967 = vor.u32 %v2966, %v2962
  %v2968 = vrot.slane %v2967, 4
  %v2970 = vshll.u32 %v142, 16
  %v2972 = vrot.slane %v2970, 5
  %v2973 = vsel %vm231, %v2968, %v2972
  %v2974 = vshrl.u32 %v142, 16
  %v2976 = vrot.slane %v2974, 4
  %v2977 = vor.u32 %v2976, %v2972
  %v2978 = vrot.slane %v2977, 4
  %v2980 = vshll.u32 %v143, 16
  %v2982 = vrot.slane %v2980, 5
  %v2983 = vsel %vm231, %v2978, %v2982
  %v2984 = vshrl.u32 %v143, 16
  %v2986 = vrot.slane %v2984, 4
  %v2987 = vor.u32 %v2986, %v2982
  %v2988 = vrot.slane %v2987, 4
  %v2990 = vshll.u32 %v144, 16
  %v2992 = vrot.slane %v2990, 5
  %v2993 = vsel %vm231, %v2988, %v2992
  %v2994 = vshrl.u32 %v144, 16
  %v2996 = vrot.slane %v2994, 4
  %v2997 = vor.u32 %v2996, %v2992
  %v2998 = vrot.slane %v2997, 4
  %v3000 = vshll.u32 %v145, 16
  %v3002 = vrot.slane %v3000, 5
  %v3003 = vsel %vm231, %v2998, %v3002
  %v3004 = vshrl.u32 %v145, 16
  %v3006 = vrot.slane %v3004, 4
  %v3007 = vor.u32 %v3006, %v3002
  %v3008 = vrot.slane %v3007, 4
  %v3010 = vshll.u32 %v146, 16
  %v3012 = vrot.slane %v3010, 5
  %v3013 = vsel %vm231, %v3008, %v3012
  %v3014 = vshrl.u32 %v146, 16
  %v3016 = vrot.slane %v3014, 4
  %v3017 = vor.u32 %v3016, %v3012
  %v3018 = vrot.slane %v3017, 4
  %v3020 = vshll.u32 %v147, 16
  %v3022 = vrot.slane %v3020, 5
  %v3023 = vsel %vm231, %v3018, %v3022
  %v3024 = vshrl.u32 %v147, 16
  %v3026 = vrot.slane %v3024, 4
  %v3027 = vor.u32 %v3026, %v3022
  %v3028 = vrot.slane %v3027, 4
  %v3030 = vshll.u32 %v148, 16
  %v3032 = vrot.slane %v3030, 5
  %v3033 = vsel %vm231, %v3028, %v3032
  %v3034 = vshrl.u32 %v148, 16
  %v3036 = vrot.slane %v3034, 4
  %v3037 = vor.u32 %v3036, %v3032
  %v3038 = vrot.slane %v3037, 4
  %v3040 = vshll.u32 %v149, 16
  %v3042 = vrot.slane %v3040, 5
  %v3043 = vsel %vm231, %v3038, %v3042
  %v3044 = vshrl.u32 %v149, 16
  %v3046 = vrot.slane %v3044, 4
  %v3047 = vor.u32 %v3046, %v3042
  %v3048 = vrot.slane %v3047, 4
  %v3050 = vshll.u32 %v150, 16
  %v3052 = vrot.slane %v3050, 5
  %v3053 = vsel %vm231, %v3048, %v3052
  %v3054 = vshrl.u32 %v150, 16
  %v3056 = vrot.slane %v3054, 4
  %v3057 = vor.u32 %v3056, %v3052
  %v3058 = vrot.slane %v3057, 4
  %v3060 = vshll.u32 %v151, 16
  %v3062 = vrot.slane %v3060, 5
  %v3063 = vsel %vm231, %v3058, %v3062
  %v3064 = vshrl.u32 %v151, 16
  %v3066 = vrot.slane %v3064, 4
  %v3067 = vor.u32 %v3066, %v3062
  %v3068 = vrot.slane %v3067, 4
  %v3070 = vshll.u32 %v152, 16
  %v3072 = vrot.slane %v3070, 5
  %v3073 = vsel %vm231, %v3068, %v3072
  %v3074 = vshrl.u32 %v152, 16
  %v3076 = vrot.slane %v3074, 4
  %v3077 = vor.u32 %v3076, %v3072
  %v3078 = vrot.slane %v3077, 4
  %v3080 = vshll.u32 %v153, 16
  %v3082 = vrot.slane %v3080, 5
  %v3083 = vsel %vm231, %v3078, %v3082
  %v3084 = vshrl.u32 %v153, 16
  %v3086 = vrot.slane %v3084, 4
  %v3087 = vor.u32 %v3086, %v3082
  %v3088 = vrot.slane %v3087, 4
  %v3090 = vshll.u32 %v2387, 16
  %v3092 = vrot.slane %v3090, 5
  %v3093 = vsel %vm231, %v3088, %v3092
  %v3094 = vshrl.u32 %v2387, 16
  %v3096 = vrot.slane %v3094, 4
  %v3097 = vor.u32 %v3096, %v3092
  %v3098 = vrot.slane %v3097, 4
  %v3100 = vshll.u32 %v2388, 16
  %v3102 = vrot.slane %v3100, 5
  %v3103 = vsel %vm231, %v3098, %v3102
  %v3104 = vshrl.u32 %v2388, 16
  %v3106 = vrot.slane %v3104, 4
  %v3107 = vor.u32 %v3106, %v3102
  %v3108 = vrot.slane %v3107, 4
  %v3110 = vshll.u32 %v2389, 16
  %v3112 = vrot.slane %v3110, 5
  %v3113 = vsel %vm231, %v3108, %v3112
  %v3114 = vshrl.u32 %v2389, 16
  %v3116 = vrot.slane %v3114, 4
  %v3117 = vor.u32 %v3116, %v3112
  %v3118 = vrot.slane %v3117, 4
  %v3192 = vmax.bf16 %v2314, %v2403
  %v3193 = vmax.bf16 %v2315, %v2413
  %v3194 = vmax.bf16 %v2316, %v2423
  %v3195 = vmax.bf16 %v2317, %v2433
  %v3196 = vmax.bf16 %v2318, %v2443
  %v3197 = vmax.bf16 %v2319, %v2453
  %v3198 = vmax.bf16 %v2320, %v2463
  %v3199 = vmax.bf16 %v2321, %v2473
  %v3200 = vmax.bf16 %v2322, %v2483
  %v3201 = vmax.bf16 %v2323, %v2493
  %v3202 = vmax.bf16 %v2324, %v2503
  %v3203 = vmax.bf16 %v2325, %v2513
  %v3204 = vmax.bf16 %v2326, %v2523
  %v3205 = vmax.bf16 %v2327, %v2533
  %v3206 = vmax.bf16 %v2328, %v2543
  %v3207 = vmax.bf16 %v2329, %v2553
  %v3208 = vmax.bf16 %v2330, %v2563
  %v3209 = vmax.bf16 %v2331, %v2573
  %v3210 = vmax.bf16 %v2332, %v2583
  %v3211 = vmax.bf16 %v2333, %v2593
  %v3212 = vmax.bf16 %v2334, %v2603
  %v3213 = vmax.bf16 %v2335, %v2613
  %v3214 = vmax.bf16 %v2336, %v2623
  %v3215 = vmax.bf16 %v2337, %v2633
  %v3216 = vmax.bf16 %v2338, %v2643
  %v3217 = vmax.bf16 %v2339, %v2653
  %v3218 = vmax.bf16 %v2340, %v2663
  %v3219 = vmax.bf16 %v2341, %v2673
  %v3220 = vmax.bf16 %v2342, %v2683
  %v3221 = vmax.bf16 %v2343, %v2693
  %v3222 = vmax.bf16 %v2344, %v2703
  %v3223 = vmax.bf16 %v2345, %v2713
  %v3224 = vmax.bf16 %v2346, %v2723
  %v3225 = vmax.bf16 %v2347, %v2733
  %v3226 = vmax.bf16 %v2348, %v2743
  %v3227 = vmax.bf16 %v2349, %v2753
  %v3228 = vmax.bf16 %v2350, %v2763
  %v3229 = vmax.bf16 %v2351, %v2773
  %v3230 = vmax.bf16 %v2352, %v2783
  %v3231 = vmax.bf16 %v2353, %v2793
  %v3232 = vmax.bf16 %v2354, %v2803
  %v3233 = vmax.bf16 %v2355, %v2813
  %v3234 = vmax.bf16 %v2356, %v2823
  %v3235 = vmax.bf16 %v2357, %v2833
  %v3236 = vmax.bf16 %v2358, %v2843
  %v3237 = vmax.bf16 %v2359, %v2853
  %v3238 = vmax.bf16 %v2360, %v2863
  %v3239 = vmax.bf16 %v2361, %v2873
  %v3240 = vmax.bf16 %v2362, %v2883
  %v3241 = vmax.bf16 %v2363, %v2893
  %v3242 = vmax.bf16 %v2364, %v2903
  %v3243 = vmax.bf16 %v2365, %v2913
  %v3244 = vmax.bf16 %v2366, %v2923
  %v3245 = vmax.bf16 %v2367, %v2933
  %v3246 = vmax.bf16 %v2368, %v2943
  %v3247 = vmax.bf16 %v2369, %v2953
  %v3248 = vmax.bf16 %v2370, %v2963
  %v3249 = vmax.bf16 %v2371, %v2973
  %v3250 = vmax.bf16 %v2372, %v2983
  %v3251 = vmax.bf16 %v2373, %v2993
  %v3252 = vmax.bf16 %v2374, %v3003
  %v3253 = vmax.bf16 %v2375, %v3013
  %v3254 = vmax.bf16 %v2376, %v3023
  %v3255 = vmax.bf16 %v2377, %v3033
  %v3256 = vmax.bf16 %v2378, %v3043
  %v3257 = vmax.bf16 %v2379, %v3053
  %v3258 = vmax.bf16 %v2380, %v3063
  %v3259 = vmax.bf16 %v2381, %v3073
  %v3260 = vmax.bf16 %v2382, %v3083
  %v3261 = vmax.bf16 %v2383, %v3093
  %v3262 = vmax.bf16 %v2384, %v3103
  %v3263 = vmax.bf16 %v2385, %v3113
  %v3264 = vmax.bf16 %v2386, %v3118
  %v3265 = vld [vmem:[%s0 + $0x8] sm:$0xe]
  %vm3339 = vcmask 1042432
  %vm3340 = vcmask 1046532
  %vm3341 = vmor %vm3339, %vm3340
  %v3342 = vrot.slane %v3265, 5
  %v3343 = vrot.slane %v3342, 4
  %v3344 = vrot.slane %v11, 5
  %v3345 = vsel %vm3341, %v3343, %v3344
  %v3346 = vrot.slane %v3344, 4
  %v3347 = vrot.slane %v12, 5
  %v3348 = vsel %vm3341, %v3346, %v3347
  %v3349 = vrot.slane %v3347, 4
  %v3350 = vrot.slane %v13, 5
  %v3351 = vsel %vm3341, %v3349, %v3350
  %v3352 = vrot.slane %v3350, 4
  %v3353 = vrot.slane %v14, 5
  %v3354 = vsel %vm3341, %v3352, %v3353
  %v3355 = vrot.slane %v3353, 4
  %v3356 = vrot.slane %v15, 5
  %v3357 = vsel %vm3341, %v3355, %v3356
  %v3358 = vrot.slane %v3356, 4
  %v3359 = vrot.slane %v16, 5
  %v3360 = vsel %vm3341, %v3358, %v3359
  %v3361 = vrot.slane %v3359, 4
  %v3362 = vrot.slane %v17, 5
  %v3363 = vsel %vm3341, %v3361, %v3362
  %v3364 = vrot.slane %v3362, 4
  %v3365 = vrot.slane %v18, 5
  %v3366 = vsel %vm3341, %v3364, %v3365
  %v3367 = vrot.slane %v3365, 4
  %v3368 = vrot.slane %v19, 5
  %v3369 = vsel %vm3341, %v3367, %v3368
  %v3370 = vrot.slane %v3368, 4
  %v3371 = vrot.slane %v20, 5
  %v3372 = vsel %vm3341, %v3370, %v3371
  %v3373 = vrot.slane %v3371, 4
  %v3374 = vrot.slane %v21, 5
  %v3375 = vsel %vm3341, %v3373, %v3374
  %v3376 = vrot.slane %v3374, 4
  %v3377 = vrot.slane %v22, 5
  %v3378 = vsel %vm3341, %v3376, %v3377
  %v3379 = vrot.slane %v3377, 4
  %v3380 = vrot.slane %v23, 5
  %v3381 = vsel %vm3341, %v3379, %v3380
  %v3382 = vrot.slane %v3380, 4
  %v3383 = vrot.slane %v24, 5
  %v3384 = vsel %vm3341, %v3382, %v3383
  %v3385 = vrot.slane %v3383, 4
  %v3386 = vrot.slane %v25, 5
  %v3387 = vsel %vm3341, %v3385, %v3386
  %v3388 = vrot.slane %v3386, 4
  %v3389 = vrot.slane %v26, 5
  %v3390 = vsel %vm3341, %v3388, %v3389
  %v3391 = vrot.slane %v3389, 4
  %v3392 = vrot.slane %v27, 5
  %v3393 = vsel %vm3341, %v3391, %v3392
  %v3394 = vrot.slane %v3392, 4
  %v3395 = vrot.slane %v28, 5
  %v3396 = vsel %vm3341, %v3394, %v3395
  %v3397 = vrot.slane %v3395, 4
  %v3398 = vrot.slane %v29, 5
  %v3399 = vsel %vm3341, %v3397, %v3398
  %v3400 = vrot.slane %v3398, 4
  %v3401 = vrot.slane %v30, 5
  %v3402 = vsel %vm3341, %v3400, %v3401
  %v3403 = vrot.slane %v3401, 4
  %v3404 = vrot.slane %v31, 5
  %v3405 = vsel %vm3341, %v3403, %v3404
  %v3406 = vrot.slane %v3404, 4
  %v3407 = vrot.slane %v32, 5
  %v3408 = vsel %vm3341, %v3406, %v3407
  %v3409 = vrot.slane %v3407, 4
  %v3410 = vrot.slane %v33, 5
  %v3411 = vsel %vm3341, %v3409, %v3410
  %v3412 = vrot.slane %v3410, 4
  %v3413 = vrot.slane %v34, 5
  %v3414 = vsel %vm3341, %v3412, %v3413
  %v3415 = vrot.slane %v3413, 4
  %v3416 = vrot.slane %v35, 5
  %v3417 = vsel %vm3341, %v3415, %v3416
  %v3418 = vrot.slane %v3416, 4
  %v3419 = vrot.slane %v36, 5
  %v3420 = vsel %vm3341, %v3418, %v3419
  %v3421 = vrot.slane %v3419, 4
  %v3422 = vrot.slane %v37, 5
  %v3423 = vsel %vm3341, %v3421, %v3422
  %v3424 = vrot.slane %v3422, 4
  %v3425 = vrot.slane %v38, 5
  %v3426 = vsel %vm3341, %v3424, %v3425
  %v3427 = vrot.slane %v3425, 4
  %v3428 = vrot.slane %v39, 5
  %v3429 = vsel %vm3341, %v3427, %v3428
  %v3430 = vrot.slane %v3428, 4
  %v3431 = vrot.slane %v40, 5
  %v3432 = vsel %vm3341, %v3430, %v3431
  %v3433 = vrot.slane %v3431, 4
  %v3434 = vrot.slane %v41, 5
  %v3435 = vsel %vm3341, %v3433, %v3434
  %v3436 = vrot.slane %v3434, 4
  %v3437 = vrot.slane %v42, 5
  %v3438 = vsel %vm3341, %v3436, %v3437
  %v3439 = vrot.slane %v3437, 4
  %v3440 = vrot.slane %v43, 5
  %v3441 = vsel %vm3341, %v3439, %v3440
  %v3442 = vrot.slane %v3440, 4
  %v3443 = vrot.slane %v44, 5
  %v3444 = vsel %vm3341, %v3442, %v3443
  %v3445 = vrot.slane %v3443, 4
  %v3446 = vrot.slane %v45, 5
  %v3447 = vsel %vm3341, %v3445, %v3446
  %v3448 = vrot.slane %v3446, 4
  %v3449 = vrot.slane %v46, 5
  %v3450 = vsel %vm3341, %v3448, %v3449
  %v3451 = vrot.slane %v3449, 4
  %v3452 = vrot.slane %v47, 5
  %v3453 = vsel %vm3341, %v3451, %v3452
  %v3454 = vrot.slane %v3452, 4
  %v3455 = vrot.slane %v48, 5
  %v3456 = vsel %vm3341, %v3454, %v3455
  %v3457 = vrot.slane %v3455, 4
  %v3458 = vrot.slane %v49, 5
  %v3459 = vsel %vm3341, %v3457, %v3458
  %v3460 = vrot.slane %v3458, 4
  %v3461 = vrot.slane %v50, 5
  %v3462 = vsel %vm3341, %v3460, %v3461
  %v3463 = vrot.slane %v3461, 4
  %v3464 = vrot.slane %v51, 5
  %v3465 = vsel %vm3341, %v3463, %v3464
  %v3466 = vrot.slane %v3464, 4
  %v3467 = vrot.slane %v52, 5
  %v3468 = vsel %vm3341, %v3466, %v3467
  %v3469 = vrot.slane %v3467, 4
  %v3470 = vrot.slane %v53, 5
  %v3471 = vsel %vm3341, %v3469, %v3470
  %v3472 = vrot.slane %v3470, 4
  %v3473 = vrot.slane %v54, 5
  %v3474 = vsel %vm3341, %v3472, %v3473
  %v3475 = vrot.slane %v3473, 4
  %v3476 = vrot.slane %v55, 5
  %v3477 = vsel %vm3341, %v3475, %v3476
  %v3478 = vrot.slane %v3476, 4
  %v3479 = vrot.slane %v56, 5
  %v3480 = vsel %vm3341, %v3478, %v3479
  %v3481 = vrot.slane %v3479, 4
  %v3482 = vrot.slane %v57, 5
  %v3483 = vsel %vm3341, %v3481, %v3482
  %v3484 = vrot.slane %v3482, 4
  %v3485 = vrot.slane %v58, 5
  %v3486 = vsel %vm3341, %v3484, %v3485
  %v3487 = vrot.slane %v3485, 4
  %v3488 = vrot.slane %v59, 5
  %v3489 = vsel %vm3341, %v3487, %v3488
  %v3490 = vrot.slane %v3488, 4
  %v3491 = vrot.slane %v60, 5
  %v3492 = vsel %vm3341, %v3490, %v3491
  %v3493 = vrot.slane %v3491, 4
  %v3494 = vrot.slane %v61, 5
  %v3495 = vsel %vm3341, %v3493, %v3494
  %v3496 = vrot.slane %v3494, 4
  %v3497 = vrot.slane %v62, 5
  %v3498 = vsel %vm3341, %v3496, %v3497
  %v3499 = vrot.slane %v3497, 4
  %v3500 = vrot.slane %v63, 5
  %v3501 = vsel %vm3341, %v3499, %v3500
  %v3502 = vrot.slane %v3500, 4
  %v3503 = vrot.slane %v64, 5
  %v3504 = vsel %vm3341, %v3502, %v3503
  %v3505 = vrot.slane %v3503, 4
  %v3506 = vrot.slane %v65, 5
  %v3507 = vsel %vm3341, %v3505, %v3506
  %v3508 = vrot.slane %v3506, 4
  %v3509 = vrot.slane %v66, 5
  %v3510 = vsel %vm3341, %v3508, %v3509
  %v3511 = vrot.slane %v3509, 4
  %v3512 = vrot.slane %v67, 5
  %v3513 = vsel %vm3341, %v3511, %v3512
  %v3514 = vrot.slane %v3512, 4
  %v3515 = vrot.slane %v68, 5
  %v3516 = vsel %vm3341, %v3514, %v3515
  %v3517 = vrot.slane %v3515, 4
  %v3518 = vrot.slane %v69, 5
  %v3519 = vsel %vm3341, %v3517, %v3518
  %v3520 = vrot.slane %v3518, 4
  %v3521 = vrot.slane %v70, 5
  %v3522 = vsel %vm3341, %v3520, %v3521
  %v3523 = vrot.slane %v3521, 4
  %v3524 = vrot.slane %v71, 5
  %v3525 = vsel %vm3341, %v3523, %v3524
  %v3526 = vrot.slane %v3524, 4
  %v3527 = vrot.slane %v72, 5
  %v3528 = vsel %vm3341, %v3526, %v3527
  %v3529 = vrot.slane %v3527, 4
  %v3530 = vrot.slane %v73, 5
  %v3531 = vsel %vm3341, %v3529, %v3530
  %v3532 = vrot.slane %v3530, 4
  %v3533 = vrot.slane %v74, 5
  %v3534 = vsel %vm3341, %v3532, %v3533
  %v3535 = vrot.slane %v3533, 4
  %v3536 = vrot.slane %v75, 5
  %v3537 = vsel %vm3341, %v3535, %v3536
  %v3538 = vrot.slane %v3536, 4
  %v3539 = vrot.slane %v76, 5
  %v3540 = vsel %vm3341, %v3538, %v3539
  %v3541 = vrot.slane %v3539, 4
  %v3542 = vrot.slane %v77, 5
  %v3543 = vsel %vm3341, %v3541, %v3542
  %v3544 = vrot.slane %v3542, 4
  %v3545 = vrot.slane %v78, 5
  %v3546 = vsel %vm3341, %v3544, %v3545
  %v3547 = vrot.slane %v3545, 4
  %v3548 = vrot.slane %v79, 5
  %v3549 = vsel %vm3341, %v3547, %v3548
  %v3550 = vrot.slane %v3548, 4
  %v3551 = vrot.slane %v2277, 5
  %v3552 = vsel %vm3341, %v3550, %v3551
  %v3553 = vrot.slane %v3551, 4
  %v3554 = vrot.slane %v2278, 5
  %v3555 = vsel %vm3341, %v3553, %v3554
  %v3556 = vrot.slane %v3554, 4
  %v3557 = vrot.slane %v2279, 5
  %v3558 = vsel %vm3341, %v3556, %v3557
  %v3559 = vrot.slane %v3557, 4
  %v3633 = vmax.bf16 %v3192, %v3345
  %v3634 = vmax.bf16 %v3193, %v3348
  %v3635 = vmax.bf16 %v3194, %v3351
  %v3636 = vmax.bf16 %v3195, %v3354
  %v3637 = vmax.bf16 %v3196, %v3357
  %v3638 = vmax.bf16 %v3197, %v3360
  %v3639 = vmax.bf16 %v3198, %v3363
  %v3640 = vmax.bf16 %v3199, %v3366
  %v3641 = vmax.bf16 %v3200, %v3369
  %v3642 = vmax.bf16 %v3201, %v3372
  %v3643 = vmax.bf16 %v3202, %v3375
  %v3644 = vmax.bf16 %v3203, %v3378
  %v3645 = vmax.bf16 %v3204, %v3381
  %v3646 = vmax.bf16 %v3205, %v3384
  %v3647 = vmax.bf16 %v3206, %v3387
  %v3648 = vmax.bf16 %v3207, %v3390
  %v3649 = vmax.bf16 %v3208, %v3393
  %v3650 = vmax.bf16 %v3209, %v3396
  %v3651 = vmax.bf16 %v3210, %v3399
  %v3652 = vmax.bf16 %v3211, %v3402
  %v3653 = vmax.bf16 %v3212, %v3405
  %v3654 = vmax.bf16 %v3213, %v3408
  %v3655 = vmax.bf16 %v3214, %v3411
  %v3656 = vmax.bf16 %v3215, %v3414
  %v3657 = vmax.bf16 %v3216, %v3417
  %v3658 = vmax.bf16 %v3217, %v3420
  %v3659 = vmax.bf16 %v3218, %v3423
  %v3660 = vmax.bf16 %v3219, %v3426
  %v3661 = vmax.bf16 %v3220, %v3429
  %v3662 = vmax.bf16 %v3221, %v3432
  %v3663 = vmax.bf16 %v3222, %v3435
  %v3664 = vmax.bf16 %v3223, %v3438
  %v3665 = vmax.bf16 %v3224, %v3441
  %v3666 = vmax.bf16 %v3225, %v3444
  %v3667 = vmax.bf16 %v3226, %v3447
  %v3668 = vmax.bf16 %v3227, %v3450
  %v3669 = vmax.bf16 %v3228, %v3453
  %v3670 = vmax.bf16 %v3229, %v3456
  %v3671 = vmax.bf16 %v3230, %v3459
  %v3672 = vmax.bf16 %v3231, %v3462
  %v3673 = vmax.bf16 %v3232, %v3465
  %v3674 = vmax.bf16 %v3233, %v3468
  %v3675 = vmax.bf16 %v3234, %v3471
  %v3676 = vmax.bf16 %v3235, %v3474
  %v3677 = vmax.bf16 %v3236, %v3477
  %v3678 = vmax.bf16 %v3237, %v3480
  %v3679 = vmax.bf16 %v3238, %v3483
  %v3680 = vmax.bf16 %v3239, %v3486
  %v3681 = vmax.bf16 %v3240, %v3489
  %v3682 = vmax.bf16 %v3241, %v3492
  %v3683 = vmax.bf16 %v3242, %v3495
  %v3684 = vmax.bf16 %v3243, %v3498
  %v3685 = vmax.bf16 %v3244, %v3501
  %v3686 = vmax.bf16 %v3245, %v3504
  %v3687 = vmax.bf16 %v3246, %v3507
  %v3688 = vmax.bf16 %v3247, %v3510
  %v3689 = vmax.bf16 %v3248, %v3513
  %v3690 = vmax.bf16 %v3249, %v3516
  %v3691 = vmax.bf16 %v3250, %v3519
  %v3692 = vmax.bf16 %v3251, %v3522
  %v3693 = vmax.bf16 %v3252, %v3525
  %v3694 = vmax.bf16 %v3253, %v3528
  %v3695 = vmax.bf16 %v3254, %v3531
  %v3696 = vmax.bf16 %v3255, %v3534
  %v3697 = vmax.bf16 %v3256, %v3537
  %v3698 = vmax.bf16 %v3257, %v3540
  %v3699 = vmax.bf16 %v3258, %v3543
  %v3700 = vmax.bf16 %v3259, %v3546
  %v3701 = vmax.bf16 %v3260, %v3549
  %v3702 = vmax.bf16 %v3261, %v3552
  %v3703 = vmax.bf16 %v3262, %v3555
  %v3704 = vmax.bf16 %v3263, %v3558
  %v3705 = vmax.bf16 %v3264, %v3559
  %vm3706 = vcmask 519168
  %3707 = vst.msk [vmem:[%s1] sm:$0xf] %vm3706, %v3633
  %3708 = vst.msk [vmem:[%s1 + $0x4] sm:$0xf] %vm3706, %v3634
  %3709 = vst.msk [vmem:[%s1 + $0x8] sm:$0xf] %vm3706, %v3635
  %3710 = vst.msk [vmem:[%s1 + $0xc] sm:$0xf] %vm3706, %v3636
  %3711 = vst.msk [vmem:[%s1 + $0x10] sm:$0xf] %vm3706, %v3637
  %3712 = vst.msk [vmem:[%s1 + $0x14] sm:$0xf] %vm3706, %v3638
  %3713 = vst.msk [vmem:[%s1 + $0x18] sm:$0xf] %vm3706, %v3639
  %3714 = vst.msk [vmem:[%s1 + $0x1c] sm:$0xf] %vm3706, %v3640
  %3715 = vst.msk [vmem:[%s1 + $0x20] sm:$0xf] %vm3706, %v3641
  %3716 = vst.msk [vmem:[%s1 + $0x24] sm:$0xf] %vm3706, %v3642
  %3717 = vst.msk [vmem:[%s1 + $0x28] sm:$0xf] %vm3706, %v3643
  %3718 = vst.msk [vmem:[%s1 + $0x2c] sm:$0xf] %vm3706, %v3644
  %3719 = vst.msk [vmem:[%s1 + $0x30] sm:$0xf] %vm3706, %v3645
  %3720 = vst.msk [vmem:[%s1 + $0x34] sm:$0xf] %vm3706, %v3646
  %3721 = vst.msk [vmem:[%s1 + $0x38] sm:$0xf] %vm3706, %v3647
  %3722 = vst.msk [vmem:[%s1 + $0x3c] sm:$0xf] %vm3706, %v3648
  %3723 = vst.msk [vmem:[%s1 + $0x40] sm:$0xf] %vm3706, %v3649
  %3724 = vst.msk [vmem:[%s1 + $0x44] sm:$0xf] %vm3706, %v3650
  %3725 = vst.msk [vmem:[%s1 + $0x48] sm:$0xf] %vm3706, %v3651
  %3726 = vst.msk [vmem:[%s1 + $0x4c] sm:$0xf] %vm3706, %v3652
  %3727 = vst.msk [vmem:[%s1 + $0x50] sm:$0xf] %vm3706, %v3653
  %3728 = vst.msk [vmem:[%s1 + $0x54] sm:$0xf] %vm3706, %v3654
  %3729 = vst.msk [vmem:[%s1 + $0x58] sm:$0xf] %vm3706, %v3655
  %3730 = vst.msk [vmem:[%s1 + $0x5c] sm:$0xf] %vm3706, %v3656
  %3731 = vst.msk [vmem:[%s1 + $0x60] sm:$0xf] %vm3706, %v3657
  %3732 = vst.msk [vmem:[%s1 + $0x64] sm:$0xf] %vm3706, %v3658
  %3733 = vst.msk [vmem:[%s1 + $0x68] sm:$0xf] %vm3706, %v3659
  %3734 = vst.msk [vmem:[%s1 + $0x6c] sm:$0xf] %vm3706, %v3660
  %3735 = vst.msk [vmem:[%s1 + $0x70] sm:$0xf] %vm3706, %v3661
  %3736 = vst.msk [vmem:[%s1 + $0x74] sm:$0xf] %vm3706, %v3662
  %3737 = vst.msk [vmem:[%s1 + $0x78] sm:$0xf] %vm3706, %v3663
  %3738 = vst.msk [vmem:[%s1 + $0x7c] sm:$0xf] %vm3706, %v3664
  %3739 = vst.msk [vmem:[%s1 + $0x80] sm:$0xf] %vm3706, %v3665
  %3740 = vst.msk [vmem:[%s1 + $0x84] sm:$0xf] %vm3706, %v3666
  %3741 = vst.msk [vmem:[%s1 + $0x88] sm:$0xf] %vm3706, %v3667
  %3742 = vst.msk [vmem:[%s1 + $0x8c] sm:$0xf] %vm3706, %v3668
  %3743 = vst.msk [vmem:[%s1 + $0x90] sm:$0xf] %vm3706, %v3669
  %3744 = vst.msk [vmem:[%s1 + $0x94] sm:$0xf] %vm3706, %v3670
  %3745 = vst.msk [vmem:[%s1 + $0x98] sm:$0xf] %vm3706, %v3671
  %3746 = vst.msk [vmem:[%s1 + $0x9c] sm:$0xf] %vm3706, %v3672
  %3747 = vst.msk [vmem:[%s1 + $0xa0] sm:$0xf] %vm3706, %v3673
  %3748 = vst.msk [vmem:[%s1 + $0xa4] sm:$0xf] %vm3706, %v3674
  %3749 = vst.msk [vmem:[%s1 + $0xa8] sm:$0xf] %vm3706, %v3675
  %3750 = vst.msk [vmem:[%s1 + $0xac] sm:$0xf] %vm3706, %v3676
  %3751 = vst.msk [vmem:[%s1 + $0xb0] sm:$0xf] %vm3706, %v3677
  %3752 = vst.msk [vmem:[%s1 + $0xb4] sm:$0xf] %vm3706, %v3678
  %3753 = vst.msk [vmem:[%s1 + $0xb8] sm:$0xf] %vm3706, %v3679
  %3754 = vst.msk [vmem:[%s1 + $0xbc] sm:$0xf] %vm3706, %v3680
  %3755 = vst.msk [vmem:[%s1 + $0xc0] sm:$0xf] %vm3706, %v3681
  %3756 = vst.msk [vmem:[%s1 + $0xc4] sm:$0xf] %vm3706, %v3682
  %3757 = vst.msk [vmem:[%s1 + $0xc8] sm:$0xf] %vm3706, %v3683
  %3758 = vst.msk [vmem:[%s1 + $0xcc] sm:$0xf] %vm3706, %v3684
  %3759 = vst.msk [vmem:[%s1 + $0xd0] sm:$0xf] %vm3706, %v3685
  %3760 = vst.msk [vmem:[%s1 + $0xd4] sm:$0xf] %vm3706, %v3686
  %3761 = vst.msk [vmem:[%s1 + $0xd8] sm:$0xf] %vm3706, %v3687
  %3762 = vst.msk [vmem:[%s1 + $0xdc] sm:$0xf] %vm3706, %v3688
  %3763 = vst.msk [vmem:[%s1 + $0xe0] sm:$0xf] %vm3706, %v3689
  %3764 = vst.msk [vmem:[%s1 + $0xe4] sm:$0xf] %vm3706, %v3690
  %3765 = vst.msk [vmem:[%s1 + $0xe8] sm:$0xf] %vm3706, %v3691
  %3766 = vst.msk [vmem:[%s1 + $0xec] sm:$0xf] %vm3706, %v3692
  %3767 = vst.msk [vmem:[%s1 + $0xf0] sm:$0xf] %vm3706, %v3693
  %3768 = vst.msk [vmem:[%s1 + $0xf4] sm:$0xf] %vm3706, %v3694
  %3769 = vst.msk [vmem:[%s1 + $0xf8] sm:$0xf] %vm3706, %v3695
  %3770 = vst.msk [vmem:[%s1 + $0xfc] sm:$0xf] %vm3706, %v3696
  %3771 = vst.msk [vmem:[%s1 + $0x100] sm:$0xf] %vm3706, %v3697
  %3772 = vst.msk [vmem:[%s1 + $0x104] sm:$0xf] %vm3706, %v3698
  %3773 = vst.msk [vmem:[%s1 + $0x108] sm:$0xf] %vm3706, %v3699
  %3774 = vst.msk [vmem:[%s1 + $0x10c] sm:$0xf] %vm3706, %v3700
  %3775 = vst.msk [vmem:[%s1 + $0x110] sm:$0xf] %vm3706, %v3701
  %3776 = vst.msk [vmem:[%s1 + $0x114] sm:$0xf] %vm3706, %v3702
  %3777 = vst.msk [vmem:[%s1 + $0x118] sm:$0xf] %vm3706, %v3703
  %3778 = vst.msk [vmem:[%s1 + $0x11c] sm:$0xf] %vm3706, %v3704
  %vm3779 = vcmask 516096
  %3780 = vst.msk [vmem:[%s1 + $0x120] sm:$0x1] %vm3779, %v3705
  // Predicated region
  $region6: #{_stem_and_pool.3} parent=0 // pred_check
    _
  $region7: #{_stem_and_pool.3} parent=0 // pred_check_branch
    %3782 = sbr.rel (0) target = $region9
  $region8: #{_stem_and_pool.3} parent=0 // pred_region
    _
  $region9: #{_stem_and_pool.3} parent=0 // pred_fallthru
    _
  // Predicated region
  $region10: #{_stem_and_pool.3} parent=0 // pred_check
    _
  $region11: #{_stem_and_pool.3} parent=0 // pred_check_branch
    %3784 = sbr.rel (0) target = $region13
  $region12: #{_stem_and_pool.3} parent=0 // pred_region
    _
  $region13: #{_stem_and_pool.3} parent=0 // pred_fallthru
    _

</llo_original>
